<compile_context>
chip_gen: v7x
topology: tpu7x:2x2x1
jax: 0.10.0
libtpu: 0.0.40
codegen_flags: <defaults>
</compile_context>

<pallas_src>
import math

import jax
import jax.numpy as jnp
from jax import lax
from jax.experimental import pallas as pl
from jax.experimental.pallas import tpu as pltpu

# Hyper-parameters from the PyTorch module.
EMBEDDING_DIM = 100
NUM_CLASSES = 20
HIDDEN_DIM = EMBEDDING_DIM // 2          # 50
CONV_K = 51
CONV_PAD = (CONV_K - 1) // 2             # 25
EPSILON = 1e-13
INF = 1e13
PAD = 1

# Lane-padded sizes (TPU lane width = 128).
EP = 128   # embedding dim padded
CP = 128   # class / conv-channel dim padded
HP = 128   # hidden dim padded
HALO = 32  # sublane-aligned conv halo per side (>= CONV_PAD + 1, multiple of 8)


def leam_kernel(xx_ref, mask_ref, labelT_ref, lnorm_ref, wpair_ref, bconv_ref,
                w1_ref, b1_ref, w2_ref, b2_ref, out_ref, gpad_ref):
    """One batch tile of the leam forward pass.

    xx_ref:    (n_chunks, cb, S, EP) bf16 embedded tokens (lane padded)
    mask_ref:  (n_chunks, cb, S)     f32 (1.0 = valid token)
    labelT_ref:(EP, CP)              bf16 label_vectors.T (zero padded)
    lnorm_ref: (1, CP)               f32 per-class label norms
    wpair_ref: (n_pairs, 2*CP, CP)   bf16 tap-pair packed conv weights
    bconv_ref: (1, CP)               f32 conv bias
    w1/b1, w2/b2:                    padded MLP params (f32)
    out_ref:   (n_chunks, cb, CP)    f32 (real classes in [..., :NUM_CLASSES])
    gpad_ref:  (cb, S + 2*HALO, CP)  f32 VMEM scratch (zero-padded conv input)
    """
    n_chunks, CB, S, EPd = xx_ref.shape
    CPd = labelT_ref.shape[1]
    NP = wpair_ref.shape[0]
    rows = CB * S
    neg_inf = jnp.float32(-INF)

    # Zero only the halo rows, every grid step (safe under "parallel" grid /
    # per-core scratch instances; the center is fully overwritten per chunk).
    gpad_ref[:, :HALO, :] = jnp.zeros((CB, HALO, CPd), jnp.float32)
    gpad_ref[:, HALO + S:, :] = jnp.zeros((CB, HALO, CPd), jnp.float32)

    # Hoisted loop-invariant: mask for the padded (fake) conv channels.
    chan_ok = lax.broadcasted_iota(jnp.int32, (rows, CPd), 1) < NUM_CLASSES

    @pl.loop(0, n_chunks)
    def _(c):
        xx_c = xx_ref[c]                                   # (CB, S, EP) bf16
        xx2 = xx_c.reshape(rows, EPd)

        # ---- cosine similarity vs label vectors (bf16 MXU, f32 accumulate) ----
        g = jnp.dot(xx2, labelT_ref[...], preferred_element_type=jnp.float32)
        xf = xx2.astype(jnp.float32)
        xnorm = jnp.sqrt(jnp.sum(xf * xf, axis=1, keepdims=True))   # (rows, 1)
        g_hat = xnorm * lnorm_ref[...]                              # (rows, CP)
        g_hat = jnp.where(g_hat == 0.0, EPSILON, g_hat)
        g = g * pl.reciprocal(g_hat, approx=True)                   # EUP, no vdiv

        # ---- Conv1d(C, C, K, pad=K//2): aligned scratch write + unrolled
        #      tap-pair matmuls with vreg (carry) accumulation ---------------
        gpad_ref[:, HALO:HALO + S, :] = g.reshape(CB, S, CPd)

        def pair_dot(kp):
            lo = HALO - CONV_PAD + 2 * kp                  # static sublane offset
            s0 = gpad_ref[:, lo:lo + S, :].reshape(rows, CPd)
            s1 = gpad_ref[:, lo + 1:lo + 1 + S, :].reshape(rows, CPd)
            slab = jnp.concatenate([s0, s1], axis=-1).astype(jnp.bfloat16)
            return jnp.dot(slab, wpair_ref[kp],
                           preferred_element_type=jnp.float32)

        acc = pair_dot(0)
        for kp in range(1, NP):                            # fully unrolled
            acc = acc + pair_dot(kp)

        u = jnp.maximum(acc + bconv_ref[...], 0.0)          # (rows, CP)
        u = jnp.where(chan_ok, u, neg_inf)                  # mask padded channels

        # ---- channel max -> masked softmax over the sequence ----
        m = jnp.max(u.reshape(CB, S, CPd), axis=-1)          # (CB, S)
        m = jnp.where(mask_ref[c] > 0.5, m, neg_inf)
        m = m - jnp.max(m, axis=-1, keepdims=True)
        e = jnp.exp(m)
        b_att = e * pl.reciprocal(jnp.sum(e, axis=-1, keepdims=True), approx=True)

        # ---- attention-weighted embedding pool + final MLP ----
        # TODO(synk): push the pool onto the MXU (batched einsum) if VPU/XLU
        # slots ever become binding after the conv fixes.
        z = jnp.sum(xx_c.astype(jnp.float32) * b_att[:, :, None], axis=1)  # (CB, EP)
        h = jnp.dot(z, w1_ref[...], preferred_element_type=jnp.float32) + b1_ref[...]
        h = jnp.maximum(h, 0.0)
        out_ref[c] = jnp.dot(h, w2_ref[...],
                             preferred_element_type=jnp.float32) + b2_ref[...]


def leam_forward(x, mask, emb_table, label_vectors, conv_w, conv_b,
                 w1, b1, w2, b2, *, tb=8):
    """x: (B, S) int32 token ids; mask: (B, S) bool (True = valid)."""
    B, S = x.shape
    C, E = label_vectors.shape
    H = w1.shape[1]
    K = conv_w.shape[-1]
    assert K == CONV_K and C == NUM_CLASSES and E == EMBEDDING_DIM
    assert S % 8 == 0, "keep sequence length a multiple of 8 (sublane tiling)"
    assert HALO % 8 == 0 and HALO >= CONV_PAD + 1

    # Conv row-chunk size: whole batch elements, ~128 rows so the f32 conv
    # accumulator lives in ~16 vregs.
    # TODO(synk): for S >> 128 split the conv row loop from the softmax instead.
    cb = max(1, min(tb, 128 // S)) if S <= 128 else 1
    while tb % cb:
        cb -= 1
    n_chunks = tb // cb

    # ---- one-time parameter packing / zero-padding to lane width 128 ----
    embP = jnp.zeros((emb_table.shape[0], EP), jnp.float32).at[:, :E].set(emb_table)
    labelT = (jnp.zeros((EP, CP), jnp.float32).at[:E, :C]
              .set(label_vectors.T).astype(jnp.bfloat16))
    lnorm = jnp.zeros((1, CP), jnp.float32).at[0, :C].set(
        jnp.sqrt(jnp.sum(label_vectors * label_vectors, axis=-1)))
    # Tap-pair packed conv weights: wpair[j, :CP] = tap 2j, wpair[j, CP:] = tap
    # 2j+1 (zero tap appended for odd K) -> 256-deep contraction per matmul.
    wtap = jnp.transpose(conv_w, (2, 1, 0))                  # (K, ci, co)
    n_pairs = (K + 1) // 2
    wpadded = jnp.zeros((2 * n_pairs, CP, CP), jnp.float32).at[:K, :C, :C].set(wtap)
    wpair = wpadded.reshape(n_pairs, 2 * CP, CP).astype(jnp.bfloat16)
    bconv = jnp.zeros((1, CP), jnp.float32).at[0, :C].set(conv_b)
    w1p = jnp.zeros((EP, HP), jnp.float32).at[:E, :H].set(w1)
    b1p = jnp.zeros((1, HP), jnp.float32).at[0, :H].set(b1)
    w2p = jnp.zeros((HP, CP), jnp.float32).at[:H, :C].set(w2)
    b2p = jnp.zeros((1, CP), jnp.float32).at[0, :C].set(b2)

    # Embedding lookup (glue). Gather from a bf16 table so xx streams at half
    # the HBM bytes and halves its double-buffered VMEM tile.
    xx = jnp.take(embP.astype(jnp.bfloat16), x, axis=0)      # (B, S, EP) bf16
    mask_f = mask.astype(jnp.float32)

    # Pad batch to a multiple of the tile; expose the conv chunk as a leading
    # axis so all in-kernel dynamic indexing is on untiled dims.
    Bp = ((B + tb - 1) // tb) * tb
    if Bp != B:
        xx = jnp.pad(xx, ((0, Bp - B), (0, 0), (0, 0)))
        mask_f = jnp.pad(mask_f, ((0, Bp - B), (0, 0)))
    xx = xx.reshape(Bp // cb, cb, S, EP)
    mask_f = mask_f.reshape(Bp // cb, cb, S)

    const2 = lambda i: (0, 0)
    const3 = lambda i: (0, 0, 0)
    resident = dict(pipeline_mode=pl.Buffered(1))   # grid-constant: single buffer

    out = pl.pallas_call(
        leam_kernel,
        out_shape=jax.ShapeDtypeStruct((Bp // cb, cb, CP), jnp.float32),
        grid_spec=pltpu.PrefetchScalarGridSpec(
            num_scalar_prefetch=0,
            grid=(Bp // tb,),
            in_specs=[
                pl.BlockSpec((n_chunks, cb, S, EP), lambda i: (i, 0, 0, 0)),  # xx
                pl.BlockSpec((n_chunks, cb, S), lambda i: (i, 0, 0)),         # mask
                pl.BlockSpec((EP, CP), const2, **resident),                   # label_vectors.T
                pl.BlockSpec((1, CP), const2, **resident),                    # label norms
                pl.BlockSpec((n_pairs, 2 * CP, CP), const3, **resident),      # conv weights
                pl.BlockSpec((1, CP), const2, **resident),                    # conv bias
                pl.BlockSpec((EP, HP), const2, **resident),                   # w1
                pl.BlockSpec((1, HP), const2, **resident),                    # b1
                pl.BlockSpec((HP, CP), const2, **resident),                   # w2
                pl.BlockSpec((1, CP), const2, **resident),                    # b2
            ],
            out_specs=pl.BlockSpec((n_chunks, cb, CP), lambda i: (i, 0, 0)),
            scratch_shapes=[
                pltpu.VMEM((cb, S + 2 * HALO, CP), jnp.float32),  # padded conv input
            ],
        ),
        compiler_params=pltpu.CompilerParams(
            # TODO(synk): verify on v7x that the batch grid splits across the
            # two TensorCores; if not, switch to pltpu.CORE_PARALLEL / core_map.
            dimension_semantics=("parallel",),
            vmem_limit_bytes=32 * 1024 * 1024,
        ),
    )(xx, mask_f, labelT, lnorm, wpair, bconv, w1p, b1p, w2p, b2p)

    return out.reshape(Bp, CP)[:B, :C]


def reference_forward(x, mask, emb_table, label_vectors, conv_w, conv_b,
                      w1, b1, w2, b2, *, mm_dtype=jnp.float32):
    """Pure-JAX reference mirroring the PyTorch leam.forward.

    With mm_dtype=bfloat16 the MXU-operand values (embeddings, label vectors,
    conv input/weights) are rounded to bf16 first, mirroring the kernel's
    mixed-precision matmuls (accumulation stays f32)."""
    K = conv_w.shape[-1]
    padk = (K - 1) // 2
    hi = lax.Precision.HIGHEST
    xx = jnp.take(emb_table, x, axis=0).astype(mm_dtype).astype(jnp.float32)
    lv = label_vectors.astype(mm_dtype).astype(jnp.float32)
    g = jnp.einsum('ce,bse->bcs', lv, xx, precision=hi)
    lnorm = jnp.sqrt(jnp.sum(label_vectors * label_vectors, axis=-1))
    xnorm = jnp.sqrt(jnp.sum(xx * xx, axis=-1))
    g_hat = jnp.einsum('c,bs->bcs', lnorm, xnorm)
    g_hat = jnp.where(g_hat == 0.0, EPSILON, g_hat)
    g = g / g_hat
    gq = g.astype(mm_dtype).astype(jnp.float32)
    wq = conv_w.astype(mm_dtype).astype(jnp.float32)
    u = lax.conv_general_dilated(gq, wq, window_strides=(1,),
                                 padding=[(padk, padk)],
                                 dimension_numbers=('NCH', 'OIH', 'NCH'),
                                 precision=hi)
    u = jnp.maximum(u + conv_b[None, :, None], 0.0)
    m = jnp.max(u, axis=1)                                          # (B, S)
    m = jnp.where(mask, m, -INF)
    b = jax.nn.softmax(m, axis=-1)
    z = jnp.einsum('bse,bs->be', xx, b, precision=hi)
    h = jnp.maximum(jnp.dot(z, w1, precision=hi) + b1, 0.0)
    return jnp.dot(h, w2, precision=hi) + b2


if __name__ == "__main__":
    key = jax.random.PRNGKey(0)
    ks = jax.random.split(key, 9)

    VOCAB = 64
    B, S = 16, 64                     # batch, sequence length (MAX_LEN scaled down)
    E, C, H = EMBEDDING_DIM, NUM_CLASSES, HIDDEN_DIM

    # Embedding table (padding_idx=PAD row zeroed, like nn.Embedding).
    emb_table = jax.random.normal(ks[0], (VOCAB, E), jnp.float32) * 0.1
    emb_table = emb_table.at[PAD].set(0.0)

    # label_vectors exactly as the module: tile(eye(C)/sqrt(E), E//C) -> (20, 100).
    label_vectors = jnp.tile(jnp.eye(C, dtype=jnp.float32) / math.sqrt(E), (1, E // C))

    # Conv1d(C, C, 51, padding=25) parameters.
    conv_w = jax.random.normal(ks[1], (C, C, CONV_K), jnp.float32) * 0.05
    conv_b = jax.random.normal(ks[2], (C,), jnp.float32) * 0.05

    # final: Linear(100, 50) -> ReLU -> Linear(50, 20), stored (in, out).
    w1 = jax.random.normal(ks[3], (E, H), jnp.float32) * 0.1
    b1 = jax.random.normal(ks[4], (H,), jnp.float32) * 0.1
    w2 = jax.random.normal(ks[5], (H, C), jnp.float32) * 0.1
    b2 = jax.random.normal(ks[6], (C,), jnp.float32) * 0.1

    # Tokens / lengths / mask (pad_first=True style: padding at the front).
    x_len = jax.random.randint(ks[7], (B,), 8, S + 1).astype(jnp.int32)
    positions = jnp.arange(S)[None, :]
    mask = positions >= (S - x_len[:, None])             # (B, S) bool, valid at end
    tokens = jax.random.randint(ks[8], (B, S), 2, VOCAB).astype(jnp.int32)
    x = jnp.where(mask, tokens, PAD)

    out = leam_forward(x, mask, emb_table, label_vectors, conv_w, conv_b,
                       w1, b1, w2, b2, tb=8)
    out = jax.block_until_ready(out)
    assert out.shape == (B, NUM_CLASSES)

    # Tight check vs a reference with the same bf16 rounding at MXU operands.
    ref_mixed = reference_forward(x, mask, emb_table, label_vectors, conv_w,
                                  conv_b, w1, b1, w2, b2, mm_dtype=jnp.bfloat16)
    assert jnp.allclose(out, ref_mixed, atol=5e-3, rtol=5e-3), \
        "mismatch vs bf16-rounded reference"

    # Semantics check vs the full-f32 reference (bf16-level tolerance).
    ref_f32 = reference_forward(x, mask, emb_table, label_vectors, conv_w,
                                conv_b, w1, b1, w2, b2, mm_dtype=jnp.float32)
    assert jnp.allclose(out, ref_f32, atol=2.5e-2, rtol=2.5e-2), \
        "mismatch vs f32 reference"

    print("KERNEL_OK")
</pallas_src>

<mosaic_0001>
module attributes {stable_mosaic.version = 11 : i64} {
  func.func @leam_kernel(%arg0: i32, %arg1: memref<4x2x64x128xbf16, #tpu.memory_space<vmem>>, %arg2: memref<4x2x64xf32, #tpu.memory_space<vmem>>, %arg3: memref<128x128xbf16, #tpu.memory_space<vmem>>, %arg4: memref<1x128xf32, #tpu.memory_space<vmem>>, %arg5: memref<26x256x128xbf16, #tpu.memory_space<vmem>>, %arg6: memref<1x128xf32, #tpu.memory_space<vmem>>, %arg7: memref<128x128xf32, #tpu.memory_space<vmem>>, %arg8: memref<1x128xf32, #tpu.memory_space<vmem>>, %arg9: memref<128x128xf32, #tpu.memory_space<vmem>>, %arg10: memref<1x128xf32, #tpu.memory_space<vmem>>, %arg11: memref<4x2x128xf32, #tpu.memory_space<vmem>>, %arg12: memref<2x128x128xf32, #tpu.memory_space<vmem>>) attributes {dimension_semantics = [#tpu.dimension_semantics<parallel>], iteration_bounds = array<i64: 2>, scalar_prefetch = 0 : i64, scratch_operands = 1 : i64, tpu.core_type = #tpu.core_type<tc>, window_params = [{transform_indices = @transform_0, window_bounds = array<i64: 4, 2, 64, 128>}, {transform_indices = @transform_1, window_bounds = array<i64: 4, 2, 64>}, {pipeline_mode = #tpu.pipeline_mode<synchronous>, transform_indices = @transform_2, window_bounds = array<i64: 128, 128>}, {pipeline_mode = #tpu.pipeline_mode<synchronous>, transform_indices = @transform_3, window_bounds = array<i64: 1, 128>}, {pipeline_mode = #tpu.pipeline_mode<synchronous>, transform_indices = @transform_4, window_bounds = array<i64: 26, 256, 128>}, {pipeline_mode = #tpu.pipeline_mode<synchronous>, transform_indices = @transform_5, window_bounds = array<i64: 1, 128>}, {pipeline_mode = #tpu.pipeline_mode<synchronous>, transform_indices = @transform_6, window_bounds = array<i64: 128, 128>}, {pipeline_mode = #tpu.pipeline_mode<synchronous>, transform_indices = @transform_7, window_bounds = array<i64: 1, 128>}, {pipeline_mode = #tpu.pipeline_mode<synchronous>, transform_indices = @transform_8, window_bounds = array<i64: 128, 128>}, {pipeline_mode = #tpu.pipeline_mode<synchronous>, transform_indices = @transform_9, window_bounds = array<i64: 1, 128>}, {transform_indices = @transform_10, window_bounds = array<i64: 4, 2, 128>}]} {
    %cst = arith.constant 0.000000e+00 : f32
    %0 = vector.broadcast %cst : f32 to vector<2x32x128xf32>
    %c0 = arith.constant 0 : index
    %c0_0 = arith.constant 0 : index
    %c0_1 = arith.constant 0 : index
    %1 = vector.load %arg12[%c0, %c0_0, %c0_1] : memref<2x128x128xf32, #tpu.memory_space<vmem>>, vector<2x32x128xf32>
    tpu.vector_store %arg12[%c0, %c0_0, %c0_1], %0 {strides = array<i32>} : memref<2x128x128xf32, #tpu.memory_space<vmem>>, vector<2x32x128xf32>,
    %cst_2 = arith.constant 0.000000e+00 : f32
    %2 = vector.broadcast %cst_2 : f32 to vector<2x32x128xf32>
    %c0_3 = arith.constant 0 : index
    %c96 = arith.constant 96 : index
    %c0_4 = arith.constant 0 : index
    %3 = vector.load %arg12[%c0_3, %c96, %c0_4] : memref<2x128x128xf32, #tpu.memory_space<vmem>>, vector<2x32x128xf32>
    tpu.vector_store %arg12[%c0_3, %c96, %c0_4], %2 {strides = array<i32>} : memref<2x128x128xf32, #tpu.memory_space<vmem>>, vector<2x32x128xf32>,
    %4 = tpu.iota {dimensions = array<i32: 1>} : vector<128x128xi32>
    %c20_i32 = arith.constant 20 : i32
    %5 = vector.broadcast %c20_i32 : i32 to vector<128x128xi32>
    %6 = arith.cmpi slt, %4, %5 : vector<128x128xi32>
    %cst_5 = arith.constant -9.99999982E+12 : f32
    %c0_i32 = arith.constant 0 : i32
    %c4_i32 = arith.constant 4 : i32
    %7 = arith.addi %c0_i32, %c4_i32 : i32
    %c1_i32 = arith.constant 1 : i32
    scf.for %arg13 = %c0_i32 to %7 step %c1_i32  : i32 {
      %c1_i32_7 = arith.constant 1 : i32
      %8 = arith.muli %arg13, %c1_i32_7 : i32
      %c0_i32_8 = arith.constant 0 : i32
      %9 = arith.addi %c0_i32_8, %8 : i32
      %10 = arith.index_cast %9 : i32 to index
      %c0_9 = arith.constant 0 : index
      %c0_10 = arith.constant 0 : index
      %c0_11 = arith.constant 0 : index
      %11 = vector.load %arg1[%10, %c0_9, %c0_10, %c0_11] : memref<4x2x64x128xbf16, #tpu.memory_space<vmem>>, vector<1x2x64x128xbf16>
      %12 = vector.shape_cast %11 : vector<1x2x64x128xbf16> to vector<2x64x128xbf16>
      %13 = vector.shape_cast %12 : vector<2x64x128xbf16> to vector<128x128xbf16>
      %c0_12 = arith.constant 0 : index
      %c0_13 = arith.constant 0 : index
      %14 = vector.load %arg3[%c0_12, %c0_13] : memref<128x128xbf16, #tpu.memory_space<vmem>>, vector<128x128xbf16>
      %cst_14 = arith.constant dense<0.000000e+00> : vector<128x128xf32>
      %15 = tpu.matmul %13, %14, %cst_14 {dimension_numbers = #tpu.dot_dimension_numbers<[1], [0], [0], [1], [0, 0, 1, 1], [], []>} : vector<128x128xbf16>, vector<128x128xbf16>, vector<128x128xf32> -> vector<128x128xf32>
      %16 = arith.extf %13 : vector<128x128xbf16> to vector<128x128xf32>
      %17 = arith.mulf %16, %16 : vector<128x128xf32>
      %cst_15 = arith.constant dense<0.000000e+00> : vector<128xf32>
      %18 = vector.multi_reduction <add>, %17, %cst_15 [1] : vector<128x128xf32> to vector<128xf32>
      %19 = vector.shape_cast %18 : vector<128xf32> to vector<128x1xf32>
      %20 = math.sqrt %19 : vector<128x1xf32>
      %c0_16 = arith.constant 0 : index
      %c0_17 = arith.constant 0 : index
      %21 = vector.load %arg4[%c0_16, %c0_17] : memref<1x128xf32, #tpu.memory_space<vmem>>, vector<1x128xf32>
      %22 = vector.broadcast %20 : vector<128x1xf32> to vector<128x128xf32>
      %23 = vector.broadcast %21 : vector<1x128xf32> to vector<128x128xf32>
      %24 = arith.mulf %22, %23 : vector<128x128xf32>
      %cst_18 = arith.constant 0.000000e+00 : f32
      %25 = vector.broadcast %cst_18 : f32 to vector<128x128xf32>
      %26 = arith.cmpf oeq, %24, %25 : vector<128x128xf32>
      %cst_19 = arith.constant 9.99999982E-14 : f32
      %27 = vector.broadcast %cst_19 : f32 to vector<128x128xf32>
      %28 = arith.select %26, %27, %24 : vector<128x128xi1>, vector<128x128xf32>
      %29 = tpu.reciprocal %28 {approx = true} : vector<128x128xf32> -> vector<128x128xf32>
      %30 = arith.mulf %15, %29 : vector<128x128xf32>
      %31 = vector.shape_cast %30 : vector<128x128xf32> to vector<2x64x128xf32>
      %c0_20 = arith.constant 0 : index
      %c32 = arith.constant 32 : index
      %c0_21 = arith.constant 0 : index
      %32 = vector.load %arg12[%c0_20, %c32, %c0_21] : memref<2x128x128xf32, #tpu.memory_space<vmem>>, vector<2x64x128xf32>
      tpu.vector_store %arg12[%c0_20, %c32, %c0_21], %31 {strides = array<i32>} : memref<2x128x128xf32, #tpu.memory_space<vmem>>, vector<2x64x128xf32>,
      %c0_22 = arith.constant 0 : index
      %c7 = arith.constant 7 : index
      %c0_23 = arith.constant 0 : index
      %33 = vector.load %arg12[%c0_22, %c7, %c0_23] : memref<2x128x128xf32, #tpu.memory_space<vmem>>, vector<2x64x128xf32>
      %34 = vector.shape_cast %33 : vector<2x64x128xf32> to vector<128x128xf32>
      %c0_24 = arith.constant 0 : index
      %c8 = arith.constant 8 : index
      %c0_25 = arith.constant 0 : index
      %35 = vector.load %arg12[%c0_24, %c8, %c0_25] : memref<2x128x128xf32, #tpu.memory_space<vmem>>, vector<2x64x128xf32>
      %36 = vector.shape_cast %35 : vector<2x64x128xf32> to vector<128x128xf32>
      %37 = tpu.concatenate %34, %36 in 1 : vector<128x128xf32>, vector<128x128xf32> -> vector<128x256xf32>
      %38 = arith.truncf %37 : vector<128x256xf32> to vector<128x256xbf16>
      %c0_26 = arith.constant 0 : index
      %c0_27 = arith.constant 0 : index
      %c0_28 = arith.constant 0 : index
      %39 = vector.load %arg5[%c0_26, %c0_27, %c0_28] : memref<26x256x128xbf16, #tpu.memory_space<vmem>>, vector<1x256x128xbf16>
      %40 = vector.shape_cast %39 : vector<1x256x128xbf16> to vector<256x128xbf16>
      %cst_29 = arith.constant dense<0.000000e+00> : vector<128x128xf32>
      %41 = tpu.matmul %38, %40, %cst_29 {dimension_numbers = #tpu.dot_dimension_numbers<[1], [0], [0], [1], [0, 0, 1, 1], [], []>} : vector<128x256xbf16>, vector<256x128xbf16>, vector<128x128xf32> -> vector<128x128xf32>
      %c0_30 = arith.constant 0 : index
      %c9 = arith.constant 9 : index
      %c0_31 = arith.constant 0 : index
      %42 = vector.load %arg12[%c0_30, %c9, %c0_31] : memref<2x128x128xf32, #tpu.memory_space<vmem>>, vector<2x64x128xf32>
      %43 = vector.shape_cast %42 : vector<2x64x128xf32> to vector<128x128xf32>
      %c0_32 = arith.constant 0 : index
      %c10 = arith.constant 10 : index
      %c0_33 = arith.constant 0 : index
      %44 = vector.load %arg12[%c0_32, %c10, %c0_33] : memref<2x128x128xf32, #tpu.memory_space<vmem>>, vector<2x64x128xf32>
      %45 = vector.shape_cast %44 : vector<2x64x128xf32> to vector<128x128xf32>
      %46 = tpu.concatenate %43, %45 in 1 : vector<128x128xf32>, vector<128x128xf32> -> vector<128x256xf32>
      %47 = arith.truncf %46 : vector<128x256xf32> to vector<128x256xbf16>
      %c1 = arith.constant 1 : index
      %c0_34 = arith.constant 0 : index
      %c0_35 = arith.constant 0 : index
      %48 = vector.load %arg5[%c1, %c0_34, %c0_35] : memref<26x256x128xbf16, #tpu.memory_space<vmem>>, vector<1x256x128xbf16>
      %49 = vector.shape_cast %48 : vector<1x256x128xbf16> to vector<256x128xbf16>
      %cst_36 = arith.constant dense<0.000000e+00> : vector<128x128xf32>
      %50 = tpu.matmul %47, %49, %cst_36 {dimension_numbers = #tpu.dot_dimension_numbers<[1], [0], [0], [1], [0, 0, 1, 1], [], []>} : vector<128x256xbf16>, vector<256x128xbf16>, vector<128x128xf32> -> vector<128x128xf32>
      %51 = arith.addf %41, %50 : vector<128x128xf32>
      %c0_37 = arith.constant 0 : index
      %c11 = arith.constant 11 : index
      %c0_38 = arith.constant 0 : index
      %52 = vector.load %arg12[%c0_37, %c11, %c0_38] : memref<2x128x128xf32, #tpu.memory_space<vmem>>, vector<2x64x128xf32>
      %53 = vector.shape_cast %52 : vector<2x64x128xf32> to vector<128x128xf32>
      %c0_39 = arith.constant 0 : index
      %c12 = arith.constant 12 : index
      %c0_40 = arith.constant 0 : index
      %54 = vector.load %arg12[%c0_39, %c12, %c0_40] : memref<2x128x128xf32, #tpu.memory_space<vmem>>, vector<2x64x128xf32>
      %55 = vector.shape_cast %54 : vector<2x64x128xf32> to vector<128x128xf32>
      %56 = tpu.concatenate %53, %55 in 1 : vector<128x128xf32>, vector<128x128xf32> -> vector<128x256xf32>
      %57 = arith.truncf %56 : vector<128x256xf32> to vector<128x256xbf16>
      %c2 = arith.constant 2 : index
      %c0_41 = arith.constant 0 : index
      %c0_42 = arith.constant 0 : index
      %58 = vector.load %arg5[%c2, %c0_41, %c0_42] : memref<26x256x128xbf16, #tpu.memory_space<vmem>>, vector<1x256x128xbf16>
      %59 = vector.shape_cast %58 : vector<1x256x128xbf16> to vector<256x128xbf16>
      %cst_43 = arith.constant dense<0.000000e+00> : vector<128x128xf32>
      %60 = tpu.matmul %57, %59, %cst_43 {dimension_numbers = #tpu.dot_dimension_numbers<[1], [0], [0], [1], [0, 0, 1, 1], [], []>} : vector<128x256xbf16>, vector<256x128xbf16>, vector<128x128xf32> -> vector<128x128xf32>
      %61 = arith.addf %51, %60 : vector<128x128xf32>
      %c0_44 = arith.constant 0 : index
      %c13 = arith.constant 13 : index
      %c0_45 = arith.constant 0 : index
      %62 = vector.load %arg12[%c0_44, %c13, %c0_45] : memref<2x128x128xf32, #tpu.memory_space<vmem>>, vector<2x64x128xf32>
      %63 = vector.shape_cast %62 : vector<2x64x128xf32> to vector<128x128xf32>
      %c0_46 = arith.constant 0 : index
      %c14 = arith.constant 14 : index
      %c0_47 = arith.constant 0 : index
      %64 = vector.load %arg12[%c0_46, %c14, %c0_47] : memref<2x128x128xf32, #tpu.memory_space<vmem>>, vector<2x64x128xf32>
      %65 = vector.shape_cast %64 : vector<2x64x128xf32> to vector<128x128xf32>
      %66 = tpu.concatenate %63, %65 in 1 : vector<128x128xf32>, vector<128x128xf32> -> vector<128x256xf32>
      %67 = arith.truncf %66 : vector<128x256xf32> to vector<128x256xbf16>
      %c3 = arith.constant 3 : index
      %c0_48 = arith.constant 0 : index
      %c0_49 = arith.constant 0 : index
      %68 = vector.load %arg5[%c3, %c0_48, %c0_49] : memref<26x256x128xbf16, #tpu.memory_space<vmem>>, vector<1x256x128xbf16>
      %69 = vector.shape_cast %68 : vector<1x256x128xbf16> to vector<256x128xbf16>
      %cst_50 = arith.constant dense<0.000000e+00> : vector<128x128xf32>
      %70 = tpu.matmul %67, %69, %cst_50 {dimension_numbers = #tpu.dot_dimension_numbers<[1], [0], [0], [1], [0, 0, 1, 1], [], []>} : vector<128x256xbf16>, vector<256x128xbf16>, vector<128x128xf32> -> vector<128x128xf32>
      %71 = arith.addf %61, %70 : vector<128x128xf32>
      %c0_51 = arith.constant 0 : index
      %c15 = arith.constant 15 : index
      %c0_52 = arith.constant 0 : index
      %72 = vector.load %arg12[%c0_51, %c15, %c0_52] : memref<2x128x128xf32, #tpu.memory_space<vmem>>, vector<2x64x128xf32>
      %73 = vector.shape_cast %72 : vector<2x64x128xf32> to vector<128x128xf32>
      %c0_53 = arith.constant 0 : index
      %c16 = arith.constant 16 : index
      %c0_54 = arith.constant 0 : index
      %74 = vector.load %arg12[%c0_53, %c16, %c0_54] : memref<2x128x128xf32, #tpu.memory_space<vmem>>, vector<2x64x128xf32>
      %75 = vector.shape_cast %74 : vector<2x64x128xf32> to vector<128x128xf32>
      %76 = tpu.concatenate %73, %75 in 1 : vector<128x128xf32>, vector<128x128xf32> -> vector<128x256xf32>
      %77 = arith.truncf %76 : vector<128x256xf32> to vector<128x256xbf16>
      %c4 = arith.constant 4 : index
      %c0_55 = arith.constant 0 : index
      %c0_56 = arith.constant 0 : index
      %78 = vector.load %arg5[%c4, %c0_55, %c0_56] : memref<26x256x128xbf16, #tpu.memory_space<vmem>>, vector<1x256x128xbf16>
      %79 = vector.shape_cast %78 : vector<1x256x128xbf16> to vector<256x128xbf16>
      %cst_57 = arith.constant dense<0.000000e+00> : vector<128x128xf32>
      %80 = tpu.matmul %77, %79, %cst_57 {dimension_numbers = #tpu.dot_dimension_numbers<[1], [0], [0], [1], [0, 0, 1, 1], [], []>} : vector<128x256xbf16>, vector<256x128xbf16>, vector<128x128xf32> -> vector<128x128xf32>
      %81 = arith.addf %71, %80 : vector<128x128xf32>
      %c0_58 = arith.constant 0 : index
      %c17 = arith.constant 17 : index
      %c0_59 = arith.constant 0 : index
      %82 = vector.load %arg12[%c0_58, %c17, %c0_59] : memref<2x128x128xf32, #tpu.memory_space<vmem>>, vector<2x64x128xf32>
      %83 = vector.shape_cast %82 : vector<2x64x128xf32> to vector<128x128xf32>
      %c0_60 = arith.constant 0 : index
      %c18 = arith.constant 18 : index
      %c0_61 = arith.constant 0 : index
      %84 = vector.load %arg12[%c0_60, %c18, %c0_61] : memref<2x128x128xf32, #tpu.memory_space<vmem>>, vector<2x64x128xf32>
      %85 = vector.shape_cast %84 : vector<2x64x128xf32> to vector<128x128xf32>
      %86 = tpu.concatenate %83, %85 in 1 : vector<128x128xf32>, vector<128x128xf32> -> vector<128x256xf32>
      %87 = arith.truncf %86 : vector<128x256xf32> to vector<128x256xbf16>
      %c5 = arith.constant 5 : index
      %c0_62 = arith.constant 0 : index
      %c0_63 = arith.constant 0 : index
      %88 = vector.load %arg5[%c5, %c0_62, %c0_63] : memref<26x256x128xbf16, #tpu.memory_space<vmem>>, vector<1x256x128xbf16>
      %89 = vector.shape_cast %88 : vector<1x256x128xbf16> to vector<256x128xbf16>
      %cst_64 = arith.constant dense<0.000000e+00> : vector<128x128xf32>
      %90 = tpu.matmul %87, %89, %cst_64 {dimension_numbers = #tpu.dot_dimension_numbers<[1], [0], [0], [1], [0, 0, 1, 1], [], []>} : vector<128x256xbf16>, vector<256x128xbf16>, vector<128x128xf32> -> vector<128x128xf32>
      %91 = arith.addf %81, %90 : vector<128x128xf32>
      %c0_65 = arith.constant 0 : index
      %c19 = arith.constant 19 : index
      %c0_66 = arith.constant 0 : index
      %92 = vector.load %arg12[%c0_65, %c19, %c0_66] : memref<2x128x128xf32, #tpu.memory_space<vmem>>, vector<2x64x128xf32>
      %93 = vector.shape_cast %92 : vector<2x64x128xf32> to vector<128x128xf32>
      %c0_67 = arith.constant 0 : index
      %c20 = arith.constant 20 : index
      %c0_68 = arith.constant 0 : index
      %94 = vector.load %arg12[%c0_67, %c20, %c0_68] : memref<2x128x128xf32, #tpu.memory_space<vmem>>, vector<2x64x128xf32>
      %95 = vector.shape_cast %94 : vector<2x64x128xf32> to vector<128x128xf32>
      %96 = tpu.concatenate %93, %95 in 1 : vector<128x128xf32>, vector<128x128xf32> -> vector<128x256xf32>
      %97 = arith.truncf %96 : vector<128x256xf32> to vector<128x256xbf16>
      %c6 = arith.constant 6 : index
      %c0_69 = arith.constant 0 : index
      %c0_70 = arith.constant 0 : index
      %98 = vector.load %arg5[%c6, %c0_69, %c0_70] : memref<26x256x128xbf16, #tpu.memory_space<vmem>>, vector<1x256x128xbf16>
      %99 = vector.shape_cast %98 : vector<1x256x128xbf16> to vector<256x128xbf16>
      %cst_71 = arith.constant dense<0.000000e+00> : vector<128x128xf32>
      %100 = tpu.matmul %97, %99, %cst_71 {dimension_numbers = #tpu.dot_dimension_numbers<[1], [0], [0], [1], [0, 0, 1, 1], [], []>} : vector<128x256xbf16>, vector<256x128xbf16>, vector<128x128xf32> -> vector<128x128xf32>
      %101 = arith.addf %91, %100 : vector<128x128xf32>
      %c0_72 = arith.constant 0 : index
      %c21 = arith.constant 21 : index
      %c0_73 = arith.constant 0 : index
      %102 = vector.load %arg12[%c0_72, %c21, %c0_73] : memref<2x128x128xf32, #tpu.memory_space<vmem>>, vector<2x64x128xf32>
      %103 = vector.shape_cast %102 : vector<2x64x128xf32> to vector<128x128xf32>
      %c0_74 = arith.constant 0 : index
      %c22 = arith.constant 22 : index
      %c0_75 = arith.constant 0 : index
      %104 = vector.load %arg12[%c0_74, %c22, %c0_75] : memref<2x128x128xf32, #tpu.memory_space<vmem>>, vector<2x64x128xf32>
      %105 = vector.shape_cast %104 : vector<2x64x128xf32> to vector<128x128xf32>
      %106 = tpu.concatenate %103, %105 in 1 : vector<128x128xf32>, vector<128x128xf32> -> vector<128x256xf32>
      %107 = arith.truncf %106 : vector<128x256xf32> to vector<128x256xbf16>
      %c7_76 = arith.constant 7 : index
      %c0_77 = arith.constant 0 : index
      %c0_78 = arith.constant 0 : index
      %108 = vector.load %arg5[%c7_76, %c0_77, %c0_78] : memref<26x256x128xbf16, #tpu.memory_space<vmem>>, vector<1x256x128xbf16>
      %109 = vector.shape_cast %108 : vector<1x256x128xbf16> to vector<256x128xbf16>
      %cst_79 = arith.constant dense<0.000000e+00> : vector<128x128xf32>
      %110 = tpu.matmul %107, %109, %cst_79 {dimension_numbers = #tpu.dot_dimension_numbers<[1], [0], [0], [1], [0, 0, 1, 1], [], []>} : vector<128x256xbf16>, vector<256x128xbf16>, vector<128x128xf32> -> vector<128x128xf32>
      %111 = arith.addf %101, %110 : vector<128x128xf32>
      %c0_80 = arith.constant 0 : index
      %c23 = arith.constant 23 : index
      %c0_81 = arith.constant 0 : index
      %112 = vector.load %arg12[%c0_80, %c23, %c0_81] : memref<2x128x128xf32, #tpu.memory_space<vmem>>, vector<2x64x128xf32>
      %113 = vector.shape_cast %112 : vector<2x64x128xf32> to vector<128x128xf32>
      %c0_82 = arith.constant 0 : index
      %c24 = arith.constant 24 : index
      %c0_83 = arith.constant 0 : index
      %114 = vector.load %arg12[%c0_82, %c24, %c0_83] : memref<2x128x128xf32, #tpu.memory_space<vmem>>, vector<2x64x128xf32>
      %115 = vector.shape_cast %114 : vector<2x64x128xf32> to vector<128x128xf32>
      %116 = tpu.concatenate %113, %115 in 1 : vector<128x128xf32>, vector<128x128xf32> -> vector<128x256xf32>
      %117 = arith.truncf %116 : vector<128x256xf32> to vector<128x256xbf16>
      %c8_84 = arith.constant 8 : index
      %c0_85 = arith.constant 0 : index
      %c0_86 = arith.constant 0 : index
      %118 = vector.load %arg5[%c8_84, %c0_85, %c0_86] : memref<26x256x128xbf16, #tpu.memory_space<vmem>>, vector<1x256x128xbf16>
      %119 = vector.shape_cast %118 : vector<1x256x128xbf16> to vector<256x128xbf16>
      %cst_87 = arith.constant dense<0.000000e+00> : vector<128x128xf32>
      %120 = tpu.matmul %117, %119, %cst_87 {dimension_numbers = #tpu.dot_dimension_numbers<[1], [0], [0], [1], [0, 0, 1, 1], [], []>} : vector<128x256xbf16>, vector<256x128xbf16>, vector<128x128xf32> -> vector<128x128xf32>
      %121 = arith.addf %111, %120 : vector<128x128xf32>
      %c0_88 = arith.constant 0 : index
      %c25 = arith.constant 25 : index
      %c0_89 = arith.constant 0 : index
      %122 = vector.load %arg12[%c0_88, %c25, %c0_89] : memref<2x128x128xf32, #tpu.memory_space<vmem>>, vector<2x64x128xf32>
      %123 = vector.shape_cast %122 : vector<2x64x128xf32> to vector<128x128xf32>
      %c0_90 = arith.constant 0 : index
      %c26 = arith.constant 26 : index
      %c0_91 = arith.constant 0 : index
      %124 = vector.load %arg12[%c0_90, %c26, %c0_91] : memref<2x128x128xf32, #tpu.memory_space<vmem>>, vector<2x64x128xf32>
      %125 = vector.shape_cast %124 : vector<2x64x128xf32> to vector<128x128xf32>
      %126 = tpu.concatenate %123, %125 in 1 : vector<128x128xf32>, vector<128x128xf32> -> vector<128x256xf32>
      %127 = arith.truncf %126 : vector<128x256xf32> to vector<128x256xbf16>
      %c9_92 = arith.constant 9 : index
      %c0_93 = arith.constant 0 : index
      %c0_94 = arith.constant 0 : index
      %128 = vector.load %arg5[%c9_92, %c0_93, %c0_94] : memref<26x256x128xbf16, #tpu.memory_space<vmem>>, vector<1x256x128xbf16>
      %129 = vector.shape_cast %128 : vector<1x256x128xbf16> to vector<256x128xbf16>
      %cst_95 = arith.constant dense<0.000000e+00> : vector<128x128xf32>
      %130 = tpu.matmul %127, %129, %cst_95 {dimension_numbers = #tpu.dot_dimension_numbers<[1], [0], [0], [1], [0, 0, 1, 1], [], []>} : vector<128x256xbf16>, vector<256x128xbf16>, vector<128x128xf32> -> vector<128x128xf32>
      %131 = arith.addf %121, %130 : vector<128x128xf32>
      %c0_96 = arith.constant 0 : index
      %c27 = arith.constant 27 : index
      %c0_97 = arith.constant 0 : index
      %132 = vector.load %arg12[%c0_96, %c27, %c0_97] : memref<2x128x128xf32, #tpu.memory_space<vmem>>, vector<2x64x128xf32>
      %133 = vector.shape_cast %132 : vector<2x64x128xf32> to vector<128x128xf32>
      %c0_98 = arith.constant 0 : index
      %c28 = arith.constant 28 : index
      %c0_99 = arith.constant 0 : index
      %134 = vector.load %arg12[%c0_98, %c28, %c0_99] : memref<2x128x128xf32, #tpu.memory_space<vmem>>, vector<2x64x128xf32>
      %135 = vector.shape_cast %134 : vector<2x64x128xf32> to vector<128x128xf32>
      %136 = tpu.concatenate %133, %135 in 1 : vector<128x128xf32>, vector<128x128xf32> -> vector<128x256xf32>
      %137 = arith.truncf %136 : vector<128x256xf32> to vector<128x256xbf16>
      %c10_100 = arith.constant 10 : index
      %c0_101 = arith.constant 0 : index
      %c0_102 = arith.constant 0 : index
      %138 = vector.load %arg5[%c10_100, %c0_101, %c0_102] : memref<26x256x128xbf16, #tpu.memory_space<vmem>>, vector<1x256x128xbf16>
      %139 = vector.shape_cast %138 : vector<1x256x128xbf16> to vector<256x128xbf16>
      %cst_103 = arith.constant dense<0.000000e+00> : vector<128x128xf32>
      %140 = tpu.matmul %137, %139, %cst_103 {dimension_numbers = #tpu.dot_dimension_numbers<[1], [0], [0], [1], [0, 0, 1, 1], [], []>} : vector<128x256xbf16>, vector<256x128xbf16>, vector<128x128xf32> -> vector<128x128xf32>
      %141 = arith.addf %131, %140 : vector<128x128xf32>
      %c0_104 = arith.constant 0 : index
      %c29 = arith.constant 29 : index
      %c0_105 = arith.constant 0 : index
      %142 = vector.load %arg12[%c0_104, %c29, %c0_105] : memref<2x128x128xf32, #tpu.memory_space<vmem>>, vector<2x64x128xf32>
      %143 = vector.shape_cast %142 : vector<2x64x128xf32> to vector<128x128xf32>
      %c0_106 = arith.constant 0 : index
      %c30 = arith.constant 30 : index
      %c0_107 = arith.constant 0 : index
      %144 = vector.load %arg12[%c0_106, %c30, %c0_107] : memref<2x128x128xf32, #tpu.memory_space<vmem>>, vector<2x64x128xf32>
      %145 = vector.shape_cast %144 : vector<2x64x128xf32> to vector<128x128xf32>
      %146 = tpu.concatenate %143, %145 in 1 : vector<128x128xf32>, vector<128x128xf32> -> vector<128x256xf32>
      %147 = arith.truncf %146 : vector<128x256xf32> to vector<128x256xbf16>
      %c11_108 = arith.constant 11 : index
      %c0_109 = arith.constant 0 : index
      %c0_110 = arith.constant 0 : index
      %148 = vector.load %arg5[%c11_108, %c0_109, %c0_110] : memref<26x256x128xbf16, #tpu.memory_space<vmem>>, vector<1x256x128xbf16>
      %149 = vector.shape_cast %148 : vector<1x256x128xbf16> to vector<256x128xbf16>
      %cst_111 = arith.constant dense<0.000000e+00> : vector<128x128xf32>
      %150 = tpu.matmul %147, %149, %cst_111 {dimension_numbers = #tpu.dot_dimension_numbers<[1], [0], [0], [1], [0, 0, 1, 1], [], []>} : vector<128x256xbf16>, vector<256x128xbf16>, vector<128x128xf32> -> vector<128x128xf32>
      %151 = arith.addf %141, %150 : vector<128x128xf32>
      %c0_112 = arith.constant 0 : index
      %c31 = arith.constant 31 : index
      %c0_113 = arith.constant 0 : index
      %152 = vector.load %arg12[%c0_112, %c31, %c0_113] : memref<2x128x128xf32, #tpu.memory_space<vmem>>, vector<2x64x128xf32>
      %153 = vector.shape_cast %152 : vector<2x64x128xf32> to vector<128x128xf32>
      %c0_114 = arith.constant 0 : index
      %c32_115 = arith.constant 32 : index
      %c0_116 = arith.constant 0 : index
      %154 = vector.load %arg12[%c0_114, %c32_115, %c0_116] : memref<2x128x128xf32, #tpu.memory_space<vmem>>, vector<2x64x128xf32>
      %155 = vector.shape_cast %154 : vector<2x64x128xf32> to vector<128x128xf32>
      %156 = tpu.concatenate %153, %155 in 1 : vector<128x128xf32>, vector<128x128xf32> -> vector<128x256xf32>
      %157 = arith.truncf %156 : vector<128x256xf32> to vector<128x256xbf16>
      %c12_117 = arith.constant 12 : index
      %c0_118 = arith.constant 0 : index
      %c0_119 = arith.constant 0 : index
      %158 = vector.load %arg5[%c12_117, %c0_118, %c0_119] : memref<26x256x128xbf16, #tpu.memory_space<vmem>>, vector<1x256x128xbf16>
      %159 = vector.shape_cast %158 : vector<1x256x128xbf16> to vector<256x128xbf16>
      %cst_120 = arith.constant dense<0.000000e+00> : vector<128x128xf32>
      %160 = tpu.matmul %157, %159, %cst_120 {dimension_numbers = #tpu.dot_dimension_numbers<[1], [0], [0], [1], [0, 0, 1, 1], [], []>} : vector<128x256xbf16>, vector<256x128xbf16>, vector<128x128xf32> -> vector<128x128xf32>
      %161 = arith.addf %151, %160 : vector<128x128xf32>
      %c0_121 = arith.constant 0 : index
      %c33 = arith.constant 33 : index
      %c0_122 = arith.constant 0 : index
      %162 = vector.load %arg12[%c0_121, %c33, %c0_122] : memref<2x128x128xf32, #tpu.memory_space<vmem>>, vector<2x64x128xf32>
      %163 = vector.shape_cast %162 : vector<2x64x128xf32> to vector<128x128xf32>
      %c0_123 = arith.constant 0 : index
      %c34 = arith.constant 34 : index
      %c0_124 = arith.constant 0 : index
      %164 = vector.load %arg12[%c0_123, %c34, %c0_124] : memref<2x128x128xf32, #tpu.memory_space<vmem>>, vector<2x64x128xf32>
      %165 = vector.shape_cast %164 : vector<2x64x128xf32> to vector<128x128xf32>
      %166 = tpu.concatenate %163, %165 in 1 : vector<128x128xf32>, vector<128x128xf32> -> vector<128x256xf32>
      %167 = arith.truncf %166 : vector<128x256xf32> to vector<128x256xbf16>
      %c13_125 = arith.constant 13 : index
      %c0_126 = arith.constant 0 : index
      %c0_127 = arith.constant 0 : index
      %168 = vector.load %arg5[%c13_125, %c0_126, %c0_127] : memref<26x256x128xbf16, #tpu.memory_space<vmem>>, vector<1x256x128xbf16>
      %169 = vector.shape_cast %168 : vector<1x256x128xbf16> to vector<256x128xbf16>
      %cst_128 = arith.constant dense<0.000000e+00> : vector<128x128xf32>
      %170 = tpu.matmul %167, %169, %cst_128 {dimension_numbers = #tpu.dot_dimension_numbers<[1], [0], [0], [1], [0, 0, 1, 1], [], []>} : vector<128x256xbf16>, vector<256x128xbf16>, vector<128x128xf32> -> vector<128x128xf32>
      %171 = arith.addf %161, %170 : vector<128x128xf32>
      %c0_129 = arith.constant 0 : index
      %c35 = arith.constant 35 : index
      %c0_130 = arith.constant 0 : index
      %172 = vector.load %arg12[%c0_129, %c35, %c0_130] : memref<2x128x128xf32, #tpu.memory_space<vmem>>, vector<2x64x128xf32>
      %173 = vector.shape_cast %172 : vector<2x64x128xf32> to vector<128x128xf32>
      %c0_131 = arith.constant 0 : index
      %c36 = arith.constant 36 : index
      %c0_132 = arith.constant 0 : index
      %174 = vector.load %arg12[%c0_131, %c36, %c0_132] : memref<2x128x128xf32, #tpu.memory_space<vmem>>, vector<2x64x128xf32>
      %175 = vector.shape_cast %174 : vector<2x64x128xf32> to vector<128x128xf32>
      %176 = tpu.concatenate %173, %175 in 1 : vector<128x128xf32>, vector<128x128xf32> -> vector<128x256xf32>
      %177 = arith.truncf %176 : vector<128x256xf32> to vector<128x256xbf16>
      %c14_133 = arith.constant 14 : index
      %c0_134 = arith.constant 0 : index
      %c0_135 = arith.constant 0 : index
      %178 = vector.load %arg5[%c14_133, %c0_134, %c0_135] : memref<26x256x128xbf16, #tpu.memory_space<vmem>>, vector<1x256x128xbf16>
      %179 = vector.shape_cast %178 : vector<1x256x128xbf16> to vector<256x128xbf16>
      %cst_136 = arith.constant dense<0.000000e+00> : vector<128x128xf32>
      %180 = tpu.matmul %177, %179, %cst_136 {dimension_numbers = #tpu.dot_dimension_numbers<[1], [0], [0], [1], [0, 0, 1, 1], [], []>} : vector<128x256xbf16>, vector<256x128xbf16>, vector<128x128xf32> -> vector<128x128xf32>
      %181 = arith.addf %171, %180 : vector<128x128xf32>
      %c0_137 = arith.constant 0 : index
      %c37 = arith.constant 37 : index
      %c0_138 = arith.constant 0 : index
      %182 = vector.load %arg12[%c0_137, %c37, %c0_138] : memref<2x128x128xf32, #tpu.memory_space<vmem>>, vector<2x64x128xf32>
      %183 = vector.shape_cast %182 : vector<2x64x128xf32> to vector<128x128xf32>
      %c0_139 = arith.constant 0 : index
      %c38 = arith.constant 38 : index
      %c0_140 = arith.constant 0 : index
      %184 = vector.load %arg12[%c0_139, %c38, %c0_140] : memref<2x128x128xf32, #tpu.memory_space<vmem>>, vector<2x64x128xf32>
      %185 = vector.shape_cast %184 : vector<2x64x128xf32> to vector<128x128xf32>
      %186 = tpu.concatenate %183, %185 in 1 : vector<128x128xf32>, vector<128x128xf32> -> vector<128x256xf32>
      %187 = arith.truncf %186 : vector<128x256xf32> to vector<128x256xbf16>
      %c15_141 = arith.constant 15 : index
      %c0_142 = arith.constant 0 : index
      %c0_143 = arith.constant 0 : index
      %188 = vector.load %arg5[%c15_141, %c0_142, %c0_143] : memref<26x256x128xbf16, #tpu.memory_space<vmem>>, vector<1x256x128xbf16>
      %189 = vector.shape_cast %188 : vector<1x256x128xbf16> to vector<256x128xbf16>
      %cst_144 = arith.constant dense<0.000000e+00> : vector<128x128xf32>
      %190 = tpu.matmul %187, %189, %cst_144 {dimension_numbers = #tpu.dot_dimension_numbers<[1], [0], [0], [1], [0, 0, 1, 1], [], []>} : vector<128x256xbf16>, vector<256x128xbf16>, vector<128x128xf32> -> vector<128x128xf32>
      %191 = arith.addf %181, %190 : vector<128x128xf32>
      %c0_145 = arith.constant 0 : index
      %c39 = arith.constant 39 : index
      %c0_146 = arith.constant 0 : index
      %192 = vector.load %arg12[%c0_145, %c39, %c0_146] : memref<2x128x128xf32, #tpu.memory_space<vmem>>, vector<2x64x128xf32>
      %193 = vector.shape_cast %192 : vector<2x64x128xf32> to vector<128x128xf32>
      %c0_147 = arith.constant 0 : index
      %c40 = arith.constant 40 : index
      %c0_148 = arith.constant 0 : index
      %194 = vector.load %arg12[%c0_147, %c40, %c0_148] : memref<2x128x128xf32, #tpu.memory_space<vmem>>, vector<2x64x128xf32>
      %195 = vector.shape_cast %194 : vector<2x64x128xf32> to vector<128x128xf32>
      %196 = tpu.concatenate %193, %195 in 1 : vector<128x128xf32>, vector<128x128xf32> -> vector<128x256xf32>
      %197 = arith.truncf %196 : vector<128x256xf32> to vector<128x256xbf16>
      %c16_149 = arith.constant 16 : index
      %c0_150 = arith.constant 0 : index
      %c0_151 = arith.constant 0 : index
      %198 = vector.load %arg5[%c16_149, %c0_150, %c0_151] : memref<26x256x128xbf16, #tpu.memory_space<vmem>>, vector<1x256x128xbf16>
      %199 = vector.shape_cast %198 : vector<1x256x128xbf16> to vector<256x128xbf16>
      %cst_152 = arith.constant dense<0.000000e+00> : vector<128x128xf32>
      %200 = tpu.matmul %197, %199, %cst_152 {dimension_numbers = #tpu.dot_dimension_numbers<[1], [0], [0], [1], [0, 0, 1, 1], [], []>} : vector<128x256xbf16>, vector<256x128xbf16>, vector<128x128xf32> -> vector<128x128xf32>
      %201 = arith.addf %191, %200 : vector<128x128xf32>
      %c0_153 = arith.constant 0 : index
      %c41 = arith.constant 41 : index
      %c0_154 = arith.constant 0 : index
      %202 = vector.load %arg12[%c0_153, %c41, %c0_154] : memref<2x128x128xf32, #tpu.memory_space<vmem>>, vector<2x64x128xf32>
      %203 = vector.shape_cast %202 : vector<2x64x128xf32> to vector<128x128xf32>
      %c0_155 = arith.constant 0 : index
      %c42 = arith.constant 42 : index
      %c0_156 = arith.constant 0 : index
      %204 = vector.load %arg12[%c0_155, %c42, %c0_156] : memref<2x128x128xf32, #tpu.memory_space<vmem>>, vector<2x64x128xf32>
      %205 = vector.shape_cast %204 : vector<2x64x128xf32> to vector<128x128xf32>
      %206 = tpu.concatenate %203, %205 in 1 : vector<128x128xf32>, vector<128x128xf32> -> vector<128x256xf32>
      %207 = arith.truncf %206 : vector<128x256xf32> to vector<128x256xbf16>
      %c17_157 = arith.constant 17 : index
      %c0_158 = arith.constant 0 : index
      %c0_159 = arith.constant 0 : index
      %208 = vector.load %arg5[%c17_157, %c0_158, %c0_159] : memref<26x256x128xbf16, #tpu.memory_space<vmem>>, vector<1x256x128xbf16>
      %209 = vector.shape_cast %208 : vector<1x256x128xbf16> to vector<256x128xbf16>
      %cst_160 = arith.constant dense<0.000000e+00> : vector<128x128xf32>
      %210 = tpu.matmul %207, %209, %cst_160 {dimension_numbers = #tpu.dot_dimension_numbers<[1], [0], [0], [1], [0, 0, 1, 1], [], []>} : vector<128x256xbf16>, vector<256x128xbf16>, vector<128x128xf32> -> vector<128x128xf32>
      %211 = arith.addf %201, %210 : vector<128x128xf32>
      %c0_161 = arith.constant 0 : index
      %c43 = arith.constant 43 : index
      %c0_162 = arith.constant 0 : index
      %212 = vector.load %arg12[%c0_161, %c43, %c0_162] : memref<2x128x128xf32, #tpu.memory_space<vmem>>, vector<2x64x128xf32>
      %213 = vector.shape_cast %212 : vector<2x64x128xf32> to vector<128x128xf32>
      %c0_163 = arith.constant 0 : index
      %c44 = arith.constant 44 : index
      %c0_164 = arith.constant 0 : index
      %214 = vector.load %arg12[%c0_163, %c44, %c0_164] : memref<2x128x128xf32, #tpu.memory_space<vmem>>, vector<2x64x128xf32>
      %215 = vector.shape_cast %214 : vector<2x64x128xf32> to vector<128x128xf32>
      %216 = tpu.concatenate %213, %215 in 1 : vector<128x128xf32>, vector<128x128xf32> -> vector<128x256xf32>
      %217 = arith.truncf %216 : vector<128x256xf32> to vector<128x256xbf16>
      %c18_165 = arith.constant 18 : index
      %c0_166 = arith.constant 0 : index
      %c0_167 = arith.constant 0 : index
      %218 = vector.load %arg5[%c18_165, %c0_166, %c0_167] : memref<26x256x128xbf16, #tpu.memory_space<vmem>>, vector<1x256x128xbf16>
      %219 = vector.shape_cast %218 : vector<1x256x128xbf16> to vector<256x128xbf16>
      %cst_168 = arith.constant dense<0.000000e+00> : vector<128x128xf32>
      %220 = tpu.matmul %217, %219, %cst_168 {dimension_numbers = #tpu.dot_dimension_numbers<[1], [0], [0], [1], [0, 0, 1, 1], [], []>} : vector<128x256xbf16>, vector<256x128xbf16>, vector<128x128xf32> -> vector<128x128xf32>
      %221 = arith.addf %211, %220 : vector<128x128xf32>
      %c0_169 = arith.constant 0 : index
      %c45 = arith.constant 45 : index
      %c0_170 = arith.constant 0 : index
      %222 = vector.load %arg12[%c0_169, %c45, %c0_170] : memref<2x128x128xf32, #tpu.memory_space<vmem>>, vector<2x64x128xf32>
      %223 = vector.shape_cast %222 : vector<2x64x128xf32> to vector<128x128xf32>
      %c0_171 = arith.constant 0 : index
      %c46 = arith.constant 46 : index
      %c0_172 = arith.constant 0 : index
      %224 = vector.load %arg12[%c0_171, %c46, %c0_172] : memref<2x128x128xf32, #tpu.memory_space<vmem>>, vector<2x64x128xf32>
      %225 = vector.shape_cast %224 : vector<2x64x128xf32> to vector<128x128xf32>
      %226 = tpu.concatenate %223, %225 in 1 : vector<128x128xf32>, vector<128x128xf32> -> vector<128x256xf32>
      %227 = arith.truncf %226 : vector<128x256xf32> to vector<128x256xbf16>
      %c19_173 = arith.constant 19 : index
      %c0_174 = arith.constant 0 : index
      %c0_175 = arith.constant 0 : index
      %228 = vector.load %arg5[%c19_173, %c0_174, %c0_175] : memref<26x256x128xbf16, #tpu.memory_space<vmem>>, vector<1x256x128xbf16>
      %229 = vector.shape_cast %228 : vector<1x256x128xbf16> to vector<256x128xbf16>
      %cst_176 = arith.constant dense<0.000000e+00> : vector<128x128xf32>
      %230 = tpu.matmul %227, %229, %cst_176 {dimension_numbers = #tpu.dot_dimension_numbers<[1], [0], [0], [1], [0, 0, 1, 1], [], []>} : vector<128x256xbf16>, vector<256x128xbf16>, vector<128x128xf32> -> vector<128x128xf32>
      %231 = arith.addf %221, %230 : vector<128x128xf32>
      %c0_177 = arith.constant 0 : index
      %c47 = arith.constant 47 : index
      %c0_178 = arith.constant 0 : index
      %232 = vector.load %arg12[%c0_177, %c47, %c0_178] : memref<2x128x128xf32, #tpu.memory_space<vmem>>, vector<2x64x128xf32>
      %233 = vector.shape_cast %232 : vector<2x64x128xf32> to vector<128x128xf32>
      %c0_179 = arith.constant 0 : index
      %c48 = arith.constant 48 : index
      %c0_180 = arith.constant 0 : index
      %234 = vector.load %arg12[%c0_179, %c48, %c0_180] : memref<2x128x128xf32, #tpu.memory_space<vmem>>, vector<2x64x128xf32>
      %235 = vector.shape_cast %234 : vector<2x64x128xf32> to vector<128x128xf32>
      %236 = tpu.concatenate %233, %235 in 1 : vector<128x128xf32>, vector<128x128xf32> -> vector<128x256xf32>
      %237 = arith.truncf %236 : vector<128x256xf32> to vector<128x256xbf16>
      %c20_181 = arith.constant 20 : index
      %c0_182 = arith.constant 0 : index
      %c0_183 = arith.constant 0 : index
      %238 = vector.load %arg5[%c20_181, %c0_182, %c0_183] : memref<26x256x128xbf16, #tpu.memory_space<vmem>>, vector<1x256x128xbf16>
      %239 = vector.shape_cast %238 : vector<1x256x128xbf16> to vector<256x128xbf16>
      %cst_184 = arith.constant dense<0.000000e+00> : vector<128x128xf32>
      %240 = tpu.matmul %237, %239, %cst_184 {dimension_numbers = #tpu.dot_dimension_numbers<[1], [0], [0], [1], [0, 0, 1, 1], [], []>} : vector<128x256xbf16>, vector<256x128xbf16>, vector<128x128xf32> -> vector<128x128xf32>
      %241 = arith.addf %231, %240 : vector<128x128xf32>
      %c0_185 = arith.constant 0 : index
      %c49 = arith.constant 49 : index
      %c0_186 = arith.constant 0 : index
      %242 = vector.load %arg12[%c0_185, %c49, %c0_186] : memref<2x128x128xf32, #tpu.memory_space<vmem>>, vector<2x64x128xf32>
      %243 = vector.shape_cast %242 : vector<2x64x128xf32> to vector<128x128xf32>
      %c0_187 = arith.constant 0 : index
      %c50 = arith.constant 50 : index
      %c0_188 = arith.constant 0 : index
      %244 = vector.load %arg12[%c0_187, %c50, %c0_188] : memref<2x128x128xf32, #tpu.memory_space<vmem>>, vector<2x64x128xf32>
      %245 = vector.shape_cast %244 : vector<2x64x128xf32> to vector<128x128xf32>
      %246 = tpu.concatenate %243, %245 in 1 : vector<128x128xf32>, vector<128x128xf32> -> vector<128x256xf32>
      %247 = arith.truncf %246 : vector<128x256xf32> to vector<128x256xbf16>
      %c21_189 = arith.constant 21 : index
      %c0_190 = arith.constant 0 : index
      %c0_191 = arith.constant 0 : index
      %248 = vector.load %arg5[%c21_189, %c0_190, %c0_191] : memref<26x256x128xbf16, #tpu.memory_space<vmem>>, vector<1x256x128xbf16>
      %249 = vector.shape_cast %248 : vector<1x256x128xbf16> to vector<256x128xbf16>
      %cst_192 = arith.constant dense<0.000000e+00> : vector<128x128xf32>
      %250 = tpu.matmul %247, %249, %cst_192 {dimension_numbers = #tpu.dot_dimension_numbers<[1], [0], [0], [1], [0, 0, 1, 1], [], []>} : vector<128x256xbf16>, vector<256x128xbf16>, vector<128x128xf32> -> vector<128x128xf32>
      %251 = arith.addf %241, %250 : vector<128x128xf32>
      %c0_193 = arith.constant 0 : index
      %c51 = arith.constant 51 : index
      %c0_194 = arith.constant 0 : index
      %252 = vector.load %arg12[%c0_193, %c51, %c0_194] : memref<2x128x128xf32, #tpu.memory_space<vmem>>, vector<2x64x128xf32>
      %253 = vector.shape_cast %252 : vector<2x64x128xf32> to vector<128x128xf32>
      %c0_195 = arith.constant 0 : index
      %c52 = arith.constant 52 : index
      %c0_196 = arith.constant 0 : index
      %254 = vector.load %arg12[%c0_195, %c52, %c0_196] : memref<2x128x128xf32, #tpu.memory_space<vmem>>, vector<2x64x128xf32>
      %255 = vector.shape_cast %254 : vector<2x64x128xf32> to vector<128x128xf32>
      %256 = tpu.concatenate %253, %255 in 1 : vector<128x128xf32>, vector<128x128xf32> -> vector<128x256xf32>
      %257 = arith.truncf %256 : vector<128x256xf32> to vector<128x256xbf16>
      %c22_197 = arith.constant 22 : index
      %c0_198 = arith.constant 0 : index
      %c0_199 = arith.constant 0 : index
      %258 = vector.load %arg5[%c22_197, %c0_198, %c0_199] : memref<26x256x128xbf16, #tpu.memory_space<vmem>>, vector<1x256x128xbf16>
      %259 = vector.shape_cast %258 : vector<1x256x128xbf16> to vector<256x128xbf16>
      %cst_200 = arith.constant dense<0.000000e+00> : vector<128x128xf32>
      %260 = tpu.matmul %257, %259, %cst_200 {dimension_numbers = #tpu.dot_dimension_numbers<[1], [0], [0], [1], [0, 0, 1, 1], [], []>} : vector<128x256xbf16>, vector<256x128xbf16>, vector<128x128xf32> -> vector<128x128xf32>
      %261 = arith.addf %251, %260 : vector<128x128xf32>
      %c0_201 = arith.constant 0 : index
      %c53 = arith.constant 53 : index
      %c0_202 = arith.constant 0 : index
      %262 = vector.load %arg12[%c0_201, %c53, %c0_202] : memref<2x128x128xf32, #tpu.memory_space<vmem>>, vector<2x64x128xf32>
      %263 = vector.shape_cast %262 : vector<2x64x128xf32> to vector<128x128xf32>
      %c0_203 = arith.constant 0 : index
      %c54 = arith.constant 54 : index
      %c0_204 = arith.constant 0 : index
      %264 = vector.load %arg12[%c0_203, %c54, %c0_204] : memref<2x128x128xf32, #tpu.memory_space<vmem>>, vector<2x64x128xf32>
      %265 = vector.shape_cast %264 : vector<2x64x128xf32> to vector<128x128xf32>
      %266 = tpu.concatenate %263, %265 in 1 : vector<128x128xf32>, vector<128x128xf32> -> vector<128x256xf32>
      %267 = arith.truncf %266 : vector<128x256xf32> to vector<128x256xbf16>
      %c23_205 = arith.constant 23 : index
      %c0_206 = arith.constant 0 : index
      %c0_207 = arith.constant 0 : index
      %268 = vector.load %arg5[%c23_205, %c0_206, %c0_207] : memref<26x256x128xbf16, #tpu.memory_space<vmem>>, vector<1x256x128xbf16>
      %269 = vector.shape_cast %268 : vector<1x256x128xbf16> to vector<256x128xbf16>
      %cst_208 = arith.constant dense<0.000000e+00> : vector<128x128xf32>
      %270 = tpu.matmul %267, %269, %cst_208 {dimension_numbers = #tpu.dot_dimension_numbers<[1], [0], [0], [1], [0, 0, 1, 1], [], []>} : vector<128x256xbf16>, vector<256x128xbf16>, vector<128x128xf32> -> vector<128x128xf32>
      %271 = arith.addf %261, %270 : vector<128x128xf32>
      %c0_209 = arith.constant 0 : index
      %c55 = arith.constant 55 : index
      %c0_210 = arith.constant 0 : index
      %272 = vector.load %arg12[%c0_209, %c55, %c0_210] : memref<2x128x128xf32, #tpu.memory_space<vmem>>, vector<2x64x128xf32>
      %273 = vector.shape_cast %272 : vector<2x64x128xf32> to vector<128x128xf32>
      %c0_211 = arith.constant 0 : index
      %c56 = arith.constant 56 : index
      %c0_212 = arith.constant 0 : index
      %274 = vector.load %arg12[%c0_211, %c56, %c0_212] : memref<2x128x128xf32, #tpu.memory_space<vmem>>, vector<2x64x128xf32>
      %275 = vector.shape_cast %274 : vector<2x64x128xf32> to vector<128x128xf32>
      %276 = tpu.concatenate %273, %275 in 1 : vector<128x128xf32>, vector<128x128xf32> -> vector<128x256xf32>
      %277 = arith.truncf %276 : vector<128x256xf32> to vector<128x256xbf16>
      %c24_213 = arith.constant 24 : index
      %c0_214 = arith.constant 0 : index
      %c0_215 = arith.constant 0 : index
      %278 = vector.load %arg5[%c24_213, %c0_214, %c0_215] : memref<26x256x128xbf16, #tpu.memory_space<vmem>>, vector<1x256x128xbf16>
      %279 = vector.shape_cast %278 : vector<1x256x128xbf16> to vector<256x128xbf16>
      %cst_216 = arith.constant dense<0.000000e+00> : vector<128x128xf32>
      %280 = tpu.matmul %277, %279, %cst_216 {dimension_numbers = #tpu.dot_dimension_numbers<[1], [0], [0], [1], [0, 0, 1, 1], [], []>} : vector<128x256xbf16>, vector<256x128xbf16>, vector<128x128xf32> -> vector<128x128xf32>
      %281 = arith.addf %271, %280 : vector<128x128xf32>
      %c0_217 = arith.constant 0 : index
      %c57 = arith.constant 57 : index
      %c0_218 = arith.constant 0 : index
      %282 = vector.load %arg12[%c0_217, %c57, %c0_218] : memref<2x128x128xf32, #tpu.memory_space<vmem>>, vector<2x64x128xf32>
      %283 = vector.shape_cast %282 : vector<2x64x128xf32> to vector<128x128xf32>
      %c0_219 = arith.constant 0 : index
      %c58 = arith.constant 58 : index
      %c0_220 = arith.constant 0 : index
      %284 = vector.load %arg12[%c0_219, %c58, %c0_220] : memref<2x128x128xf32, #tpu.memory_space<vmem>>, vector<2x64x128xf32>
      %285 = vector.shape_cast %284 : vector<2x64x128xf32> to vector<128x128xf32>
      %286 = tpu.concatenate %283, %285 in 1 : vector<128x128xf32>, vector<128x128xf32> -> vector<128x256xf32>
      %287 = arith.truncf %286 : vector<128x256xf32> to vector<128x256xbf16>
      %c25_221 = arith.constant 25 : index
      %c0_222 = arith.constant 0 : index
      %c0_223 = arith.constant 0 : index
      %288 = vector.load %arg5[%c25_221, %c0_222, %c0_223] : memref<26x256x128xbf16, #tpu.memory_space<vmem>>, vector<1x256x128xbf16>
      %289 = vector.shape_cast %288 : vector<1x256x128xbf16> to vector<256x128xbf16>
      %cst_224 = arith.constant dense<0.000000e+00> : vector<128x128xf32>
      %290 = tpu.matmul %287, %289, %cst_224 {dimension_numbers = #tpu.dot_dimension_numbers<[1], [0], [0], [1], [0, 0, 1, 1], [], []>} : vector<128x256xbf16>, vector<256x128xbf16>, vector<128x128xf32> -> vector<128x128xf32>
      %291 = arith.addf %281, %290 : vector<128x128xf32>
      %c0_225 = arith.constant 0 : index
      %c0_226 = arith.constant 0 : index
      %292 = vector.load %arg6[%c0_225, %c0_226] : memref<1x128xf32, #tpu.memory_space<vmem>>, vector<1x128xf32>
      %293 = vector.broadcast %292 : vector<1x128xf32> to vector<128x128xf32>
      %294 = arith.addf %291, %293 : vector<128x128xf32>
      %cst_227 = arith.constant 0.000000e+00 : f32
      %295 = vector.broadcast %cst_227 : f32 to vector<128x128xf32>
      %296 = arith.maximumf %294, %295 : vector<128x128xf32>
      %297 = vector.broadcast %cst_5 : f32 to vector<128x128xf32>
      %298 = arith.select %6, %296, %297 : vector<128x128xi1>, vector<128x128xf32>
      %299 = vector.shape_cast %298 : vector<128x128xf32> to vector<2x64x128xf32>
      %cst_228 = arith.constant dense<0xFF800000> : vector<2x64xf32>
      %300 = vector.multi_reduction <maximumf>, %299, %cst_228 [2] : vector<2x64x128xf32> to vector<2x64xf32>
      %301 = arith.index_cast %9 : i32 to index
      %c0_229 = arith.constant 0 : index
      %c0_230 = arith.constant 0 : index
      %302 = vector.load %arg2[%301, %c0_229, %c0_230] : memref<4x2x64xf32, #tpu.memory_space<vmem>>, vector<1x2x64xf32>
      %303 = vector.shape_cast %302 : vector<1x2x64xf32> to vector<2x64xf32>
      %cst_231 = arith.constant 5.000000e-01 : f32
      %304 = vector.broadcast %cst_231 : f32 to vector<2x64xf32>
      %305 = arith.cmpf ogt, %303, %304 : vector<2x64xf32>
      %306 = vector.broadcast %cst_5 : f32 to vector<2x64xf32>
      %307 = arith.select %305, %300, %306 : vector<2x64xi1>, vector<2x64xf32>
      %cst_232 = arith.constant dense<0xFF800000> : vector<2xf32>
      %308 = vector.multi_reduction <maximumf>, %307, %cst_232 [1] : vector<2x64xf32> to vector<2xf32>
      %309 = vector.shape_cast %308 : vector<2xf32> to vector<2x1xf32>
      %310 = vector.broadcast %309 : vector<2x1xf32> to vector<2x64xf32>
      %311 = arith.subf %307, %310 : vector<2x64xf32>
      %312 = math.exp %311 : vector<2x64xf32>
      %cst_233 = arith.constant dense<0.000000e+00> : vector<2xf32>
      %313 = vector.multi_reduction <add>, %312, %cst_233 [1] : vector<2x64xf32> to vector<2xf32>
      %314 = vector.shape_cast %313 : vector<2xf32> to vector<2x1xf32>
      %315 = tpu.reciprocal %314 {approx = true} : vector<2x1xf32> -> vector<2x1xf32>
      %316 = vector.broadcast %315 : vector<2x1xf32> to vector<2x64xf32>
      %317 = arith.mulf %312, %316 : vector<2x64xf32>
      %318 = arith.extf %12 : vector<2x64x128xbf16> to vector<2x64x128xf32>
      %319 = vector.shape_cast %317 : vector<2x64xf32> to vector<2x64x1xf32>
      %320 = vector.broadcast %319 : vector<2x64x1xf32> to vector<2x64x128xf32>
      %321 = arith.mulf %318, %320 : vector<2x64x128xf32>
      %cst_234 = arith.constant dense<0.000000e+00> : vector<2x128xf32>
      %322 = vector.multi_reduction <add>, %321, %cst_234 [1] : vector<2x64x128xf32> to vector<2x128xf32>
      %c0_235 = arith.constant 0 : index
      %c0_236 = arith.constant 0 : index
      %323 = vector.load %arg7[%c0_235, %c0_236] : memref<128x128xf32, #tpu.memory_space<vmem>>, vector<128x128xf32>
      %cst_237 = arith.constant dense<0.000000e+00> : vector<2x128xf32>
      %324 = tpu.matmul %322, %323, %cst_237 {dimension_numbers = #tpu.dot_dimension_numbers<[1], [0], [0], [1], [0, 0, 1, 1], [], []>} : vector<2x128xf32>, vector<128x128xf32>, vector<2x128xf32> -> vector<2x128xf32>
      %c0_238 = arith.constant 0 : index
      %c0_239 = arith.constant 0 : index
      %325 = vector.load %arg8[%c0_238, %c0_239] : memref<1x128xf32, #tpu.memory_space<vmem>>, vector<1x128xf32>
      %326 = vector.broadcast %325 : vector<1x128xf32> to vector<2x128xf32>
      %327 = arith.addf %324, %326 : vector<2x128xf32>
      %cst_240 = arith.constant 0.000000e+00 : f32
      %328 = vector.broadcast %cst_240 : f32 to vector<2x128xf32>
      %329 = arith.maximumf %327, %328 : vector<2x128xf32>
      %c0_241 = arith.constant 0 : index
      %c0_242 = arith.constant 0 : index
      %330 = vector.load %arg9[%c0_241, %c0_242] : memref<128x128xf32, #tpu.memory_space<vmem>>, vector<128x128xf32>
      %cst_243 = arith.constant dense<0.000000e+00> : vector<2x128xf32>
      %331 = tpu.matmul %329, %330, %cst_243 {dimension_numbers = #tpu.dot_dimension_numbers<[1], [0], [0], [1], [0, 0, 1, 1], [], []>} : vector<2x128xf32>, vector<128x128xf32>, vector<2x128xf32> -> vector<2x128xf32>
      %c0_244 = arith.constant 0 : index
      %c0_245 = arith.constant 0 : index
      %332 = vector.load %arg10[%c0_244, %c0_245] : memref<1x128xf32, #tpu.memory_space<vmem>>, vector<1x128xf32>
      %333 = vector.broadcast %332 : vector<1x128xf32> to vector<2x128xf32>
      %334 = arith.addf %331, %333 : vector<2x128xf32>
      %335 = arith.index_cast %9 : i32 to index
      %c0_246 = arith.constant 0 : index
      %c0_247 = arith.constant 0 : index
      %336 = vector.load %arg11[%335, %c0_246, %c0_247] : memref<4x2x128xf32, #tpu.memory_space<vmem>>, vector<1x2x128xf32>
      %337 = vector.shape_cast %336 : vector<1x2x128xf32> to vector<2x128xf32>
      %338 = vector.shape_cast %334 : vector<2x128xf32> to vector<1x2x128xf32>
      tpu.vector_store %arg11[%335, %c0_246, %c0_247], %338 {strides = array<i32>} : memref<4x2x128xf32, #tpu.memory_space<vmem>>, vector<1x2x128xf32>,
    }
    %c4_i32_6 = arith.constant 4 : i32
    return
  }
  func.func @transform_0(%arg0: i32) -> (i32, i32, i32, i32) {
    %c0_i32 = arith.constant 0 : i32
    %c0_i32_0 = arith.constant 0 : i32
    %c0_i32_1 = arith.constant 0 : i32
    %c0_i32_2 = arith.constant 0 : i32
    return %arg0, %c0_i32, %c0_i32_0, %c0_i32_1 : i32, i32, i32, i32
  }
  func.func @transform_1(%arg0: i32) -> (i32, i32, i32) {
    %c0_i32 = arith.constant 0 : i32
    %c0_i32_0 = arith.constant 0 : i32
    %c0_i32_1 = arith.constant 0 : i32
    return %arg0, %c0_i32, %c0_i32_0 : i32, i32, i32
  }
  func.func @transform_2(%arg0: i32) -> (i32, i32) {
    %c0_i32 = arith.constant 0 : i32
    %c0_i32_0 = arith.constant 0 : i32
    %c0_i32_1 = arith.constant 0 : i32
    return %c0_i32, %c0_i32_0 : i32, i32
  }
  func.func @transform_3(%arg0: i32) -> (i32, i32) {
    %c0_i32 = arith.constant 0 : i32
    %c0_i32_0 = arith.constant 0 : i32
    %c0_i32_1 = arith.constant 0 : i32
    return %c0_i32, %c0_i32_0 : i32, i32
  }
  func.func @transform_4(%arg0: i32) -> (i32, i32, i32) {
    %c0_i32 = arith.constant 0 : i32
    %c0_i32_0 = arith.constant 0 : i32
    %c0_i32_1 = arith.constant 0 : i32
    %c0_i32_2 = arith.constant 0 : i32
    return %c0_i32, %c0_i32_0, %c0_i32_1 : i32, i32, i32
  }
  func.func @transform_5(%arg0: i32) -> (i32, i32) {
    %c0_i32 = arith.constant 0 : i32
    %c0_i32_0 = arith.constant 0 : i32
    %c0_i32_1 = arith.constant 0 : i32
    return %c0_i32, %c0_i32_0 : i32, i32
  }
  func.func @transform_6(%arg0: i32) -> (i32, i32) {
    %c0_i32 = arith.constant 0 : i32
    %c0_i32_0 = arith.constant 0 : i32
    %c0_i32_1 = arith.constant 0 : i32
    return %c0_i32, %c0_i32_0 : i32, i32
  }
  func.func @transform_7(%arg0: i32) -> (i32, i32) {
    %c0_i32 = arith.constant 0 : i32
    %c0_i32_0 = arith.constant 0 : i32
    %c0_i32_1 = arith.constant 0 : i32
    return %c0_i32, %c0_i32_0 : i32, i32
  }
  func.func @transform_8(%arg0: i32) -> (i32, i32) {
    %c0_i32 = arith.constant 0 : i32
    %c0_i32_0 = arith.constant 0 : i32
    %c0_i32_1 = arith.constant 0 : i32
    return %c0_i32, %c0_i32_0 : i32, i32
  }
  func.func @transform_9(%arg0: i32) -> (i32, i32) {
    %c0_i32 = arith.constant 0 : i32
    %c0_i32_0 = arith.constant 0 : i32
    %c0_i32_1 = arith.constant 0 : i32
    return %c0_i32, %c0_i32_0 : i32, i32
  }
  func.func @transform_10(%arg0: i32) -> (i32, i32, i32) {
    %c0_i32 = arith.constant 0 : i32
    %c0_i32_0 = arith.constant 0 : i32
    %c0_i32_1 = arith.constant 0 : i32
    return %arg0, %c0_i32, %c0_i32_0 : i32, i32, i32
  }
}

</mosaic_0001>

<llo_original>
// kernel: tpu_custom_call.1
$region0: #{tpu_custom_call.1}
  #allocation0 [shape = 'u32[]', space=smem, size = 0x4, offset = 0x4, fixed_abs, tag = 'smem constant byte address 0x4 - core index']
  #allocation1 [shape = 'u32[144,128]{1,0:T(1,128)}', space=vmem, size = 0x12000, scoped, tag = 'internal scratch']
  #allocation2 [shape = 'f32[2,128,128]{2,1,0:T(8,128)}', space=vmem, size = 0x20000, scoped, tag = 'scratch operand']
  %s0 = inlined_call_operand.hbm [shape: bf16[8,2,64,128], index: 0, kind: input, shape index: {}]
  %s1 = inlined_call_operand.hbm [shape: f32[8,2,64], index: 1, kind: input, shape index: {}]
  %s2 = inlined_call_operand.hbm [shape: bf16[128,128], index: 2, kind: input, shape index: {}]
  %s3 = inlined_call_operand.hbm [shape: f32[1,128], index: 3, kind: input, shape index: {}]
  %s4 = inlined_call_operand.hbm [shape: bf16[26,256,128], index: 4, kind: input, shape index: {}]
  %s5 = inlined_call_operand.hbm [shape: f32[1,128], index: 5, kind: input, shape index: {}]
  %s6 = inlined_call_operand.hbm [shape: f32[128,128], index: 6, kind: input, shape index: {}]
  %s7 = inlined_call_operand.hbm [shape: f32[1,128], index: 7, kind: input, shape index: {}]
  %s8 = inlined_call_operand.hbm [shape: f32[128,128], index: 8, kind: input, shape index: {}]
  %s9 = inlined_call_operand.hbm [shape: f32[1,128], index: 9, kind: input, shape index: {}]
  %s10 = inlined_call_operand.hbm [shape: f32[8,2,128], index: 10, kind: output, shape index: {}]
  %s11 = sld [smem:[#allocation0]]
  $region120: #{tpu_custom_call.1} parent=0
    _
  %s13 = ssub.s32 1, %s11
  %s14 = scalar_select 0, %s13, %s11
  $region1: #{tpu_custom_call.1} parent=0
    #allocation3 [shape = 'u8[262144]{0}', space=vmem, size = 0x40000, scoped, tag = 'input window, operand 0']
    #allocation4 [shape = 's32[2]{0}', space=sflag, size = 0x8, scoped, tag = 'scoped memory for tpu_custom_call.1']
    #allocation5 [shape = 's32[2]{0}', space=sflag, size = 0x8, scoped, tag = 'scoped memory for tpu_custom_call.1']
    #allocation6 [shape = 'u8[8192]{0}', space=vmem, size = 0x2000, scoped, tag = 'input window, operand 1']
    #allocation7 [shape = 's32[2]{0}', space=sflag, size = 0x8, scoped, tag = 'scoped memory for tpu_custom_call.1']
    #allocation8 [shape = 'u8[32768]{0}', space=vmem, size = 0x8000, scoped, tag = 'input window, operand 2, single buffered']
    #allocation9 [shape = 'u8[512]{0}', space=vmem, size = 0x400, scoped, tag = 'input window, operand 3, single buffered']
    #allocation10 [shape = 's32[1]{0}', space=sflag, size = 0x4, scoped, tag = 'scoped memory for tpu_custom_call.1']
    #allocation11 [shape = 'u8[1703936]{0}', space=vmem, size = 0x1a0000, scoped, tag = 'input window, operand 4, single buffered']
    #allocation12 [shape = 'u8[512]{0}', space=vmem, size = 0x400, scoped, tag = 'input window, operand 5, single buffered']
    #allocation13 [shape = 's32[1]{0}', space=sflag, size = 0x4, scoped, tag = 'scoped memory for tpu_custom_call.1']
    #allocation14 [shape = 'u8[65536]{0}', space=vmem, size = 0x10000, scoped, tag = 'input window, operand 6, single buffered']
    #allocation15 [shape = 'u8[512]{0}', space=vmem, size = 0x400, scoped, tag = 'input window, operand 7, single buffered']
    #allocation16 [shape = 's32[1]{0}', space=sflag, size = 0x4, scoped, tag = 'scoped memory for tpu_custom_call.1']
    #allocation17 [shape = 'u8[65536]{0}', space=vmem, size = 0x10000, scoped, tag = 'input window, operand 8, single buffered']
    #allocation18 [shape = 'u8[512]{0}', space=vmem, size = 0x400, scoped, tag = 'input window, operand 9, single buffered']
    #allocation19 [shape = 's32[1]{0}', space=sflag, size = 0x4, scoped, tag = 'scoped memory for tpu_custom_call.1']
    #allocation20 [shape = 'u8[8192]{0}', space=vmem, size = 0x2000, scoped, tag = 'output window, operand 0']
    %15 = vsyncpa [#allocation4], 0
    %s16 = scalar_lea.sflag [#allocation4], 1
    %17 = vsyncpa %s16, 0
    %18 = vsyncpa [#allocation7], 0
    %s19 = scalar_lea.sflag [#allocation7], 1
    %20 = vsyncpa %s19, 0
    %21 = vsyncpa [#allocation10], 0
    %22 = vsyncpa [#allocation13], 0
    %23 = vsyncpa [#allocation16], 0
    %24 = vsyncpa [#allocation19], 0
    %25 = vsyncpa [#allocation5], 0
    %s26 = scalar_lea.sflag [#allocation5], 1
    %27 = vsyncpa %s26, 0
    loop: start=0, step=1, limit=4
    $region2: #{tpu_custom_call.1} parent=1 // loop_pre_header
      _
    $region3: #{tpu_custom_call.1} parent=1 // loop_header
      %s29 = sphi 0, %s33
      %p30 = scmp.ge.s32.totalorder %s29, 4
      %s39 = sphi 0, %s41
      %s42 = sphi 0, %s39
      %s43 = sphi 0, %s42
      %s59 = sphi 0, %s43
      %s65 = sphi 0, %s67
      %s68 = sphi 0, %s65
      %s69 = sphi 0, %s68
      %s85 = sphi 0, %s69
      %s89 = sphi 0, %s89
      %s91 = sphi 0, %s89
      %s92 = sphi 0, %s91
      %s106 = sphi 0, %s92
      %s110 = sphi 0, %s110
      %s112 = sphi 0, %s110
      %s113 = sphi 0, %s112
      %s127 = sphi 0, %s113
      %s131 = sphi 0, %s131
      %s133 = sphi 0, %s131
      %s134 = sphi 0, %s133
      %s148 = sphi 0, %s134
      %s152 = sphi 0, %s152
      %s154 = sphi 0, %s152
      %s155 = sphi 0, %s154
      %s169 = sphi 0, %s155
      %s173 = sphi 0, %s173
      %s175 = sphi 0, %s173
      %s176 = sphi 0, %s175
      %s190 = sphi 0, %s176
      %s194 = sphi 0, %s194
      %s196 = sphi 0, %s194
      %s197 = sphi 0, %s196
      %s211 = sphi 0, %s197
      %s215 = sphi 0, %s215
      %s217 = sphi 0, %s215
      %s218 = sphi 0, %s217
      %s232 = sphi 0, %s218
      %s236 = sphi 0, %s236
      %s238 = sphi 0, %s236
      %s239 = sphi 0, %s238
      %s253 = sphi 0, %s239
      %s259 = sphi 0, %s261
      %s262 = sphi 0, %s259
      %s263 = sphi 0, %s262
      %s279 = sphi 0, %s263
    $region4: #{tpu_custom_call.1} parent=1 // loop_header_branch
      %32 = sbr.rel (%p30) target = $region8
    $region5: #{tpu_custom_call.1} parent=1 // loop_body
      %s34 = ssub.s32 %s29, 1
      %s35 = ssub.s32 %s29, 2
      %s36 = sadd.s32 %s29, 1
      %s37 = ssub.s32 %s29, %s36
      %p38 = scmp.eq.s32.totalorder %s37, 0
      %s40 = sadd.s32 %s39, 1
      %s41 = scalar_select %p38, %s39, %s40
      %p44 = pneg %p38
      %p45 = scmp.eq.s32.totalorder %s29, 1
      %p46 = por %p44, %p45
      %p47 = scmp.ne.s32.totalorder %s39, %s42
      %p48 = scmp.eq.s32.totalorder %s29, 0
      %p49 = por %p47, %p48
      %p50 = scmp.ne.s32.totalorder %s39, %s42
      %p51 = scmp.eq.s32.totalorder %s34, 1
      %p52 = por %p50, %p51
      %p53 = scmp.ne.s32.totalorder %s42, %s43
      %p54 = scmp.eq.s32.totalorder %s34, 0
      %p55 = por %p53, %p54
      %p56 = scmp.ne.s32.totalorder %s42, %s43
      %p57 = scmp.eq.s32.totalorder %s35, 1
      %p58 = por %p56, %p57
      %p60 = scmp.ne.s32.totalorder %s43, %s59
      %p61 = scmp.eq.s32.totalorder %s35, 0
      %p62 = por %p60, %p61
      %s63 = ssub.s32 %s29, %s36
      %p64 = scmp.eq.s32.totalorder %s63, 0
      %s66 = sadd.s32 %s65, 1
      %s67 = scalar_select %p64, %s65, %s66
      %p70 = pneg %p64
      %p71 = scmp.eq.s32.totalorder %s29, 1
      %p72 = por %p70, %p71
      %p73 = scmp.ne.s32.totalorder %s65, %s68
      %p74 = scmp.eq.s32.totalorder %s29, 0
      %p75 = por %p73, %p74
      %p76 = scmp.ne.s32.totalorder %s65, %s68
      %p77 = scmp.eq.s32.totalorder %s34, 1
      %p78 = por %p76, %p77
      %p79 = scmp.ne.s32.totalorder %s68, %s69
      %p80 = scmp.eq.s32.totalorder %s34, 0
      %p81 = por %p79, %p80
      %p82 = scmp.ne.s32.totalorder %s68, %s69
      %p83 = scmp.eq.s32.totalorder %s35, 1
      %p84 = por %p82, %p83
      %p86 = scmp.ne.s32.totalorder %s69, %s85
      %p87 = scmp.eq.s32.totalorder %s35, 0
      %p88 = por %p86, %p87
      %s90 = sadd.s32 %s89, 1
      %p93 = scmp.eq.s32.totalorder %s29, 1
      %p94 = scmp.ne.s32.totalorder %s89, %s91
      %p95 = scmp.eq.s32.totalorder %s29, 0
      %p96 = por %p94, %p95
      %p97 = scmp.ne.s32.totalorder %s89, %s91
      %p98 = scmp.eq.s32.totalorder %s34, 1
      %p99 = por %p97, %p98
      %p100 = scmp.ne.s32.totalorder %s91, %s92
      %p101 = scmp.eq.s32.totalorder %s34, 0
      %p102 = por %p100, %p101
      %p103 = scmp.ne.s32.totalorder %s91, %s92
      %p104 = scmp.eq.s32.totalorder %s35, 1
      %p105 = por %p103, %p104
      %p107 = scmp.ne.s32.totalorder %s92, %s106
      %p108 = scmp.eq.s32.totalorder %s35, 0
      %p109 = por %p107, %p108
      %s111 = sadd.s32 %s110, 1
      %p114 = scmp.eq.s32.totalorder %s29, 1
      %p115 = scmp.ne.s32.totalorder %s110, %s112
      %p116 = scmp.eq.s32.totalorder %s29, 0
      %p117 = por %p115, %p116
      %p118 = scmp.ne.s32.totalorder %s110, %s112
      %p119 = scmp.eq.s32.totalorder %s34, 1
      %p120 = por %p118, %p119
      %p121 = scmp.ne.s32.totalorder %s112, %s113
      %p122 = scmp.eq.s32.totalorder %s34, 0
      %p123 = por %p121, %p122
      %p124 = scmp.ne.s32.totalorder %s112, %s113
      %p125 = scmp.eq.s32.totalorder %s35, 1
      %p126 = por %p124, %p125
      %p128 = scmp.ne.s32.totalorder %s113, %s127
      %p129 = scmp.eq.s32.totalorder %s35, 0
      %p130 = por %p128, %p129
      %s132 = sadd.s32 %s131, 1
      %p135 = scmp.eq.s32.totalorder %s29, 1
      %p136 = scmp.ne.s32.totalorder %s131, %s133
      %p137 = scmp.eq.s32.totalorder %s29, 0
      %p138 = por %p136, %p137
      %p139 = scmp.ne.s32.totalorder %s131, %s133
      %p140 = scmp.eq.s32.totalorder %s34, 1
      %p141 = por %p139, %p140
      %p142 = scmp.ne.s32.totalorder %s133, %s134
      %p143 = scmp.eq.s32.totalorder %s34, 0
      %p144 = por %p142, %p143
      %p145 = scmp.ne.s32.totalorder %s133, %s134
      %p146 = scmp.eq.s32.totalorder %s35, 1
      %p147 = por %p145, %p146
      %p149 = scmp.ne.s32.totalorder %s134, %s148
      %p150 = scmp.eq.s32.totalorder %s35, 0
      %p151 = por %p149, %p150
      %s153 = sadd.s32 %s152, 1
      %p156 = scmp.eq.s32.totalorder %s29, 1
      %p157 = scmp.ne.s32.totalorder %s152, %s154
      %p158 = scmp.eq.s32.totalorder %s29, 0
      %p159 = por %p157, %p158
      %p160 = scmp.ne.s32.totalorder %s152, %s154
      %p161 = scmp.eq.s32.totalorder %s34, 1
      %p162 = por %p160, %p161
      %p163 = scmp.ne.s32.totalorder %s154, %s155
      %p164 = scmp.eq.s32.totalorder %s34, 0
      %p165 = por %p163, %p164
      %p166 = scmp.ne.s32.totalorder %s154, %s155
      %p167 = scmp.eq.s32.totalorder %s35, 1
      %p168 = por %p166, %p167
      %p170 = scmp.ne.s32.totalorder %s155, %s169
      %p171 = scmp.eq.s32.totalorder %s35, 0
      %p172 = por %p170, %p171
      %s174 = sadd.s32 %s173, 1
      %p177 = scmp.eq.s32.totalorder %s29, 1
      %p178 = scmp.ne.s32.totalorder %s173, %s175
      %p179 = scmp.eq.s32.totalorder %s29, 0
      %p180 = por %p178, %p179
      %p181 = scmp.ne.s32.totalorder %s173, %s175
      %p182 = scmp.eq.s32.totalorder %s34, 1
      %p183 = por %p181, %p182
      %p184 = scmp.ne.s32.totalorder %s175, %s176
      %p185 = scmp.eq.s32.totalorder %s34, 0
      %p186 = por %p184, %p185
      %p187 = scmp.ne.s32.totalorder %s175, %s176
      %p188 = scmp.eq.s32.totalorder %s35, 1
      %p189 = por %p187, %p188
      %p191 = scmp.ne.s32.totalorder %s176, %s190
      %p192 = scmp.eq.s32.totalorder %s35, 0
      %p193 = por %p191, %p192
      %s195 = sadd.s32 %s194, 1
      %p198 = scmp.eq.s32.totalorder %s29, 1
      %p199 = scmp.ne.s32.totalorder %s194, %s196
      %p200 = scmp.eq.s32.totalorder %s29, 0
      %p201 = por %p199, %p200
      %p202 = scmp.ne.s32.totalorder %s194, %s196
      %p203 = scmp.eq.s32.totalorder %s34, 1
      %p204 = por %p202, %p203
      %p205 = scmp.ne.s32.totalorder %s196, %s197
      %p206 = scmp.eq.s32.totalorder %s34, 0
      %p207 = por %p205, %p206
      %p208 = scmp.ne.s32.totalorder %s196, %s197
      %p209 = scmp.eq.s32.totalorder %s35, 1
      %p210 = por %p208, %p209
      %p212 = scmp.ne.s32.totalorder %s197, %s211
      %p213 = scmp.eq.s32.totalorder %s35, 0
      %p214 = por %p212, %p213
      %s216 = sadd.s32 %s215, 1
      %p219 = scmp.eq.s32.totalorder %s29, 1
      %p220 = scmp.ne.s32.totalorder %s215, %s217
      %p221 = scmp.eq.s32.totalorder %s29, 0
      %p222 = por %p220, %p221
      %p223 = scmp.ne.s32.totalorder %s215, %s217
      %p224 = scmp.eq.s32.totalorder %s34, 1
      %p225 = por %p223, %p224
      %p226 = scmp.ne.s32.totalorder %s217, %s218
      %p227 = scmp.eq.s32.totalorder %s34, 0
      %p228 = por %p226, %p227
      %p229 = scmp.ne.s32.totalorder %s217, %s218
      %p230 = scmp.eq.s32.totalorder %s35, 1
      %p231 = por %p229, %p230
      %p233 = scmp.ne.s32.totalorder %s218, %s232
      %p234 = scmp.eq.s32.totalorder %s35, 0
      %p235 = por %p233, %p234
      %s237 = sadd.s32 %s236, 1
      %p240 = scmp.eq.s32.totalorder %s29, 1
      %p241 = scmp.ne.s32.totalorder %s236, %s238
      %p242 = scmp.eq.s32.totalorder %s29, 0
      %p243 = por %p241, %p242
      %p244 = scmp.ne.s32.totalorder %s236, %s238
      %p245 = scmp.eq.s32.totalorder %s34, 1
      %p246 = por %p244, %p245
      %p247 = scmp.ne.s32.totalorder %s238, %s239
      %p248 = scmp.eq.s32.totalorder %s34, 0
      %p249 = por %p247, %p248
      %p250 = scmp.ne.s32.totalorder %s238, %s239
      %p251 = scmp.eq.s32.totalorder %s35, 1
      %p252 = por %p250, %p251
      %p254 = scmp.ne.s32.totalorder %s239, %s253
      %p255 = scmp.eq.s32.totalorder %s35, 0
      %p256 = por %p254, %p255
      %s257 = ssub.s32 %s29, %s36
      %p258 = scmp.eq.s32.totalorder %s257, 0
      %s260 = sadd.s32 %s259, 1
      %s261 = scalar_select %p258, %s259, %s260
      %p264 = pneg %p258
      %p265 = scmp.eq.s32.totalorder %s29, 1
      %p266 = por %p264, %p265
      %p267 = scmp.ne.s32.totalorder %s259, %s262
      %p268 = scmp.eq.s32.totalorder %s29, 0
      %p269 = por %p267, %p268
      %p270 = scmp.ne.s32.totalorder %s259, %s262
      %p271 = scmp.eq.s32.totalorder %s34, 1
      %p272 = por %p270, %p271
      %p273 = scmp.ne.s32.totalorder %s262, %s263
      %p274 = scmp.eq.s32.totalorder %s34, 0
      %p275 = por %p273, %p274
      %p276 = scmp.ne.s32.totalorder %s262, %s263
      %p277 = scmp.eq.s32.totalorder %s35, 1
      %p278 = por %p276, %p277
      %p280 = scmp.ne.s32.totalorder %s263, %s279
      %p281 = scmp.eq.s32.totalorder %s35, 0
      %p282 = por %p280, %p281
      %p283 = scmp.le.s32.totalorder 1, %s29
      %p284 = scmp.lt.s32.totalorder %s29, 3
      %p285 = pnand %p283, %p284
      %p286 = pneg %p285
      // Predicated region
      $region9: #{tpu_custom_call.1} parent=5 // pred_check
        _
      $region10: #{tpu_custom_call.1} parent=5 // pred_check_branch
        %288 = sbr.rel (%p285) target = $region12
      $region11: #{tpu_custom_call.1} parent=5 // pred_region
        %s289 = ssub.s32 %s29, 1
        // Predicated region
        $region13: #{tpu_custom_call.1} parent=11 // pred_check
          %p290 = pneg %p102
        $region14: #{tpu_custom_call.1} parent=11 // pred_check_branch
          %292 = sbr.rel (%p290) target = $region16
        $region15: #{tpu_custom_call.1} parent=11 // pred_region
          %s294 = ssub.s32 1024, 1024
          %295 = vsyncadd [#allocation7], %s294
          %s296 = sshll.u32 [#allocation8], 4
          %s297 = int_to_ptr.vmem [resolvable:$true] %s296
          %302 = dma.hbm_to_vmem [thread:$0]  %s2, 1024, %s297, [#allocation7], 64, 64, 4
        $region16: #{tpu_custom_call.1} parent=11 // pred_fallthru
          _
        // Predicated region
        $region17: #{tpu_custom_call.1} parent=11 // pred_check
          %p303 = pneg %p123
        $region18: #{tpu_custom_call.1} parent=11 // pred_check_branch
          %305 = sbr.rel (%p303) target = $region20
        $region19: #{tpu_custom_call.1} parent=11 // pred_region
          %s307 = ssub.s32 16, 16
          %308 = vsyncadd [#allocation10], %s307
          %s310 = sshll.u32 [#allocation9], 4
          %s311 = int_to_ptr.vmem [resolvable:$true] %s310
          %313 = dma.hbm_to_vmem [thread:$0]  %s3, 16, %s311, [#allocation10]
        $region20: #{tpu_custom_call.1} parent=11 // pred_fallthru
          _
        // Predicated region
        $region21: #{tpu_custom_call.1} parent=11 // pred_check
          %p314 = pneg %p144
        $region22: #{tpu_custom_call.1} parent=11 // pred_check_branch
          %316 = sbr.rel (%p314) target = $region24
        $region23: #{tpu_custom_call.1} parent=11 // pred_region
          %s318 = ssub.s32 53248, 53248
          %319 = vsyncadd [#allocation10], %s318
          %s320 = sshll.u32 [#allocation11], 4
          %s321 = int_to_ptr.vmem [resolvable:$true] %s320
          %326 = dma.hbm_to_vmem [thread:$0]  %s4, 53248, %s321, [#allocation10], 64, 64, 4
        $region24: #{tpu_custom_call.1} parent=11 // pred_fallthru
          _
        // Predicated region
        $region25: #{tpu_custom_call.1} parent=11 // pred_check
          %p327 = pneg %p165
        $region26: #{tpu_custom_call.1} parent=11 // pred_check_branch
          %329 = sbr.rel (%p327) target = $region28
        $region27: #{tpu_custom_call.1} parent=11 // pred_region
          %s331 = ssub.s32 16, 16
          %332 = vsyncadd [#allocation13], %s331
          %s334 = sshll.u32 [#allocation12], 4
          %s335 = int_to_ptr.vmem [resolvable:$true] %s334
          %337 = dma.hbm_to_vmem [thread:$0]  %s5, 16, %s335, [#allocation13]
        $region28: #{tpu_custom_call.1} parent=11 // pred_fallthru
          _
        // Predicated region
        $region29: #{tpu_custom_call.1} parent=11 // pred_check
          %p338 = pneg %p186
        $region30: #{tpu_custom_call.1} parent=11 // pred_check_branch
          %340 = sbr.rel (%p338) target = $region32
        $region31: #{tpu_custom_call.1} parent=11 // pred_region
          %s342 = ssub.s32 2048, 2048
          %343 = vsyncadd [#allocation13], %s342
          %s344 = sshll.u32 [#allocation14], 4
          %s345 = int_to_ptr.vmem [resolvable:$true] %s344
          %350 = dma.hbm_to_vmem [thread:$0]  %s6, 2048, %s345, [#allocation13], 128, 128, 8
        $region32: #{tpu_custom_call.1} parent=11 // pred_fallthru
          _
        // Predicated region
        $region33: #{tpu_custom_call.1} parent=11 // pred_check
          %p351 = pneg %p207
        $region34: #{tpu_custom_call.1} parent=11 // pred_check_branch
          %353 = sbr.rel (%p351) target = $region36
        $region35: #{tpu_custom_call.1} parent=11 // pred_region
          %s355 = ssub.s32 16, 16
          %356 = vsyncadd [#allocation16], %s355
          %s358 = sshll.u32 [#allocation15], 4
          %s359 = int_to_ptr.vmem [resolvable:$true] %s358
          %361 = dma.hbm_to_vmem [thread:$0]  %s7, 16, %s359, [#allocation16]
        $region36: #{tpu_custom_call.1} parent=11 // pred_fallthru
          _
        // Predicated region
        $region37: #{tpu_custom_call.1} parent=11 // pred_check
          %p362 = pneg %p228
        $region38: #{tpu_custom_call.1} parent=11 // pred_check_branch
          %364 = sbr.rel (%p362) target = $region40
        $region39: #{tpu_custom_call.1} parent=11 // pred_region
          %s366 = ssub.s32 2048, 2048
          %367 = vsyncadd [#allocation16], %s366
          %s368 = sshll.u32 [#allocation17], 4
          %s369 = int_to_ptr.vmem [resolvable:$true] %s368
          %374 = dma.hbm_to_vmem [thread:$0]  %s8, 2048, %s369, [#allocation16], 128, 128, 8
        $region40: #{tpu_custom_call.1} parent=11 // pred_fallthru
          _
        // Predicated region
        $region41: #{tpu_custom_call.1} parent=11 // pred_check
          %p375 = pneg %p249
        $region42: #{tpu_custom_call.1} parent=11 // pred_check_branch
          %377 = sbr.rel (%p375) target = $region44
        $region43: #{tpu_custom_call.1} parent=11 // pred_region
          %s379 = ssub.s32 16, 16
          %380 = vsyncadd [#allocation19], %s379
          %s382 = sshll.u32 [#allocation18], 4
          %s383 = int_to_ptr.vmem [resolvable:$true] %s382
          %385 = dma.hbm_to_vmem [thread:$0]  %s9, 16, %s383, [#allocation19]
        $region44: #{tpu_custom_call.1} parent=11 // pred_fallthru
          _
      $region12: #{tpu_custom_call.1} parent=5 // pred_fallthru
        _
      %p386 = scmp.lt.s32.totalorder %s29, 2
      // Predicated region
      $region45: #{tpu_custom_call.1} parent=5 // pred_check
        %p387 = pneg %p386
      $region46: #{tpu_custom_call.1} parent=5 // pred_check_branch
        %389 = sbr.rel (%p387) target = $region48
      $region47: #{tpu_custom_call.1} parent=5 // pred_region
        // Predicated region
        $region49: #{tpu_custom_call.1} parent=47 // pred_check
          %p390 = pneg %p49
        $region50: #{tpu_custom_call.1} parent=47 // pred_check_branch
          %392 = sbr.rel (%p390) target = $region52
        $region51: #{tpu_custom_call.1} parent=47 // pred_region
          %s393 = sand.u32 %s39, 1
          %s394 = scalar_lea.sflag [#allocation4], %s393
          %s395 = sand.u32 %s39, 1
          %s396 = smul.addr %s395, 256
          %s397 = scalar_lea.vmem [#allocation3], %s396
          %s398 = smul.u32 4, %s29
          %s400 = ssub.s32 4096, 4096
          %401 = vsyncadd %s394, %s400
          %s402 = smul.addr %s398, 16
          %s403 = smul.addr %s402, 64
          %s404 = scalar_lea.hbm %s0, %s403
          %s405 = sshll.u32 %s397, 4
          %s406 = int_to_ptr.vmem [resolvable:$true] %s405
          %411 = dma.hbm_to_vmem [thread:$0]  %s404, 4096, %s406, %s394, 64, 64, 4
        $region52: #{tpu_custom_call.1} parent=47 // pred_fallthru
          _
        // Predicated region
        $region53: #{tpu_custom_call.1} parent=47 // pred_check
          %p412 = pneg %p75
        $region54: #{tpu_custom_call.1} parent=47 // pred_check_branch
          %414 = sbr.rel (%p412) target = $region56
        $region55: #{tpu_custom_call.1} parent=47 // pred_region
          %s415 = sand.u32 %s29, 1
          %s416 = scalar_lea.sflag [#allocation7], %s415
          %s417 = sand.u32 %s65, 1
          %s418 = smul.addr %s417, 8
          %s419 = scalar_lea.vmem [#allocation6], %s418
          %s420 = smul.u32 4, %s29
          %s422 = ssub.s32 128, 128
          %423 = vsyncadd %s416, %s422
          %s424 = smul.addr %s420, 32
          %s425 = scalar_lea.hbm %s1, %s424
          %s426 = sshll.u32 %s419, 4
          %s427 = int_to_ptr.vmem [resolvable:$true] %s426
          %432 = dma.hbm_to_vmem [thread:$0]  %s425, 128, %s427, %s416, 32, 32, 2
        $region56: #{tpu_custom_call.1} parent=47 // pred_fallthru
          _
      $region48: #{tpu_custom_call.1} parent=5 // pred_fallthru
        _
      %p433 = scmp.le.s32.totalorder 1, %s29
      %p434 = scmp.lt.s32.totalorder %s29, 3
      %p435 = pnand %p433, %p434
      %p436 = pneg %p435
      // Predicated region
      $region57: #{tpu_custom_call.1} parent=5 // pred_check
        _
      $region58: #{tpu_custom_call.1} parent=5 // pred_check_branch
        %438 = sbr.rel (%p435) target = $region60
      $region59: #{tpu_custom_call.1} parent=5 // pred_region
        %s439 = ssub.s32 %s29, 1
        %s440 = sand.u32 %s42, 1
        %s441 = scalar_lea.sflag [#allocation4], %s440
        %s442 = sand.u32 %s42, 1
        %s443 = smul.addr %s442, 256
        %s444 = scalar_lea.vmem [#allocation3], %s443
        // Predicated region
        $region61: #{tpu_custom_call.1} parent=59 // pred_check
          %p445 = pneg %p55
        $region62: #{tpu_custom_call.1} parent=59 // pred_check_branch
          %447 = sbr.rel (%p445) target = $region64
        $region63: #{tpu_custom_call.1} parent=59 // pred_region
          %448 = dma.done %s441, 4096
        $region64: #{tpu_custom_call.1} parent=59 // pred_fallthru
          _
        %s449 = sand.u32 %s34, 1
        %s450 = scalar_lea.sflag [#allocation7], %s449
        %s451 = sand.u32 %s68, 1
        %s452 = smul.addr %s451, 8
        %s453 = scalar_lea.vmem [#allocation6], %s452
        // Predicated region
        $region65: #{tpu_custom_call.1} parent=59 // pred_check
          %p454 = pneg %p81
        $region66: #{tpu_custom_call.1} parent=59 // pred_check_branch
          %456 = sbr.rel (%p454) target = $region68
        $region67: #{tpu_custom_call.1} parent=59 // pred_region
          %457 = dma.done %s450, 128
        $region68: #{tpu_custom_call.1} parent=59 // pred_fallthru
          _
        // Predicated region
        $region69: #{tpu_custom_call.1} parent=59 // pred_check
          %p458 = pneg %p102
        $region70: #{tpu_custom_call.1} parent=59 // pred_check_branch
          %460 = sbr.rel (%p458) target = $region72
        $region71: #{tpu_custom_call.1} parent=59 // pred_region
          %461 = dma.done [#allocation7], 1024
        $region72: #{tpu_custom_call.1} parent=59 // pred_fallthru
          _
        // Predicated region
        $region73: #{tpu_custom_call.1} parent=59 // pred_check
          %p462 = pneg %p123
        $region74: #{tpu_custom_call.1} parent=59 // pred_check_branch
          %464 = sbr.rel (%p462) target = $region76
        $region75: #{tpu_custom_call.1} parent=59 // pred_region
          %465 = dma.done [#allocation10], 16
        $region76: #{tpu_custom_call.1} parent=59 // pred_fallthru
          _
        // Predicated region
        $region77: #{tpu_custom_call.1} parent=59 // pred_check
          %p466 = pneg %p144
        $region78: #{tpu_custom_call.1} parent=59 // pred_check_branch
          %468 = sbr.rel (%p466) target = $region80
        $region79: #{tpu_custom_call.1} parent=59 // pred_region
          %469 = dma.done [#allocation10], 53248
        $region80: #{tpu_custom_call.1} parent=59 // pred_fallthru
          _
        // Predicated region
        $region81: #{tpu_custom_call.1} parent=59 // pred_check
          %p470 = pneg %p165
        $region82: #{tpu_custom_call.1} parent=59 // pred_check_branch
          %472 = sbr.rel (%p470) target = $region84
        $region83: #{tpu_custom_call.1} parent=59 // pred_region
          %473 = dma.done [#allocation13], 16
        $region84: #{tpu_custom_call.1} parent=59 // pred_fallthru
          _
        // Predicated region
        $region85: #{tpu_custom_call.1} parent=59 // pred_check
          %p474 = pneg %p186
        $region86: #{tpu_custom_call.1} parent=59 // pred_check_branch
          %476 = sbr.rel (%p474) target = $region88
        $region87: #{tpu_custom_call.1} parent=59 // pred_region
          %477 = dma.done [#allocation13], 2048
        $region88: #{tpu_custom_call.1} parent=59 // pred_fallthru
          _
        // Predicated region
        $region89: #{tpu_custom_call.1} parent=59 // pred_check
          %p478 = pneg %p207
        $region90: #{tpu_custom_call.1} parent=59 // pred_check_branch
          %480 = sbr.rel (%p478) target = $region92
        $region91: #{tpu_custom_call.1} parent=59 // pred_region
          %481 = dma.done [#allocation16], 16
        $region92: #{tpu_custom_call.1} parent=59 // pred_fallthru
          _
        // Predicated region
        $region93: #{tpu_custom_call.1} parent=59 // pred_check
          %p482 = pneg %p228
        $region94: #{tpu_custom_call.1} parent=59 // pred_check_branch
          %484 = sbr.rel (%p482) target = $region96
        $region95: #{tpu_custom_call.1} parent=59 // pred_region
          %485 = dma.done [#allocation16], 2048
        $region96: #{tpu_custom_call.1} parent=59 // pred_fallthru
          _
        // Predicated region
        $region97: #{tpu_custom_call.1} parent=59 // pred_check
          %p486 = pneg %p249
        $region98: #{tpu_custom_call.1} parent=59 // pred_check_branch
          %488 = sbr.rel (%p486) target = $region100
        $region99: #{tpu_custom_call.1} parent=59 // pred_region
          %489 = dma.done [#allocation19], 16
        $region100: #{tpu_custom_call.1} parent=59 // pred_fallthru
          _
        %s490 = sand.u32 %s42, 1
        %s491 = scalar_lea.sflag [#allocation4], %s490
        %s492 = sand.u32 %s42, 1
        %s493 = smul.addr %s492, 256
        %s494 = scalar_lea.vmem [#allocation3], %s493
        %p495 = pneg %p55
        %p496 = pneg %p52
        %s497 = sand.u32 %s34, 1
        %s498 = scalar_lea.sflag [#allocation7], %s497
        %s499 = sand.u32 %s68, 1
        %s500 = smul.addr %s499, 8
        %s501 = scalar_lea.vmem [#allocation6], %s500
        %p502 = pneg %p81
        %p503 = pneg %p78
        %p504 = pneg %p102
        %p505 = pneg %p99
        %p506 = pneg %p123
        %p507 = pneg %p120
        %p508 = pneg %p144
        %p509 = pneg %p141
        %p510 = pneg %p165
        %p511 = pneg %p162
        %p512 = pneg %p186
        %p513 = pneg %p183
        %p514 = pneg %p207
        %p515 = pneg %p204
        %p516 = pneg %p228
        %p517 = pneg %p225
        %p518 = pneg %p249
        %p519 = pneg %p246
        %p520 = pneg %p275
        %p521 = pneg %p272
        %s522 = sand.u32 %s262, 1
        %s523 = scalar_lea.sflag [#allocation5], %s522
        %s524 = sand.u32 %s262, 1
        %s525 = smul.addr %s524, 8
        %s526 = scalar_lea.vmem [#allocation20], %s525
        %s527 = smul.u32 4, %s34
        %s528 = smul.u32 4, %s34
        %s529 = smul.u32 4, %s34
        %531 = vst [vmem:[#allocation2] sm:$0xff] 0.0
        %532 = vst [vmem:[#allocation2 + $0x8] sm:$0xff] 0.0
        %533 = vst [vmem:[#allocation2 + $0x10] sm:$0xff] 0.0
        %534 = vst [vmem:[#allocation2 + $0x18] sm:$0xff] 0.0
        %535 = vst [vmem:[#allocation2 + $0x80] sm:$0xff] 0.0
        %536 = vst [vmem:[#allocation2 + $0x88] sm:$0xff] 0.0
        %537 = vst [vmem:[#allocation2 + $0x90] sm:$0xff] 0.0
        %538 = vst [vmem:[#allocation2 + $0x98] sm:$0xff] 0.0
        %539 = vst [vmem:[#allocation2 + $0x60] sm:$0xff] 0.0
        %540 = vst [vmem:[#allocation2 + $0x68] sm:$0xff] 0.0
        %541 = vst [vmem:[#allocation2 + $0x70] sm:$0xff] 0.0
        %542 = vst [vmem:[#allocation2 + $0x78] sm:$0xff] 0.0
        %543 = vst [vmem:[#allocation2 + $0xe0] sm:$0xff] 0.0
        %544 = vst [vmem:[#allocation2 + $0xe8] sm:$0xff] 0.0
        %545 = vst [vmem:[#allocation2 + $0xf0] sm:$0xff] 0.0
        %546 = vst [vmem:[#allocation2 + $0xf8] sm:$0xff] 0.0
        %v547 = vlaneseq
        %v548 = vand.u32 %v547, 127
        %vm549 = vcmp.lt.s32.totalorder %v548, 20
        loop: start=0, step=1, limit=4
        $region101: #{tpu_custom_call.1} parent=59 // loop_pre_header
          _
        $region102: #{tpu_custom_call.1} parent=59 // loop_header
          %s551 = sphi 0, %s555
          %p552 = scmp.ge.s32.totalorder %s551, 4
        $region103: #{tpu_custom_call.1} parent=59 // loop_header_branch
          %554 = sbr.rel (%p552) target = $region107
        $region104: #{tpu_custom_call.1} parent=59 // loop_body
          %s556 = smul.u32 %s551, 16
          %s557 = smul.addr %s556, 4
          %s558 = scalar_lea.vmem %s444, %s557 [#allocation3]
          %v559 = vld [vmem:[%s558] sm:$0xf]
          %v560 = vld [vmem:[%s558 + $0x4] sm:$0xf]
          %v561 = vld [vmem:[%s558 + $0x8] sm:$0xf]
          %v562 = vld [vmem:[%s558 + $0xc] sm:$0xf]
          %v563 = vld [vmem:[%s558 + $0x10] sm:$0xf]
          %v564 = vld [vmem:[%s558 + $0x14] sm:$0xf]
          %v565 = vld [vmem:[%s558 + $0x18] sm:$0xf]
          %v566 = vld [vmem:[%s558 + $0x1c] sm:$0xf]
          %v567 = vld [vmem:[%s558 + $0x20] sm:$0xf]
          %v568 = vld [vmem:[%s558 + $0x24] sm:$0xf]
          %v569 = vld [vmem:[%s558 + $0x28] sm:$0xf]
          %v570 = vld [vmem:[%s558 + $0x2c] sm:$0xf]
          %v571 = vld [vmem:[%s558 + $0x30] sm:$0xf]
          %v572 = vld [vmem:[%s558 + $0x34] sm:$0xf]
          %v573 = vld [vmem:[%s558 + $0x38] sm:$0xf]
          %v574 = vld [vmem:[%s558 + $0x3c] sm:$0xf]
          %v575 = vld [vmem:[#allocation8] sm:$0xf]
          %v576 = vld [vmem:[#allocation8 + $0x4] sm:$0xf]
          %v577 = vld [vmem:[#allocation8 + $0x8] sm:$0xf]
          %v578 = vld [vmem:[#allocation8 + $0xc] sm:$0xf]
          %v579 = vld [vmem:[#allocation8 + $0x10] sm:$0xf]
          %v580 = vld [vmem:[#allocation8 + $0x14] sm:$0xf]
          %v581 = vld [vmem:[#allocation8 + $0x18] sm:$0xf]
          %v582 = vld [vmem:[#allocation8 + $0x1c] sm:$0xf]
          %v583 = vld [vmem:[#allocation8 + $0x20] sm:$0xf]
          %v584 = vld [vmem:[#allocation8 + $0x24] sm:$0xf]
          %v585 = vld [vmem:[#allocation8 + $0x28] sm:$0xf]
          %v586 = vld [vmem:[#allocation8 + $0x2c] sm:$0xf]
          %v587 = vld [vmem:[#allocation8 + $0x30] sm:$0xf]
          %v588 = vld [vmem:[#allocation8 + $0x34] sm:$0xf]
          %v589 = vld [vmem:[#allocation8 + $0x38] sm:$0xf]
          %v590 = vld [vmem:[#allocation8 + $0x3c] sm:$0xf]
          %v607 = vunpack.c.l.b16 %v559
          %v608 = vunpack.c.l.b16 %v560
          %v609 = vunpack.c.l.b16 %v561
          %v610 = vunpack.c.l.b16 %v562
          %v611 = vunpack.c.l.b16 %v563
          %v612 = vunpack.c.l.b16 %v564
          %v613 = vunpack.c.l.b16 %v565
          %v614 = vunpack.c.l.b16 %v566
          %v615 = vunpack.c.l.b16 %v567
          %v616 = vunpack.c.l.b16 %v568
          %v617 = vunpack.c.l.b16 %v569
          %v618 = vunpack.c.l.b16 %v570
          %v619 = vunpack.c.l.b16 %v571
          %v620 = vunpack.c.l.b16 %v572
          %v621 = vunpack.c.l.b16 %v573
          %v622 = vunpack.c.l.b16 %v574
          %v623 = vpack.c.b16 %v608, %v607
          %v624 = vpack.c.b16 %v610, %v609
          %v625 = vpack.c.b16 %v612, %v611
          %v626 = vpack.c.b16 %v614, %v613
          %v627 = vpack.c.b16 %v616, %v615
          %v628 = vpack.c.b16 %v618, %v617
          %v629 = vpack.c.b16 %v620, %v619
          %v630 = vpack.c.b16 %v622, %v621
          %v655 = vunpack.c.l.b16 %v575
          %v656 = vunpack.c.l.b16 %v576
          %v657 = vunpack.c.l.b16 %v577
          %v658 = vunpack.c.l.b16 %v578
          %v659 = vunpack.c.l.b16 %v579
          %v660 = vunpack.c.l.b16 %v580
          %v661 = vunpack.c.l.b16 %v581
          %v662 = vunpack.c.l.b16 %v582
          %v663 = vunpack.c.l.b16 %v583
          %v664 = vunpack.c.l.b16 %v584
          %v665 = vunpack.c.l.b16 %v585
          %v666 = vunpack.c.l.b16 %v586
          %v667 = vunpack.c.l.b16 %v587
          %v668 = vunpack.c.l.b16 %v588
          %v669 = vunpack.c.l.b16 %v589
          %v670 = vunpack.c.l.b16 %v590
          %v671 = vpack.c.b16 %v656, %v655
          %v672 = vpack.c.b16 %v658, %v657
          %v673 = vpack.c.b16 %v660, %v659
          %v674 = vpack.c.b16 %v662, %v661
          %v675 = vpack.c.b16 %v664, %v663
          %v676 = vpack.c.b16 %v666, %v665
          %v677 = vpack.c.b16 %v668, %v667
          %v678 = vpack.c.b16 %v670, %v669
          %687 = vmatprep.subr.bf16.mxu0 0
          %688 = vmatpush1.bf16.msra.mxu0 %v671
          %689 = vmatprep.subr.bf16.mxu0 0
          %690 = vmatpush1.bf16.msra.mxu0 %v672
          %691 = vmatprep.subr.bf16.mxu0 0
          %692 = vmatpush1.bf16.msra.mxu0 %v673
          %693 = vmatprep.subr.bf16.mxu0 0
          %694 = vmatpush1.bf16.msra.mxu0 %v674
          %695 = vmatprep.subr.bf16.mxu0 0
          %696 = vmatpush1.bf16.msra.mxu0 %v675
          %697 = vmatprep.subr.bf16.mxu0 0
          %698 = vmatpush1.bf16.msra.mxu0 %v676
          %699 = vmatprep.subr.bf16.mxu0 0
          %700 = vmatpush1.bf16.msra.mxu0 %v677
          %701 = vmatprep.subr.bf16.mxu0 0
          %702 = vmatpush1.bf16.msra.mxu0 %v678
          %703 = vmatprep.subr.bf16.mxu0 0
          %704 = vmatpush1.bf16.msra.mxu0 0
          %705 = vmatprep.subr.bf16.mxu0 0
          %706 = vmatpush1.bf16.msra.mxu0 0
          %707 = vmatprep.subr.bf16.mxu0 0
          %708 = vmatpush1.bf16.msra.mxu0 0
          %709 = vmatprep.subr.bf16.mxu0 0
          %710 = vmatpush1.bf16.msra.mxu0 0
          %711 = vmatprep.subr.bf16.mxu0 0
          %712 = vmatpush1.bf16.msra.mxu0 0
          %713 = vmatprep.subr.bf16.mxu0 0
          %714 = vmatpush1.bf16.msra.mxu0 0
          %715 = vmatprep.subr.bf16.mxu0 0
          %716 = vmatpush1.bf16.msra.mxu0 0
          %717 = vmatprep.subr.bf16.mxu0 0
          %718 = vmatpush1.bf16.msra.mxu0 0
          %719 = vmatprep.mubr.bf16.mxu0 0
          %720 = vmatmul.mubr.bf16.gmra.mrb[0].mxu0 %v623
          %v721 = vpop.f32.mrb[0].mxu0
          %v722 = vadd.f32 0.0, %v721
          %v723 = vpop.f32.mrb[0].mxu0
          %v724 = vpop.f32.mrb[0].mxu0
          %v725 = vadd.f32 0.0, %v724
          %v726 = vpop.f32.mrb[0].mxu0
          %727 = vmatprep.mubr.bf16.mxu0 0
          %728 = vmatmul.mubr.bf16.gmra.mrb[0].mxu0 %v624
          %v729 = vpop.f32.mrb[0].mxu0
          %v730 = vadd.f32 0.0, %v729
          %v731 = vpop.f32.mrb[0].mxu0
          %v732 = vpop.f32.mrb[0].mxu0
          %v733 = vadd.f32 0.0, %v732
          %v734 = vpop.f32.mrb[0].mxu0
          %735 = vmatprep.mubr.bf16.mxu0 0
          %736 = vmatmul.mubr.bf16.gmra.mrb[0].mxu0 %v625
          %v737 = vpop.f32.mrb[0].mxu0
          %v738 = vadd.f32 0.0, %v737
          %v739 = vpop.f32.mrb[0].mxu0
          %v740 = vpop.f32.mrb[0].mxu0
          %v741 = vadd.f32 0.0, %v740
          %v742 = vpop.f32.mrb[0].mxu0
          %743 = vmatprep.mubr.bf16.mxu0 0
          %744 = vmatmul.mubr.bf16.gmra.mrb[0].mxu0 %v626
          %v745 = vpop.f32.mrb[0].mxu0
          %v746 = vadd.f32 0.0, %v745
          %v747 = vpop.f32.mrb[0].mxu0
          %v748 = vpop.f32.mrb[0].mxu0
          %v749 = vadd.f32 0.0, %v748
          %v750 = vpop.f32.mrb[0].mxu0
          %751 = vmatprep.mubr.bf16.mxu0 0
          %752 = vmatmul.mubr.bf16.gmra.mrb[0].mxu0 %v627
          %v753 = vpop.f32.mrb[0].mxu0
          %v754 = vadd.f32 0.0, %v753
          %v755 = vpop.f32.mrb[0].mxu0
          %v756 = vpop.f32.mrb[0].mxu0
          %v757 = vadd.f32 0.0, %v756
          %v758 = vpop.f32.mrb[0].mxu0
          %759 = vmatprep.mubr.bf16.mxu0 0
          %760 = vmatmul.mubr.bf16.gmra.mrb[0].mxu0 %v628
          %v761 = vpop.f32.mrb[0].mxu0
          %v762 = vadd.f32 0.0, %v761
          %v763 = vpop.f32.mrb[0].mxu0
          %v764 = vpop.f32.mrb[0].mxu0
          %v765 = vadd.f32 0.0, %v764
          %v766 = vpop.f32.mrb[0].mxu0
          %767 = vmatprep.mubr.bf16.mxu0 0
          %768 = vmatmul.mubr.bf16.gmra.mrb[0].mxu0 %v629
          %v769 = vpop.f32.mrb[0].mxu0
          %v770 = vadd.f32 0.0, %v769
          %v771 = vpop.f32.mrb[0].mxu0
          %v772 = vpop.f32.mrb[0].mxu0
          %v773 = vadd.f32 0.0, %v772
          %v774 = vpop.f32.mrb[0].mxu0
          %775 = vmatprep.mubr.bf16.mxu0 0
          %776 = vmatmul.mubr.bf16.gmra.mrb[0].mxu0 %v630
          %v777 = vpop.f32.mrb[0].mxu0
          %v778 = vadd.f32 0.0, %v777
          %v779 = vpop.f32.mrb[0].mxu0
          %v780 = vpop.f32.mrb[0].mxu0
          %v781 = vadd.f32 0.0, %v780
          %v782 = vpop.f32.mrb[0].mxu0
          %783 = vdwg.mxu0
          %v784 = vunpack.c.l.bf16 %v559
          %v785 = vunpack.c.l.bf16 %v560
          %v786 = vunpack.c.l.bf16 %v561
          %v787 = vunpack.c.l.bf16 %v562
          %v788 = vunpack.c.l.bf16 %v563
          %v789 = vunpack.c.l.bf16 %v564
          %v790 = vunpack.c.l.bf16 %v565
          %v791 = vunpack.c.l.bf16 %v566
          %v792 = vunpack.c.l.bf16 %v567
          %v793 = vunpack.c.l.bf16 %v568
          %v794 = vunpack.c.l.bf16 %v569
          %v795 = vunpack.c.l.bf16 %v570
          %v796 = vunpack.c.l.bf16 %v571
          %v797 = vunpack.c.l.bf16 %v572
          %v798 = vunpack.c.l.bf16 %v573
          %v799 = vunpack.c.l.bf16 %v574
          %v800 = vmul.f32 %v784, %v784
          %v801 = vmul.f32 %v785, %v785
          %v802 = vmul.f32 %v786, %v786
          %v803 = vmul.f32 %v787, %v787
          %v804 = vmul.f32 %v788, %v788
          %v805 = vmul.f32 %v789, %v789
          %v806 = vmul.f32 %v790, %v790
          %v807 = vmul.f32 %v791, %v791
          %v808 = vmul.f32 %v792, %v792
          %v809 = vmul.f32 %v793, %v793
          %v810 = vmul.f32 %v794, %v794
          %v811 = vmul.f32 %v795, %v795
          %v812 = vmul.f32 %v796, %v796
          %v813 = vmul.f32 %v797, %v797
          %v814 = vmul.f32 %v798, %v798
          %v815 = vmul.f32 %v799, %v799
          %816 = vadd.xlane.f32.xlu0 %v800
          %v817 = vpop.xlane.xlu0 %816
          %818 = vadd.xlane.f32.xlu0 %v801
          %v819 = vpop.xlane.xlu0 %818
          %820 = vadd.xlane.f32.xlu0 %v802
          %v821 = vpop.xlane.xlu0 %820
          %822 = vadd.xlane.f32.xlu0 %v803
          %v823 = vpop.xlane.xlu0 %822
          %824 = vadd.xlane.f32.xlu0 %v804
          %v825 = vpop.xlane.xlu0 %824
          %826 = vadd.xlane.f32.xlu0 %v805
          %v827 = vpop.xlane.xlu0 %826
          %828 = vadd.xlane.f32.xlu0 %v806
          %v829 = vpop.xlane.xlu0 %828
          %830 = vadd.xlane.f32.xlu0 %v807
          %v831 = vpop.xlane.xlu0 %830
          %832 = vadd.xlane.f32.xlu0 %v808
          %v833 = vpop.xlane.xlu0 %832
          %834 = vadd.xlane.f32.xlu0 %v809
          %v835 = vpop.xlane.xlu0 %834
          %836 = vadd.xlane.f32.xlu0 %v810
          %v837 = vpop.xlane.xlu0 %836
          %838 = vadd.xlane.f32.xlu0 %v811
          %v839 = vpop.xlane.xlu0 %838
          %840 = vadd.xlane.f32.xlu0 %v812
          %v841 = vpop.xlane.xlu0 %840
          %842 = vadd.xlane.f32.xlu0 %v813
          %v843 = vpop.xlane.xlu0 %842
          %844 = vadd.xlane.f32.xlu0 %v814
          %v845 = vpop.xlane.xlu0 %844
          %846 = vadd.xlane.f32.xlu0 %v815
          %v847 = vpop.xlane.xlu0 %846
          %v848 = vrsqrt.pop %v817
          %v849 = vmul.f32 %v817, %v848
          %vm850 = vcmp.eq.f32.partialorder %v817, inf
          %v851 = vsel %vm850, %v817, %v849
          %vm852 = vcmp.eq.f32.partialorder %v817, 0.0
          %v853 = vand.u32 %v817, 2147483648
          %v854 = vsel %vm852, %v853, %v851
          %v855 = vrsqrt.pop %v819
          %v856 = vmul.f32 %v819, %v855
          %vm857 = vcmp.eq.f32.partialorder %v819, inf
          %v858 = vsel %vm857, %v819, %v856
          %vm859 = vcmp.eq.f32.partialorder %v819, 0.0
          %v860 = vand.u32 %v819, 2147483648
          %v861 = vsel %vm859, %v860, %v858
          %v862 = vrsqrt.pop %v821
          %v863 = vmul.f32 %v821, %v862
          %vm864 = vcmp.eq.f32.partialorder %v821, inf
          %v865 = vsel %vm864, %v821, %v863
          %vm866 = vcmp.eq.f32.partialorder %v821, 0.0
          %v867 = vand.u32 %v821, 2147483648
          %v868 = vsel %vm866, %v867, %v865
          %v869 = vrsqrt.pop %v823
          %v870 = vmul.f32 %v823, %v869
          %vm871 = vcmp.eq.f32.partialorder %v823, inf
          %v872 = vsel %vm871, %v823, %v870
          %vm873 = vcmp.eq.f32.partialorder %v823, 0.0
          %v874 = vand.u32 %v823, 2147483648
          %v875 = vsel %vm873, %v874, %v872
          %v876 = vrsqrt.pop %v825
          %v877 = vmul.f32 %v825, %v876
          %vm878 = vcmp.eq.f32.partialorder %v825, inf
          %v879 = vsel %vm878, %v825, %v877
          %vm880 = vcmp.eq.f32.partialorder %v825, 0.0
          %v881 = vand.u32 %v825, 2147483648
          %v882 = vsel %vm880, %v881, %v879
          %v883 = vrsqrt.pop %v827
          %v884 = vmul.f32 %v827, %v883
          %vm885 = vcmp.eq.f32.partialorder %v827, inf
          %v886 = vsel %vm885, %v827, %v884
          %vm887 = vcmp.eq.f32.partialorder %v827, 0.0
          %v888 = vand.u32 %v827, 2147483648
          %v889 = vsel %vm887, %v888, %v886
          %v890 = vrsqrt.pop %v829
          %v891 = vmul.f32 %v829, %v890
          %vm892 = vcmp.eq.f32.partialorder %v829, inf
          %v893 = vsel %vm892, %v829, %v891
          %vm894 = vcmp.eq.f32.partialorder %v829, 0.0
          %v895 = vand.u32 %v829, 2147483648
          %v896 = vsel %vm894, %v895, %v893
          %v897 = vrsqrt.pop %v831
          %v898 = vmul.f32 %v831, %v897
          %vm899 = vcmp.eq.f32.partialorder %v831, inf
          %v900 = vsel %vm899, %v831, %v898
          %vm901 = vcmp.eq.f32.partialorder %v831, 0.0
          %v902 = vand.u32 %v831, 2147483648
          %v903 = vsel %vm901, %v902, %v900
          %v904 = vrsqrt.pop %v833
          %v905 = vmul.f32 %v833, %v904
          %vm906 = vcmp.eq.f32.partialorder %v833, inf
          %v907 = vsel %vm906, %v833, %v905
          %vm908 = vcmp.eq.f32.partialorder %v833, 0.0
          %v909 = vand.u32 %v833, 2147483648
          %v910 = vsel %vm908, %v909, %v907
          %v911 = vrsqrt.pop %v835
          %v912 = vmul.f32 %v835, %v911
          %vm913 = vcmp.eq.f32.partialorder %v835, inf
          %v914 = vsel %vm913, %v835, %v912
          %vm915 = vcmp.eq.f32.partialorder %v835, 0.0
          %v916 = vand.u32 %v835, 2147483648
          %v917 = vsel %vm915, %v916, %v914
          %v918 = vrsqrt.pop %v837
          %v919 = vmul.f32 %v837, %v918
          %vm920 = vcmp.eq.f32.partialorder %v837, inf
          %v921 = vsel %vm920, %v837, %v919
          %vm922 = vcmp.eq.f32.partialorder %v837, 0.0
          %v923 = vand.u32 %v837, 2147483648
          %v924 = vsel %vm922, %v923, %v921
          %v925 = vrsqrt.pop %v839
          %v926 = vmul.f32 %v839, %v925
          %vm927 = vcmp.eq.f32.partialorder %v839, inf
          %v928 = vsel %vm927, %v839, %v926
          %vm929 = vcmp.eq.f32.partialorder %v839, 0.0
          %v930 = vand.u32 %v839, 2147483648
          %v931 = vsel %vm929, %v930, %v928
          %v932 = vrsqrt.pop %v841
          %v933 = vmul.f32 %v841, %v932
          %vm934 = vcmp.eq.f32.partialorder %v841, inf
          %v935 = vsel %vm934, %v841, %v933
          %vm936 = vcmp.eq.f32.partialorder %v841, 0.0
          %v937 = vand.u32 %v841, 2147483648
          %v938 = vsel %vm936, %v937, %v935
          %v939 = vrsqrt.pop %v843
          %v940 = vmul.f32 %v843, %v939
          %vm941 = vcmp.eq.f32.partialorder %v843, inf
          %v942 = vsel %vm941, %v843, %v940
          %vm943 = vcmp.eq.f32.partialorder %v843, 0.0
          %v944 = vand.u32 %v843, 2147483648
          %v945 = vsel %vm943, %v944, %v942
          %v946 = vrsqrt.pop %v845
          %v947 = vmul.f32 %v845, %v946
          %vm948 = vcmp.eq.f32.partialorder %v845, inf
          %v949 = vsel %vm948, %v845, %v947
          %vm950 = vcmp.eq.f32.partialorder %v845, 0.0
          %v951 = vand.u32 %v845, 2147483648
          %v952 = vsel %vm950, %v951, %v949
          %v953 = vrsqrt.pop %v847
          %v954 = vmul.f32 %v847, %v953
          %vm955 = vcmp.eq.f32.partialorder %v847, inf
          %v956 = vsel %vm955, %v847, %v954
          %vm957 = vcmp.eq.f32.partialorder %v847, 0.0
          %v958 = vand.u32 %v847, 2147483648
          %v959 = vsel %vm957, %v958, %v956
          %v960 = vld [vmem:[#allocation9] sm:$0x1]
          %v962 = vlaneseq
          %v963 = vshrl.u32 %v962, 7
          %v964 = vsub.s32 0, %v963
          %v965 = vrot.slane %v960, %v964
          %v967 = vmul.f32 %v854, %v965
          %v968 = vmul.f32 %v861, %v965
          %v969 = vmul.f32 %v868, %v965
          %v970 = vmul.f32 %v875, %v965
          %v971 = vmul.f32 %v882, %v965
          %v972 = vmul.f32 %v889, %v965
          %v973 = vmul.f32 %v896, %v965
          %v974 = vmul.f32 %v903, %v965
          %v975 = vmul.f32 %v910, %v965
          %v976 = vmul.f32 %v917, %v965
          %v977 = vmul.f32 %v924, %v965
          %v978 = vmul.f32 %v931, %v965
          %v979 = vmul.f32 %v938, %v965
          %v980 = vmul.f32 %v945, %v965
          %v981 = vmul.f32 %v952, %v965
          %v982 = vmul.f32 %v959, %v965
          %vm983 = vcmp.eq.f32.partialorder %v967, 0.0
          %vm984 = vcmp.eq.f32.partialorder %v968, 0.0
          %vm985 = vcmp.eq.f32.partialorder %v969, 0.0
          %vm986 = vcmp.eq.f32.partialorder %v970, 0.0
          %vm987 = vcmp.eq.f32.partialorder %v971, 0.0
          %vm988 = vcmp.eq.f32.partialorder %v972, 0.0
          %vm989 = vcmp.eq.f32.partialorder %v973, 0.0
          %vm990 = vcmp.eq.f32.partialorder %v974, 0.0
          %vm991 = vcmp.eq.f32.partialorder %v975, 0.0
          %vm992 = vcmp.eq.f32.partialorder %v976, 0.0
          %vm993 = vcmp.eq.f32.partialorder %v977, 0.0
          %vm994 = vcmp.eq.f32.partialorder %v978, 0.0
          %vm995 = vcmp.eq.f32.partialorder %v979, 0.0
          %vm996 = vcmp.eq.f32.partialorder %v980, 0.0
          %vm997 = vcmp.eq.f32.partialorder %v981, 0.0
          %vm998 = vcmp.eq.f32.partialorder %v982, 0.0
          %v999 = vsel %vm983, 1e-13, %v967
          %v1000 = vsel %vm984, 1e-13, %v968
          %v1001 = vsel %vm985, 1e-13, %v969
          %v1002 = vsel %vm986, 1e-13, %v970
          %v1003 = vsel %vm987, 1e-13, %v971
          %v1004 = vsel %vm988, 1e-13, %v972
          %v1005 = vsel %vm989, 1e-13, %v973
          %v1006 = vsel %vm990, 1e-13, %v974
          %v1007 = vsel %vm991, 1e-13, %v975
          %v1008 = vsel %vm992, 1e-13, %v976
          %v1009 = vsel %vm993, 1e-13, %v977
          %v1010 = vsel %vm994, 1e-13, %v978
          %v1011 = vsel %vm995, 1e-13, %v979
          %v1012 = vsel %vm996, 1e-13, %v980
          %v1013 = vsel %vm997, 1e-13, %v981
          %v1014 = vsel %vm998, 1e-13, %v982
          %v1015 = vrcp.pop %v999
          %v1016 = vrcp.pop %v1000
          %v1017 = vrcp.pop %v1001
          %v1018 = vrcp.pop %v1002
          %v1019 = vrcp.pop %v1003
          %v1020 = vrcp.pop %v1004
          %v1021 = vrcp.pop %v1005
          %v1022 = vrcp.pop %v1006
          %v1023 = vrcp.pop %v1007
          %v1024 = vrcp.pop %v1008
          %v1025 = vrcp.pop %v1009
          %v1026 = vrcp.pop %v1010
          %v1027 = vrcp.pop %v1011
          %v1028 = vrcp.pop %v1012
          %v1029 = vrcp.pop %v1013
          %v1030 = vrcp.pop %v1014
          %v1031 = vmul.f32 %v722, %v1015
          %v1032 = vmul.f32 %v725, %v1016
          %v1033 = vmul.f32 %v730, %v1017
          %v1034 = vmul.f32 %v733, %v1018
          %v1035 = vmul.f32 %v738, %v1019
          %v1036 = vmul.f32 %v741, %v1020
          %v1037 = vmul.f32 %v746, %v1021
          %v1038 = vmul.f32 %v749, %v1022
          %v1039 = vmul.f32 %v754, %v1023
          %v1040 = vmul.f32 %v757, %v1024
          %v1041 = vmul.f32 %v762, %v1025
          %v1042 = vmul.f32 %v765, %v1026
          %v1043 = vmul.f32 %v770, %v1027
          %v1044 = vmul.f32 %v773, %v1028
          %v1045 = vmul.f32 %v778, %v1029
          %v1046 = vmul.f32 %v781, %v1030
          %1047 = vst [vmem:[#allocation2 + $0x20] sm:$0xff] %v1031
          %1048 = vst [vmem:[#allocation2 + $0x28] sm:$0xff] %v1032
          %1049 = vst [vmem:[#allocation2 + $0x30] sm:$0xff] %v1033
          %1050 = vst [vmem:[#allocation2 + $0x38] sm:$0xff] %v1034
          %1051 = vst [vmem:[#allocation2 + $0x40] sm:$0xff] %v1035
          %1052 = vst [vmem:[#allocation2 + $0x48] sm:$0xff] %v1036
          %1053 = vst [vmem:[#allocation2 + $0x50] sm:$0xff] %v1037
          %1054 = vst [vmem:[#allocation2 + $0x58] sm:$0xff] %v1038
          %1055 = vst [vmem:[#allocation2 + $0xa0] sm:$0xff] %v1039
          %1056 = vst [vmem:[#allocation2 + $0xa8] sm:$0xff] %v1040
          %1057 = vst [vmem:[#allocation2 + $0xb0] sm:$0xff] %v1041
          %1058 = vst [vmem:[#allocation2 + $0xb8] sm:$0xff] %v1042
          %1059 = vst [vmem:[#allocation2 + $0xc0] sm:$0xff] %v1043
          %1060 = vst [vmem:[#allocation2 + $0xc8] sm:$0xff] %v1044
          %1061 = vst [vmem:[#allocation2 + $0xd0] sm:$0xff] %v1045
          %1062 = vst [vmem:[#allocation2 + $0xd8] sm:$0xff] %v1046
          %v1063 = vld [vmem:[#allocation2 + $0x7] sm:$0xff]
          %v1064 = vld [vmem:[#allocation2 + $0xf] sm:$0xff]
          %v1065 = vld [vmem:[#allocation2 + $0x17] sm:$0xff]
          %v1066 = vld [vmem:[#allocation2 + $0x1f] sm:$0xff]
          %v1067 = vld [vmem:[#allocation2 + $0x27] sm:$0xff]
          %v1068 = vld [vmem:[#allocation2 + $0x2f] sm:$0xff]
          %v1069 = vld [vmem:[#allocation2 + $0x37] sm:$0xff]
          %v1070 = vld [vmem:[#allocation2 + $0x3f] sm:$0xff]
          %v1071 = vld [vmem:[#allocation2 + $0x87] sm:$0xff]
          %v1072 = vld [vmem:[#allocation2 + $0x8f] sm:$0xff]
          %v1073 = vld [vmem:[#allocation2 + $0x97] sm:$0xff]
          %v1074 = vld [vmem:[#allocation2 + $0x9f] sm:$0xff]
          %v1075 = vld [vmem:[#allocation2 + $0xa7] sm:$0xff]
          %v1076 = vld [vmem:[#allocation2 + $0xaf] sm:$0xff]
          %v1077 = vld [vmem:[#allocation2 + $0xb7] sm:$0xff]
          %v1078 = vld [vmem:[#allocation2 + $0xbf] sm:$0xff]
          %v1079 = vld [vmem:[#allocation2 + $0x8] sm:$0xff]
          %v1080 = vld [vmem:[#allocation2 + $0x10] sm:$0xff]
          %v1081 = vld [vmem:[#allocation2 + $0x18] sm:$0xff]
          %v1082 = vld [vmem:[#allocation2 + $0x20] sm:$0xff]
          %v1083 = vld [vmem:[#allocation2 + $0x28] sm:$0xff]
          %v1084 = vld [vmem:[#allocation2 + $0x30] sm:$0xff]
          %v1085 = vld [vmem:[#allocation2 + $0x38] sm:$0xff]
          %v1086 = vld [vmem:[#allocation2 + $0x40] sm:$0xff]
          %v1087 = vld [vmem:[#allocation2 + $0x88] sm:$0xff]
          %v1088 = vld [vmem:[#allocation2 + $0x90] sm:$0xff]
          %v1089 = vld [vmem:[#allocation2 + $0x98] sm:$0xff]
          %v1090 = vld [vmem:[#allocation2 + $0xa0] sm:$0xff]
          %v1091 = vld [vmem:[#allocation2 + $0xa8] sm:$0xff]
          %v1092 = vld [vmem:[#allocation2 + $0xb0] sm:$0xff]
          %v1093 = vld [vmem:[#allocation2 + $0xb8] sm:$0xff]
          %v1094 = vld [vmem:[#allocation2 + $0xc0] sm:$0xff]
          %v1095 = vpack.c.bf16 %v1064, %v1063
          %v1096 = vpack.c.bf16 %v1080, %v1079
          %v1097 = vpack.c.bf16 %v1066, %v1065
          %v1098 = vpack.c.bf16 %v1082, %v1081
          %v1099 = vpack.c.bf16 %v1068, %v1067
          %v1100 = vpack.c.bf16 %v1084, %v1083
          %v1101 = vpack.c.bf16 %v1070, %v1069
          %v1102 = vpack.c.bf16 %v1086, %v1085
          %v1103 = vpack.c.bf16 %v1072, %v1071
          %v1104 = vpack.c.bf16 %v1088, %v1087
          %v1105 = vpack.c.bf16 %v1074, %v1073
          %v1106 = vpack.c.bf16 %v1090, %v1089
          %v1107 = vpack.c.bf16 %v1076, %v1075
          %v1108 = vpack.c.bf16 %v1092, %v1091
          %v1109 = vpack.c.bf16 %v1078, %v1077
          %v1110 = vpack.c.bf16 %v1094, %v1093
          %v1111 = vld [vmem:[#allocation11] sm:$0xf]
          %v1112 = vld [vmem:[#allocation11 + $0x4] sm:$0xf]
          %v1113 = vld [vmem:[#allocation11 + $0x8] sm:$0xf]
          %v1114 = vld [vmem:[#allocation11 + $0xc] sm:$0xf]
          %v1115 = vld [vmem:[#allocation11 + $0x10] sm:$0xf]
          %v1116 = vld [vmem:[#allocation11 + $0x14] sm:$0xf]
          %v1117 = vld [vmem:[#allocation11 + $0x18] sm:$0xf]
          %v1118 = vld [vmem:[#allocation11 + $0x1c] sm:$0xf]
          %v1119 = vld [vmem:[#allocation11 + $0x20] sm:$0xf]
          %v1120 = vld [vmem:[#allocation11 + $0x24] sm:$0xf]
          %v1121 = vld [vmem:[#allocation11 + $0x28] sm:$0xf]
          %v1122 = vld [vmem:[#allocation11 + $0x2c] sm:$0xf]
          %v1123 = vld [vmem:[#allocation11 + $0x30] sm:$0xf]
          %v1124 = vld [vmem:[#allocation11 + $0x34] sm:$0xf]
          %v1125 = vld [vmem:[#allocation11 + $0x38] sm:$0xf]
          %v1126 = vld [vmem:[#allocation11 + $0x3c] sm:$0xf]
          %v1127 = vld [vmem:[#allocation11 + $0x40] sm:$0xf]
          %v1128 = vld [vmem:[#allocation11 + $0x44] sm:$0xf]
          %v1129 = vld [vmem:[#allocation11 + $0x48] sm:$0xf]
          %v1130 = vld [vmem:[#allocation11 + $0x4c] sm:$0xf]
          %v1131 = vld [vmem:[#allocation11 + $0x50] sm:$0xf]
          %v1132 = vld [vmem:[#allocation11 + $0x54] sm:$0xf]
          %v1133 = vld [vmem:[#allocation11 + $0x58] sm:$0xf]
          %v1134 = vld [vmem:[#allocation11 + $0x5c] sm:$0xf]
          %v1135 = vld [vmem:[#allocation11 + $0x60] sm:$0xf]
          %v1136 = vld [vmem:[#allocation11 + $0x64] sm:$0xf]
          %v1137 = vld [vmem:[#allocation11 + $0x68] sm:$0xf]
          %v1138 = vld [vmem:[#allocation11 + $0x6c] sm:$0xf]
          %v1139 = vld [vmem:[#allocation11 + $0x70] sm:$0xf]
          %v1140 = vld [vmem:[#allocation11 + $0x74] sm:$0xf]
          %v1141 = vld [vmem:[#allocation11 + $0x78] sm:$0xf]
          %v1142 = vld [vmem:[#allocation11 + $0x7c] sm:$0xf]
          %v1143 = vld [vmem:[#allocation2 + $0x9] sm:$0xff]
          %v1144 = vld [vmem:[#allocation2 + $0x11] sm:$0xff]
          %v1145 = vld [vmem:[#allocation2 + $0x19] sm:$0xff]
          %v1146 = vld [vmem:[#allocation2 + $0x21] sm:$0xff]
          %v1147 = vld [vmem:[#allocation2 + $0x29] sm:$0xff]
          %v1148 = vld [vmem:[#allocation2 + $0x31] sm:$0xff]
          %v1149 = vld [vmem:[#allocation2 + $0x39] sm:$0xff]
          %v1150 = vld [vmem:[#allocation2 + $0x41] sm:$0xff]
          %v1151 = vld [vmem:[#allocation2 + $0x89] sm:$0xff]
          %v1152 = vld [vmem:[#allocation2 + $0x91] sm:$0xff]
          %v1153 = vld [vmem:[#allocation2 + $0x99] sm:$0xff]
          %v1154 = vld [vmem:[#allocation2 + $0xa1] sm:$0xff]
          %v1155 = vld [vmem:[#allocation2 + $0xa9] sm:$0xff]
          %v1156 = vld [vmem:[#allocation2 + $0xb1] sm:$0xff]
          %v1157 = vld [vmem:[#allocation2 + $0xb9] sm:$0xff]
          %v1158 = vld [vmem:[#allocation2 + $0xc1] sm:$0xff]
          %v1159 = vld [vmem:[#allocation2 + $0xa] sm:$0xff]
          %v1160 = vld [vmem:[#allocation2 + $0x12] sm:$0xff]
          %v1161 = vld [vmem:[#allocation2 + $0x1a] sm:$0xff]
          %v1162 = vld [vmem:[#allocation2 + $0x22] sm:$0xff]
          %v1163 = vld [vmem:[#allocation2 + $0x2a] sm:$0xff]
          %v1164 = vld [vmem:[#allocation2 + $0x32] sm:$0xff]
          %v1165 = vld [vmem:[#allocation2 + $0x3a] sm:$0xff]
          %v1166 = vld [vmem:[#allocation2 + $0x42] sm:$0xff]
          %v1167 = vld [vmem:[#allocation2 + $0x8a] sm:$0xff]
          %v1168 = vld [vmem:[#allocation2 + $0x92] sm:$0xff]
          %v1169 = vld [vmem:[#allocation2 + $0x9a] sm:$0xff]
          %v1170 = vld [vmem:[#allocation2 + $0xa2] sm:$0xff]
          %v1171 = vld [vmem:[#allocation2 + $0xaa] sm:$0xff]
          %v1172 = vld [vmem:[#allocation2 + $0xb2] sm:$0xff]
          %v1173 = vld [vmem:[#allocation2 + $0xba] sm:$0xff]
          %v1174 = vld [vmem:[#allocation2 + $0xc2] sm:$0xff]
          %v1175 = vpack.c.bf16 %v1144, %v1143
          %v1176 = vpack.c.bf16 %v1160, %v1159
          %v1177 = vpack.c.bf16 %v1146, %v1145
          %v1178 = vpack.c.bf16 %v1162, %v1161
          %v1179 = vpack.c.bf16 %v1148, %v1147
          %v1180 = vpack.c.bf16 %v1164, %v1163
          %v1181 = vpack.c.bf16 %v1150, %v1149
          %v1182 = vpack.c.bf16 %v1166, %v1165
          %v1183 = vpack.c.bf16 %v1152, %v1151
          %v1184 = vpack.c.bf16 %v1168, %v1167
          %v1185 = vpack.c.bf16 %v1154, %v1153
          %v1186 = vpack.c.bf16 %v1170, %v1169
          %v1187 = vpack.c.bf16 %v1156, %v1155
          %v1188 = vpack.c.bf16 %v1172, %v1171
          %v1189 = vpack.c.bf16 %v1158, %v1157
          %v1190 = vpack.c.bf16 %v1174, %v1173
          %s1191 = scalar_lea.vmem [#allocation11], 128
          %v1192 = vld [vmem:[%s1191] sm:$0xf]
          %v1193 = vld [vmem:[%s1191 + $0x4] sm:$0xf]
          %v1194 = vld [vmem:[%s1191 + $0x8] sm:$0xf]
          %v1195 = vld [vmem:[%s1191 + $0xc] sm:$0xf]
          %v1196 = vld [vmem:[%s1191 + $0x10] sm:$0xf]
          %v1197 = vld [vmem:[%s1191 + $0x14] sm:$0xf]
          %v1198 = vld [vmem:[%s1191 + $0x18] sm:$0xf]
          %v1199 = vld [vmem:[%s1191 + $0x1c] sm:$0xf]
          %v1200 = vld [vmem:[%s1191 + $0x20] sm:$0xf]
          %v1201 = vld [vmem:[%s1191 + $0x24] sm:$0xf]
          %v1202 = vld [vmem:[%s1191 + $0x28] sm:$0xf]
          %v1203 = vld [vmem:[%s1191 + $0x2c] sm:$0xf]
          %v1204 = vld [vmem:[%s1191 + $0x30] sm:$0xf]
          %v1205 = vld [vmem:[%s1191 + $0x34] sm:$0xf]
          %v1206 = vld [vmem:[%s1191 + $0x38] sm:$0xf]
          %v1207 = vld [vmem:[%s1191 + $0x3c] sm:$0xf]
          %v1208 = vld [vmem:[%s1191 + $0x40] sm:$0xf]
          %v1209 = vld [vmem:[%s1191 + $0x44] sm:$0xf]
          %v1210 = vld [vmem:[%s1191 + $0x48] sm:$0xf]
          %v1211 = vld [vmem:[%s1191 + $0x4c] sm:$0xf]
          %v1212 = vld [vmem:[%s1191 + $0x50] sm:$0xf]
          %v1213 = vld [vmem:[%s1191 + $0x54] sm:$0xf]
          %v1214 = vld [vmem:[%s1191 + $0x58] sm:$0xf]
          %v1215 = vld [vmem:[%s1191 + $0x5c] sm:$0xf]
          %v1216 = vld [vmem:[%s1191 + $0x60] sm:$0xf]
          %v1217 = vld [vmem:[%s1191 + $0x64] sm:$0xf]
          %v1218 = vld [vmem:[%s1191 + $0x68] sm:$0xf]
          %v1219 = vld [vmem:[%s1191 + $0x6c] sm:$0xf]
          %v1220 = vld [vmem:[%s1191 + $0x70] sm:$0xf]
          %v1221 = vld [vmem:[%s1191 + $0x74] sm:$0xf]
          %v1222 = vld [vmem:[%s1191 + $0x78] sm:$0xf]
          %v1223 = vld [vmem:[%s1191 + $0x7c] sm:$0xf]
          %v1256 = vunpack.c.l.b16 %v1192
          %v1257 = vunpack.c.l.b16 %v1193
          %v1258 = vunpack.c.l.b16 %v1194
          %v1259 = vunpack.c.l.b16 %v1195
          %v1260 = vunpack.c.l.b16 %v1196
          %v1261 = vunpack.c.l.b16 %v1197
          %v1262 = vunpack.c.l.b16 %v1198
          %v1263 = vunpack.c.l.b16 %v1199
          %v1264 = vunpack.c.l.b16 %v1200
          %v1265 = vunpack.c.l.b16 %v1201
          %v1266 = vunpack.c.l.b16 %v1202
          %v1267 = vunpack.c.l.b16 %v1203
          %v1268 = vunpack.c.l.b16 %v1204
          %v1269 = vunpack.c.l.b16 %v1205
          %v1270 = vunpack.c.l.b16 %v1206
          %v1271 = vunpack.c.l.b16 %v1207
          %v1272 = vunpack.c.l.b16 %v1208
          %v1273 = vunpack.c.l.b16 %v1209
          %v1274 = vunpack.c.l.b16 %v1210
          %v1275 = vunpack.c.l.b16 %v1211
          %v1276 = vunpack.c.l.b16 %v1212
          %v1277 = vunpack.c.l.b16 %v1213
          %v1278 = vunpack.c.l.b16 %v1214
          %v1279 = vunpack.c.l.b16 %v1215
          %v1280 = vunpack.c.l.b16 %v1216
          %v1281 = vunpack.c.l.b16 %v1217
          %v1282 = vunpack.c.l.b16 %v1218
          %v1283 = vunpack.c.l.b16 %v1219
          %v1284 = vunpack.c.l.b16 %v1220
          %v1285 = vunpack.c.l.b16 %v1221
          %v1286 = vunpack.c.l.b16 %v1222
          %v1287 = vunpack.c.l.b16 %v1223
          %v1288 = vpack.c.b16 %v1257, %v1256
          %v1289 = vpack.c.b16 %v1259, %v1258
          %v1290 = vpack.c.b16 %v1261, %v1260
          %v1291 = vpack.c.b16 %v1263, %v1262
          %v1292 = vpack.c.b16 %v1265, %v1264
          %v1293 = vpack.c.b16 %v1267, %v1266
          %v1294 = vpack.c.b16 %v1269, %v1268
          %v1295 = vpack.c.b16 %v1271, %v1270
          %v1296 = vpack.c.b16 %v1273, %v1272
          %v1297 = vpack.c.b16 %v1275, %v1274
          %v1298 = vpack.c.b16 %v1277, %v1276
          %v1299 = vpack.c.b16 %v1279, %v1278
          %v1300 = vpack.c.b16 %v1281, %v1280
          %v1301 = vpack.c.b16 %v1283, %v1282
          %v1302 = vpack.c.b16 %v1285, %v1284
          %v1303 = vpack.c.b16 %v1287, %v1286
          %1320 = vmatprep.subr.bf16.mxu0 0
          %1321 = vmatpush1.bf16.msra.mxu0 %v1288
          %1322 = vmatprep.subr.bf16.mxu0 0
          %1323 = vmatpush1.bf16.msra.mxu0 %v1289
          %1324 = vmatprep.subr.bf16.mxu0 0
          %1325 = vmatpush1.bf16.msra.mxu0 %v1290
          %1326 = vmatprep.subr.bf16.mxu0 0
          %1327 = vmatpush1.bf16.msra.mxu0 %v1291
          %1328 = vmatprep.subr.bf16.mxu0 0
          %1329 = vmatpush1.bf16.msra.mxu0 %v1292
          %1330 = vmatprep.subr.bf16.mxu0 0
          %1331 = vmatpush1.bf16.msra.mxu0 %v1293
          %1332 = vmatprep.subr.bf16.mxu0 0
          %1333 = vmatpush1.bf16.msra.mxu0 %v1294
          %1334 = vmatprep.subr.bf16.mxu0 0
          %1335 = vmatpush1.bf16.msra.mxu0 %v1295
          %1336 = vmatprep.subr.bf16.mxu0 0
          %1337 = vmatpush1.bf16.msra.mxu0 %v1296
          %1338 = vmatprep.subr.bf16.mxu0 0
          %1339 = vmatpush1.bf16.msra.mxu0 %v1297
          %1340 = vmatprep.subr.bf16.mxu0 0
          %1341 = vmatpush1.bf16.msra.mxu0 %v1298
          %1342 = vmatprep.subr.bf16.mxu0 0
          %1343 = vmatpush1.bf16.msra.mxu0 %v1299
          %1344 = vmatprep.subr.bf16.mxu0 0
          %1345 = vmatpush1.bf16.msra.mxu0 %v1300
          %1346 = vmatprep.subr.bf16.mxu0 0
          %1347 = vmatpush1.bf16.msra.mxu0 %v1301
          %1348 = vmatprep.subr.bf16.mxu0 0
          %1349 = vmatpush1.bf16.msra.mxu0 %v1302
          %1350 = vmatprep.subr.bf16.mxu0 0
          %1351 = vmatpush1.bf16.msra.mxu0 %v1303
          %1352 = vmatprep.mubr.bf16.mxu0 %v1176
          %1353 = vmatmul.mubr.bf16.gmra.mrb[0].mxu0 %v1175
          %v1354 = vpop.f32.mrb[0].mxu0
          %v1355 = vadd.f32 0.0, %v1354
          %v1356 = vpop.f32.mrb[0].mxu0
          %v1357 = vpop.f32.mrb[0].mxu0
          %v1358 = vadd.f32 0.0, %v1357
          %v1359 = vpop.f32.mrb[0].mxu0
          %1360 = vmatprep.mubr.bf16.mxu0 %v1178
          %1361 = vmatmul.mubr.bf16.gmra.mrb[0].mxu0 %v1177
          %v1362 = vpop.f32.mrb[0].mxu0
          %v1363 = vadd.f32 0.0, %v1362
          %v1364 = vpop.f32.mrb[0].mxu0
          %v1365 = vpop.f32.mrb[0].mxu0
          %v1366 = vadd.f32 0.0, %v1365
          %v1367 = vpop.f32.mrb[0].mxu0
          %1368 = vmatprep.mubr.bf16.mxu0 %v1180
          %1369 = vmatmul.mubr.bf16.gmra.mrb[0].mxu0 %v1179
          %v1370 = vpop.f32.mrb[0].mxu0
          %v1371 = vadd.f32 0.0, %v1370
          %v1372 = vpop.f32.mrb[0].mxu0
          %v1373 = vpop.f32.mrb[0].mxu0
          %v1374 = vadd.f32 0.0, %v1373
          %v1375 = vpop.f32.mrb[0].mxu0
          %1376 = vmatprep.mubr.bf16.mxu0 %v1182
          %1377 = vmatmul.mubr.bf16.gmra.mrb[0].mxu0 %v1181
          %v1378 = vpop.f32.mrb[0].mxu0
          %v1379 = vadd.f32 0.0, %v1378
          %v1380 = vpop.f32.mrb[0].mxu0
          %v1381 = vpop.f32.mrb[0].mxu0
          %v1382 = vadd.f32 0.0, %v1381
          %v1383 = vpop.f32.mrb[0].mxu0
          %1384 = vmatprep.mubr.bf16.mxu0 %v1184
          %1385 = vmatmul.mubr.bf16.gmra.mrb[0].mxu0 %v1183
          %v1386 = vpop.f32.mrb[0].mxu0
          %v1387 = vadd.f32 0.0, %v1386
          %v1388 = vpop.f32.mrb[0].mxu0
          %v1389 = vpop.f32.mrb[0].mxu0
          %v1390 = vadd.f32 0.0, %v1389
          %v1391 = vpop.f32.mrb[0].mxu0
          %1392 = vmatprep.mubr.bf16.mxu0 %v1186
          %1393 = vmatmul.mubr.bf16.gmra.mrb[0].mxu0 %v1185
          %v1394 = vpop.f32.mrb[0].mxu0
          %v1395 = vadd.f32 0.0, %v1394
          %v1396 = vpop.f32.mrb[0].mxu0
          %v1397 = vpop.f32.mrb[0].mxu0
          %v1398 = vadd.f32 0.0, %v1397
          %v1399 = vpop.f32.mrb[0].mxu0
          %1400 = vmatprep.mubr.bf16.mxu0 %v1188
          %1401 = vmatmul.mubr.bf16.gmra.mrb[0].mxu0 %v1187
          %v1402 = vpop.f32.mrb[0].mxu0
          %v1403 = vadd.f32 0.0, %v1402
          %v1404 = vpop.f32.mrb[0].mxu0
          %v1405 = vpop.f32.mrb[0].mxu0
          %v1406 = vadd.f32 0.0, %v1405
          %v1407 = vpop.f32.mrb[0].mxu0
          %1408 = vmatprep.mubr.bf16.mxu0 %v1190
          %1409 = vmatmul.mubr.bf16.gmra.mrb[0].mxu0 %v1189
          %v1410 = vpop.f32.mrb[0].mxu0
          %v1411 = vadd.f32 0.0, %v1410
          %v1412 = vpop.f32.mrb[0].mxu0
          %v1413 = vpop.f32.mrb[0].mxu0
          %v1414 = vadd.f32 0.0, %v1413
          %v1415 = vpop.f32.mrb[0].mxu0
          %1416 = vdwg.mxu0
          %v1449 = vunpack.c.l.b16 %v1111
          %v1450 = vunpack.c.l.b16 %v1112
          %v1451 = vunpack.c.l.b16 %v1113
          %v1452 = vunpack.c.l.b16 %v1114
          %v1453 = vunpack.c.l.b16 %v1115
          %v1454 = vunpack.c.l.b16 %v1116
          %v1455 = vunpack.c.l.b16 %v1117
          %v1456 = vunpack.c.l.b16 %v1118
          %v1457 = vunpack.c.l.b16 %v1119
          %v1458 = vunpack.c.l.b16 %v1120
          %v1459 = vunpack.c.l.b16 %v1121
          %v1460 = vunpack.c.l.b16 %v1122
          %v1461 = vunpack.c.l.b16 %v1123
          %v1462 = vunpack.c.l.b16 %v1124
          %v1463 = vunpack.c.l.b16 %v1125
          %v1464 = vunpack.c.l.b16 %v1126
          %v1465 = vunpack.c.l.b16 %v1127
          %v1466 = vunpack.c.l.b16 %v1128
          %v1467 = vunpack.c.l.b16 %v1129
          %v1468 = vunpack.c.l.b16 %v1130
          %v1469 = vunpack.c.l.b16 %v1131
          %v1470 = vunpack.c.l.b16 %v1132
          %v1471 = vunpack.c.l.b16 %v1133
          %v1472 = vunpack.c.l.b16 %v1134
          %v1473 = vunpack.c.l.b16 %v1135
          %v1474 = vunpack.c.l.b16 %v1136
          %v1475 = vunpack.c.l.b16 %v1137
          %v1476 = vunpack.c.l.b16 %v1138
          %v1477 = vunpack.c.l.b16 %v1139
          %v1478 = vunpack.c.l.b16 %v1140
          %v1479 = vunpack.c.l.b16 %v1141
          %v1480 = vunpack.c.l.b16 %v1142
          %v1481 = vpack.c.b16 %v1450, %v1449
          %v1482 = vpack.c.b16 %v1452, %v1451
          %v1483 = vpack.c.b16 %v1454, %v1453
          %v1484 = vpack.c.b16 %v1456, %v1455
          %v1485 = vpack.c.b16 %v1458, %v1457
          %v1486 = vpack.c.b16 %v1460, %v1459
          %v1487 = vpack.c.b16 %v1462, %v1461
          %v1488 = vpack.c.b16 %v1464, %v1463
          %v1489 = vpack.c.b16 %v1466, %v1465
          %v1490 = vpack.c.b16 %v1468, %v1467
          %v1491 = vpack.c.b16 %v1470, %v1469
          %v1492 = vpack.c.b16 %v1472, %v1471
          %v1493 = vpack.c.b16 %v1474, %v1473
          %v1494 = vpack.c.b16 %v1476, %v1475
          %v1495 = vpack.c.b16 %v1478, %v1477
          %v1496 = vpack.c.b16 %v1480, %v1479
          %1513 = vmatprep.subr.bf16.mxu0 0
          %1514 = vmatpush1.bf16.msra.mxu0 %v1481
          %1515 = vmatprep.subr.bf16.mxu0 0
          %1516 = vmatpush1.bf16.msra.mxu0 %v1482
          %1517 = vmatprep.subr.bf16.mxu0 0
          %1518 = vmatpush1.bf16.msra.mxu0 %v1483
          %1519 = vmatprep.subr.bf16.mxu0 0
          %1520 = vmatpush1.bf16.msra.mxu0 %v1484
          %1521 = vmatprep.subr.bf16.mxu0 0
          %1522 = vmatpush1.bf16.msra.mxu0 %v1485
          %1523 = vmatprep.subr.bf16.mxu0 0
          %1524 = vmatpush1.bf16.msra.mxu0 %v1486
          %1525 = vmatprep.subr.bf16.mxu0 0
          %1526 = vmatpush1.bf16.msra.mxu0 %v1487
          %1527 = vmatprep.subr.bf16.mxu0 0
          %1528 = vmatpush1.bf16.msra.mxu0 %v1488
          %1529 = vmatprep.subr.bf16.mxu0 0
          %1530 = vmatpush1.bf16.msra.mxu0 %v1489
          %1531 = vmatprep.subr.bf16.mxu0 0
          %1532 = vmatpush1.bf16.msra.mxu0 %v1490
          %1533 = vmatprep.subr.bf16.mxu0 0
          %1534 = vmatpush1.bf16.msra.mxu0 %v1491
          %1535 = vmatprep.subr.bf16.mxu0 0
          %1536 = vmatpush1.bf16.msra.mxu0 %v1492
          %1537 = vmatprep.subr.bf16.mxu0 0
          %1538 = vmatpush1.bf16.msra.mxu0 %v1493
          %1539 = vmatprep.subr.bf16.mxu0 0
          %1540 = vmatpush1.bf16.msra.mxu0 %v1494
          %1541 = vmatprep.subr.bf16.mxu0 0
          %1542 = vmatpush1.bf16.msra.mxu0 %v1495
          %1543 = vmatprep.subr.bf16.mxu0 0
          %1544 = vmatpush1.bf16.msra.mxu0 %v1496
          %1545 = vmatprep.mubr.bf16.mxu0 %v1096
          %1546 = vmatmul.mubr.bf16.gmra.mrb[0].mxu0 %v1095
          %v1547 = vpop.f32.mrb[0].mxu0
          %v1548 = vadd.f32 %v1355, %v1547
          %v1549 = vpop.f32.mrb[0].mxu0
          %v1550 = vpop.f32.mrb[0].mxu0
          %v1551 = vadd.f32 %v1358, %v1550
          %v1552 = vpop.f32.mrb[0].mxu0
          %1553 = vmatprep.mubr.bf16.mxu0 %v1098
          %1554 = vmatmul.mubr.bf16.gmra.mrb[0].mxu0 %v1097
          %v1555 = vpop.f32.mrb[0].mxu0
          %v1556 = vadd.f32 %v1363, %v1555
          %v1557 = vpop.f32.mrb[0].mxu0
          %v1558 = vpop.f32.mrb[0].mxu0
          %v1559 = vadd.f32 %v1366, %v1558
          %v1560 = vpop.f32.mrb[0].mxu0
          %1561 = vmatprep.mubr.bf16.mxu0 %v1100
          %1562 = vmatmul.mubr.bf16.gmra.mrb[0].mxu0 %v1099
          %v1563 = vpop.f32.mrb[0].mxu0
          %v1564 = vadd.f32 %v1371, %v1563
          %v1565 = vpop.f32.mrb[0].mxu0
          %v1566 = vpop.f32.mrb[0].mxu0
          %v1567 = vadd.f32 %v1374, %v1566
          %v1568 = vpop.f32.mrb[0].mxu0
          %1569 = vmatprep.mubr.bf16.mxu0 %v1102
          %1570 = vmatmul.mubr.bf16.gmra.mrb[0].mxu0 %v1101
          %v1571 = vpop.f32.mrb[0].mxu0
          %v1572 = vadd.f32 %v1379, %v1571
          %v1573 = vpop.f32.mrb[0].mxu0
          %v1574 = vpop.f32.mrb[0].mxu0
          %v1575 = vadd.f32 %v1382, %v1574
          %v1576 = vpop.f32.mrb[0].mxu0
          %1577 = vmatprep.mubr.bf16.mxu0 %v1104
          %1578 = vmatmul.mubr.bf16.gmra.mrb[0].mxu0 %v1103
          %v1579 = vpop.f32.mrb[0].mxu0
          %v1580 = vadd.f32 %v1387, %v1579
          %v1581 = vpop.f32.mrb[0].mxu0
          %v1582 = vpop.f32.mrb[0].mxu0
          %v1583 = vadd.f32 %v1390, %v1582
          %v1584 = vpop.f32.mrb[0].mxu0
          %1585 = vmatprep.mubr.bf16.mxu0 %v1106
          %1586 = vmatmul.mubr.bf16.gmra.mrb[0].mxu0 %v1105
          %v1587 = vpop.f32.mrb[0].mxu0
          %v1588 = vadd.f32 %v1395, %v1587
          %v1589 = vpop.f32.mrb[0].mxu0
          %v1590 = vpop.f32.mrb[0].mxu0
          %v1591 = vadd.f32 %v1398, %v1590
          %v1592 = vpop.f32.mrb[0].mxu0
          %1593 = vmatprep.mubr.bf16.mxu0 %v1108
          %1594 = vmatmul.mubr.bf16.gmra.mrb[0].mxu0 %v1107
          %v1595 = vpop.f32.mrb[0].mxu0
          %v1596 = vadd.f32 %v1403, %v1595
          %v1597 = vpop.f32.mrb[0].mxu0
          %v1598 = vpop.f32.mrb[0].mxu0
          %v1599 = vadd.f32 %v1406, %v1598
          %v1600 = vpop.f32.mrb[0].mxu0
          %1601 = vmatprep.mubr.bf16.mxu0 %v1110
          %1602 = vmatmul.mubr.bf16.gmra.mrb[0].mxu0 %v1109
          %v1603 = vpop.f32.mrb[0].mxu0
          %v1604 = vadd.f32 %v1411, %v1603
          %v1605 = vpop.f32.mrb[0].mxu0
          %v1606 = vpop.f32.mrb[0].mxu0
          %v1607 = vadd.f32 %v1414, %v1606
          %v1608 = vpop.f32.mrb[0].mxu0
          %1609 = vdwg.mxu0
          %v1610 = vld [vmem:[#allocation2 + $0xb] sm:$0xff]
          %v1611 = vld [vmem:[#allocation2 + $0x13] sm:$0xff]
          %v1612 = vld [vmem:[#allocation2 + $0x1b] sm:$0xff]
          %v1613 = vld [vmem:[#allocation2 + $0x23] sm:$0xff]
          %v1614 = vld [vmem:[#allocation2 + $0x2b] sm:$0xff]
          %v1615 = vld [vmem:[#allocation2 + $0x33] sm:$0xff]
          %v1616 = vld [vmem:[#allocation2 + $0x3b] sm:$0xff]
          %v1617 = vld [vmem:[#allocation2 + $0x43] sm:$0xff]
          %v1618 = vld [vmem:[#allocation2 + $0x8b] sm:$0xff]
          %v1619 = vld [vmem:[#allocation2 + $0x93] sm:$0xff]
          %v1620 = vld [vmem:[#allocation2 + $0x9b] sm:$0xff]
          %v1621 = vld [vmem:[#allocation2 + $0xa3] sm:$0xff]
          %v1622 = vld [vmem:[#allocation2 + $0xab] sm:$0xff]
          %v1623 = vld [vmem:[#allocation2 + $0xb3] sm:$0xff]
          %v1624 = vld [vmem:[#allocation2 + $0xbb] sm:$0xff]
          %v1625 = vld [vmem:[#allocation2 + $0xc3] sm:$0xff]
          %v1626 = vld [vmem:[#allocation2 + $0xc] sm:$0xff]
          %v1627 = vld [vmem:[#allocation2 + $0x14] sm:$0xff]
          %v1628 = vld [vmem:[#allocation2 + $0x1c] sm:$0xff]
          %v1629 = vld [vmem:[#allocation2 + $0x24] sm:$0xff]
          %v1630 = vld [vmem:[#allocation2 + $0x2c] sm:$0xff]
          %v1631 = vld [vmem:[#allocation2 + $0x34] sm:$0xff]
          %v1632 = vld [vmem:[#allocation2 + $0x3c] sm:$0xff]
          %v1633 = vld [vmem:[#allocation2 + $0x44] sm:$0xff]
          %v1634 = vld [vmem:[#allocation2 + $0x8c] sm:$0xff]
          %v1635 = vld [vmem:[#allocation2 + $0x94] sm:$0xff]
          %v1636 = vld [vmem:[#allocation2 + $0x9c] sm:$0xff]
          %v1637 = vld [vmem:[#allocation2 + $0xa4] sm:$0xff]
          %v1638 = vld [vmem:[#allocation2 + $0xac] sm:$0xff]
          %v1639 = vld [vmem:[#allocation2 + $0xb4] sm:$0xff]
          %v1640 = vld [vmem:[#allocation2 + $0xbc] sm:$0xff]
          %v1641 = vld [vmem:[#allocation2 + $0xc4] sm:$0xff]
          %v1642 = vpack.c.bf16 %v1611, %v1610
          %v1643 = vpack.c.bf16 %v1627, %v1626
          %v1644 = vpack.c.bf16 %v1613, %v1612
          %v1645 = vpack.c.bf16 %v1629, %v1628
          %v1646 = vpack.c.bf16 %v1615, %v1614
          %v1647 = vpack.c.bf16 %v1631, %v1630
          %v1648 = vpack.c.bf16 %v1617, %v1616
          %v1649 = vpack.c.bf16 %v1633, %v1632
          %v1650 = vpack.c.bf16 %v1619, %v1618
          %v1651 = vpack.c.bf16 %v1635, %v1634
          %v1652 = vpack.c.bf16 %v1621, %v1620
          %v1653 = vpack.c.bf16 %v1637, %v1636
          %v1654 = vpack.c.bf16 %v1623, %v1622
          %v1655 = vpack.c.bf16 %v1639, %v1638
          %v1656 = vpack.c.bf16 %v1625, %v1624
          %v1657 = vpack.c.bf16 %v1641, %v1640
          %s1658 = scalar_lea.vmem [#allocation11], 256
          %v1659 = vld [vmem:[%s1658] sm:$0xf]
          %v1660 = vld [vmem:[%s1658 + $0x4] sm:$0xf]
          %v1661 = vld [vmem:[%s1658 + $0x8] sm:$0xf]
          %v1662 = vld [vmem:[%s1658 + $0xc] sm:$0xf]
          %v1663 = vld [vmem:[%s1658 + $0x10] sm:$0xf]
          %v1664 = vld [vmem:[%s1658 + $0x14] sm:$0xf]
          %v1665 = vld [vmem:[%s1658 + $0x18] sm:$0xf]
          %v1666 = vld [vmem:[%s1658 + $0x1c] sm:$0xf]
          %v1667 = vld [vmem:[%s1658 + $0x20] sm:$0xf]
          %v1668 = vld [vmem:[%s1658 + $0x24] sm:$0xf]
          %v1669 = vld [vmem:[%s1658 + $0x28] sm:$0xf]
          %v1670 = vld [vmem:[%s1658 + $0x2c] sm:$0xf]
          %v1671 = vld [vmem:[%s1658 + $0x30] sm:$0xf]
          %v1672 = vld [vmem:[%s1658 + $0x34] sm:$0xf]
          %v1673 = vld [vmem:[%s1658 + $0x38] sm:$0xf]
          %v1674 = vld [vmem:[%s1658 + $0x3c] sm:$0xf]
          %v1675 = vld [vmem:[%s1658 + $0x40] sm:$0xf]
          %v1676 = vld [vmem:[%s1658 + $0x44] sm:$0xf]
          %v1677 = vld [vmem:[%s1658 + $0x48] sm:$0xf]
          %v1678 = vld [vmem:[%s1658 + $0x4c] sm:$0xf]
          %v1679 = vld [vmem:[%s1658 + $0x50] sm:$0xf]
          %v1680 = vld [vmem:[%s1658 + $0x54] sm:$0xf]
          %v1681 = vld [vmem:[%s1658 + $0x58] sm:$0xf]
          %v1682 = vld [vmem:[%s1658 + $0x5c] sm:$0xf]
          %v1683 = vld [vmem:[%s1658 + $0x60] sm:$0xf]
          %v1684 = vld [vmem:[%s1658 + $0x64] sm:$0xf]
          %v1685 = vld [vmem:[%s1658 + $0x68] sm:$0xf]
          %v1686 = vld [vmem:[%s1658 + $0x6c] sm:$0xf]
          %v1687 = vld [vmem:[%s1658 + $0x70] sm:$0xf]
          %v1688 = vld [vmem:[%s1658 + $0x74] sm:$0xf]
          %v1689 = vld [vmem:[%s1658 + $0x78] sm:$0xf]
          %v1690 = vld [vmem:[%s1658 + $0x7c] sm:$0xf]
          %v1723 = vunpack.c.l.b16 %v1659
          %v1724 = vunpack.c.l.b16 %v1660
          %v1725 = vunpack.c.l.b16 %v1661
          %v1726 = vunpack.c.l.b16 %v1662
          %v1727 = vunpack.c.l.b16 %v1663
          %v1728 = vunpack.c.l.b16 %v1664
          %v1729 = vunpack.c.l.b16 %v1665
          %v1730 = vunpack.c.l.b16 %v1666
          %v1731 = vunpack.c.l.b16 %v1667
          %v1732 = vunpack.c.l.b16 %v1668
          %v1733 = vunpack.c.l.b16 %v1669
          %v1734 = vunpack.c.l.b16 %v1670
          %v1735 = vunpack.c.l.b16 %v1671
          %v1736 = vunpack.c.l.b16 %v1672
          %v1737 = vunpack.c.l.b16 %v1673
          %v1738 = vunpack.c.l.b16 %v1674
          %v1739 = vunpack.c.l.b16 %v1675
          %v1740 = vunpack.c.l.b16 %v1676
          %v1741 = vunpack.c.l.b16 %v1677
          %v1742 = vunpack.c.l.b16 %v1678
          %v1743 = vunpack.c.l.b16 %v1679
          %v1744 = vunpack.c.l.b16 %v1680
          %v1745 = vunpack.c.l.b16 %v1681
          %v1746 = vunpack.c.l.b16 %v1682
          %v1747 = vunpack.c.l.b16 %v1683
          %v1748 = vunpack.c.l.b16 %v1684
          %v1749 = vunpack.c.l.b16 %v1685
          %v1750 = vunpack.c.l.b16 %v1686
          %v1751 = vunpack.c.l.b16 %v1687
          %v1752 = vunpack.c.l.b16 %v1688
          %v1753 = vunpack.c.l.b16 %v1689
          %v1754 = vunpack.c.l.b16 %v1690
          %v1755 = vpack.c.b16 %v1724, %v1723
          %v1756 = vpack.c.b16 %v1726, %v1725
          %v1757 = vpack.c.b16 %v1728, %v1727
          %v1758 = vpack.c.b16 %v1730, %v1729
          %v1759 = vpack.c.b16 %v1732, %v1731
          %v1760 = vpack.c.b16 %v1734, %v1733
          %v1761 = vpack.c.b16 %v1736, %v1735
          %v1762 = vpack.c.b16 %v1738, %v1737
          %v1763 = vpack.c.b16 %v1740, %v1739
          %v1764 = vpack.c.b16 %v1742, %v1741
          %v1765 = vpack.c.b16 %v1744, %v1743
          %v1766 = vpack.c.b16 %v1746, %v1745
          %v1767 = vpack.c.b16 %v1748, %v1747
          %v1768 = vpack.c.b16 %v1750, %v1749
          %v1769 = vpack.c.b16 %v1752, %v1751
          %v1770 = vpack.c.b16 %v1754, %v1753
          %1787 = vmatprep.subr.bf16.mxu0 0
          %1788 = vmatpush1.bf16.msra.mxu0 %v1755
          %1789 = vmatprep.subr.bf16.mxu0 0
          %1790 = vmatpush1.bf16.msra.mxu0 %v1756
          %1791 = vmatprep.subr.bf16.mxu0 0
          %1792 = vmatpush1.bf16.msra.mxu0 %v1757
          %1793 = vmatprep.subr.bf16.mxu0 0
          %1794 = vmatpush1.bf16.msra.mxu0 %v1758
          %1795 = vmatprep.subr.bf16.mxu0 0
          %1796 = vmatpush1.bf16.msra.mxu0 %v1759
          %1797 = vmatprep.subr.bf16.mxu0 0
          %1798 = vmatpush1.bf16.msra.mxu0 %v1760
          %1799 = vmatprep.subr.bf16.mxu0 0
          %1800 = vmatpush1.bf16.msra.mxu0 %v1761
          %1801 = vmatprep.subr.bf16.mxu0 0
          %1802 = vmatpush1.bf16.msra.mxu0 %v1762
          %1803 = vmatprep.subr.bf16.mxu0 0
          %1804 = vmatpush1.bf16.msra.mxu0 %v1763
          %1805 = vmatprep.subr.bf16.mxu0 0
          %1806 = vmatpush1.bf16.msra.mxu0 %v1764
          %1807 = vmatprep.subr.bf16.mxu0 0
          %1808 = vmatpush1.bf16.msra.mxu0 %v1765
          %1809 = vmatprep.subr.bf16.mxu0 0
          %1810 = vmatpush1.bf16.msra.mxu0 %v1766
          %1811 = vmatprep.subr.bf16.mxu0 0
          %1812 = vmatpush1.bf16.msra.mxu0 %v1767
          %1813 = vmatprep.subr.bf16.mxu0 0
          %1814 = vmatpush1.bf16.msra.mxu0 %v1768
          %1815 = vmatprep.subr.bf16.mxu0 0
          %1816 = vmatpush1.bf16.msra.mxu0 %v1769
          %1817 = vmatprep.subr.bf16.mxu0 0
          %1818 = vmatpush1.bf16.msra.mxu0 %v1770
          %1819 = vmatprep.mubr.bf16.mxu0 %v1643
          %1820 = vmatmul.mubr.bf16.gmra.mrb[0].mxu0 %v1642
          %v1821 = vpop.f32.mrb[0].mxu0
          %v1822 = vadd.f32 0.0, %v1821
          %v1823 = vpop.f32.mrb[0].mxu0
          %v1824 = vpop.f32.mrb[0].mxu0
          %v1825 = vadd.f32 0.0, %v1824
          %v1826 = vpop.f32.mrb[0].mxu0
          %1827 = vmatprep.mubr.bf16.mxu0 %v1645
          %1828 = vmatmul.mubr.bf16.gmra.mrb[0].mxu0 %v1644
          %v1829 = vpop.f32.mrb[0].mxu0
          %v1830 = vadd.f32 0.0, %v1829
          %v1831 = vpop.f32.mrb[0].mxu0
          %v1832 = vpop.f32.mrb[0].mxu0
          %v1833 = vadd.f32 0.0, %v1832
          %v1834 = vpop.f32.mrb[0].mxu0
          %1835 = vmatprep.mubr.bf16.mxu0 %v1647
          %1836 = vmatmul.mubr.bf16.gmra.mrb[0].mxu0 %v1646
          %v1837 = vpop.f32.mrb[0].mxu0
          %v1838 = vadd.f32 0.0, %v1837
          %v1839 = vpop.f32.mrb[0].mxu0
          %v1840 = vpop.f32.mrb[0].mxu0
          %v1841 = vadd.f32 0.0, %v1840
          %v1842 = vpop.f32.mrb[0].mxu0
          %1843 = vmatprep.mubr.bf16.mxu0 %v1649
          %1844 = vmatmul.mubr.bf16.gmra.mrb[0].mxu0 %v1648
          %v1845 = vpop.f32.mrb[0].mxu0
          %v1846 = vadd.f32 0.0, %v1845
          %v1847 = vpop.f32.mrb[0].mxu0
          %v1848 = vpop.f32.mrb[0].mxu0
          %v1849 = vadd.f32 0.0, %v1848
          %v1850 = vpop.f32.mrb[0].mxu0
          %1851 = vmatprep.mubr.bf16.mxu0 %v1651
          %1852 = vmatmul.mubr.bf16.gmra.mrb[0].mxu0 %v1650
          %v1853 = vpop.f32.mrb[0].mxu0
          %v1854 = vadd.f32 0.0, %v1853
          %v1855 = vpop.f32.mrb[0].mxu0
          %v1856 = vpop.f32.mrb[0].mxu0
          %v1857 = vadd.f32 0.0, %v1856
          %v1858 = vpop.f32.mrb[0].mxu0
          %1859 = vmatprep.mubr.bf16.mxu0 %v1653
          %1860 = vmatmul.mubr.bf16.gmra.mrb[0].mxu0 %v1652
          %v1861 = vpop.f32.mrb[0].mxu0
          %v1862 = vadd.f32 0.0, %v1861
          %v1863 = vpop.f32.mrb[0].mxu0
          %v1864 = vpop.f32.mrb[0].mxu0
          %v1865 = vadd.f32 0.0, %v1864
          %v1866 = vpop.f32.mrb[0].mxu0
          %1867 = vmatprep.mubr.bf16.mxu0 %v1655
          %1868 = vmatmul.mubr.bf16.gmra.mrb[0].mxu0 %v1654
          %v1869 = vpop.f32.mrb[0].mxu0
          %v1870 = vadd.f32 0.0, %v1869
          %v1871 = vpop.f32.mrb[0].mxu0
          %v1872 = vpop.f32.mrb[0].mxu0
          %v1873 = vadd.f32 0.0, %v1872
          %v1874 = vpop.f32.mrb[0].mxu0
          %1875 = vmatprep.mubr.bf16.mxu0 %v1657
          %1876 = vmatmul.mubr.bf16.gmra.mrb[0].mxu0 %v1656
          %v1877 = vpop.f32.mrb[0].mxu0
          %v1878 = vadd.f32 0.0, %v1877
          %v1879 = vpop.f32.mrb[0].mxu0
          %v1880 = vpop.f32.mrb[0].mxu0
          %v1881 = vadd.f32 0.0, %v1880
          %v1882 = vpop.f32.mrb[0].mxu0
          %1883 = vdwg.mxu0
          %v1884 = vadd.f32 %v1548, %v1822
          %v1885 = vadd.f32 %v1551, %v1825
          %v1886 = vadd.f32 %v1556, %v1830
          %v1887 = vadd.f32 %v1559, %v1833
          %v1888 = vadd.f32 %v1564, %v1838
          %v1889 = vadd.f32 %v1567, %v1841
          %v1890 = vadd.f32 %v1572, %v1846
          %v1891 = vadd.f32 %v1575, %v1849
          %v1892 = vadd.f32 %v1580, %v1854
          %v1893 = vadd.f32 %v1583, %v1857
          %v1894 = vadd.f32 %v1588, %v1862
          %v1895 = vadd.f32 %v1591, %v1865
          %v1896 = vadd.f32 %v1596, %v1870
          %v1897 = vadd.f32 %v1599, %v1873
          %v1898 = vadd.f32 %v1604, %v1878
          %v1899 = vadd.f32 %v1607, %v1881
          %v1900 = vld [vmem:[#allocation2 + $0xd] sm:$0xff]
          %v1901 = vld [vmem:[#allocation2 + $0x15] sm:$0xff]
          %v1902 = vld [vmem:[#allocation2 + $0x1d] sm:$0xff]
          %v1903 = vld [vmem:[#allocation2 + $0x25] sm:$0xff]
          %v1904 = vld [vmem:[#allocation2 + $0x2d] sm:$0xff]
          %v1905 = vld [vmem:[#allocation2 + $0x35] sm:$0xff]
          %v1906 = vld [vmem:[#allocation2 + $0x3d] sm:$0xff]
          %v1907 = vld [vmem:[#allocation2 + $0x45] sm:$0xff]
          %v1908 = vld [vmem:[#allocation2 + $0x8d] sm:$0xff]
          %v1909 = vld [vmem:[#allocation2 + $0x95] sm:$0xff]
          %v1910 = vld [vmem:[#allocation2 + $0x9d] sm:$0xff]
          %v1911 = vld [vmem:[#allocation2 + $0xa5] sm:$0xff]
          %v1912 = vld [vmem:[#allocation2 + $0xad] sm:$0xff]
          %v1913 = vld [vmem:[#allocation2 + $0xb5] sm:$0xff]
          %v1914 = vld [vmem:[#allocation2 + $0xbd] sm:$0xff]
          %v1915 = vld [vmem:[#allocation2 + $0xc5] sm:$0xff]
          %v1916 = vld [vmem:[#allocation2 + $0xe] sm:$0xff]
          %v1917 = vld [vmem:[#allocation2 + $0x16] sm:$0xff]
          %v1918 = vld [vmem:[#allocation2 + $0x1e] sm:$0xff]
          %v1919 = vld [vmem:[#allocation2 + $0x26] sm:$0xff]
          %v1920 = vld [vmem:[#allocation2 + $0x2e] sm:$0xff]
          %v1921 = vld [vmem:[#allocation2 + $0x36] sm:$0xff]
          %v1922 = vld [vmem:[#allocation2 + $0x3e] sm:$0xff]
          %v1923 = vld [vmem:[#allocation2 + $0x46] sm:$0xff]
          %v1924 = vld [vmem:[#allocation2 + $0x8e] sm:$0xff]
          %v1925 = vld [vmem:[#allocation2 + $0x96] sm:$0xff]
          %v1926 = vld [vmem:[#allocation2 + $0x9e] sm:$0xff]
          %v1927 = vld [vmem:[#allocation2 + $0xa6] sm:$0xff]
          %v1928 = vld [vmem:[#allocation2 + $0xae] sm:$0xff]
          %v1929 = vld [vmem:[#allocation2 + $0xb6] sm:$0xff]
          %v1930 = vld [vmem:[#allocation2 + $0xbe] sm:$0xff]
          %v1931 = vld [vmem:[#allocation2 + $0xc6] sm:$0xff]
          %v1932 = vpack.c.bf16 %v1901, %v1900
          %v1933 = vpack.c.bf16 %v1917, %v1916
          %v1934 = vpack.c.bf16 %v1903, %v1902
          %v1935 = vpack.c.bf16 %v1919, %v1918
          %v1936 = vpack.c.bf16 %v1905, %v1904
          %v1937 = vpack.c.bf16 %v1921, %v1920
          %v1938 = vpack.c.bf16 %v1907, %v1906
          %v1939 = vpack.c.bf16 %v1923, %v1922
          %v1940 = vpack.c.bf16 %v1909, %v1908
          %v1941 = vpack.c.bf16 %v1925, %v1924
          %v1942 = vpack.c.bf16 %v1911, %v1910
          %v1943 = vpack.c.bf16 %v1927, %v1926
          %v1944 = vpack.c.bf16 %v1913, %v1912
          %v1945 = vpack.c.bf16 %v1929, %v1928
          %v1946 = vpack.c.bf16 %v1915, %v1914
          %v1947 = vpack.c.bf16 %v1931, %v1930
          %s1948 = scalar_lea.vmem [#allocation11], 384
          %v1949 = vld [vmem:[%s1948] sm:$0xf]
          %v1950 = vld [vmem:[%s1948 + $0x4] sm:$0xf]
          %v1951 = vld [vmem:[%s1948 + $0x8] sm:$0xf]
          %v1952 = vld [vmem:[%s1948 + $0xc] sm:$0xf]
          %v1953 = vld [vmem:[%s1948 + $0x10] sm:$0xf]
          %v1954 = vld [vmem:[%s1948 + $0x14] sm:$0xf]
          %v1955 = vld [vmem:[%s1948 + $0x18] sm:$0xf]
          %v1956 = vld [vmem:[%s1948 + $0x1c] sm:$0xf]
          %v1957 = vld [vmem:[%s1948 + $0x20] sm:$0xf]
          %v1958 = vld [vmem:[%s1948 + $0x24] sm:$0xf]
          %v1959 = vld [vmem:[%s1948 + $0x28] sm:$0xf]
          %v1960 = vld [vmem:[%s1948 + $0x2c] sm:$0xf]
          %v1961 = vld [vmem:[%s1948 + $0x30] sm:$0xf]
          %v1962 = vld [vmem:[%s1948 + $0x34] sm:$0xf]
          %v1963 = vld [vmem:[%s1948 + $0x38] sm:$0xf]
          %v1964 = vld [vmem:[%s1948 + $0x3c] sm:$0xf]
          %v1965 = vld [vmem:[%s1948 + $0x40] sm:$0xf]
          %v1966 = vld [vmem:[%s1948 + $0x44] sm:$0xf]
          %v1967 = vld [vmem:[%s1948 + $0x48] sm:$0xf]
          %v1968 = vld [vmem:[%s1948 + $0x4c] sm:$0xf]
          %v1969 = vld [vmem:[%s1948 + $0x50] sm:$0xf]
          %v1970 = vld [vmem:[%s1948 + $0x54] sm:$0xf]
          %v1971 = vld [vmem:[%s1948 + $0x58] sm:$0xf]
          %v1972 = vld [vmem:[%s1948 + $0x5c] sm:$0xf]
          %v1973 = vld [vmem:[%s1948 + $0x60] sm:$0xf]
          %v1974 = vld [vmem:[%s1948 + $0x64] sm:$0xf]
          %v1975 = vld [vmem:[%s1948 + $0x68] sm:$0xf]
          %v1976 = vld [vmem:[%s1948 + $0x6c] sm:$0xf]
          %v1977 = vld [vmem:[%s1948 + $0x70] sm:$0xf]
          %v1978 = vld [vmem:[%s1948 + $0x74] sm:$0xf]
          %v1979 = vld [vmem:[%s1948 + $0x78] sm:$0xf]
          %v1980 = vld [vmem:[%s1948 + $0x7c] sm:$0xf]
          %v2013 = vunpack.c.l.b16 %v1949
          %v2014 = vunpack.c.l.b16 %v1950
          %v2015 = vunpack.c.l.b16 %v1951
          %v2016 = vunpack.c.l.b16 %v1952
          %v2017 = vunpack.c.l.b16 %v1953
          %v2018 = vunpack.c.l.b16 %v1954
          %v2019 = vunpack.c.l.b16 %v1955
          %v2020 = vunpack.c.l.b16 %v1956
          %v2021 = vunpack.c.l.b16 %v1957
          %v2022 = vunpack.c.l.b16 %v1958
          %v2023 = vunpack.c.l.b16 %v1959
          %v2024 = vunpack.c.l.b16 %v1960
          %v2025 = vunpack.c.l.b16 %v1961
          %v2026 = vunpack.c.l.b16 %v1962
          %v2027 = vunpack.c.l.b16 %v1963
          %v2028 = vunpack.c.l.b16 %v1964
          %v2029 = vunpack.c.l.b16 %v1965
          %v2030 = vunpack.c.l.b16 %v1966
          %v2031 = vunpack.c.l.b16 %v1967
          %v2032 = vunpack.c.l.b16 %v1968
          %v2033 = vunpack.c.l.b16 %v1969
          %v2034 = vunpack.c.l.b16 %v1970
          %v2035 = vunpack.c.l.b16 %v1971
          %v2036 = vunpack.c.l.b16 %v1972
          %v2037 = vunpack.c.l.b16 %v1973
          %v2038 = vunpack.c.l.b16 %v1974
          %v2039 = vunpack.c.l.b16 %v1975
          %v2040 = vunpack.c.l.b16 %v1976
          %v2041 = vunpack.c.l.b16 %v1977
          %v2042 = vunpack.c.l.b16 %v1978
          %v2043 = vunpack.c.l.b16 %v1979
          %v2044 = vunpack.c.l.b16 %v1980
          %v2045 = vpack.c.b16 %v2014, %v2013
          %v2046 = vpack.c.b16 %v2016, %v2015
          %v2047 = vpack.c.b16 %v2018, %v2017
          %v2048 = vpack.c.b16 %v2020, %v2019
          %v2049 = vpack.c.b16 %v2022, %v2021
          %v2050 = vpack.c.b16 %v2024, %v2023
          %v2051 = vpack.c.b16 %v2026, %v2025
          %v2052 = vpack.c.b16 %v2028, %v2027
          %v2053 = vpack.c.b16 %v2030, %v2029
          %v2054 = vpack.c.b16 %v2032, %v2031
          %v2055 = vpack.c.b16 %v2034, %v2033
          %v2056 = vpack.c.b16 %v2036, %v2035
          %v2057 = vpack.c.b16 %v2038, %v2037
          %v2058 = vpack.c.b16 %v2040, %v2039
          %v2059 = vpack.c.b16 %v2042, %v2041
          %v2060 = vpack.c.b16 %v2044, %v2043
          %2077 = vmatprep.subr.bf16.mxu0 0
          %2078 = vmatpush1.bf16.msra.mxu0 %v2045
          %2079 = vmatprep.subr.bf16.mxu0 0
          %2080 = vmatpush1.bf16.msra.mxu0 %v2046
          %2081 = vmatprep.subr.bf16.mxu0 0
          %2082 = vmatpush1.bf16.msra.mxu0 %v2047
          %2083 = vmatprep.subr.bf16.mxu0 0
          %2084 = vmatpush1.bf16.msra.mxu0 %v2048
          %2085 = vmatprep.subr.bf16.mxu0 0
          %2086 = vmatpush1.bf16.msra.mxu0 %v2049
          %2087 = vmatprep.subr.bf16.mxu0 0
          %2088 = vmatpush1.bf16.msra.mxu0 %v2050
          %2089 = vmatprep.subr.bf16.mxu0 0
          %2090 = vmatpush1.bf16.msra.mxu0 %v2051
          %2091 = vmatprep.subr.bf16.mxu0 0
          %2092 = vmatpush1.bf16.msra.mxu0 %v2052
          %2093 = vmatprep.subr.bf16.mxu0 0
          %2094 = vmatpush1.bf16.msra.mxu0 %v2053
          %2095 = vmatprep.subr.bf16.mxu0 0
          %2096 = vmatpush1.bf16.msra.mxu0 %v2054
          %2097 = vmatprep.subr.bf16.mxu0 0
          %2098 = vmatpush1.bf16.msra.mxu0 %v2055
          %2099 = vmatprep.subr.bf16.mxu0 0
          %2100 = vmatpush1.bf16.msra.mxu0 %v2056
          %2101 = vmatprep.subr.bf16.mxu0 0
          %2102 = vmatpush1.bf16.msra.mxu0 %v2057
          %2103 = vmatprep.subr.bf16.mxu0 0
          %2104 = vmatpush1.bf16.msra.mxu0 %v2058
          %2105 = vmatprep.subr.bf16.mxu0 0
          %2106 = vmatpush1.bf16.msra.mxu0 %v2059
          %2107 = vmatprep.subr.bf16.mxu0 0
          %2108 = vmatpush1.bf16.msra.mxu0 %v2060
          %2109 = vmatprep.mubr.bf16.mxu0 %v1933
          %2110 = vmatmul.mubr.bf16.gmra.mrb[0].mxu0 %v1932
          %v2111 = vpop.f32.mrb[0].mxu0
          %v2112 = vadd.f32 0.0, %v2111
          %v2113 = vpop.f32.mrb[0].mxu0
          %v2114 = vpop.f32.mrb[0].mxu0
          %v2115 = vadd.f32 0.0, %v2114
          %v2116 = vpop.f32.mrb[0].mxu0
          %2117 = vmatprep.mubr.bf16.mxu0 %v1935
          %2118 = vmatmul.mubr.bf16.gmra.mrb[0].mxu0 %v1934
          %v2119 = vpop.f32.mrb[0].mxu0
          %v2120 = vadd.f32 0.0, %v2119
          %v2121 = vpop.f32.mrb[0].mxu0
          %v2122 = vpop.f32.mrb[0].mxu0
          %v2123 = vadd.f32 0.0, %v2122
          %v2124 = vpop.f32.mrb[0].mxu0
          %2125 = vmatprep.mubr.bf16.mxu0 %v1937
          %2126 = vmatmul.mubr.bf16.gmra.mrb[0].mxu0 %v1936
          %v2127 = vpop.f32.mrb[0].mxu0
          %v2128 = vadd.f32 0.0, %v2127
          %v2129 = vpop.f32.mrb[0].mxu0
          %v2130 = vpop.f32.mrb[0].mxu0
          %v2131 = vadd.f32 0.0, %v2130
          %v2132 = vpop.f32.mrb[0].mxu0
          %2133 = vmatprep.mubr.bf16.mxu0 %v1939
          %2134 = vmatmul.mubr.bf16.gmra.mrb[0].mxu0 %v1938
          %v2135 = vpop.f32.mrb[0].mxu0
          %v2136 = vadd.f32 0.0, %v2135
          %v2137 = vpop.f32.mrb[0].mxu0
          %v2138 = vpop.f32.mrb[0].mxu0
          %v2139 = vadd.f32 0.0, %v2138
          %v2140 = vpop.f32.mrb[0].mxu0
          %2141 = vmatprep.mubr.bf16.mxu0 %v1941
          %2142 = vmatmul.mubr.bf16.gmra.mrb[0].mxu0 %v1940
          %v2143 = vpop.f32.mrb[0].mxu0
          %v2144 = vadd.f32 0.0, %v2143
          %v2145 = vpop.f32.mrb[0].mxu0
          %v2146 = vpop.f32.mrb[0].mxu0
          %v2147 = vadd.f32 0.0, %v2146
          %v2148 = vpop.f32.mrb[0].mxu0
          %2149 = vmatprep.mubr.bf16.mxu0 %v1943
          %2150 = vmatmul.mubr.bf16.gmra.mrb[0].mxu0 %v1942
          %v2151 = vpop.f32.mrb[0].mxu0
          %v2152 = vadd.f32 0.0, %v2151
          %v2153 = vpop.f32.mrb[0].mxu0
          %v2154 = vpop.f32.mrb[0].mxu0
          %v2155 = vadd.f32 0.0, %v2154
          %v2156 = vpop.f32.mrb[0].mxu0
          %2157 = vmatprep.mubr.bf16.mxu0 %v1945
          %2158 = vmatmul.mubr.bf16.gmra.mrb[0].mxu0 %v1944
          %v2159 = vpop.f32.mrb[0].mxu0
          %v2160 = vadd.f32 0.0, %v2159
          %v2161 = vpop.f32.mrb[0].mxu0
          %v2162 = vpop.f32.mrb[0].mxu0
          %v2163 = vadd.f32 0.0, %v2162
          %v2164 = vpop.f32.mrb[0].mxu0
          %2165 = vmatprep.mubr.bf16.mxu0 %v1947
          %2166 = vmatmul.mubr.bf16.gmra.mrb[0].mxu0 %v1946
          %v2167 = vpop.f32.mrb[0].mxu0
          %v2168 = vadd.f32 0.0, %v2167
          %v2169 = vpop.f32.mrb[0].mxu0
          %v2170 = vpop.f32.mrb[0].mxu0
          %v2171 = vadd.f32 0.0, %v2170
          %v2172 = vpop.f32.mrb[0].mxu0
          %2173 = vdwg.mxu0
          %v2174 = vadd.f32 %v1884, %v2112
          %v2175 = vadd.f32 %v1885, %v2115
          %v2176 = vadd.f32 %v1886, %v2120
          %v2177 = vadd.f32 %v1887, %v2123
          %v2178 = vadd.f32 %v1888, %v2128
          %v2179 = vadd.f32 %v1889, %v2131
          %v2180 = vadd.f32 %v1890, %v2136
          %v2181 = vadd.f32 %v1891, %v2139
          %v2182 = vadd.f32 %v1892, %v2144
          %v2183 = vadd.f32 %v1893, %v2147
          %v2184 = vadd.f32 %v1894, %v2152
          %v2185 = vadd.f32 %v1895, %v2155
          %v2186 = vadd.f32 %v1896, %v2160
          %v2187 = vadd.f32 %v1897, %v2163
          %v2188 = vadd.f32 %v1898, %v2168
          %v2189 = vadd.f32 %v1899, %v2171
          %v2190 = vld [vmem:[#allocation2 + $0xf] sm:$0xff]
          %v2191 = vld [vmem:[#allocation2 + $0x17] sm:$0xff]
          %v2192 = vld [vmem:[#allocation2 + $0x1f] sm:$0xff]
          %v2193 = vld [vmem:[#allocation2 + $0x27] sm:$0xff]
          %v2194 = vld [vmem:[#allocation2 + $0x2f] sm:$0xff]
          %v2195 = vld [vmem:[#allocation2 + $0x37] sm:$0xff]
          %v2196 = vld [vmem:[#allocation2 + $0x3f] sm:$0xff]
          %v2197 = vld [vmem:[#allocation2 + $0x47] sm:$0xff]
          %v2198 = vld [vmem:[#allocation2 + $0x8f] sm:$0xff]
          %v2199 = vld [vmem:[#allocation2 + $0x97] sm:$0xff]
          %v2200 = vld [vmem:[#allocation2 + $0x9f] sm:$0xff]
          %v2201 = vld [vmem:[#allocation2 + $0xa7] sm:$0xff]
          %v2202 = vld [vmem:[#allocation2 + $0xaf] sm:$0xff]
          %v2203 = vld [vmem:[#allocation2 + $0xb7] sm:$0xff]
          %v2204 = vld [vmem:[#allocation2 + $0xbf] sm:$0xff]
          %v2205 = vld [vmem:[#allocation2 + $0xc7] sm:$0xff]
          %v2206 = vld [vmem:[#allocation2 + $0x10] sm:$0xff]
          %v2207 = vld [vmem:[#allocation2 + $0x18] sm:$0xff]
          %v2208 = vld [vmem:[#allocation2 + $0x20] sm:$0xff]
          %v2209 = vld [vmem:[#allocation2 + $0x28] sm:$0xff]
          %v2210 = vld [vmem:[#allocation2 + $0x30] sm:$0xff]
          %v2211 = vld [vmem:[#allocation2 + $0x38] sm:$0xff]
          %v2212 = vld [vmem:[#allocation2 + $0x40] sm:$0xff]
          %v2213 = vld [vmem:[#allocation2 + $0x48] sm:$0xff]
          %v2214 = vld [vmem:[#allocation2 + $0x90] sm:$0xff]
          %v2215 = vld [vmem:[#allocation2 + $0x98] sm:$0xff]
          %v2216 = vld [vmem:[#allocation2 + $0xa0] sm:$0xff]
          %v2217 = vld [vmem:[#allocation2 + $0xa8] sm:$0xff]
          %v2218 = vld [vmem:[#allocation2 + $0xb0] sm:$0xff]
          %v2219 = vld [vmem:[#allocation2 + $0xb8] sm:$0xff]
          %v2220 = vld [vmem:[#allocation2 + $0xc0] sm:$0xff]
          %v2221 = vld [vmem:[#allocation2 + $0xc8] sm:$0xff]
          %v2222 = vpack.c.bf16 %v2191, %v2190
          %v2223 = vpack.c.bf16 %v2207, %v2206
          %v2224 = vpack.c.bf16 %v2193, %v2192
          %v2225 = vpack.c.bf16 %v2209, %v2208
          %v2226 = vpack.c.bf16 %v2195, %v2194
          %v2227 = vpack.c.bf16 %v2211, %v2210
          %v2228 = vpack.c.bf16 %v2197, %v2196
          %v2229 = vpack.c.bf16 %v2213, %v2212
          %v2230 = vpack.c.bf16 %v2199, %v2198
          %v2231 = vpack.c.bf16 %v2215, %v2214
          %v2232 = vpack.c.bf16 %v2201, %v2200
          %v2233 = vpack.c.bf16 %v2217, %v2216
          %v2234 = vpack.c.bf16 %v2203, %v2202
          %v2235 = vpack.c.bf16 %v2219, %v2218
          %v2236 = vpack.c.bf16 %v2205, %v2204
          %v2237 = vpack.c.bf16 %v2221, %v2220
          %s2238 = scalar_lea.vmem [#allocation11], 512
          %v2239 = vld [vmem:[%s2238] sm:$0xf]
          %v2240 = vld [vmem:[%s2238 + $0x4] sm:$0xf]
          %v2241 = vld [vmem:[%s2238 + $0x8] sm:$0xf]
          %v2242 = vld [vmem:[%s2238 + $0xc] sm:$0xf]
          %v2243 = vld [vmem:[%s2238 + $0x10] sm:$0xf]
          %v2244 = vld [vmem:[%s2238 + $0x14] sm:$0xf]
          %v2245 = vld [vmem:[%s2238 + $0x18] sm:$0xf]
          %v2246 = vld [vmem:[%s2238 + $0x1c] sm:$0xf]
          %v2247 = vld [vmem:[%s2238 + $0x20] sm:$0xf]
          %v2248 = vld [vmem:[%s2238 + $0x24] sm:$0xf]
          %v2249 = vld [vmem:[%s2238 + $0x28] sm:$0xf]
          %v2250 = vld [vmem:[%s2238 + $0x2c] sm:$0xf]
          %v2251 = vld [vmem:[%s2238 + $0x30] sm:$0xf]
          %v2252 = vld [vmem:[%s2238 + $0x34] sm:$0xf]
          %v2253 = vld [vmem:[%s2238 + $0x38] sm:$0xf]
          %v2254 = vld [vmem:[%s2238 + $0x3c] sm:$0xf]
          %v2255 = vld [vmem:[%s2238 + $0x40] sm:$0xf]
          %v2256 = vld [vmem:[%s2238 + $0x44] sm:$0xf]
          %v2257 = vld [vmem:[%s2238 + $0x48] sm:$0xf]
          %v2258 = vld [vmem:[%s2238 + $0x4c] sm:$0xf]
          %v2259 = vld [vmem:[%s2238 + $0x50] sm:$0xf]
          %v2260 = vld [vmem:[%s2238 + $0x54] sm:$0xf]
          %v2261 = vld [vmem:[%s2238 + $0x58] sm:$0xf]
          %v2262 = vld [vmem:[%s2238 + $0x5c] sm:$0xf]
          %v2263 = vld [vmem:[%s2238 + $0x60] sm:$0xf]
          %v2264 = vld [vmem:[%s2238 + $0x64] sm:$0xf]
          %v2265 = vld [vmem:[%s2238 + $0x68] sm:$0xf]
          %v2266 = vld [vmem:[%s2238 + $0x6c] sm:$0xf]
          %v2267 = vld [vmem:[%s2238 + $0x70] sm:$0xf]
          %v2268 = vld [vmem:[%s2238 + $0x74] sm:$0xf]
          %v2269 = vld [vmem:[%s2238 + $0x78] sm:$0xf]
          %v2270 = vld [vmem:[%s2238 + $0x7c] sm:$0xf]
          %v2303 = vunpack.c.l.b16 %v2239
          %v2304 = vunpack.c.l.b16 %v2240
          %v2305 = vunpack.c.l.b16 %v2241
          %v2306 = vunpack.c.l.b16 %v2242
          %v2307 = vunpack.c.l.b16 %v2243
          %v2308 = vunpack.c.l.b16 %v2244
          %v2309 = vunpack.c.l.b16 %v2245
          %v2310 = vunpack.c.l.b16 %v2246
          %v2311 = vunpack.c.l.b16 %v2247
          %v2312 = vunpack.c.l.b16 %v2248
          %v2313 = vunpack.c.l.b16 %v2249
          %v2314 = vunpack.c.l.b16 %v2250
          %v2315 = vunpack.c.l.b16 %v2251
          %v2316 = vunpack.c.l.b16 %v2252
          %v2317 = vunpack.c.l.b16 %v2253
          %v2318 = vunpack.c.l.b16 %v2254
          %v2319 = vunpack.c.l.b16 %v2255
          %v2320 = vunpack.c.l.b16 %v2256
          %v2321 = vunpack.c.l.b16 %v2257
          %v2322 = vunpack.c.l.b16 %v2258
          %v2323 = vunpack.c.l.b16 %v2259
          %v2324 = vunpack.c.l.b16 %v2260
          %v2325 = vunpack.c.l.b16 %v2261
          %v2326 = vunpack.c.l.b16 %v2262
          %v2327 = vunpack.c.l.b16 %v2263
          %v2328 = vunpack.c.l.b16 %v2264
          %v2329 = vunpack.c.l.b16 %v2265
          %v2330 = vunpack.c.l.b16 %v2266
          %v2331 = vunpack.c.l.b16 %v2267
          %v2332 = vunpack.c.l.b16 %v2268
          %v2333 = vunpack.c.l.b16 %v2269
          %v2334 = vunpack.c.l.b16 %v2270
          %v2335 = vpack.c.b16 %v2304, %v2303
          %v2336 = vpack.c.b16 %v2306, %v2305
          %v2337 = vpack.c.b16 %v2308, %v2307
          %v2338 = vpack.c.b16 %v2310, %v2309
          %v2339 = vpack.c.b16 %v2312, %v2311
          %v2340 = vpack.c.b16 %v2314, %v2313
          %v2341 = vpack.c.b16 %v2316, %v2315
          %v2342 = vpack.c.b16 %v2318, %v2317
          %v2343 = vpack.c.b16 %v2320, %v2319
          %v2344 = vpack.c.b16 %v2322, %v2321
          %v2345 = vpack.c.b16 %v2324, %v2323
          %v2346 = vpack.c.b16 %v2326, %v2325
          %v2347 = vpack.c.b16 %v2328, %v2327
          %v2348 = vpack.c.b16 %v2330, %v2329
          %v2349 = vpack.c.b16 %v2332, %v2331
          %v2350 = vpack.c.b16 %v2334, %v2333
          %2367 = vmatprep.subr.bf16.mxu0 0
          %2368 = vmatpush1.bf16.msra.mxu0 %v2335
          %2369 = vmatprep.subr.bf16.mxu0 0
          %2370 = vmatpush1.bf16.msra.mxu0 %v2336
          %2371 = vmatprep.subr.bf16.mxu0 0
          %2372 = vmatpush1.bf16.msra.mxu0 %v2337
          %2373 = vmatprep.subr.bf16.mxu0 0
          %2374 = vmatpush1.bf16.msra.mxu0 %v2338
          %2375 = vmatprep.subr.bf16.mxu0 0
          %2376 = vmatpush1.bf16.msra.mxu0 %v2339
          %2377 = vmatprep.subr.bf16.mxu0 0
          %2378 = vmatpush1.bf16.msra.mxu0 %v2340
          %2379 = vmatprep.subr.bf16.mxu0 0
          %2380 = vmatpush1.bf16.msra.mxu0 %v2341
          %2381 = vmatprep.subr.bf16.mxu0 0
          %2382 = vmatpush1.bf16.msra.mxu0 %v2342
          %2383 = vmatprep.subr.bf16.mxu0 0
          %2384 = vmatpush1.bf16.msra.mxu0 %v2343
          %2385 = vmatprep.subr.bf16.mxu0 0
          %2386 = vmatpush1.bf16.msra.mxu0 %v2344
          %2387 = vmatprep.subr.bf16.mxu0 0
          %2388 = vmatpush1.bf16.msra.mxu0 %v2345
          %2389 = vmatprep.subr.bf16.mxu0 0
          %2390 = vmatpush1.bf16.msra.mxu0 %v2346
          %2391 = vmatprep.subr.bf16.mxu0 0
          %2392 = vmatpush1.bf16.msra.mxu0 %v2347
          %2393 = vmatprep.subr.bf16.mxu0 0
          %2394 = vmatpush1.bf16.msra.mxu0 %v2348
          %2395 = vmatprep.subr.bf16.mxu0 0
          %2396 = vmatpush1.bf16.msra.mxu0 %v2349
          %2397 = vmatprep.subr.bf16.mxu0 0
          %2398 = vmatpush1.bf16.msra.mxu0 %v2350
          %2399 = vmatprep.mubr.bf16.mxu0 %v2223
          %2400 = vmatmul.mubr.bf16.gmra.mrb[0].mxu0 %v2222
          %v2401 = vpop.f32.mrb[0].mxu0
          %v2402 = vadd.f32 0.0, %v2401
          %v2403 = vpop.f32.mrb[0].mxu0
          %v2404 = vpop.f32.mrb[0].mxu0
          %v2405 = vadd.f32 0.0, %v2404
          %v2406 = vpop.f32.mrb[0].mxu0
          %2407 = vmatprep.mubr.bf16.mxu0 %v2225
          %2408 = vmatmul.mubr.bf16.gmra.mrb[0].mxu0 %v2224
          %v2409 = vpop.f32.mrb[0].mxu0
          %v2410 = vadd.f32 0.0, %v2409
          %v2411 = vpop.f32.mrb[0].mxu0
          %v2412 = vpop.f32.mrb[0].mxu0
          %v2413 = vadd.f32 0.0, %v2412
          %v2414 = vpop.f32.mrb[0].mxu0
          %2415 = vmatprep.mubr.bf16.mxu0 %v2227
          %2416 = vmatmul.mubr.bf16.gmra.mrb[0].mxu0 %v2226
          %v2417 = vpop.f32.mrb[0].mxu0
          %v2418 = vadd.f32 0.0, %v2417
          %v2419 = vpop.f32.mrb[0].mxu0
          %v2420 = vpop.f32.mrb[0].mxu0
          %v2421 = vadd.f32 0.0, %v2420
          %v2422 = vpop.f32.mrb[0].mxu0
          %2423 = vmatprep.mubr.bf16.mxu0 %v2229
          %2424 = vmatmul.mubr.bf16.gmra.mrb[0].mxu0 %v2228
          %v2425 = vpop.f32.mrb[0].mxu0
          %v2426 = vadd.f32 0.0, %v2425
          %v2427 = vpop.f32.mrb[0].mxu0
          %v2428 = vpop.f32.mrb[0].mxu0
          %v2429 = vadd.f32 0.0, %v2428
          %v2430 = vpop.f32.mrb[0].mxu0
          %2431 = vmatprep.mubr.bf16.mxu0 %v2231
          %2432 = vmatmul.mubr.bf16.gmra.mrb[0].mxu0 %v2230
          %v2433 = vpop.f32.mrb[0].mxu0
          %v2434 = vadd.f32 0.0, %v2433
          %v2435 = vpop.f32.mrb[0].mxu0
          %v2436 = vpop.f32.mrb[0].mxu0
          %v2437 = vadd.f32 0.0, %v2436
          %v2438 = vpop.f32.mrb[0].mxu0
          %2439 = vmatprep.mubr.bf16.mxu0 %v2233
          %2440 = vmatmul.mubr.bf16.gmra.mrb[0].mxu0 %v2232
          %v2441 = vpop.f32.mrb[0].mxu0
          %v2442 = vadd.f32 0.0, %v2441
          %v2443 = vpop.f32.mrb[0].mxu0
          %v2444 = vpop.f32.mrb[0].mxu0
          %v2445 = vadd.f32 0.0, %v2444
          %v2446 = vpop.f32.mrb[0].mxu0
          %2447 = vmatprep.mubr.bf16.mxu0 %v2235
          %2448 = vmatmul.mubr.bf16.gmra.mrb[0].mxu0 %v2234
          %v2449 = vpop.f32.mrb[0].mxu0
          %v2450 = vadd.f32 0.0, %v2449
          %v2451 = vpop.f32.mrb[0].mxu0
          %v2452 = vpop.f32.mrb[0].mxu0
          %v2453 = vadd.f32 0.0, %v2452
          %v2454 = vpop.f32.mrb[0].mxu0
          %2455 = vmatprep.mubr.bf16.mxu0 %v2237
          %2456 = vmatmul.mubr.bf16.gmra.mrb[0].mxu0 %v2236
          %v2457 = vpop.f32.mrb[0].mxu0
          %v2458 = vadd.f32 0.0, %v2457
          %v2459 = vpop.f32.mrb[0].mxu0
          %v2460 = vpop.f32.mrb[0].mxu0
          %v2461 = vadd.f32 0.0, %v2460
          %v2462 = vpop.f32.mrb[0].mxu0
          %2463 = vdwg.mxu0
          %v2464 = vadd.f32 %v2174, %v2402
          %v2465 = vadd.f32 %v2175, %v2405
          %v2466 = vadd.f32 %v2176, %v2410
          %v2467 = vadd.f32 %v2177, %v2413
          %v2468 = vadd.f32 %v2178, %v2418
          %v2469 = vadd.f32 %v2179, %v2421
          %v2470 = vadd.f32 %v2180, %v2426
          %v2471 = vadd.f32 %v2181, %v2429
          %v2472 = vadd.f32 %v2182, %v2434
          %v2473 = vadd.f32 %v2183, %v2437
          %v2474 = vadd.f32 %v2184, %v2442
          %v2475 = vadd.f32 %v2185, %v2445
          %v2476 = vadd.f32 %v2186, %v2450
          %v2477 = vadd.f32 %v2187, %v2453
          %v2478 = vadd.f32 %v2188, %v2458
          %v2479 = vadd.f32 %v2189, %v2461
          %v2480 = vld [vmem:[#allocation2 + $0x11] sm:$0xff]
          %v2481 = vld [vmem:[#allocation2 + $0x19] sm:$0xff]
          %v2482 = vld [vmem:[#allocation2 + $0x21] sm:$0xff]
          %v2483 = vld [vmem:[#allocation2 + $0x29] sm:$0xff]
          %v2484 = vld [vmem:[#allocation2 + $0x31] sm:$0xff]
          %v2485 = vld [vmem:[#allocation2 + $0x39] sm:$0xff]
          %v2486 = vld [vmem:[#allocation2 + $0x41] sm:$0xff]
          %v2487 = vld [vmem:[#allocation2 + $0x49] sm:$0xff]
          %v2488 = vld [vmem:[#allocation2 + $0x91] sm:$0xff]
          %v2489 = vld [vmem:[#allocation2 + $0x99] sm:$0xff]
          %v2490 = vld [vmem:[#allocation2 + $0xa1] sm:$0xff]
          %v2491 = vld [vmem:[#allocation2 + $0xa9] sm:$0xff]
          %v2492 = vld [vmem:[#allocation2 + $0xb1] sm:$0xff]
          %v2493 = vld [vmem:[#allocation2 + $0xb9] sm:$0xff]
          %v2494 = vld [vmem:[#allocation2 + $0xc1] sm:$0xff]
          %v2495 = vld [vmem:[#allocation2 + $0xc9] sm:$0xff]
          %v2496 = vld [vmem:[#allocation2 + $0x12] sm:$0xff]
          %v2497 = vld [vmem:[#allocation2 + $0x1a] sm:$0xff]
          %v2498 = vld [vmem:[#allocation2 + $0x22] sm:$0xff]
          %v2499 = vld [vmem:[#allocation2 + $0x2a] sm:$0xff]
          %v2500 = vld [vmem:[#allocation2 + $0x32] sm:$0xff]
          %v2501 = vld [vmem:[#allocation2 + $0x3a] sm:$0xff]
          %v2502 = vld [vmem:[#allocation2 + $0x42] sm:$0xff]
          %v2503 = vld [vmem:[#allocation2 + $0x4a] sm:$0xff]
          %v2504 = vld [vmem:[#allocation2 + $0x92] sm:$0xff]
          %v2505 = vld [vmem:[#allocation2 + $0x9a] sm:$0xff]
          %v2506 = vld [vmem:[#allocation2 + $0xa2] sm:$0xff]
          %v2507 = vld [vmem:[#allocation2 + $0xaa] sm:$0xff]
          %v2508 = vld [vmem:[#allocation2 + $0xb2] sm:$0xff]
          %v2509 = vld [vmem:[#allocation2 + $0xba] sm:$0xff]
          %v2510 = vld [vmem:[#allocation2 + $0xc2] sm:$0xff]
          %v2511 = vld [vmem:[#allocation2 + $0xca] sm:$0xff]
          %v2512 = vpack.c.bf16 %v2481, %v2480
          %v2513 = vpack.c.bf16 %v2497, %v2496
          %v2514 = vpack.c.bf16 %v2483, %v2482
          %v2515 = vpack.c.bf16 %v2499, %v2498
          %v2516 = vpack.c.bf16 %v2485, %v2484
          %v2517 = vpack.c.bf16 %v2501, %v2500
          %v2518 = vpack.c.bf16 %v2487, %v2486
          %v2519 = vpack.c.bf16 %v2503, %v2502
          %v2520 = vpack.c.bf16 %v2489, %v2488
          %v2521 = vpack.c.bf16 %v2505, %v2504
          %v2522 = vpack.c.bf16 %v2491, %v2490
          %v2523 = vpack.c.bf16 %v2507, %v2506
          %v2524 = vpack.c.bf16 %v2493, %v2492
          %v2525 = vpack.c.bf16 %v2509, %v2508
          %v2526 = vpack.c.bf16 %v2495, %v2494
          %v2527 = vpack.c.bf16 %v2511, %v2510
          %s2528 = scalar_lea.vmem [#allocation11], 640
          %v2529 = vld [vmem:[%s2528] sm:$0xf]
          %v2530 = vld [vmem:[%s2528 + $0x4] sm:$0xf]
          %v2531 = vld [vmem:[%s2528 + $0x8] sm:$0xf]
          %v2532 = vld [vmem:[%s2528 + $0xc] sm:$0xf]
          %v2533 = vld [vmem:[%s2528 + $0x10] sm:$0xf]
          %v2534 = vld [vmem:[%s2528 + $0x14] sm:$0xf]
          %v2535 = vld [vmem:[%s2528 + $0x18] sm:$0xf]
          %v2536 = vld [vmem:[%s2528 + $0x1c] sm:$0xf]
          %v2537 = vld [vmem:[%s2528 + $0x20] sm:$0xf]
          %v2538 = vld [vmem:[%s2528 + $0x24] sm:$0xf]
          %v2539 = vld [vmem:[%s2528 + $0x28] sm:$0xf]
          %v2540 = vld [vmem:[%s2528 + $0x2c] sm:$0xf]
          %v2541 = vld [vmem:[%s2528 + $0x30] sm:$0xf]
          %v2542 = vld [vmem:[%s2528 + $0x34] sm:$0xf]
          %v2543 = vld [vmem:[%s2528 + $0x38] sm:$0xf]
          %v2544 = vld [vmem:[%s2528 + $0x3c] sm:$0xf]
          %v2545 = vld [vmem:[%s2528 + $0x40] sm:$0xf]
          %v2546 = vld [vmem:[%s2528 + $0x44] sm:$0xf]
          %v2547 = vld [vmem:[%s2528 + $0x48] sm:$0xf]
          %v2548 = vld [vmem:[%s2528 + $0x4c] sm:$0xf]
          %v2549 = vld [vmem:[%s2528 + $0x50] sm:$0xf]
          %v2550 = vld [vmem:[%s2528 + $0x54] sm:$0xf]
          %v2551 = vld [vmem:[%s2528 + $0x58] sm:$0xf]
          %v2552 = vld [vmem:[%s2528 + $0x5c] sm:$0xf]
          %v2553 = vld [vmem:[%s2528 + $0x60] sm:$0xf]
          %v2554 = vld [vmem:[%s2528 + $0x64] sm:$0xf]
          %v2555 = vld [vmem:[%s2528 + $0x68] sm:$0xf]
          %v2556 = vld [vmem:[%s2528 + $0x6c] sm:$0xf]
          %v2557 = vld [vmem:[%s2528 + $0x70] sm:$0xf]
          %v2558 = vld [vmem:[%s2528 + $0x74] sm:$0xf]
          %v2559 = vld [vmem:[%s2528 + $0x78] sm:$0xf]
          %v2560 = vld [vmem:[%s2528 + $0x7c] sm:$0xf]
          %v2593 = vunpack.c.l.b16 %v2529
          %v2594 = vunpack.c.l.b16 %v2530
          %v2595 = vunpack.c.l.b16 %v2531
          %v2596 = vunpack.c.l.b16 %v2532
          %v2597 = vunpack.c.l.b16 %v2533
          %v2598 = vunpack.c.l.b16 %v2534
          %v2599 = vunpack.c.l.b16 %v2535
          %v2600 = vunpack.c.l.b16 %v2536
          %v2601 = vunpack.c.l.b16 %v2537
          %v2602 = vunpack.c.l.b16 %v2538
          %v2603 = vunpack.c.l.b16 %v2539
          %v2604 = vunpack.c.l.b16 %v2540
          %v2605 = vunpack.c.l.b16 %v2541
          %v2606 = vunpack.c.l.b16 %v2542
          %v2607 = vunpack.c.l.b16 %v2543
          %v2608 = vunpack.c.l.b16 %v2544
          %v2609 = vunpack.c.l.b16 %v2545
          %v2610 = vunpack.c.l.b16 %v2546
          %v2611 = vunpack.c.l.b16 %v2547
          %v2612 = vunpack.c.l.b16 %v2548
          %v2613 = vunpack.c.l.b16 %v2549
          %v2614 = vunpack.c.l.b16 %v2550
          %v2615 = vunpack.c.l.b16 %v2551
          %v2616 = vunpack.c.l.b16 %v2552
          %v2617 = vunpack.c.l.b16 %v2553
          %v2618 = vunpack.c.l.b16 %v2554
          %v2619 = vunpack.c.l.b16 %v2555
          %v2620 = vunpack.c.l.b16 %v2556
          %v2621 = vunpack.c.l.b16 %v2557
          %v2622 = vunpack.c.l.b16 %v2558
          %v2623 = vunpack.c.l.b16 %v2559
          %v2624 = vunpack.c.l.b16 %v2560
          %v2625 = vpack.c.b16 %v2594, %v2593
          %v2626 = vpack.c.b16 %v2596, %v2595
          %v2627 = vpack.c.b16 %v2598, %v2597
          %v2628 = vpack.c.b16 %v2600, %v2599
          %v2629 = vpack.c.b16 %v2602, %v2601
          %v2630 = vpack.c.b16 %v2604, %v2603
          %v2631 = vpack.c.b16 %v2606, %v2605
          %v2632 = vpack.c.b16 %v2608, %v2607
          %v2633 = vpack.c.b16 %v2610, %v2609
          %v2634 = vpack.c.b16 %v2612, %v2611
          %v2635 = vpack.c.b16 %v2614, %v2613
          %v2636 = vpack.c.b16 %v2616, %v2615
          %v2637 = vpack.c.b16 %v2618, %v2617
          %v2638 = vpack.c.b16 %v2620, %v2619
          %v2639 = vpack.c.b16 %v2622, %v2621
          %v2640 = vpack.c.b16 %v2624, %v2623
          %2657 = vmatprep.subr.bf16.mxu0 0
          %2658 = vmatpush1.bf16.msra.mxu0 %v2625
          %2659 = vmatprep.subr.bf16.mxu0 0
          %2660 = vmatpush1.bf16.msra.mxu0 %v2626
          %2661 = vmatprep.subr.bf16.mxu0 0
          %2662 = vmatpush1.bf16.msra.mxu0 %v2627
          %2663 = vmatprep.subr.bf16.mxu0 0
          %2664 = vmatpush1.bf16.msra.mxu0 %v2628
          %2665 = vmatprep.subr.bf16.mxu0 0
          %2666 = vmatpush1.bf16.msra.mxu0 %v2629
          %2667 = vmatprep.subr.bf16.mxu0 0
          %2668 = vmatpush1.bf16.msra.mxu0 %v2630
          %2669 = vmatprep.subr.bf16.mxu0 0
          %2670 = vmatpush1.bf16.msra.mxu0 %v2631
          %2671 = vmatprep.subr.bf16.mxu0 0
          %2672 = vmatpush1.bf16.msra.mxu0 %v2632
          %2673 = vmatprep.subr.bf16.mxu0 0
          %2674 = vmatpush1.bf16.msra.mxu0 %v2633
          %2675 = vmatprep.subr.bf16.mxu0 0
          %2676 = vmatpush1.bf16.msra.mxu0 %v2634
          %2677 = vmatprep.subr.bf16.mxu0 0
          %2678 = vmatpush1.bf16.msra.mxu0 %v2635
          %2679 = vmatprep.subr.bf16.mxu0 0
          %2680 = vmatpush1.bf16.msra.mxu0 %v2636
          %2681 = vmatprep.subr.bf16.mxu0 0
          %2682 = vmatpush1.bf16.msra.mxu0 %v2637
          %2683 = vmatprep.subr.bf16.mxu0 0
          %2684 = vmatpush1.bf16.msra.mxu0 %v2638
          %2685 = vmatprep.subr.bf16.mxu0 0
          %2686 = vmatpush1.bf16.msra.mxu0 %v2639
          %2687 = vmatprep.subr.bf16.mxu0 0
          %2688 = vmatpush1.bf16.msra.mxu0 %v2640
          %2689 = vmatprep.mubr.bf16.mxu0 %v2513
          %2690 = vmatmul.mubr.bf16.gmra.mrb[0].mxu0 %v2512
          %v2691 = vpop.f32.mrb[0].mxu0
          %v2692 = vadd.f32 0.0, %v2691
          %v2693 = vpop.f32.mrb[0].mxu0
          %v2694 = vpop.f32.mrb[0].mxu0
          %v2695 = vadd.f32 0.0, %v2694
          %v2696 = vpop.f32.mrb[0].mxu0
          %2697 = vmatprep.mubr.bf16.mxu0 %v2515
          %2698 = vmatmul.mubr.bf16.gmra.mrb[0].mxu0 %v2514
          %v2699 = vpop.f32.mrb[0].mxu0
          %v2700 = vadd.f32 0.0, %v2699
          %v2701 = vpop.f32.mrb[0].mxu0
          %v2702 = vpop.f32.mrb[0].mxu0
          %v2703 = vadd.f32 0.0, %v2702
          %v2704 = vpop.f32.mrb[0].mxu0
          %2705 = vmatprep.mubr.bf16.mxu0 %v2517
          %2706 = vmatmul.mubr.bf16.gmra.mrb[0].mxu0 %v2516
          %v2707 = vpop.f32.mrb[0].mxu0
          %v2708 = vadd.f32 0.0, %v2707
          %v2709 = vpop.f32.mrb[0].mxu0
          %v2710 = vpop.f32.mrb[0].mxu0
          %v2711 = vadd.f32 0.0, %v2710
          %v2712 = vpop.f32.mrb[0].mxu0
          %2713 = vmatprep.mubr.bf16.mxu0 %v2519
          %2714 = vmatmul.mubr.bf16.gmra.mrb[0].mxu0 %v2518
          %v2715 = vpop.f32.mrb[0].mxu0
          %v2716 = vadd.f32 0.0, %v2715
          %v2717 = vpop.f32.mrb[0].mxu0
          %v2718 = vpop.f32.mrb[0].mxu0
          %v2719 = vadd.f32 0.0, %v2718
          %v2720 = vpop.f32.mrb[0].mxu0
          %2721 = vmatprep.mubr.bf16.mxu0 %v2521
          %2722 = vmatmul.mubr.bf16.gmra.mrb[0].mxu0 %v2520
          %v2723 = vpop.f32.mrb[0].mxu0
          %v2724 = vadd.f32 0.0, %v2723
          %v2725 = vpop.f32.mrb[0].mxu0
          %v2726 = vpop.f32.mrb[0].mxu0
          %v2727 = vadd.f32 0.0, %v2726
          %v2728 = vpop.f32.mrb[0].mxu0
          %2729 = vmatprep.mubr.bf16.mxu0 %v2523
          %2730 = vmatmul.mubr.bf16.gmra.mrb[0].mxu0 %v2522
          %v2731 = vpop.f32.mrb[0].mxu0
          %v2732 = vadd.f32 0.0, %v2731
          %v2733 = vpop.f32.mrb[0].mxu0
          %v2734 = vpop.f32.mrb[0].mxu0
          %v2735 = vadd.f32 0.0, %v2734
          %v2736 = vpop.f32.mrb[0].mxu0
          %2737 = vmatprep.mubr.bf16.mxu0 %v2525
          %2738 = vmatmul.mubr.bf16.gmra.mrb[0].mxu0 %v2524
          %v2739 = vpop.f32.mrb[0].mxu0
          %v2740 = vadd.f32 0.0, %v2739
          %v2741 = vpop.f32.mrb[0].mxu0
          %v2742 = vpop.f32.mrb[0].mxu0
          %v2743 = vadd.f32 0.0, %v2742
          %v2744 = vpop.f32.mrb[0].mxu0
          %2745 = vmatprep.mubr.bf16.mxu0 %v2527
          %2746 = vmatmul.mubr.bf16.gmra.mrb[0].mxu0 %v2526
          %v2747 = vpop.f32.mrb[0].mxu0
          %v2748 = vadd.f32 0.0, %v2747
          %v2749 = vpop.f32.mrb[0].mxu0
          %v2750 = vpop.f32.mrb[0].mxu0
          %v2751 = vadd.f32 0.0, %v2750
          %v2752 = vpop.f32.mrb[0].mxu0
          %2753 = vdwg.mxu0
          %v2754 = vadd.f32 %v2464, %v2692
          %v2755 = vadd.f32 %v2465, %v2695
          %v2756 = vadd.f32 %v2466, %v2700
          %v2757 = vadd.f32 %v2467, %v2703
          %v2758 = vadd.f32 %v2468, %v2708
          %v2759 = vadd.f32 %v2469, %v2711
          %v2760 = vadd.f32 %v2470, %v2716
          %v2761 = vadd.f32 %v2471, %v2719
          %v2762 = vadd.f32 %v2472, %v2724
          %v2763 = vadd.f32 %v2473, %v2727
          %v2764 = vadd.f32 %v2474, %v2732
          %v2765 = vadd.f32 %v2475, %v2735
          %v2766 = vadd.f32 %v2476, %v2740
          %v2767 = vadd.f32 %v2477, %v2743
          %v2768 = vadd.f32 %v2478, %v2748
          %v2769 = vadd.f32 %v2479, %v2751
          %v2770 = vld [vmem:[#allocation2 + $0x13] sm:$0xff]
          %v2771 = vld [vmem:[#allocation2 + $0x1b] sm:$0xff]
          %v2772 = vld [vmem:[#allocation2 + $0x23] sm:$0xff]
          %v2773 = vld [vmem:[#allocation2 + $0x2b] sm:$0xff]
          %v2774 = vld [vmem:[#allocation2 + $0x33] sm:$0xff]
          %v2775 = vld [vmem:[#allocation2 + $0x3b] sm:$0xff]
          %v2776 = vld [vmem:[#allocation2 + $0x43] sm:$0xff]
          %v2777 = vld [vmem:[#allocation2 + $0x4b] sm:$0xff]
          %v2778 = vld [vmem:[#allocation2 + $0x93] sm:$0xff]
          %v2779 = vld [vmem:[#allocation2 + $0x9b] sm:$0xff]
          %v2780 = vld [vmem:[#allocation2 + $0xa3] sm:$0xff]
          %v2781 = vld [vmem:[#allocation2 + $0xab] sm:$0xff]
          %v2782 = vld [vmem:[#allocation2 + $0xb3] sm:$0xff]
          %v2783 = vld [vmem:[#allocation2 + $0xbb] sm:$0xff]
          %v2784 = vld [vmem:[#allocation2 + $0xc3] sm:$0xff]
          %v2785 = vld [vmem:[#allocation2 + $0xcb] sm:$0xff]
          %v2786 = vld [vmem:[#allocation2 + $0x14] sm:$0xff]
          %v2787 = vld [vmem:[#allocation2 + $0x1c] sm:$0xff]
          %v2788 = vld [vmem:[#allocation2 + $0x24] sm:$0xff]
          %v2789 = vld [vmem:[#allocation2 + $0x2c] sm:$0xff]
          %v2790 = vld [vmem:[#allocation2 + $0x34] sm:$0xff]
          %v2791 = vld [vmem:[#allocation2 + $0x3c] sm:$0xff]
          %v2792 = vld [vmem:[#allocation2 + $0x44] sm:$0xff]
          %v2793 = vld [vmem:[#allocation2 + $0x4c] sm:$0xff]
          %v2794 = vld [vmem:[#allocation2 + $0x94] sm:$0xff]
          %v2795 = vld [vmem:[#allocation2 + $0x9c] sm:$0xff]
          %v2796 = vld [vmem:[#allocation2 + $0xa4] sm:$0xff]
          %v2797 = vld [vmem:[#allocation2 + $0xac] sm:$0xff]
          %v2798 = vld [vmem:[#allocation2 + $0xb4] sm:$0xff]
          %v2799 = vld [vmem:[#allocation2 + $0xbc] sm:$0xff]
          %v2800 = vld [vmem:[#allocation2 + $0xc4] sm:$0xff]
          %v2801 = vld [vmem:[#allocation2 + $0xcc] sm:$0xff]
          %v2802 = vpack.c.bf16 %v2771, %v2770
          %v2803 = vpack.c.bf16 %v2787, %v2786
          %v2804 = vpack.c.bf16 %v2773, %v2772
          %v2805 = vpack.c.bf16 %v2789, %v2788
          %v2806 = vpack.c.bf16 %v2775, %v2774
          %v2807 = vpack.c.bf16 %v2791, %v2790
          %v2808 = vpack.c.bf16 %v2777, %v2776
          %v2809 = vpack.c.bf16 %v2793, %v2792
          %v2810 = vpack.c.bf16 %v2779, %v2778
          %v2811 = vpack.c.bf16 %v2795, %v2794
          %v2812 = vpack.c.bf16 %v2781, %v2780
          %v2813 = vpack.c.bf16 %v2797, %v2796
          %v2814 = vpack.c.bf16 %v2783, %v2782
          %v2815 = vpack.c.bf16 %v2799, %v2798
          %v2816 = vpack.c.bf16 %v2785, %v2784
          %v2817 = vpack.c.bf16 %v2801, %v2800
          %s2818 = scalar_lea.vmem [#allocation11], 768
          %v2819 = vld [vmem:[%s2818] sm:$0xf]
          %v2820 = vld [vmem:[%s2818 + $0x4] sm:$0xf]
          %v2821 = vld [vmem:[%s2818 + $0x8] sm:$0xf]
          %v2822 = vld [vmem:[%s2818 + $0xc] sm:$0xf]
          %v2823 = vld [vmem:[%s2818 + $0x10] sm:$0xf]
          %v2824 = vld [vmem:[%s2818 + $0x14] sm:$0xf]
          %v2825 = vld [vmem:[%s2818 + $0x18] sm:$0xf]
          %v2826 = vld [vmem:[%s2818 + $0x1c] sm:$0xf]
          %v2827 = vld [vmem:[%s2818 + $0x20] sm:$0xf]
          %v2828 = vld [vmem:[%s2818 + $0x24] sm:$0xf]
          %v2829 = vld [vmem:[%s2818 + $0x28] sm:$0xf]
          %v2830 = vld [vmem:[%s2818 + $0x2c] sm:$0xf]
          %v2831 = vld [vmem:[%s2818 + $0x30] sm:$0xf]
          %v2832 = vld [vmem:[%s2818 + $0x34] sm:$0xf]
          %v2833 = vld [vmem:[%s2818 + $0x38] sm:$0xf]
          %v2834 = vld [vmem:[%s2818 + $0x3c] sm:$0xf]
          %v2835 = vld [vmem:[%s2818 + $0x40] sm:$0xf]
          %v2836 = vld [vmem:[%s2818 + $0x44] sm:$0xf]
          %v2837 = vld [vmem:[%s2818 + $0x48] sm:$0xf]
          %v2838 = vld [vmem:[%s2818 + $0x4c] sm:$0xf]
          %v2839 = vld [vmem:[%s2818 + $0x50] sm:$0xf]
          %v2840 = vld [vmem:[%s2818 + $0x54] sm:$0xf]
          %v2841 = vld [vmem:[%s2818 + $0x58] sm:$0xf]
          %v2842 = vld [vmem:[%s2818 + $0x5c] sm:$0xf]
          %v2843 = vld [vmem:[%s2818 + $0x60] sm:$0xf]
          %v2844 = vld [vmem:[%s2818 + $0x64] sm:$0xf]
          %v2845 = vld [vmem:[%s2818 + $0x68] sm:$0xf]
          %v2846 = vld [vmem:[%s2818 + $0x6c] sm:$0xf]
          %v2847 = vld [vmem:[%s2818 + $0x70] sm:$0xf]
          %v2848 = vld [vmem:[%s2818 + $0x74] sm:$0xf]
          %v2849 = vld [vmem:[%s2818 + $0x78] sm:$0xf]
          %v2850 = vld [vmem:[%s2818 + $0x7c] sm:$0xf]
          %v2883 = vunpack.c.l.b16 %v2819
          %v2884 = vunpack.c.l.b16 %v2820
          %v2885 = vunpack.c.l.b16 %v2821
          %v2886 = vunpack.c.l.b16 %v2822
          %v2887 = vunpack.c.l.b16 %v2823
          %v2888 = vunpack.c.l.b16 %v2824
          %v2889 = vunpack.c.l.b16 %v2825
          %v2890 = vunpack.c.l.b16 %v2826
          %v2891 = vunpack.c.l.b16 %v2827
          %v2892 = vunpack.c.l.b16 %v2828
          %v2893 = vunpack.c.l.b16 %v2829
          %v2894 = vunpack.c.l.b16 %v2830
          %v2895 = vunpack.c.l.b16 %v2831
          %v2896 = vunpack.c.l.b16 %v2832
          %v2897 = vunpack.c.l.b16 %v2833
          %v2898 = vunpack.c.l.b16 %v2834
          %v2899 = vunpack.c.l.b16 %v2835
          %v2900 = vunpack.c.l.b16 %v2836
          %v2901 = vunpack.c.l.b16 %v2837
          %v2902 = vunpack.c.l.b16 %v2838
          %v2903 = vunpack.c.l.b16 %v2839
          %v2904 = vunpack.c.l.b16 %v2840
          %v2905 = vunpack.c.l.b16 %v2841
          %v2906 = vunpack.c.l.b16 %v2842
          %v2907 = vunpack.c.l.b16 %v2843
          %v2908 = vunpack.c.l.b16 %v2844
          %v2909 = vunpack.c.l.b16 %v2845
          %v2910 = vunpack.c.l.b16 %v2846
          %v2911 = vunpack.c.l.b16 %v2847
          %v2912 = vunpack.c.l.b16 %v2848
          %v2913 = vunpack.c.l.b16 %v2849
          %v2914 = vunpack.c.l.b16 %v2850
          %v2915 = vpack.c.b16 %v2884, %v2883
          %v2916 = vpack.c.b16 %v2886, %v2885
          %v2917 = vpack.c.b16 %v2888, %v2887
          %v2918 = vpack.c.b16 %v2890, %v2889
          %v2919 = vpack.c.b16 %v2892, %v2891
          %v2920 = vpack.c.b16 %v2894, %v2893
          %v2921 = vpack.c.b16 %v2896, %v2895
          %v2922 = vpack.c.b16 %v2898, %v2897
          %v2923 = vpack.c.b16 %v2900, %v2899
          %v2924 = vpack.c.b16 %v2902, %v2901
          %v2925 = vpack.c.b16 %v2904, %v2903
          %v2926 = vpack.c.b16 %v2906, %v2905
          %v2927 = vpack.c.b16 %v2908, %v2907
          %v2928 = vpack.c.b16 %v2910, %v2909
          %v2929 = vpack.c.b16 %v2912, %v2911
          %v2930 = vpack.c.b16 %v2914, %v2913
          %2947 = vmatprep.subr.bf16.mxu0 0
          %2948 = vmatpush1.bf16.msra.mxu0 %v2915
          %2949 = vmatprep.subr.bf16.mxu0 0
          %2950 = vmatpush1.bf16.msra.mxu0 %v2916
          %2951 = vmatprep.subr.bf16.mxu0 0
          %2952 = vmatpush1.bf16.msra.mxu0 %v2917
          %2953 = vmatprep.subr.bf16.mxu0 0
          %2954 = vmatpush1.bf16.msra.mxu0 %v2918
          %2955 = vmatprep.subr.bf16.mxu0 0
          %2956 = vmatpush1.bf16.msra.mxu0 %v2919
          %2957 = vmatprep.subr.bf16.mxu0 0
          %2958 = vmatpush1.bf16.msra.mxu0 %v2920
          %2959 = vmatprep.subr.bf16.mxu0 0
          %2960 = vmatpush1.bf16.msra.mxu0 %v2921
          %2961 = vmatprep.subr.bf16.mxu0 0
          %2962 = vmatpush1.bf16.msra.mxu0 %v2922
          %2963 = vmatprep.subr.bf16.mxu0 0
          %2964 = vmatpush1.bf16.msra.mxu0 %v2923
          %2965 = vmatprep.subr.bf16.mxu0 0
          %2966 = vmatpush1.bf16.msra.mxu0 %v2924
          %2967 = vmatprep.subr.bf16.mxu0 0
          %2968 = vmatpush1.bf16.msra.mxu0 %v2925
          %2969 = vmatprep.subr.bf16.mxu0 0
          %2970 = vmatpush1.bf16.msra.mxu0 %v2926
          %2971 = vmatprep.subr.bf16.mxu0 0
          %2972 = vmatpush1.bf16.msra.mxu0 %v2927
          %2973 = vmatprep.subr.bf16.mxu0 0
          %2974 = vmatpush1.bf16.msra.mxu0 %v2928
          %2975 = vmatprep.subr.bf16.mxu0 0
          %2976 = vmatpush1.bf16.msra.mxu0 %v2929
          %2977 = vmatprep.subr.bf16.mxu0 0
          %2978 = vmatpush1.bf16.msra.mxu0 %v2930
          %2979 = vmatprep.mubr.bf16.mxu0 %v2803
          %2980 = vmatmul.mubr.bf16.gmra.mrb[0].mxu0 %v2802
          %v2981 = vpop.f32.mrb[0].mxu0
          %v2982 = vadd.f32 0.0, %v2981
          %v2983 = vpop.f32.mrb[0].mxu0
          %v2984 = vpop.f32.mrb[0].mxu0
          %v2985 = vadd.f32 0.0, %v2984
          %v2986 = vpop.f32.mrb[0].mxu0
          %2987 = vmatprep.mubr.bf16.mxu0 %v2805
          %2988 = vmatmul.mubr.bf16.gmra.mrb[0].mxu0 %v2804
          %v2989 = vpop.f32.mrb[0].mxu0
          %v2990 = vadd.f32 0.0, %v2989
          %v2991 = vpop.f32.mrb[0].mxu0
          %v2992 = vpop.f32.mrb[0].mxu0
          %v2993 = vadd.f32 0.0, %v2992
          %v2994 = vpop.f32.mrb[0].mxu0
          %2995 = vmatprep.mubr.bf16.mxu0 %v2807
          %2996 = vmatmul.mubr.bf16.gmra.mrb[0].mxu0 %v2806
          %v2997 = vpop.f32.mrb[0].mxu0
          %v2998 = vadd.f32 0.0, %v2997
          %v2999 = vpop.f32.mrb[0].mxu0
          %v3000 = vpop.f32.mrb[0].mxu0
          %v3001 = vadd.f32 0.0, %v3000
          %v3002 = vpop.f32.mrb[0].mxu0
          %3003 = vmatprep.mubr.bf16.mxu0 %v2809
          %3004 = vmatmul.mubr.bf16.gmra.mrb[0].mxu0 %v2808
          %v3005 = vpop.f32.mrb[0].mxu0
          %v3006 = vadd.f32 0.0, %v3005
          %v3007 = vpop.f32.mrb[0].mxu0
          %v3008 = vpop.f32.mrb[0].mxu0
          %v3009 = vadd.f32 0.0, %v3008
          %v3010 = vpop.f32.mrb[0].mxu0
          %3011 = vmatprep.mubr.bf16.mxu0 %v2811
          %3012 = vmatmul.mubr.bf16.gmra.mrb[0].mxu0 %v2810
          %v3013 = vpop.f32.mrb[0].mxu0
          %v3014 = vadd.f32 0.0, %v3013
          %v3015 = vpop.f32.mrb[0].mxu0
          %v3016 = vpop.f32.mrb[0].mxu0
          %v3017 = vadd.f32 0.0, %v3016
          %v3018 = vpop.f32.mrb[0].mxu0
          %3019 = vmatprep.mubr.bf16.mxu0 %v2813
          %3020 = vmatmul.mubr.bf16.gmra.mrb[0].mxu0 %v2812
          %v3021 = vpop.f32.mrb[0].mxu0
          %v3022 = vadd.f32 0.0, %v3021
          %v3023 = vpop.f32.mrb[0].mxu0
          %v3024 = vpop.f32.mrb[0].mxu0
          %v3025 = vadd.f32 0.0, %v3024
          %v3026 = vpop.f32.mrb[0].mxu0
          %3027 = vmatprep.mubr.bf16.mxu0 %v2815
          %3028 = vmatmul.mubr.bf16.gmra.mrb[0].mxu0 %v2814
          %v3029 = vpop.f32.mrb[0].mxu0
          %v3030 = vadd.f32 0.0, %v3029
          %v3031 = vpop.f32.mrb[0].mxu0
          %v3032 = vpop.f32.mrb[0].mxu0
          %v3033 = vadd.f32 0.0, %v3032
          %v3034 = vpop.f32.mrb[0].mxu0
          %3035 = vmatprep.mubr.bf16.mxu0 %v2817
          %3036 = vmatmul.mubr.bf16.gmra.mrb[0].mxu0 %v2816
          %v3037 = vpop.f32.mrb[0].mxu0
          %v3038 = vadd.f32 0.0, %v3037
          %v3039 = vpop.f32.mrb[0].mxu0
          %v3040 = vpop.f32.mrb[0].mxu0
          %v3041 = vadd.f32 0.0, %v3040
          %v3042 = vpop.f32.mrb[0].mxu0
          %3043 = vdwg.mxu0
          %v3044 = vadd.f32 %v2754, %v2982
          %v3045 = vadd.f32 %v2755, %v2985
          %v3046 = vadd.f32 %v2756, %v2990
          %v3047 = vadd.f32 %v2757, %v2993
          %v3048 = vadd.f32 %v2758, %v2998
          %v3049 = vadd.f32 %v2759, %v3001
          %v3050 = vadd.f32 %v2760, %v3006
          %v3051 = vadd.f32 %v2761, %v3009
          %v3052 = vadd.f32 %v2762, %v3014
          %v3053 = vadd.f32 %v2763, %v3017
          %v3054 = vadd.f32 %v2764, %v3022
          %v3055 = vadd.f32 %v2765, %v3025
          %v3056 = vadd.f32 %v2766, %v3030
          %v3057 = vadd.f32 %v2767, %v3033
          %v3058 = vadd.f32 %v2768, %v3038
          %v3059 = vadd.f32 %v2769, %v3041
          %v3060 = vld [vmem:[#allocation2 + $0x15] sm:$0xff]
          %v3061 = vld [vmem:[#allocation2 + $0x1d] sm:$0xff]
          %v3062 = vld [vmem:[#allocation2 + $0x25] sm:$0xff]
          %v3063 = vld [vmem:[#allocation2 + $0x2d] sm:$0xff]
          %v3064 = vld [vmem:[#allocation2 + $0x35] sm:$0xff]
          %v3065 = vld [vmem:[#allocation2 + $0x3d] sm:$0xff]
          %v3066 = vld [vmem:[#allocation2 + $0x45] sm:$0xff]
          %v3067 = vld [vmem:[#allocation2 + $0x4d] sm:$0xff]
          %v3068 = vld [vmem:[#allocation2 + $0x95] sm:$0xff]
          %v3069 = vld [vmem:[#allocation2 + $0x9d] sm:$0xff]
          %v3070 = vld [vmem:[#allocation2 + $0xa5] sm:$0xff]
          %v3071 = vld [vmem:[#allocation2 + $0xad] sm:$0xff]
          %v3072 = vld [vmem:[#allocation2 + $0xb5] sm:$0xff]
          %v3073 = vld [vmem:[#allocation2 + $0xbd] sm:$0xff]
          %v3074 = vld [vmem:[#allocation2 + $0xc5] sm:$0xff]
          %v3075 = vld [vmem:[#allocation2 + $0xcd] sm:$0xff]
          %v3076 = vld [vmem:[#allocation2 + $0x16] sm:$0xff]
          %v3077 = vld [vmem:[#allocation2 + $0x1e] sm:$0xff]
          %v3078 = vld [vmem:[#allocation2 + $0x26] sm:$0xff]
          %v3079 = vld [vmem:[#allocation2 + $0x2e] sm:$0xff]
          %v3080 = vld [vmem:[#allocation2 + $0x36] sm:$0xff]
          %v3081 = vld [vmem:[#allocation2 + $0x3e] sm:$0xff]
          %v3082 = vld [vmem:[#allocation2 + $0x46] sm:$0xff]
          %v3083 = vld [vmem:[#allocation2 + $0x4e] sm:$0xff]
          %v3084 = vld [vmem:[#allocation2 + $0x96] sm:$0xff]
          %v3085 = vld [vmem:[#allocation2 + $0x9e] sm:$0xff]
          %v3086 = vld [vmem:[#allocation2 + $0xa6] sm:$0xff]
          %v3087 = vld [vmem:[#allocation2 + $0xae] sm:$0xff]
          %v3088 = vld [vmem:[#allocation2 + $0xb6] sm:$0xff]
          %v3089 = vld [vmem:[#allocation2 + $0xbe] sm:$0xff]
          %v3090 = vld [vmem:[#allocation2 + $0xc6] sm:$0xff]
          %v3091 = vld [vmem:[#allocation2 + $0xce] sm:$0xff]
          %v3092 = vpack.c.bf16 %v3061, %v3060
          %v3093 = vpack.c.bf16 %v3077, %v3076
          %v3094 = vpack.c.bf16 %v3063, %v3062
          %v3095 = vpack.c.bf16 %v3079, %v3078
          %v3096 = vpack.c.bf16 %v3065, %v3064
          %v3097 = vpack.c.bf16 %v3081, %v3080
          %v3098 = vpack.c.bf16 %v3067, %v3066
          %v3099 = vpack.c.bf16 %v3083, %v3082
          %v3100 = vpack.c.bf16 %v3069, %v3068
          %v3101 = vpack.c.bf16 %v3085, %v3084
          %v3102 = vpack.c.bf16 %v3071, %v3070
          %v3103 = vpack.c.bf16 %v3087, %v3086
          %v3104 = vpack.c.bf16 %v3073, %v3072
          %v3105 = vpack.c.bf16 %v3089, %v3088
          %v3106 = vpack.c.bf16 %v3075, %v3074
          %v3107 = vpack.c.bf16 %v3091, %v3090
          %s3108 = scalar_lea.vmem [#allocation11], 896
          %v3109 = vld [vmem:[%s3108] sm:$0xf]
          %v3110 = vld [vmem:[%s3108 + $0x4] sm:$0xf]
          %v3111 = vld [vmem:[%s3108 + $0x8] sm:$0xf]
          %v3112 = vld [vmem:[%s3108 + $0xc] sm:$0xf]
          %v3113 = vld [vmem:[%s3108 + $0x10] sm:$0xf]
          %v3114 = vld [vmem:[%s3108 + $0x14] sm:$0xf]
          %v3115 = vld [vmem:[%s3108 + $0x18] sm:$0xf]
          %v3116 = vld [vmem:[%s3108 + $0x1c] sm:$0xf]
          %v3117 = vld [vmem:[%s3108 + $0x20] sm:$0xf]
          %v3118 = vld [vmem:[%s3108 + $0x24] sm:$0xf]
          %v3119 = vld [vmem:[%s3108 + $0x28] sm:$0xf]
          %v3120 = vld [vmem:[%s3108 + $0x2c] sm:$0xf]
          %v3121 = vld [vmem:[%s3108 + $0x30] sm:$0xf]
          %v3122 = vld [vmem:[%s3108 + $0x34] sm:$0xf]
          %v3123 = vld [vmem:[%s3108 + $0x38] sm:$0xf]
          %v3124 = vld [vmem:[%s3108 + $0x3c] sm:$0xf]
          %v3125 = vld [vmem:[%s3108 + $0x40] sm:$0xf]
          %v3126 = vld [vmem:[%s3108 + $0x44] sm:$0xf]
          %v3127 = vld [vmem:[%s3108 + $0x48] sm:$0xf]
          %v3128 = vld [vmem:[%s3108 + $0x4c] sm:$0xf]
          %v3129 = vld [vmem:[%s3108 + $0x50] sm:$0xf]
          %v3130 = vld [vmem:[%s3108 + $0x54] sm:$0xf]
          %v3131 = vld [vmem:[%s3108 + $0x58] sm:$0xf]
          %v3132 = vld [vmem:[%s3108 + $0x5c] sm:$0xf]
          %v3133 = vld [vmem:[%s3108 + $0x60] sm:$0xf]
          %v3134 = vld [vmem:[%s3108 + $0x64] sm:$0xf]
          %v3135 = vld [vmem:[%s3108 + $0x68] sm:$0xf]
          %v3136 = vld [vmem:[%s3108 + $0x6c] sm:$0xf]
          %v3137 = vld [vmem:[%s3108 + $0x70] sm:$0xf]
          %v3138 = vld [vmem:[%s3108 + $0x74] sm:$0xf]
          %v3139 = vld [vmem:[%s3108 + $0x78] sm:$0xf]
          %v3140 = vld [vmem:[%s3108 + $0x7c] sm:$0xf]
          %v3173 = vunpack.c.l.b16 %v3109
          %v3174 = vunpack.c.l.b16 %v3110
          %v3175 = vunpack.c.l.b16 %v3111
          %v3176 = vunpack.c.l.b16 %v3112
          %v3177 = vunpack.c.l.b16 %v3113
          %v3178 = vunpack.c.l.b16 %v3114
          %v3179 = vunpack.c.l.b16 %v3115
          %v3180 = vunpack.c.l.b16 %v3116
          %v3181 = vunpack.c.l.b16 %v3117
          %v3182 = vunpack.c.l.b16 %v3118
          %v3183 = vunpack.c.l.b16 %v3119
          %v3184 = vunpack.c.l.b16 %v3120
          %v3185 = vunpack.c.l.b16 %v3121
          %v3186 = vunpack.c.l.b16 %v3122
          %v3187 = vunpack.c.l.b16 %v3123
          %v3188 = vunpack.c.l.b16 %v3124
          %v3189 = vunpack.c.l.b16 %v3125
          %v3190 = vunpack.c.l.b16 %v3126
          %v3191 = vunpack.c.l.b16 %v3127
          %v3192 = vunpack.c.l.b16 %v3128
          %v3193 = vunpack.c.l.b16 %v3129
          %v3194 = vunpack.c.l.b16 %v3130
          %v3195 = vunpack.c.l.b16 %v3131
          %v3196 = vunpack.c.l.b16 %v3132
          %v3197 = vunpack.c.l.b16 %v3133
          %v3198 = vunpack.c.l.b16 %v3134
          %v3199 = vunpack.c.l.b16 %v3135
          %v3200 = vunpack.c.l.b16 %v3136
          %v3201 = vunpack.c.l.b16 %v3137
          %v3202 = vunpack.c.l.b16 %v3138
          %v3203 = vunpack.c.l.b16 %v3139
          %v3204 = vunpack.c.l.b16 %v3140
          %v3205 = vpack.c.b16 %v3174, %v3173
          %v3206 = vpack.c.b16 %v3176, %v3175
          %v3207 = vpack.c.b16 %v3178, %v3177
          %v3208 = vpack.c.b16 %v3180, %v3179
          %v3209 = vpack.c.b16 %v3182, %v3181
          %v3210 = vpack.c.b16 %v3184, %v3183
          %v3211 = vpack.c.b16 %v3186, %v3185
          %v3212 = vpack.c.b16 %v3188, %v3187
          %v3213 = vpack.c.b16 %v3190, %v3189
          %v3214 = vpack.c.b16 %v3192, %v3191
          %v3215 = vpack.c.b16 %v3194, %v3193
          %v3216 = vpack.c.b16 %v3196, %v3195
          %v3217 = vpack.c.b16 %v3198, %v3197
          %v3218 = vpack.c.b16 %v3200, %v3199
          %v3219 = vpack.c.b16 %v3202, %v3201
          %v3220 = vpack.c.b16 %v3204, %v3203
          %3237 = vmatprep.subr.bf16.mxu0 0
          %3238 = vmatpush1.bf16.msra.mxu0 %v3205
          %3239 = vmatprep.subr.bf16.mxu0 0
          %3240 = vmatpush1.bf16.msra.mxu0 %v3206
          %3241 = vmatprep.subr.bf16.mxu0 0
          %3242 = vmatpush1.bf16.msra.mxu0 %v3207
          %3243 = vmatprep.subr.bf16.mxu0 0
          %3244 = vmatpush1.bf16.msra.mxu0 %v3208
          %3245 = vmatprep.subr.bf16.mxu0 0
          %3246 = vmatpush1.bf16.msra.mxu0 %v3209
          %3247 = vmatprep.subr.bf16.mxu0 0
          %3248 = vmatpush1.bf16.msra.mxu0 %v3210
          %3249 = vmatprep.subr.bf16.mxu0 0
          %3250 = vmatpush1.bf16.msra.mxu0 %v3211
          %3251 = vmatprep.subr.bf16.mxu0 0
          %3252 = vmatpush1.bf16.msra.mxu0 %v3212
          %3253 = vmatprep.subr.bf16.mxu0 0
          %3254 = vmatpush1.bf16.msra.mxu0 %v3213
          %3255 = vmatprep.subr.bf16.mxu0 0
          %3256 = vmatpush1.bf16.msra.mxu0 %v3214
          %3257 = vmatprep.subr.bf16.mxu0 0
          %3258 = vmatpush1.bf16.msra.mxu0 %v3215
          %3259 = vmatprep.subr.bf16.mxu0 0
          %3260 = vmatpush1.bf16.msra.mxu0 %v3216
          %3261 = vmatprep.subr.bf16.mxu0 0
          %3262 = vmatpush1.bf16.msra.mxu0 %v3217
          %3263 = vmatprep.subr.bf16.mxu0 0
          %3264 = vmatpush1.bf16.msra.mxu0 %v3218
          %3265 = vmatprep.subr.bf16.mxu0 0
          %3266 = vmatpush1.bf16.msra.mxu0 %v3219
          %3267 = vmatprep.subr.bf16.mxu0 0
          %3268 = vmatpush1.bf16.msra.mxu0 %v3220
          %3269 = vmatprep.mubr.bf16.mxu0 %v3093
          %3270 = vmatmul.mubr.bf16.gmra.mrb[0].mxu0 %v3092
          %v3271 = vpop.f32.mrb[0].mxu0
          %v3272 = vadd.f32 0.0, %v3271
          %v3273 = vpop.f32.mrb[0].mxu0
          %v3274 = vpop.f32.mrb[0].mxu0
          %v3275 = vadd.f32 0.0, %v3274
          %v3276 = vpop.f32.mrb[0].mxu0
          %3277 = vmatprep.mubr.bf16.mxu0 %v3095
          %3278 = vmatmul.mubr.bf16.gmra.mrb[0].mxu0 %v3094
          %v3279 = vpop.f32.mrb[0].mxu0
          %v3280 = vadd.f32 0.0, %v3279
          %v3281 = vpop.f32.mrb[0].mxu0
          %v3282 = vpop.f32.mrb[0].mxu0
          %v3283 = vadd.f32 0.0, %v3282
          %v3284 = vpop.f32.mrb[0].mxu0
          %3285 = vmatprep.mubr.bf16.mxu0 %v3097
          %3286 = vmatmul.mubr.bf16.gmra.mrb[0].mxu0 %v3096
          %v3287 = vpop.f32.mrb[0].mxu0
          %v3288 = vadd.f32 0.0, %v3287
          %v3289 = vpop.f32.mrb[0].mxu0
          %v3290 = vpop.f32.mrb[0].mxu0
          %v3291 = vadd.f32 0.0, %v3290
          %v3292 = vpop.f32.mrb[0].mxu0
          %3293 = vmatprep.mubr.bf16.mxu0 %v3099
          %3294 = vmatmul.mubr.bf16.gmra.mrb[0].mxu0 %v3098
          %v3295 = vpop.f32.mrb[0].mxu0
          %v3296 = vadd.f32 0.0, %v3295
          %v3297 = vpop.f32.mrb[0].mxu0
          %v3298 = vpop.f32.mrb[0].mxu0
          %v3299 = vadd.f32 0.0, %v3298
          %v3300 = vpop.f32.mrb[0].mxu0
          %3301 = vmatprep.mubr.bf16.mxu0 %v3101
          %3302 = vmatmul.mubr.bf16.gmra.mrb[0].mxu0 %v3100
          %v3303 = vpop.f32.mrb[0].mxu0
          %v3304 = vadd.f32 0.0, %v3303
          %v3305 = vpop.f32.mrb[0].mxu0
          %v3306 = vpop.f32.mrb[0].mxu0
          %v3307 = vadd.f32 0.0, %v3306
          %v3308 = vpop.f32.mrb[0].mxu0
          %3309 = vmatprep.mubr.bf16.mxu0 %v3103
          %3310 = vmatmul.mubr.bf16.gmra.mrb[0].mxu0 %v3102
          %v3311 = vpop.f32.mrb[0].mxu0
          %v3312 = vadd.f32 0.0, %v3311
          %v3313 = vpop.f32.mrb[0].mxu0
          %v3314 = vpop.f32.mrb[0].mxu0
          %v3315 = vadd.f32 0.0, %v3314
          %v3316 = vpop.f32.mrb[0].mxu0
          %3317 = vmatprep.mubr.bf16.mxu0 %v3105
          %3318 = vmatmul.mubr.bf16.gmra.mrb[0].mxu0 %v3104
          %v3319 = vpop.f32.mrb[0].mxu0
          %v3320 = vadd.f32 0.0, %v3319
          %v3321 = vpop.f32.mrb[0].mxu0
          %v3322 = vpop.f32.mrb[0].mxu0
          %v3323 = vadd.f32 0.0, %v3322
          %v3324 = vpop.f32.mrb[0].mxu0
          %3325 = vmatprep.mubr.bf16.mxu0 %v3107
          %3326 = vmatmul.mubr.bf16.gmra.mrb[0].mxu0 %v3106
          %v3327 = vpop.f32.mrb[0].mxu0
          %v3328 = vadd.f32 0.0, %v3327
          %v3329 = vpop.f32.mrb[0].mxu0
          %v3330 = vpop.f32.mrb[0].mxu0
          %v3331 = vadd.f32 0.0, %v3330
          %v3332 = vpop.f32.mrb[0].mxu0
          %3333 = vdwg.mxu0
          %v3334 = vadd.f32 %v3044, %v3272
          %v3335 = vadd.f32 %v3045, %v3275
          %v3336 = vadd.f32 %v3046, %v3280
          %v3337 = vadd.f32 %v3047, %v3283
          %v3338 = vadd.f32 %v3048, %v3288
          %v3339 = vadd.f32 %v3049, %v3291
          %v3340 = vadd.f32 %v3050, %v3296
          %v3341 = vadd.f32 %v3051, %v3299
          %v3342 = vadd.f32 %v3052, %v3304
          %v3343 = vadd.f32 %v3053, %v3307
          %v3344 = vadd.f32 %v3054, %v3312
          %v3345 = vadd.f32 %v3055, %v3315
          %v3346 = vadd.f32 %v3056, %v3320
          %v3347 = vadd.f32 %v3057, %v3323
          %v3348 = vadd.f32 %v3058, %v3328
          %v3349 = vadd.f32 %v3059, %v3331
          %v3350 = vld [vmem:[#allocation2 + $0x17] sm:$0xff]
          %v3351 = vld [vmem:[#allocation2 + $0x1f] sm:$0xff]
          %v3352 = vld [vmem:[#allocation2 + $0x27] sm:$0xff]
          %v3353 = vld [vmem:[#allocation2 + $0x2f] sm:$0xff]
          %v3354 = vld [vmem:[#allocation2 + $0x37] sm:$0xff]
          %v3355 = vld [vmem:[#allocation2 + $0x3f] sm:$0xff]
          %v3356 = vld [vmem:[#allocation2 + $0x47] sm:$0xff]
          %v3357 = vld [vmem:[#allocation2 + $0x4f] sm:$0xff]
          %v3358 = vld [vmem:[#allocation2 + $0x97] sm:$0xff]
          %v3359 = vld [vmem:[#allocation2 + $0x9f] sm:$0xff]
          %v3360 = vld [vmem:[#allocation2 + $0xa7] sm:$0xff]
          %v3361 = vld [vmem:[#allocation2 + $0xaf] sm:$0xff]
          %v3362 = vld [vmem:[#allocation2 + $0xb7] sm:$0xff]
          %v3363 = vld [vmem:[#allocation2 + $0xbf] sm:$0xff]
          %v3364 = vld [vmem:[#allocation2 + $0xc7] sm:$0xff]
          %v3365 = vld [vmem:[#allocation2 + $0xcf] sm:$0xff]
          %v3366 = vld [vmem:[#allocation2 + $0x18] sm:$0xff]
          %v3367 = vld [vmem:[#allocation2 + $0x20] sm:$0xff]
          %v3368 = vld [vmem:[#allocation2 + $0x28] sm:$0xff]
          %v3369 = vld [vmem:[#allocation2 + $0x30] sm:$0xff]
          %v3370 = vld [vmem:[#allocation2 + $0x38] sm:$0xff]
          %v3371 = vld [vmem:[#allocation2 + $0x40] sm:$0xff]
          %v3372 = vld [vmem:[#allocation2 + $0x48] sm:$0xff]
          %v3373 = vld [vmem:[#allocation2 + $0x50] sm:$0xff]
          %v3374 = vld [vmem:[#allocation2 + $0x98] sm:$0xff]
          %v3375 = vld [vmem:[#allocation2 + $0xa0] sm:$0xff]
          %v3376 = vld [vmem:[#allocation2 + $0xa8] sm:$0xff]
          %v3377 = vld [vmem:[#allocation2 + $0xb0] sm:$0xff]
          %v3378 = vld [vmem:[#allocation2 + $0xb8] sm:$0xff]
          %v3379 = vld [vmem:[#allocation2 + $0xc0] sm:$0xff]
          %v3380 = vld [vmem:[#allocation2 + $0xc8] sm:$0xff]
          %v3381 = vld [vmem:[#allocation2 + $0xd0] sm:$0xff]
          %v3382 = vpack.c.bf16 %v3351, %v3350
          %v3383 = vpack.c.bf16 %v3367, %v3366
          %v3384 = vpack.c.bf16 %v3353, %v3352
          %v3385 = vpack.c.bf16 %v3369, %v3368
          %v3386 = vpack.c.bf16 %v3355, %v3354
          %v3387 = vpack.c.bf16 %v3371, %v3370
          %v3388 = vpack.c.bf16 %v3357, %v3356
          %v3389 = vpack.c.bf16 %v3373, %v3372
          %v3390 = vpack.c.bf16 %v3359, %v3358
          %v3391 = vpack.c.bf16 %v3375, %v3374
          %v3392 = vpack.c.bf16 %v3361, %v3360
          %v3393 = vpack.c.bf16 %v3377, %v3376
          %v3394 = vpack.c.bf16 %v3363, %v3362
          %v3395 = vpack.c.bf16 %v3379, %v3378
          %v3396 = vpack.c.bf16 %v3365, %v3364
          %v3397 = vpack.c.bf16 %v3381, %v3380
          %s3398 = scalar_lea.vmem [#allocation11], 1024
          %v3399 = vld [vmem:[%s3398] sm:$0xf]
          %v3400 = vld [vmem:[%s3398 + $0x4] sm:$0xf]
          %v3401 = vld [vmem:[%s3398 + $0x8] sm:$0xf]
          %v3402 = vld [vmem:[%s3398 + $0xc] sm:$0xf]
          %v3403 = vld [vmem:[%s3398 + $0x10] sm:$0xf]
          %v3404 = vld [vmem:[%s3398 + $0x14] sm:$0xf]
          %v3405 = vld [vmem:[%s3398 + $0x18] sm:$0xf]
          %v3406 = vld [vmem:[%s3398 + $0x1c] sm:$0xf]
          %v3407 = vld [vmem:[%s3398 + $0x20] sm:$0xf]
          %v3408 = vld [vmem:[%s3398 + $0x24] sm:$0xf]
          %v3409 = vld [vmem:[%s3398 + $0x28] sm:$0xf]
          %v3410 = vld [vmem:[%s3398 + $0x2c] sm:$0xf]
          %v3411 = vld [vmem:[%s3398 + $0x30] sm:$0xf]
          %v3412 = vld [vmem:[%s3398 + $0x34] sm:$0xf]
          %v3413 = vld [vmem:[%s3398 + $0x38] sm:$0xf]
          %v3414 = vld [vmem:[%s3398 + $0x3c] sm:$0xf]
          %v3415 = vld [vmem:[%s3398 + $0x40] sm:$0xf]
          %v3416 = vld [vmem:[%s3398 + $0x44] sm:$0xf]
          %v3417 = vld [vmem:[%s3398 + $0x48] sm:$0xf]
          %v3418 = vld [vmem:[%s3398 + $0x4c] sm:$0xf]
          %v3419 = vld [vmem:[%s3398 + $0x50] sm:$0xf]
          %v3420 = vld [vmem:[%s3398 + $0x54] sm:$0xf]
          %v3421 = vld [vmem:[%s3398 + $0x58] sm:$0xf]
          %v3422 = vld [vmem:[%s3398 + $0x5c] sm:$0xf]
          %v3423 = vld [vmem:[%s3398 + $0x60] sm:$0xf]
          %v3424 = vld [vmem:[%s3398 + $0x64] sm:$0xf]
          %v3425 = vld [vmem:[%s3398 + $0x68] sm:$0xf]
          %v3426 = vld [vmem:[%s3398 + $0x6c] sm:$0xf]
          %v3427 = vld [vmem:[%s3398 + $0x70] sm:$0xf]
          %v3428 = vld [vmem:[%s3398 + $0x74] sm:$0xf]
          %v3429 = vld [vmem:[%s3398 + $0x78] sm:$0xf]
          %v3430 = vld [vmem:[%s3398 + $0x7c] sm:$0xf]
          %v3463 = vunpack.c.l.b16 %v3399
          %v3464 = vunpack.c.l.b16 %v3400
          %v3465 = vunpack.c.l.b16 %v3401
          %v3466 = vunpack.c.l.b16 %v3402
          %v3467 = vunpack.c.l.b16 %v3403
          %v3468 = vunpack.c.l.b16 %v3404
          %v3469 = vunpack.c.l.b16 %v3405
          %v3470 = vunpack.c.l.b16 %v3406
          %v3471 = vunpack.c.l.b16 %v3407
          %v3472 = vunpack.c.l.b16 %v3408
          %v3473 = vunpack.c.l.b16 %v3409
          %v3474 = vunpack.c.l.b16 %v3410
          %v3475 = vunpack.c.l.b16 %v3411
          %v3476 = vunpack.c.l.b16 %v3412
          %v3477 = vunpack.c.l.b16 %v3413
          %v3478 = vunpack.c.l.b16 %v3414
          %v3479 = vunpack.c.l.b16 %v3415
          %v3480 = vunpack.c.l.b16 %v3416
          %v3481 = vunpack.c.l.b16 %v3417
          %v3482 = vunpack.c.l.b16 %v3418
          %v3483 = vunpack.c.l.b16 %v3419
          %v3484 = vunpack.c.l.b16 %v3420
          %v3485 = vunpack.c.l.b16 %v3421
          %v3486 = vunpack.c.l.b16 %v3422
          %v3487 = vunpack.c.l.b16 %v3423
          %v3488 = vunpack.c.l.b16 %v3424
          %v3489 = vunpack.c.l.b16 %v3425
          %v3490 = vunpack.c.l.b16 %v3426
          %v3491 = vunpack.c.l.b16 %v3427
          %v3492 = vunpack.c.l.b16 %v3428
          %v3493 = vunpack.c.l.b16 %v3429
          %v3494 = vunpack.c.l.b16 %v3430
          %v3495 = vpack.c.b16 %v3464, %v3463
          %v3496 = vpack.c.b16 %v3466, %v3465
          %v3497 = vpack.c.b16 %v3468, %v3467
          %v3498 = vpack.c.b16 %v3470, %v3469
          %v3499 = vpack.c.b16 %v3472, %v3471
          %v3500 = vpack.c.b16 %v3474, %v3473
          %v3501 = vpack.c.b16 %v3476, %v3475
          %v3502 = vpack.c.b16 %v3478, %v3477
          %v3503 = vpack.c.b16 %v3480, %v3479
          %v3504 = vpack.c.b16 %v3482, %v3481
          %v3505 = vpack.c.b16 %v3484, %v3483
          %v3506 = vpack.c.b16 %v3486, %v3485
          %v3507 = vpack.c.b16 %v3488, %v3487
          %v3508 = vpack.c.b16 %v3490, %v3489
          %v3509 = vpack.c.b16 %v3492, %v3491
          %v3510 = vpack.c.b16 %v3494, %v3493
          %3527 = vmatprep.subr.bf16.mxu0 0
          %3528 = vmatpush1.bf16.msra.mxu0 %v3495
          %3529 = vmatprep.subr.bf16.mxu0 0
          %3530 = vmatpush1.bf16.msra.mxu0 %v3496
          %3531 = vmatprep.subr.bf16.mxu0 0
          %3532 = vmatpush1.bf16.msra.mxu0 %v3497
          %3533 = vmatprep.subr.bf16.mxu0 0
          %3534 = vmatpush1.bf16.msra.mxu0 %v3498
          %3535 = vmatprep.subr.bf16.mxu0 0
          %3536 = vmatpush1.bf16.msra.mxu0 %v3499
          %3537 = vmatprep.subr.bf16.mxu0 0
          %3538 = vmatpush1.bf16.msra.mxu0 %v3500
          %3539 = vmatprep.subr.bf16.mxu0 0
          %3540 = vmatpush1.bf16.msra.mxu0 %v3501
          %3541 = vmatprep.subr.bf16.mxu0 0
          %3542 = vmatpush1.bf16.msra.mxu0 %v3502
          %3543 = vmatprep.subr.bf16.mxu0 0
          %3544 = vmatpush1.bf16.msra.mxu0 %v3503
          %3545 = vmatprep.subr.bf16.mxu0 0
          %3546 = vmatpush1.bf16.msra.mxu0 %v3504
          %3547 = vmatprep.subr.bf16.mxu0 0
          %3548 = vmatpush1.bf16.msra.mxu0 %v3505
          %3549 = vmatprep.subr.bf16.mxu0 0
          %3550 = vmatpush1.bf16.msra.mxu0 %v3506
          %3551 = vmatprep.subr.bf16.mxu0 0
          %3552 = vmatpush1.bf16.msra.mxu0 %v3507
          %3553 = vmatprep.subr.bf16.mxu0 0
          %3554 = vmatpush1.bf16.msra.mxu0 %v3508
          %3555 = vmatprep.subr.bf16.mxu0 0
          %3556 = vmatpush1.bf16.msra.mxu0 %v3509
          %3557 = vmatprep.subr.bf16.mxu0 0
          %3558 = vmatpush1.bf16.msra.mxu0 %v3510
          %3559 = vmatprep.mubr.bf16.mxu0 %v3383
          %3560 = vmatmul.mubr.bf16.gmra.mrb[0].mxu0 %v3382
          %v3561 = vpop.f32.mrb[0].mxu0
          %v3562 = vadd.f32 0.0, %v3561
          %v3563 = vpop.f32.mrb[0].mxu0
          %v3564 = vpop.f32.mrb[0].mxu0
          %v3565 = vadd.f32 0.0, %v3564
          %v3566 = vpop.f32.mrb[0].mxu0
          %3567 = vmatprep.mubr.bf16.mxu0 %v3385
          %3568 = vmatmul.mubr.bf16.gmra.mrb[0].mxu0 %v3384
          %v3569 = vpop.f32.mrb[0].mxu0
          %v3570 = vadd.f32 0.0, %v3569
          %v3571 = vpop.f32.mrb[0].mxu0
          %v3572 = vpop.f32.mrb[0].mxu0
          %v3573 = vadd.f32 0.0, %v3572
          %v3574 = vpop.f32.mrb[0].mxu0
          %3575 = vmatprep.mubr.bf16.mxu0 %v3387
          %3576 = vmatmul.mubr.bf16.gmra.mrb[0].mxu0 %v3386
          %v3577 = vpop.f32.mrb[0].mxu0
          %v3578 = vadd.f32 0.0, %v3577
          %v3579 = vpop.f32.mrb[0].mxu0
          %v3580 = vpop.f32.mrb[0].mxu0
          %v3581 = vadd.f32 0.0, %v3580
          %v3582 = vpop.f32.mrb[0].mxu0
          %3583 = vmatprep.mubr.bf16.mxu0 %v3389
          %3584 = vmatmul.mubr.bf16.gmra.mrb[0].mxu0 %v3388
          %v3585 = vpop.f32.mrb[0].mxu0
          %v3586 = vadd.f32 0.0, %v3585
          %v3587 = vpop.f32.mrb[0].mxu0
          %v3588 = vpop.f32.mrb[0].mxu0
          %v3589 = vadd.f32 0.0, %v3588
          %v3590 = vpop.f32.mrb[0].mxu0
          %3591 = vmatprep.mubr.bf16.mxu0 %v3391
          %3592 = vmatmul.mubr.bf16.gmra.mrb[0].mxu0 %v3390
          %v3593 = vpop.f32.mrb[0].mxu0
          %v3594 = vadd.f32 0.0, %v3593
          %v3595 = vpop.f32.mrb[0].mxu0
          %v3596 = vpop.f32.mrb[0].mxu0
          %v3597 = vadd.f32 0.0, %v3596
          %v3598 = vpop.f32.mrb[0].mxu0
          %3599 = vmatprep.mubr.bf16.mxu0 %v3393
          %3600 = vmatmul.mubr.bf16.gmra.mrb[0].mxu0 %v3392
          %v3601 = vpop.f32.mrb[0].mxu0
          %v3602 = vadd.f32 0.0, %v3601
          %v3603 = vpop.f32.mrb[0].mxu0
          %v3604 = vpop.f32.mrb[0].mxu0
          %v3605 = vadd.f32 0.0, %v3604
          %v3606 = vpop.f32.mrb[0].mxu0
          %3607 = vmatprep.mubr.bf16.mxu0 %v3395
          %3608 = vmatmul.mubr.bf16.gmra.mrb[0].mxu0 %v3394
          %v3609 = vpop.f32.mrb[0].mxu0
          %v3610 = vadd.f32 0.0, %v3609
          %v3611 = vpop.f32.mrb[0].mxu0
          %v3612 = vpop.f32.mrb[0].mxu0
          %v3613 = vadd.f32 0.0, %v3612
          %v3614 = vpop.f32.mrb[0].mxu0
          %3615 = vmatprep.mubr.bf16.mxu0 %v3397
          %3616 = vmatmul.mubr.bf16.gmra.mrb[0].mxu0 %v3396
          %v3617 = vpop.f32.mrb[0].mxu0
          %v3618 = vadd.f32 0.0, %v3617
          %v3619 = vpop.f32.mrb[0].mxu0
          %v3620 = vpop.f32.mrb[0].mxu0
          %v3621 = vadd.f32 0.0, %v3620
          %v3622 = vpop.f32.mrb[0].mxu0
          %3623 = vdwg.mxu0
          %v3624 = vadd.f32 %v3334, %v3562
          %v3625 = vadd.f32 %v3335, %v3565
          %v3626 = vadd.f32 %v3336, %v3570
          %v3627 = vadd.f32 %v3337, %v3573
          %v3628 = vadd.f32 %v3338, %v3578
          %v3629 = vadd.f32 %v3339, %v3581
          %v3630 = vadd.f32 %v3340, %v3586
          %v3631 = vadd.f32 %v3341, %v3589
          %v3632 = vadd.f32 %v3342, %v3594
          %v3633 = vadd.f32 %v3343, %v3597
          %v3634 = vadd.f32 %v3344, %v3602
          %v3635 = vadd.f32 %v3345, %v3605
          %v3636 = vadd.f32 %v3346, %v3610
          %v3637 = vadd.f32 %v3347, %v3613
          %v3638 = vadd.f32 %v3348, %v3618
          %v3639 = vadd.f32 %v3349, %v3621
          %v3640 = vld [vmem:[#allocation2 + $0x19] sm:$0xff]
          %v3641 = vld [vmem:[#allocation2 + $0x21] sm:$0xff]
          %v3642 = vld [vmem:[#allocation2 + $0x29] sm:$0xff]
          %v3643 = vld [vmem:[#allocation2 + $0x31] sm:$0xff]
          %v3644 = vld [vmem:[#allocation2 + $0x39] sm:$0xff]
          %v3645 = vld [vmem:[#allocation2 + $0x41] sm:$0xff]
          %v3646 = vld [vmem:[#allocation2 + $0x49] sm:$0xff]
          %v3647 = vld [vmem:[#allocation2 + $0x51] sm:$0xff]
          %v3648 = vld [vmem:[#allocation2 + $0x99] sm:$0xff]
          %v3649 = vld [vmem:[#allocation2 + $0xa1] sm:$0xff]
          %v3650 = vld [vmem:[#allocation2 + $0xa9] sm:$0xff]
          %v3651 = vld [vmem:[#allocation2 + $0xb1] sm:$0xff]
          %v3652 = vld [vmem:[#allocation2 + $0xb9] sm:$0xff]
          %v3653 = vld [vmem:[#allocation2 + $0xc1] sm:$0xff]
          %v3654 = vld [vmem:[#allocation2 + $0xc9] sm:$0xff]
          %v3655 = vld [vmem:[#allocation2 + $0xd1] sm:$0xff]
          %v3656 = vld [vmem:[#allocation2 + $0x1a] sm:$0xff]
          %v3657 = vld [vmem:[#allocation2 + $0x22] sm:$0xff]
          %v3658 = vld [vmem:[#allocation2 + $0x2a] sm:$0xff]
          %v3659 = vld [vmem:[#allocation2 + $0x32] sm:$0xff]
          %v3660 = vld [vmem:[#allocation2 + $0x3a] sm:$0xff]
          %v3661 = vld [vmem:[#allocation2 + $0x42] sm:$0xff]
          %v3662 = vld [vmem:[#allocation2 + $0x4a] sm:$0xff]
          %v3663 = vld [vmem:[#allocation2 + $0x52] sm:$0xff]
          %v3664 = vld [vmem:[#allocation2 + $0x9a] sm:$0xff]
          %v3665 = vld [vmem:[#allocation2 + $0xa2] sm:$0xff]
          %v3666 = vld [vmem:[#allocation2 + $0xaa] sm:$0xff]
          %v3667 = vld [vmem:[#allocation2 + $0xb2] sm:$0xff]
          %v3668 = vld [vmem:[#allocation2 + $0xba] sm:$0xff]
          %v3669 = vld [vmem:[#allocation2 + $0xc2] sm:$0xff]
          %v3670 = vld [vmem:[#allocation2 + $0xca] sm:$0xff]
          %v3671 = vld [vmem:[#allocation2 + $0xd2] sm:$0xff]
          %v3672 = vpack.c.bf16 %v3641, %v3640
          %v3673 = vpack.c.bf16 %v3657, %v3656
          %v3674 = vpack.c.bf16 %v3643, %v3642
          %v3675 = vpack.c.bf16 %v3659, %v3658
          %v3676 = vpack.c.bf16 %v3645, %v3644
          %v3677 = vpack.c.bf16 %v3661, %v3660
          %v3678 = vpack.c.bf16 %v3647, %v3646
          %v3679 = vpack.c.bf16 %v3663, %v3662
          %v3680 = vpack.c.bf16 %v3649, %v3648
          %v3681 = vpack.c.bf16 %v3665, %v3664
          %v3682 = vpack.c.bf16 %v3651, %v3650
          %v3683 = vpack.c.bf16 %v3667, %v3666
          %v3684 = vpack.c.bf16 %v3653, %v3652
          %v3685 = vpack.c.bf16 %v3669, %v3668
          %v3686 = vpack.c.bf16 %v3655, %v3654
          %v3687 = vpack.c.bf16 %v3671, %v3670
          %s3688 = scalar_lea.vmem [#allocation11], 1152
          %v3689 = vld [vmem:[%s3688] sm:$0xf]
          %v3690 = vld [vmem:[%s3688 + $0x4] sm:$0xf]
          %v3691 = vld [vmem:[%s3688 + $0x8] sm:$0xf]
          %v3692 = vld [vmem:[%s3688 + $0xc] sm:$0xf]
          %v3693 = vld [vmem:[%s3688 + $0x10] sm:$0xf]
          %v3694 = vld [vmem:[%s3688 + $0x14] sm:$0xf]
          %v3695 = vld [vmem:[%s3688 + $0x18] sm:$0xf]
          %v3696 = vld [vmem:[%s3688 + $0x1c] sm:$0xf]
          %v3697 = vld [vmem:[%s3688 + $0x20] sm:$0xf]
          %v3698 = vld [vmem:[%s3688 + $0x24] sm:$0xf]
          %v3699 = vld [vmem:[%s3688 + $0x28] sm:$0xf]
          %v3700 = vld [vmem:[%s3688 + $0x2c] sm:$0xf]
          %v3701 = vld [vmem:[%s3688 + $0x30] sm:$0xf]
          %v3702 = vld [vmem:[%s3688 + $0x34] sm:$0xf]
          %v3703 = vld [vmem:[%s3688 + $0x38] sm:$0xf]
          %v3704 = vld [vmem:[%s3688 + $0x3c] sm:$0xf]
          %v3705 = vld [vmem:[%s3688 + $0x40] sm:$0xf]
          %v3706 = vld [vmem:[%s3688 + $0x44] sm:$0xf]
          %v3707 = vld [vmem:[%s3688 + $0x48] sm:$0xf]
          %v3708 = vld [vmem:[%s3688 + $0x4c] sm:$0xf]
          %v3709 = vld [vmem:[%s3688 + $0x50] sm:$0xf]
          %v3710 = vld [vmem:[%s3688 + $0x54] sm:$0xf]
          %v3711 = vld [vmem:[%s3688 + $0x58] sm:$0xf]
          %v3712 = vld [vmem:[%s3688 + $0x5c] sm:$0xf]
          %v3713 = vld [vmem:[%s3688 + $0x60] sm:$0xf]
          %v3714 = vld [vmem:[%s3688 + $0x64] sm:$0xf]
          %v3715 = vld [vmem:[%s3688 + $0x68] sm:$0xf]
          %v3716 = vld [vmem:[%s3688 + $0x6c] sm:$0xf]
          %v3717 = vld [vmem:[%s3688 + $0x70] sm:$0xf]
          %v3718 = vld [vmem:[%s3688 + $0x74] sm:$0xf]
          %v3719 = vld [vmem:[%s3688 + $0x78] sm:$0xf]
          %v3720 = vld [vmem:[%s3688 + $0x7c] sm:$0xf]
          %v3753 = vunpack.c.l.b16 %v3689
          %v3754 = vunpack.c.l.b16 %v3690
          %v3755 = vunpack.c.l.b16 %v3691
          %v3756 = vunpack.c.l.b16 %v3692
          %v3757 = vunpack.c.l.b16 %v3693
          %v3758 = vunpack.c.l.b16 %v3694
          %v3759 = vunpack.c.l.b16 %v3695
          %v3760 = vunpack.c.l.b16 %v3696
          %v3761 = vunpack.c.l.b16 %v3697
          %v3762 = vunpack.c.l.b16 %v3698
          %v3763 = vunpack.c.l.b16 %v3699
          %v3764 = vunpack.c.l.b16 %v3700
          %v3765 = vunpack.c.l.b16 %v3701
          %v3766 = vunpack.c.l.b16 %v3702
          %v3767 = vunpack.c.l.b16 %v3703
          %v3768 = vunpack.c.l.b16 %v3704
          %v3769 = vunpack.c.l.b16 %v3705
          %v3770 = vunpack.c.l.b16 %v3706
          %v3771 = vunpack.c.l.b16 %v3707
          %v3772 = vunpack.c.l.b16 %v3708
          %v3773 = vunpack.c.l.b16 %v3709
          %v3774 = vunpack.c.l.b16 %v3710
          %v3775 = vunpack.c.l.b16 %v3711
          %v3776 = vunpack.c.l.b16 %v3712
          %v3777 = vunpack.c.l.b16 %v3713
          %v3778 = vunpack.c.l.b16 %v3714
          %v3779 = vunpack.c.l.b16 %v3715
          %v3780 = vunpack.c.l.b16 %v3716
          %v3781 = vunpack.c.l.b16 %v3717
          %v3782 = vunpack.c.l.b16 %v3718
          %v3783 = vunpack.c.l.b16 %v3719
          %v3784 = vunpack.c.l.b16 %v3720
          %v3785 = vpack.c.b16 %v3754, %v3753
          %v3786 = vpack.c.b16 %v3756, %v3755
          %v3787 = vpack.c.b16 %v3758, %v3757
          %v3788 = vpack.c.b16 %v3760, %v3759
          %v3789 = vpack.c.b16 %v3762, %v3761
          %v3790 = vpack.c.b16 %v3764, %v3763
          %v3791 = vpack.c.b16 %v3766, %v3765
          %v3792 = vpack.c.b16 %v3768, %v3767
          %v3793 = vpack.c.b16 %v3770, %v3769
          %v3794 = vpack.c.b16 %v3772, %v3771
          %v3795 = vpack.c.b16 %v3774, %v3773
          %v3796 = vpack.c.b16 %v3776, %v3775
          %v3797 = vpack.c.b16 %v3778, %v3777
          %v3798 = vpack.c.b16 %v3780, %v3779
          %v3799 = vpack.c.b16 %v3782, %v3781
          %v3800 = vpack.c.b16 %v3784, %v3783
          %3817 = vmatprep.subr.bf16.mxu0 0
          %3818 = vmatpush1.bf16.msra.mxu0 %v3785
          %3819 = vmatprep.subr.bf16.mxu0 0
          %3820 = vmatpush1.bf16.msra.mxu0 %v3786
          %3821 = vmatprep.subr.bf16.mxu0 0
          %3822 = vmatpush1.bf16.msra.mxu0 %v3787
          %3823 = vmatprep.subr.bf16.mxu0 0
          %3824 = vmatpush1.bf16.msra.mxu0 %v3788
          %3825 = vmatprep.subr.bf16.mxu0 0
          %3826 = vmatpush1.bf16.msra.mxu0 %v3789
          %3827 = vmatprep.subr.bf16.mxu0 0
          %3828 = vmatpush1.bf16.msra.mxu0 %v3790
          %3829 = vmatprep.subr.bf16.mxu0 0
          %3830 = vmatpush1.bf16.msra.mxu0 %v3791
          %3831 = vmatprep.subr.bf16.mxu0 0
          %3832 = vmatpush1.bf16.msra.mxu0 %v3792
          %3833 = vmatprep.subr.bf16.mxu0 0
          %3834 = vmatpush1.bf16.msra.mxu0 %v3793
          %3835 = vmatprep.subr.bf16.mxu0 0
          %3836 = vmatpush1.bf16.msra.mxu0 %v3794
          %3837 = vmatprep.subr.bf16.mxu0 0
          %3838 = vmatpush1.bf16.msra.mxu0 %v3795
          %3839 = vmatprep.subr.bf16.mxu0 0
          %3840 = vmatpush1.bf16.msra.mxu0 %v3796
          %3841 = vmatprep.subr.bf16.mxu0 0
          %3842 = vmatpush1.bf16.msra.mxu0 %v3797
          %3843 = vmatprep.subr.bf16.mxu0 0
          %3844 = vmatpush1.bf16.msra.mxu0 %v3798
          %3845 = vmatprep.subr.bf16.mxu0 0
          %3846 = vmatpush1.bf16.msra.mxu0 %v3799
          %3847 = vmatprep.subr.bf16.mxu0 0
          %3848 = vmatpush1.bf16.msra.mxu0 %v3800
          %3849 = vmatprep.mubr.bf16.mxu0 %v3673
          %3850 = vmatmul.mubr.bf16.gmra.mrb[0].mxu0 %v3672
          %v3851 = vpop.f32.mrb[0].mxu0
          %v3852 = vadd.f32 0.0, %v3851
          %v3853 = vpop.f32.mrb[0].mxu0
          %v3854 = vpop.f32.mrb[0].mxu0
          %v3855 = vadd.f32 0.0, %v3854
          %v3856 = vpop.f32.mrb[0].mxu0
          %3857 = vmatprep.mubr.bf16.mxu0 %v3675
          %3858 = vmatmul.mubr.bf16.gmra.mrb[0].mxu0 %v3674
          %v3859 = vpop.f32.mrb[0].mxu0
          %v3860 = vadd.f32 0.0, %v3859
          %v3861 = vpop.f32.mrb[0].mxu0
          %v3862 = vpop.f32.mrb[0].mxu0
          %v3863 = vadd.f32 0.0, %v3862
          %v3864 = vpop.f32.mrb[0].mxu0
          %3865 = vmatprep.mubr.bf16.mxu0 %v3677
          %3866 = vmatmul.mubr.bf16.gmra.mrb[0].mxu0 %v3676
          %v3867 = vpop.f32.mrb[0].mxu0
          %v3868 = vadd.f32 0.0, %v3867
          %v3869 = vpop.f32.mrb[0].mxu0
          %v3870 = vpop.f32.mrb[0].mxu0
          %v3871 = vadd.f32 0.0, %v3870
          %v3872 = vpop.f32.mrb[0].mxu0
          %3873 = vmatprep.mubr.bf16.mxu0 %v3679
          %3874 = vmatmul.mubr.bf16.gmra.mrb[0].mxu0 %v3678
          %v3875 = vpop.f32.mrb[0].mxu0
          %v3876 = vadd.f32 0.0, %v3875
          %v3877 = vpop.f32.mrb[0].mxu0
          %v3878 = vpop.f32.mrb[0].mxu0
          %v3879 = vadd.f32 0.0, %v3878
          %v3880 = vpop.f32.mrb[0].mxu0
          %3881 = vmatprep.mubr.bf16.mxu0 %v3681
          %3882 = vmatmul.mubr.bf16.gmra.mrb[0].mxu0 %v3680
          %v3883 = vpop.f32.mrb[0].mxu0
          %v3884 = vadd.f32 0.0, %v3883
          %v3885 = vpop.f32.mrb[0].mxu0
          %v3886 = vpop.f32.mrb[0].mxu0
          %v3887 = vadd.f32 0.0, %v3886
          %v3888 = vpop.f32.mrb[0].mxu0
          %3889 = vmatprep.mubr.bf16.mxu0 %v3683
          %3890 = vmatmul.mubr.bf16.gmra.mrb[0].mxu0 %v3682
          %v3891 = vpop.f32.mrb[0].mxu0
          %v3892 = vadd.f32 0.0, %v3891
          %v3893 = vpop.f32.mrb[0].mxu0
          %v3894 = vpop.f32.mrb[0].mxu0
          %v3895 = vadd.f32 0.0, %v3894
          %v3896 = vpop.f32.mrb[0].mxu0
          %3897 = vmatprep.mubr.bf16.mxu0 %v3685
          %3898 = vmatmul.mubr.bf16.gmra.mrb[0].mxu0 %v3684
          %v3899 = vpop.f32.mrb[0].mxu0
          %v3900 = vadd.f32 0.0, %v3899
          %v3901 = vpop.f32.mrb[0].mxu0
          %v3902 = vpop.f32.mrb[0].mxu0
          %v3903 = vadd.f32 0.0, %v3902
          %v3904 = vpop.f32.mrb[0].mxu0
          %3905 = vmatprep.mubr.bf16.mxu0 %v3687
          %3906 = vmatmul.mubr.bf16.gmra.mrb[0].mxu0 %v3686
          %v3907 = vpop.f32.mrb[0].mxu0
          %v3908 = vadd.f32 0.0, %v3907
          %v3909 = vpop.f32.mrb[0].mxu0
          %v3910 = vpop.f32.mrb[0].mxu0
          %v3911 = vadd.f32 0.0, %v3910
          %v3912 = vpop.f32.mrb[0].mxu0
          %3913 = vdwg.mxu0
          %v3914 = vadd.f32 %v3624, %v3852
          %v3915 = vadd.f32 %v3625, %v3855
          %v3916 = vadd.f32 %v3626, %v3860
          %v3917 = vadd.f32 %v3627, %v3863
          %v3918 = vadd.f32 %v3628, %v3868
          %v3919 = vadd.f32 %v3629, %v3871
          %v3920 = vadd.f32 %v3630, %v3876
          %v3921 = vadd.f32 %v3631, %v3879
          %v3922 = vadd.f32 %v3632, %v3884
          %v3923 = vadd.f32 %v3633, %v3887
          %v3924 = vadd.f32 %v3634, %v3892
          %v3925 = vadd.f32 %v3635, %v3895
          %v3926 = vadd.f32 %v3636, %v3900
          %v3927 = vadd.f32 %v3637, %v3903
          %v3928 = vadd.f32 %v3638, %v3908
          %v3929 = vadd.f32 %v3639, %v3911
          %v3930 = vld [vmem:[#allocation2 + $0x1b] sm:$0xff]
          %v3931 = vld [vmem:[#allocation2 + $0x23] sm:$0xff]
          %v3932 = vld [vmem:[#allocation2 + $0x2b] sm:$0xff]
          %v3933 = vld [vmem:[#allocation2 + $0x33] sm:$0xff]
          %v3934 = vld [vmem:[#allocation2 + $0x3b] sm:$0xff]
          %v3935 = vld [vmem:[#allocation2 + $0x43] sm:$0xff]
          %v3936 = vld [vmem:[#allocation2 + $0x4b] sm:$0xff]
          %v3937 = vld [vmem:[#allocation2 + $0x53] sm:$0xff]
          %v3938 = vld [vmem:[#allocation2 + $0x9b] sm:$0xff]
          %v3939 = vld [vmem:[#allocation2 + $0xa3] sm:$0xff]
          %v3940 = vld [vmem:[#allocation2 + $0xab] sm:$0xff]
          %v3941 = vld [vmem:[#allocation2 + $0xb3] sm:$0xff]
          %v3942 = vld [vmem:[#allocation2 + $0xbb] sm:$0xff]
          %v3943 = vld [vmem:[#allocation2 + $0xc3] sm:$0xff]
          %v3944 = vld [vmem:[#allocation2 + $0xcb] sm:$0xff]
          %v3945 = vld [vmem:[#allocation2 + $0xd3] sm:$0xff]
          %v3946 = vld [vmem:[#allocation2 + $0x1c] sm:$0xff]
          %v3947 = vld [vmem:[#allocation2 + $0x24] sm:$0xff]
          %v3948 = vld [vmem:[#allocation2 + $0x2c] sm:$0xff]
          %v3949 = vld [vmem:[#allocation2 + $0x34] sm:$0xff]
          %v3950 = vld [vmem:[#allocation2 + $0x3c] sm:$0xff]
          %v3951 = vld [vmem:[#allocation2 + $0x44] sm:$0xff]
          %v3952 = vld [vmem:[#allocation2 + $0x4c] sm:$0xff]
          %v3953 = vld [vmem:[#allocation2 + $0x54] sm:$0xff]
          %v3954 = vld [vmem:[#allocation2 + $0x9c] sm:$0xff]
          %v3955 = vld [vmem:[#allocation2 + $0xa4] sm:$0xff]
          %v3956 = vld [vmem:[#allocation2 + $0xac] sm:$0xff]
          %v3957 = vld [vmem:[#allocation2 + $0xb4] sm:$0xff]
          %v3958 = vld [vmem:[#allocation2 + $0xbc] sm:$0xff]
          %v3959 = vld [vmem:[#allocation2 + $0xc4] sm:$0xff]
          %v3960 = vld [vmem:[#allocation2 + $0xcc] sm:$0xff]
          %v3961 = vld [vmem:[#allocation2 + $0xd4] sm:$0xff]
          %v3962 = vpack.c.bf16 %v3931, %v3930
          %v3963 = vpack.c.bf16 %v3947, %v3946
          %v3964 = vpack.c.bf16 %v3933, %v3932
          %v3965 = vpack.c.bf16 %v3949, %v3948
          %v3966 = vpack.c.bf16 %v3935, %v3934
          %v3967 = vpack.c.bf16 %v3951, %v3950
          %v3968 = vpack.c.bf16 %v3937, %v3936
          %v3969 = vpack.c.bf16 %v3953, %v3952
          %v3970 = vpack.c.bf16 %v3939, %v3938
          %v3971 = vpack.c.bf16 %v3955, %v3954
          %v3972 = vpack.c.bf16 %v3941, %v3940
          %v3973 = vpack.c.bf16 %v3957, %v3956
          %v3974 = vpack.c.bf16 %v3943, %v3942
          %v3975 = vpack.c.bf16 %v3959, %v3958
          %v3976 = vpack.c.bf16 %v3945, %v3944
          %v3977 = vpack.c.bf16 %v3961, %v3960
          %s3978 = scalar_lea.vmem [#allocation11], 1280
          %v3979 = vld [vmem:[%s3978] sm:$0xf]
          %v3980 = vld [vmem:[%s3978 + $0x4] sm:$0xf]
          %v3981 = vld [vmem:[%s3978 + $0x8] sm:$0xf]
          %v3982 = vld [vmem:[%s3978 + $0xc] sm:$0xf]
          %v3983 = vld [vmem:[%s3978 + $0x10] sm:$0xf]
          %v3984 = vld [vmem:[%s3978 + $0x14] sm:$0xf]
          %v3985 = vld [vmem:[%s3978 + $0x18] sm:$0xf]
          %v3986 = vld [vmem:[%s3978 + $0x1c] sm:$0xf]
          %v3987 = vld [vmem:[%s3978 + $0x20] sm:$0xf]
          %v3988 = vld [vmem:[%s3978 + $0x24] sm:$0xf]
          %v3989 = vld [vmem:[%s3978 + $0x28] sm:$0xf]
          %v3990 = vld [vmem:[%s3978 + $0x2c] sm:$0xf]
          %v3991 = vld [vmem:[%s3978 + $0x30] sm:$0xf]
          %v3992 = vld [vmem:[%s3978 + $0x34] sm:$0xf]
          %v3993 = vld [vmem:[%s3978 + $0x38] sm:$0xf]
          %v3994 = vld [vmem:[%s3978 + $0x3c] sm:$0xf]
          %v3995 = vld [vmem:[%s3978 + $0x40] sm:$0xf]
          %v3996 = vld [vmem:[%s3978 + $0x44] sm:$0xf]
          %v3997 = vld [vmem:[%s3978 + $0x48] sm:$0xf]
          %v3998 = vld [vmem:[%s3978 + $0x4c] sm:$0xf]
          %v3999 = vld [vmem:[%s3978 + $0x50] sm:$0xf]
          %v4000 = vld [vmem:[%s3978 + $0x54] sm:$0xf]
          %v4001 = vld [vmem:[%s3978 + $0x58] sm:$0xf]
          %v4002 = vld [vmem:[%s3978 + $0x5c] sm:$0xf]
          %v4003 = vld [vmem:[%s3978 + $0x60] sm:$0xf]
          %v4004 = vld [vmem:[%s3978 + $0x64] sm:$0xf]
          %v4005 = vld [vmem:[%s3978 + $0x68] sm:$0xf]
          %v4006 = vld [vmem:[%s3978 + $0x6c] sm:$0xf]
          %v4007 = vld [vmem:[%s3978 + $0x70] sm:$0xf]
          %v4008 = vld [vmem:[%s3978 + $0x74] sm:$0xf]
          %v4009 = vld [vmem:[%s3978 + $0x78] sm:$0xf]
          %v4010 = vld [vmem:[%s3978 + $0x7c] sm:$0xf]
          %v4043 = vunpack.c.l.b16 %v3979
          %v4044 = vunpack.c.l.b16 %v3980
          %v4045 = vunpack.c.l.b16 %v3981
          %v4046 = vunpack.c.l.b16 %v3982
          %v4047 = vunpack.c.l.b16 %v3983
          %v4048 = vunpack.c.l.b16 %v3984
          %v4049 = vunpack.c.l.b16 %v3985
          %v4050 = vunpack.c.l.b16 %v3986
          %v4051 = vunpack.c.l.b16 %v3987
          %v4052 = vunpack.c.l.b16 %v3988
          %v4053 = vunpack.c.l.b16 %v3989
          %v4054 = vunpack.c.l.b16 %v3990
          %v4055 = vunpack.c.l.b16 %v3991
          %v4056 = vunpack.c.l.b16 %v3992
          %v4057 = vunpack.c.l.b16 %v3993
          %v4058 = vunpack.c.l.b16 %v3994
          %v4059 = vunpack.c.l.b16 %v3995
          %v4060 = vunpack.c.l.b16 %v3996
          %v4061 = vunpack.c.l.b16 %v3997
          %v4062 = vunpack.c.l.b16 %v3998
          %v4063 = vunpack.c.l.b16 %v3999
          %v4064 = vunpack.c.l.b16 %v4000
          %v4065 = vunpack.c.l.b16 %v4001
          %v4066 = vunpack.c.l.b16 %v4002
          %v4067 = vunpack.c.l.b16 %v4003
          %v4068 = vunpack.c.l.b16 %v4004
          %v4069 = vunpack.c.l.b16 %v4005
          %v4070 = vunpack.c.l.b16 %v4006
          %v4071 = vunpack.c.l.b16 %v4007
          %v4072 = vunpack.c.l.b16 %v4008
          %v4073 = vunpack.c.l.b16 %v4009
          %v4074 = vunpack.c.l.b16 %v4010
          %v4075 = vpack.c.b16 %v4044, %v4043
          %v4076 = vpack.c.b16 %v4046, %v4045
          %v4077 = vpack.c.b16 %v4048, %v4047
          %v4078 = vpack.c.b16 %v4050, %v4049
          %v4079 = vpack.c.b16 %v4052, %v4051
          %v4080 = vpack.c.b16 %v4054, %v4053
          %v4081 = vpack.c.b16 %v4056, %v4055
          %v4082 = vpack.c.b16 %v4058, %v4057
          %v4083 = vpack.c.b16 %v4060, %v4059
          %v4084 = vpack.c.b16 %v4062, %v4061
          %v4085 = vpack.c.b16 %v4064, %v4063
          %v4086 = vpack.c.b16 %v4066, %v4065
          %v4087 = vpack.c.b16 %v4068, %v4067
          %v4088 = vpack.c.b16 %v4070, %v4069
          %v4089 = vpack.c.b16 %v4072, %v4071
          %v4090 = vpack.c.b16 %v4074, %v4073
          %4107 = vmatprep.subr.bf16.mxu0 0
          %4108 = vmatpush1.bf16.msra.mxu0 %v4075
          %4109 = vmatprep.subr.bf16.mxu0 0
          %4110 = vmatpush1.bf16.msra.mxu0 %v4076
          %4111 = vmatprep.subr.bf16.mxu0 0
          %4112 = vmatpush1.bf16.msra.mxu0 %v4077
          %4113 = vmatprep.subr.bf16.mxu0 0
          %4114 = vmatpush1.bf16.msra.mxu0 %v4078
          %4115 = vmatprep.subr.bf16.mxu0 0
          %4116 = vmatpush1.bf16.msra.mxu0 %v4079
          %4117 = vmatprep.subr.bf16.mxu0 0
          %4118 = vmatpush1.bf16.msra.mxu0 %v4080
          %4119 = vmatprep.subr.bf16.mxu0 0
          %4120 = vmatpush1.bf16.msra.mxu0 %v4081
          %4121 = vmatprep.subr.bf16.mxu0 0
          %4122 = vmatpush1.bf16.msra.mxu0 %v4082
          %4123 = vmatprep.subr.bf16.mxu0 0
          %4124 = vmatpush1.bf16.msra.mxu0 %v4083
          %4125 = vmatprep.subr.bf16.mxu0 0
          %4126 = vmatpush1.bf16.msra.mxu0 %v4084
          %4127 = vmatprep.subr.bf16.mxu0 0
          %4128 = vmatpush1.bf16.msra.mxu0 %v4085
          %4129 = vmatprep.subr.bf16.mxu0 0
          %4130 = vmatpush1.bf16.msra.mxu0 %v4086
          %4131 = vmatprep.subr.bf16.mxu0 0
          %4132 = vmatpush1.bf16.msra.mxu0 %v4087
          %4133 = vmatprep.subr.bf16.mxu0 0
          %4134 = vmatpush1.bf16.msra.mxu0 %v4088
          %4135 = vmatprep.subr.bf16.mxu0 0
          %4136 = vmatpush1.bf16.msra.mxu0 %v4089
          %4137 = vmatprep.subr.bf16.mxu0 0
          %4138 = vmatpush1.bf16.msra.mxu0 %v4090
          %4139 = vmatprep.mubr.bf16.mxu0 %v3963
          %4140 = vmatmul.mubr.bf16.gmra.mrb[0].mxu0 %v3962
          %v4141 = vpop.f32.mrb[0].mxu0
          %v4142 = vadd.f32 0.0, %v4141
          %v4143 = vpop.f32.mrb[0].mxu0
          %v4144 = vpop.f32.mrb[0].mxu0
          %v4145 = vadd.f32 0.0, %v4144
          %v4146 = vpop.f32.mrb[0].mxu0
          %4147 = vmatprep.mubr.bf16.mxu0 %v3965
          %4148 = vmatmul.mubr.bf16.gmra.mrb[0].mxu0 %v3964
          %v4149 = vpop.f32.mrb[0].mxu0
          %v4150 = vadd.f32 0.0, %v4149
          %v4151 = vpop.f32.mrb[0].mxu0
          %v4152 = vpop.f32.mrb[0].mxu0
          %v4153 = vadd.f32 0.0, %v4152
          %v4154 = vpop.f32.mrb[0].mxu0
          %4155 = vmatprep.mubr.bf16.mxu0 %v3967
          %4156 = vmatmul.mubr.bf16.gmra.mrb[0].mxu0 %v3966
          %v4157 = vpop.f32.mrb[0].mxu0
          %v4158 = vadd.f32 0.0, %v4157
          %v4159 = vpop.f32.mrb[0].mxu0
          %v4160 = vpop.f32.mrb[0].mxu0
          %v4161 = vadd.f32 0.0, %v4160
          %v4162 = vpop.f32.mrb[0].mxu0
          %4163 = vmatprep.mubr.bf16.mxu0 %v3969
          %4164 = vmatmul.mubr.bf16.gmra.mrb[0].mxu0 %v3968
          %v4165 = vpop.f32.mrb[0].mxu0
          %v4166 = vadd.f32 0.0, %v4165
          %v4167 = vpop.f32.mrb[0].mxu0
          %v4168 = vpop.f32.mrb[0].mxu0
          %v4169 = vadd.f32 0.0, %v4168
          %v4170 = vpop.f32.mrb[0].mxu0
          %4171 = vmatprep.mubr.bf16.mxu0 %v3971
          %4172 = vmatmul.mubr.bf16.gmra.mrb[0].mxu0 %v3970
          %v4173 = vpop.f32.mrb[0].mxu0
          %v4174 = vadd.f32 0.0, %v4173
          %v4175 = vpop.f32.mrb[0].mxu0
          %v4176 = vpop.f32.mrb[0].mxu0
          %v4177 = vadd.f32 0.0, %v4176
          %v4178 = vpop.f32.mrb[0].mxu0
          %4179 = vmatprep.mubr.bf16.mxu0 %v3973
          %4180 = vmatmul.mubr.bf16.gmra.mrb[0].mxu0 %v3972
          %v4181 = vpop.f32.mrb[0].mxu0
          %v4182 = vadd.f32 0.0, %v4181
          %v4183 = vpop.f32.mrb[0].mxu0
          %v4184 = vpop.f32.mrb[0].mxu0
          %v4185 = vadd.f32 0.0, %v4184
          %v4186 = vpop.f32.mrb[0].mxu0
          %4187 = vmatprep.mubr.bf16.mxu0 %v3975
          %4188 = vmatmul.mubr.bf16.gmra.mrb[0].mxu0 %v3974
          %v4189 = vpop.f32.mrb[0].mxu0
          %v4190 = vadd.f32 0.0, %v4189
          %v4191 = vpop.f32.mrb[0].mxu0
          %v4192 = vpop.f32.mrb[0].mxu0
          %v4193 = vadd.f32 0.0, %v4192
          %v4194 = vpop.f32.mrb[0].mxu0
          %4195 = vmatprep.mubr.bf16.mxu0 %v3977
          %4196 = vmatmul.mubr.bf16.gmra.mrb[0].mxu0 %v3976
          %v4197 = vpop.f32.mrb[0].mxu0
          %v4198 = vadd.f32 0.0, %v4197
          %v4199 = vpop.f32.mrb[0].mxu0
          %v4200 = vpop.f32.mrb[0].mxu0
          %v4201 = vadd.f32 0.0, %v4200
          %v4202 = vpop.f32.mrb[0].mxu0
          %4203 = vdwg.mxu0
          %v4204 = vadd.f32 %v3914, %v4142
          %v4205 = vadd.f32 %v3915, %v4145
          %v4206 = vadd.f32 %v3916, %v4150
          %v4207 = vadd.f32 %v3917, %v4153
          %v4208 = vadd.f32 %v3918, %v4158
          %v4209 = vadd.f32 %v3919, %v4161
          %v4210 = vadd.f32 %v3920, %v4166
          %v4211 = vadd.f32 %v3921, %v4169
          %v4212 = vadd.f32 %v3922, %v4174
          %v4213 = vadd.f32 %v3923, %v4177
          %v4214 = vadd.f32 %v3924, %v4182
          %v4215 = vadd.f32 %v3925, %v4185
          %v4216 = vadd.f32 %v3926, %v4190
          %v4217 = vadd.f32 %v3927, %v4193
          %v4218 = vadd.f32 %v3928, %v4198
          %v4219 = vadd.f32 %v3929, %v4201
          %v4220 = vld [vmem:[#allocation2 + $0x1d] sm:$0xff]
          %v4221 = vld [vmem:[#allocation2 + $0x25] sm:$0xff]
          %v4222 = vld [vmem:[#allocation2 + $0x2d] sm:$0xff]
          %v4223 = vld [vmem:[#allocation2 + $0x35] sm:$0xff]
          %v4224 = vld [vmem:[#allocation2 + $0x3d] sm:$0xff]
          %v4225 = vld [vmem:[#allocation2 + $0x45] sm:$0xff]
          %v4226 = vld [vmem:[#allocation2 + $0x4d] sm:$0xff]
          %v4227 = vld [vmem:[#allocation2 + $0x55] sm:$0xff]
          %v4228 = vld [vmem:[#allocation2 + $0x9d] sm:$0xff]
          %v4229 = vld [vmem:[#allocation2 + $0xa5] sm:$0xff]
          %v4230 = vld [vmem:[#allocation2 + $0xad] sm:$0xff]
          %v4231 = vld [vmem:[#allocation2 + $0xb5] sm:$0xff]
          %v4232 = vld [vmem:[#allocation2 + $0xbd] sm:$0xff]
          %v4233 = vld [vmem:[#allocation2 + $0xc5] sm:$0xff]
          %v4234 = vld [vmem:[#allocation2 + $0xcd] sm:$0xff]
          %v4235 = vld [vmem:[#allocation2 + $0xd5] sm:$0xff]
          %v4236 = vld [vmem:[#allocation2 + $0x1e] sm:$0xff]
          %v4237 = vld [vmem:[#allocation2 + $0x26] sm:$0xff]
          %v4238 = vld [vmem:[#allocation2 + $0x2e] sm:$0xff]
          %v4239 = vld [vmem:[#allocation2 + $0x36] sm:$0xff]
          %v4240 = vld [vmem:[#allocation2 + $0x3e] sm:$0xff]
          %v4241 = vld [vmem:[#allocation2 + $0x46] sm:$0xff]
          %v4242 = vld [vmem:[#allocation2 + $0x4e] sm:$0xff]
          %v4243 = vld [vmem:[#allocation2 + $0x56] sm:$0xff]
          %v4244 = vld [vmem:[#allocation2 + $0x9e] sm:$0xff]
          %v4245 = vld [vmem:[#allocation2 + $0xa6] sm:$0xff]
          %v4246 = vld [vmem:[#allocation2 + $0xae] sm:$0xff]
          %v4247 = vld [vmem:[#allocation2 + $0xb6] sm:$0xff]
          %v4248 = vld [vmem:[#allocation2 + $0xbe] sm:$0xff]
          %v4249 = vld [vmem:[#allocation2 + $0xc6] sm:$0xff]
          %v4250 = vld [vmem:[#allocation2 + $0xce] sm:$0xff]
          %v4251 = vld [vmem:[#allocation2 + $0xd6] sm:$0xff]
          %v4252 = vpack.c.bf16 %v4221, %v4220
          %v4253 = vpack.c.bf16 %v4237, %v4236
          %v4254 = vpack.c.bf16 %v4223, %v4222
          %v4255 = vpack.c.bf16 %v4239, %v4238
          %v4256 = vpack.c.bf16 %v4225, %v4224
          %v4257 = vpack.c.bf16 %v4241, %v4240
          %v4258 = vpack.c.bf16 %v4227, %v4226
          %v4259 = vpack.c.bf16 %v4243, %v4242
          %v4260 = vpack.c.bf16 %v4229, %v4228
          %v4261 = vpack.c.bf16 %v4245, %v4244
          %v4262 = vpack.c.bf16 %v4231, %v4230
          %v4263 = vpack.c.bf16 %v4247, %v4246
          %v4264 = vpack.c.bf16 %v4233, %v4232
          %v4265 = vpack.c.bf16 %v4249, %v4248
          %v4266 = vpack.c.bf16 %v4235, %v4234
          %v4267 = vpack.c.bf16 %v4251, %v4250
          %s4268 = scalar_lea.vmem [#allocation11], 1408
          %v4269 = vld [vmem:[%s4268] sm:$0xf]
          %v4270 = vld [vmem:[%s4268 + $0x4] sm:$0xf]
          %v4271 = vld [vmem:[%s4268 + $0x8] sm:$0xf]
          %v4272 = vld [vmem:[%s4268 + $0xc] sm:$0xf]
          %v4273 = vld [vmem:[%s4268 + $0x10] sm:$0xf]
          %v4274 = vld [vmem:[%s4268 + $0x14] sm:$0xf]
          %v4275 = vld [vmem:[%s4268 + $0x18] sm:$0xf]
          %v4276 = vld [vmem:[%s4268 + $0x1c] sm:$0xf]
          %v4277 = vld [vmem:[%s4268 + $0x20] sm:$0xf]
          %v4278 = vld [vmem:[%s4268 + $0x24] sm:$0xf]
          %v4279 = vld [vmem:[%s4268 + $0x28] sm:$0xf]
          %v4280 = vld [vmem:[%s4268 + $0x2c] sm:$0xf]
          %v4281 = vld [vmem:[%s4268 + $0x30] sm:$0xf]
          %v4282 = vld [vmem:[%s4268 + $0x34] sm:$0xf]
          %v4283 = vld [vmem:[%s4268 + $0x38] sm:$0xf]
          %v4284 = vld [vmem:[%s4268 + $0x3c] sm:$0xf]
          %v4285 = vld [vmem:[%s4268 + $0x40] sm:$0xf]
          %v4286 = vld [vmem:[%s4268 + $0x44] sm:$0xf]
          %v4287 = vld [vmem:[%s4268 + $0x48] sm:$0xf]
          %v4288 = vld [vmem:[%s4268 + $0x4c] sm:$0xf]
          %v4289 = vld [vmem:[%s4268 + $0x50] sm:$0xf]
          %v4290 = vld [vmem:[%s4268 + $0x54] sm:$0xf]
          %v4291 = vld [vmem:[%s4268 + $0x58] sm:$0xf]
          %v4292 = vld [vmem:[%s4268 + $0x5c] sm:$0xf]
          %v4293 = vld [vmem:[%s4268 + $0x60] sm:$0xf]
          %v4294 = vld [vmem:[%s4268 + $0x64] sm:$0xf]
          %v4295 = vld [vmem:[%s4268 + $0x68] sm:$0xf]
          %v4296 = vld [vmem:[%s4268 + $0x6c] sm:$0xf]
          %v4297 = vld [vmem:[%s4268 + $0x70] sm:$0xf]
          %v4298 = vld [vmem:[%s4268 + $0x74] sm:$0xf]
          %v4299 = vld [vmem:[%s4268 + $0x78] sm:$0xf]
          %v4300 = vld [vmem:[%s4268 + $0x7c] sm:$0xf]
          %v4333 = vunpack.c.l.b16 %v4269
          %v4334 = vunpack.c.l.b16 %v4270
          %v4335 = vunpack.c.l.b16 %v4271
          %v4336 = vunpack.c.l.b16 %v4272
          %v4337 = vunpack.c.l.b16 %v4273
          %v4338 = vunpack.c.l.b16 %v4274
          %v4339 = vunpack.c.l.b16 %v4275
          %v4340 = vunpack.c.l.b16 %v4276
          %v4341 = vunpack.c.l.b16 %v4277
          %v4342 = vunpack.c.l.b16 %v4278
          %v4343 = vunpack.c.l.b16 %v4279
          %v4344 = vunpack.c.l.b16 %v4280
          %v4345 = vunpack.c.l.b16 %v4281
          %v4346 = vunpack.c.l.b16 %v4282
          %v4347 = vunpack.c.l.b16 %v4283
          %v4348 = vunpack.c.l.b16 %v4284
          %v4349 = vunpack.c.l.b16 %v4285
          %v4350 = vunpack.c.l.b16 %v4286
          %v4351 = vunpack.c.l.b16 %v4287
          %v4352 = vunpack.c.l.b16 %v4288
          %v4353 = vunpack.c.l.b16 %v4289
          %v4354 = vunpack.c.l.b16 %v4290
          %v4355 = vunpack.c.l.b16 %v4291
          %v4356 = vunpack.c.l.b16 %v4292
          %v4357 = vunpack.c.l.b16 %v4293
          %v4358 = vunpack.c.l.b16 %v4294
          %v4359 = vunpack.c.l.b16 %v4295
          %v4360 = vunpack.c.l.b16 %v4296
          %v4361 = vunpack.c.l.b16 %v4297
          %v4362 = vunpack.c.l.b16 %v4298
          %v4363 = vunpack.c.l.b16 %v4299
          %v4364 = vunpack.c.l.b16 %v4300
          %v4365 = vpack.c.b16 %v4334, %v4333
          %v4366 = vpack.c.b16 %v4336, %v4335
          %v4367 = vpack.c.b16 %v4338, %v4337
          %v4368 = vpack.c.b16 %v4340, %v4339
          %v4369 = vpack.c.b16 %v4342, %v4341
          %v4370 = vpack.c.b16 %v4344, %v4343
          %v4371 = vpack.c.b16 %v4346, %v4345
          %v4372 = vpack.c.b16 %v4348, %v4347
          %v4373 = vpack.c.b16 %v4350, %v4349
          %v4374 = vpack.c.b16 %v4352, %v4351
          %v4375 = vpack.c.b16 %v4354, %v4353
          %v4376 = vpack.c.b16 %v4356, %v4355
          %v4377 = vpack.c.b16 %v4358, %v4357
          %v4378 = vpack.c.b16 %v4360, %v4359
          %v4379 = vpack.c.b16 %v4362, %v4361
          %v4380 = vpack.c.b16 %v4364, %v4363
          %4397 = vmatprep.subr.bf16.mxu0 0
          %4398 = vmatpush1.bf16.msra.mxu0 %v4365
          %4399 = vmatprep.subr.bf16.mxu0 0
          %4400 = vmatpush1.bf16.msra.mxu0 %v4366
          %4401 = vmatprep.subr.bf16.mxu0 0
          %4402 = vmatpush1.bf16.msra.mxu0 %v4367
          %4403 = vmatprep.subr.bf16.mxu0 0
          %4404 = vmatpush1.bf16.msra.mxu0 %v4368
          %4405 = vmatprep.subr.bf16.mxu0 0
          %4406 = vmatpush1.bf16.msra.mxu0 %v4369
          %4407 = vmatprep.subr.bf16.mxu0 0
          %4408 = vmatpush1.bf16.msra.mxu0 %v4370
          %4409 = vmatprep.subr.bf16.mxu0 0
          %4410 = vmatpush1.bf16.msra.mxu0 %v4371
          %4411 = vmatprep.subr.bf16.mxu0 0
          %4412 = vmatpush1.bf16.msra.mxu0 %v4372
          %4413 = vmatprep.subr.bf16.mxu0 0
          %4414 = vmatpush1.bf16.msra.mxu0 %v4373
          %4415 = vmatprep.subr.bf16.mxu0 0
          %4416 = vmatpush1.bf16.msra.mxu0 %v4374
          %4417 = vmatprep.subr.bf16.mxu0 0
          %4418 = vmatpush1.bf16.msra.mxu0 %v4375
          %4419 = vmatprep.subr.bf16.mxu0 0
          %4420 = vmatpush1.bf16.msra.mxu0 %v4376
          %4421 = vmatprep.subr.bf16.mxu0 0
          %4422 = vmatpush1.bf16.msra.mxu0 %v4377
          %4423 = vmatprep.subr.bf16.mxu0 0
          %4424 = vmatpush1.bf16.msra.mxu0 %v4378
          %4425 = vmatprep.subr.bf16.mxu0 0
          %4426 = vmatpush1.bf16.msra.mxu0 %v4379
          %4427 = vmatprep.subr.bf16.mxu0 0
          %4428 = vmatpush1.bf16.msra.mxu0 %v4380
          %4429 = vmatprep.mubr.bf16.mxu0 %v4253
          %4430 = vmatmul.mubr.bf16.gmra.mrb[0].mxu0 %v4252
          %v4431 = vpop.f32.mrb[0].mxu0
          %v4432 = vadd.f32 0.0, %v4431
          %v4433 = vpop.f32.mrb[0].mxu0
          %v4434 = vpop.f32.mrb[0].mxu0
          %v4435 = vadd.f32 0.0, %v4434
          %v4436 = vpop.f32.mrb[0].mxu0
          %4437 = vmatprep.mubr.bf16.mxu0 %v4255
          %4438 = vmatmul.mubr.bf16.gmra.mrb[0].mxu0 %v4254
          %v4439 = vpop.f32.mrb[0].mxu0
          %v4440 = vadd.f32 0.0, %v4439
          %v4441 = vpop.f32.mrb[0].mxu0
          %v4442 = vpop.f32.mrb[0].mxu0
          %v4443 = vadd.f32 0.0, %v4442
          %v4444 = vpop.f32.mrb[0].mxu0
          %4445 = vmatprep.mubr.bf16.mxu0 %v4257
          %4446 = vmatmul.mubr.bf16.gmra.mrb[0].mxu0 %v4256
          %v4447 = vpop.f32.mrb[0].mxu0
          %v4448 = vadd.f32 0.0, %v4447
          %v4449 = vpop.f32.mrb[0].mxu0
          %v4450 = vpop.f32.mrb[0].mxu0
          %v4451 = vadd.f32 0.0, %v4450
          %v4452 = vpop.f32.mrb[0].mxu0
          %4453 = vmatprep.mubr.bf16.mxu0 %v4259
          %4454 = vmatmul.mubr.bf16.gmra.mrb[0].mxu0 %v4258
          %v4455 = vpop.f32.mrb[0].mxu0
          %v4456 = vadd.f32 0.0, %v4455
          %v4457 = vpop.f32.mrb[0].mxu0
          %v4458 = vpop.f32.mrb[0].mxu0
          %v4459 = vadd.f32 0.0, %v4458
          %v4460 = vpop.f32.mrb[0].mxu0
          %4461 = vmatprep.mubr.bf16.mxu0 %v4261
          %4462 = vmatmul.mubr.bf16.gmra.mrb[0].mxu0 %v4260
          %v4463 = vpop.f32.mrb[0].mxu0
          %v4464 = vadd.f32 0.0, %v4463
          %v4465 = vpop.f32.mrb[0].mxu0
          %v4466 = vpop.f32.mrb[0].mxu0
          %v4467 = vadd.f32 0.0, %v4466
          %v4468 = vpop.f32.mrb[0].mxu0
          %4469 = vmatprep.mubr.bf16.mxu0 %v4263
          %4470 = vmatmul.mubr.bf16.gmra.mrb[0].mxu0 %v4262
          %v4471 = vpop.f32.mrb[0].mxu0
          %v4472 = vadd.f32 0.0, %v4471
          %v4473 = vpop.f32.mrb[0].mxu0
          %v4474 = vpop.f32.mrb[0].mxu0
          %v4475 = vadd.f32 0.0, %v4474
          %v4476 = vpop.f32.mrb[0].mxu0
          %4477 = vmatprep.mubr.bf16.mxu0 %v4265
          %4478 = vmatmul.mubr.bf16.gmra.mrb[0].mxu0 %v4264
          %v4479 = vpop.f32.mrb[0].mxu0
          %v4480 = vadd.f32 0.0, %v4479
          %v4481 = vpop.f32.mrb[0].mxu0
          %v4482 = vpop.f32.mrb[0].mxu0
          %v4483 = vadd.f32 0.0, %v4482
          %v4484 = vpop.f32.mrb[0].mxu0
          %4485 = vmatprep.mubr.bf16.mxu0 %v4267
          %4486 = vmatmul.mubr.bf16.gmra.mrb[0].mxu0 %v4266
          %v4487 = vpop.f32.mrb[0].mxu0
          %v4488 = vadd.f32 0.0, %v4487
          %v4489 = vpop.f32.mrb[0].mxu0
          %v4490 = vpop.f32.mrb[0].mxu0
          %v4491 = vadd.f32 0.0, %v4490
          %v4492 = vpop.f32.mrb[0].mxu0
          %4493 = vdwg.mxu0
          %v4494 = vadd.f32 %v4204, %v4432
          %v4495 = vadd.f32 %v4205, %v4435
          %v4496 = vadd.f32 %v4206, %v4440
          %v4497 = vadd.f32 %v4207, %v4443
          %v4498 = vadd.f32 %v4208, %v4448
          %v4499 = vadd.f32 %v4209, %v4451
          %v4500 = vadd.f32 %v4210, %v4456
          %v4501 = vadd.f32 %v4211, %v4459
          %v4502 = vadd.f32 %v4212, %v4464
          %v4503 = vadd.f32 %v4213, %v4467
          %v4504 = vadd.f32 %v4214, %v4472
          %v4505 = vadd.f32 %v4215, %v4475
          %v4506 = vadd.f32 %v4216, %v4480
          %v4507 = vadd.f32 %v4217, %v4483
          %v4508 = vadd.f32 %v4218, %v4488
          %v4509 = vadd.f32 %v4219, %v4491
          %v4510 = vld [vmem:[#allocation2 + $0x1f] sm:$0xff]
          %v4511 = vld [vmem:[#allocation2 + $0x27] sm:$0xff]
          %v4512 = vld [vmem:[#allocation2 + $0x2f] sm:$0xff]
          %v4513 = vld [vmem:[#allocation2 + $0x37] sm:$0xff]
          %v4514 = vld [vmem:[#allocation2 + $0x3f] sm:$0xff]
          %v4515 = vld [vmem:[#allocation2 + $0x47] sm:$0xff]
          %v4516 = vld [vmem:[#allocation2 + $0x4f] sm:$0xff]
          %v4517 = vld [vmem:[#allocation2 + $0x57] sm:$0xff]
          %v4518 = vld [vmem:[#allocation2 + $0x9f] sm:$0xff]
          %v4519 = vld [vmem:[#allocation2 + $0xa7] sm:$0xff]
          %v4520 = vld [vmem:[#allocation2 + $0xaf] sm:$0xff]
          %v4521 = vld [vmem:[#allocation2 + $0xb7] sm:$0xff]
          %v4522 = vld [vmem:[#allocation2 + $0xbf] sm:$0xff]
          %v4523 = vld [vmem:[#allocation2 + $0xc7] sm:$0xff]
          %v4524 = vld [vmem:[#allocation2 + $0xcf] sm:$0xff]
          %v4525 = vld [vmem:[#allocation2 + $0xd7] sm:$0xff]
          %v4526 = vld [vmem:[#allocation2 + $0x20] sm:$0xff]
          %v4527 = vld [vmem:[#allocation2 + $0x28] sm:$0xff]
          %v4528 = vld [vmem:[#allocation2 + $0x30] sm:$0xff]
          %v4529 = vld [vmem:[#allocation2 + $0x38] sm:$0xff]
          %v4530 = vld [vmem:[#allocation2 + $0x40] sm:$0xff]
          %v4531 = vld [vmem:[#allocation2 + $0x48] sm:$0xff]
          %v4532 = vld [vmem:[#allocation2 + $0x50] sm:$0xff]
          %v4533 = vld [vmem:[#allocation2 + $0x58] sm:$0xff]
          %v4534 = vld [vmem:[#allocation2 + $0xa0] sm:$0xff]
          %v4535 = vld [vmem:[#allocation2 + $0xa8] sm:$0xff]
          %v4536 = vld [vmem:[#allocation2 + $0xb0] sm:$0xff]
          %v4537 = vld [vmem:[#allocation2 + $0xb8] sm:$0xff]
          %v4538 = vld [vmem:[#allocation2 + $0xc0] sm:$0xff]
          %v4539 = vld [vmem:[#allocation2 + $0xc8] sm:$0xff]
          %v4540 = vld [vmem:[#allocation2 + $0xd0] sm:$0xff]
          %v4541 = vld [vmem:[#allocation2 + $0xd8] sm:$0xff]
          %v4542 = vpack.c.bf16 %v4511, %v4510
          %v4543 = vpack.c.bf16 %v4527, %v4526
          %v4544 = vpack.c.bf16 %v4513, %v4512
          %v4545 = vpack.c.bf16 %v4529, %v4528
          %v4546 = vpack.c.bf16 %v4515, %v4514
          %v4547 = vpack.c.bf16 %v4531, %v4530
          %v4548 = vpack.c.bf16 %v4517, %v4516
          %v4549 = vpack.c.bf16 %v4533, %v4532
          %v4550 = vpack.c.bf16 %v4519, %v4518
          %v4551 = vpack.c.bf16 %v4535, %v4534
          %v4552 = vpack.c.bf16 %v4521, %v4520
          %v4553 = vpack.c.bf16 %v4537, %v4536
          %v4554 = vpack.c.bf16 %v4523, %v4522
          %v4555 = vpack.c.bf16 %v4539, %v4538
          %v4556 = vpack.c.bf16 %v4525, %v4524
          %v4557 = vpack.c.bf16 %v4541, %v4540
          %s4558 = scalar_lea.vmem [#allocation11], 1536
          %v4559 = vld [vmem:[%s4558] sm:$0xf]
          %v4560 = vld [vmem:[%s4558 + $0x4] sm:$0xf]
          %v4561 = vld [vmem:[%s4558 + $0x8] sm:$0xf]
          %v4562 = vld [vmem:[%s4558 + $0xc] sm:$0xf]
          %v4563 = vld [vmem:[%s4558 + $0x10] sm:$0xf]
          %v4564 = vld [vmem:[%s4558 + $0x14] sm:$0xf]
          %v4565 = vld [vmem:[%s4558 + $0x18] sm:$0xf]
          %v4566 = vld [vmem:[%s4558 + $0x1c] sm:$0xf]
          %v4567 = vld [vmem:[%s4558 + $0x20] sm:$0xf]
          %v4568 = vld [vmem:[%s4558 + $0x24] sm:$0xf]
          %v4569 = vld [vmem:[%s4558 + $0x28] sm:$0xf]
          %v4570 = vld [vmem:[%s4558 + $0x2c] sm:$0xf]
          %v4571 = vld [vmem:[%s4558 + $0x30] sm:$0xf]
          %v4572 = vld [vmem:[%s4558 + $0x34] sm:$0xf]
          %v4573 = vld [vmem:[%s4558 + $0x38] sm:$0xf]
          %v4574 = vld [vmem:[%s4558 + $0x3c] sm:$0xf]
          %v4575 = vld [vmem:[%s4558 + $0x40] sm:$0xf]
          %v4576 = vld [vmem:[%s4558 + $0x44] sm:$0xf]
          %v4577 = vld [vmem:[%s4558 + $0x48] sm:$0xf]
          %v4578 = vld [vmem:[%s4558 + $0x4c] sm:$0xf]
          %v4579 = vld [vmem:[%s4558 + $0x50] sm:$0xf]
          %v4580 = vld [vmem:[%s4558 + $0x54] sm:$0xf]
          %v4581 = vld [vmem:[%s4558 + $0x58] sm:$0xf]
          %v4582 = vld [vmem:[%s4558 + $0x5c] sm:$0xf]
          %v4583 = vld [vmem:[%s4558 + $0x60] sm:$0xf]
          %v4584 = vld [vmem:[%s4558 + $0x64] sm:$0xf]
          %v4585 = vld [vmem:[%s4558 + $0x68] sm:$0xf]
          %v4586 = vld [vmem:[%s4558 + $0x6c] sm:$0xf]
          %v4587 = vld [vmem:[%s4558 + $0x70] sm:$0xf]
          %v4588 = vld [vmem:[%s4558 + $0x74] sm:$0xf]
          %v4589 = vld [vmem:[%s4558 + $0x78] sm:$0xf]
          %v4590 = vld [vmem:[%s4558 + $0x7c] sm:$0xf]
          %v4623 = vunpack.c.l.b16 %v4559
          %v4624 = vunpack.c.l.b16 %v4560
          %v4625 = vunpack.c.l.b16 %v4561
          %v4626 = vunpack.c.l.b16 %v4562
          %v4627 = vunpack.c.l.b16 %v4563
          %v4628 = vunpack.c.l.b16 %v4564
          %v4629 = vunpack.c.l.b16 %v4565
          %v4630 = vunpack.c.l.b16 %v4566
          %v4631 = vunpack.c.l.b16 %v4567
          %v4632 = vunpack.c.l.b16 %v4568
          %v4633 = vunpack.c.l.b16 %v4569
          %v4634 = vunpack.c.l.b16 %v4570
          %v4635 = vunpack.c.l.b16 %v4571
          %v4636 = vunpack.c.l.b16 %v4572
          %v4637 = vunpack.c.l.b16 %v4573
          %v4638 = vunpack.c.l.b16 %v4574
          %v4639 = vunpack.c.l.b16 %v4575
          %v4640 = vunpack.c.l.b16 %v4576
          %v4641 = vunpack.c.l.b16 %v4577
          %v4642 = vunpack.c.l.b16 %v4578
          %v4643 = vunpack.c.l.b16 %v4579
          %v4644 = vunpack.c.l.b16 %v4580
          %v4645 = vunpack.c.l.b16 %v4581
          %v4646 = vunpack.c.l.b16 %v4582
          %v4647 = vunpack.c.l.b16 %v4583
          %v4648 = vunpack.c.l.b16 %v4584
          %v4649 = vunpack.c.l.b16 %v4585
          %v4650 = vunpack.c.l.b16 %v4586
          %v4651 = vunpack.c.l.b16 %v4587
          %v4652 = vunpack.c.l.b16 %v4588
          %v4653 = vunpack.c.l.b16 %v4589
          %v4654 = vunpack.c.l.b16 %v4590
          %v4655 = vpack.c.b16 %v4624, %v4623
          %v4656 = vpack.c.b16 %v4626, %v4625
          %v4657 = vpack.c.b16 %v4628, %v4627
          %v4658 = vpack.c.b16 %v4630, %v4629
          %v4659 = vpack.c.b16 %v4632, %v4631
          %v4660 = vpack.c.b16 %v4634, %v4633
          %v4661 = vpack.c.b16 %v4636, %v4635
          %v4662 = vpack.c.b16 %v4638, %v4637
          %v4663 = vpack.c.b16 %v4640, %v4639
          %v4664 = vpack.c.b16 %v4642, %v4641
          %v4665 = vpack.c.b16 %v4644, %v4643
          %v4666 = vpack.c.b16 %v4646, %v4645
          %v4667 = vpack.c.b16 %v4648, %v4647
          %v4668 = vpack.c.b16 %v4650, %v4649
          %v4669 = vpack.c.b16 %v4652, %v4651
          %v4670 = vpack.c.b16 %v4654, %v4653
          %4687 = vmatprep.subr.bf16.mxu0 0
          %4688 = vmatpush1.bf16.msra.mxu0 %v4655
          %4689 = vmatprep.subr.bf16.mxu0 0
          %4690 = vmatpush1.bf16.msra.mxu0 %v4656
          %4691 = vmatprep.subr.bf16.mxu0 0
          %4692 = vmatpush1.bf16.msra.mxu0 %v4657
          %4693 = vmatprep.subr.bf16.mxu0 0
          %4694 = vmatpush1.bf16.msra.mxu0 %v4658
          %4695 = vmatprep.subr.bf16.mxu0 0
          %4696 = vmatpush1.bf16.msra.mxu0 %v4659
          %4697 = vmatprep.subr.bf16.mxu0 0
          %4698 = vmatpush1.bf16.msra.mxu0 %v4660
          %4699 = vmatprep.subr.bf16.mxu0 0
          %4700 = vmatpush1.bf16.msra.mxu0 %v4661
          %4701 = vmatprep.subr.bf16.mxu0 0
          %4702 = vmatpush1.bf16.msra.mxu0 %v4662
          %4703 = vmatprep.subr.bf16.mxu0 0
          %4704 = vmatpush1.bf16.msra.mxu0 %v4663
          %4705 = vmatprep.subr.bf16.mxu0 0
          %4706 = vmatpush1.bf16.msra.mxu0 %v4664
          %4707 = vmatprep.subr.bf16.mxu0 0
          %4708 = vmatpush1.bf16.msra.mxu0 %v4665
          %4709 = vmatprep.subr.bf16.mxu0 0
          %4710 = vmatpush1.bf16.msra.mxu0 %v4666
          %4711 = vmatprep.subr.bf16.mxu0 0
          %4712 = vmatpush1.bf16.msra.mxu0 %v4667
          %4713 = vmatprep.subr.bf16.mxu0 0
          %4714 = vmatpush1.bf16.msra.mxu0 %v4668
          %4715 = vmatprep.subr.bf16.mxu0 0
          %4716 = vmatpush1.bf16.msra.mxu0 %v4669
          %4717 = vmatprep.subr.bf16.mxu0 0
          %4718 = vmatpush1.bf16.msra.mxu0 %v4670
          %4719 = vmatprep.mubr.bf16.mxu0 %v4543
          %4720 = vmatmul.mubr.bf16.gmra.mrb[0].mxu0 %v4542
          %v4721 = vpop.f32.mrb[0].mxu0
          %v4722 = vadd.f32 0.0, %v4721
          %v4723 = vpop.f32.mrb[0].mxu0
          %v4724 = vpop.f32.mrb[0].mxu0
          %v4725 = vadd.f32 0.0, %v4724
          %v4726 = vpop.f32.mrb[0].mxu0
          %4727 = vmatprep.mubr.bf16.mxu0 %v4545
          %4728 = vmatmul.mubr.bf16.gmra.mrb[0].mxu0 %v4544
          %v4729 = vpop.f32.mrb[0].mxu0
          %v4730 = vadd.f32 0.0, %v4729
          %v4731 = vpop.f32.mrb[0].mxu0
          %v4732 = vpop.f32.mrb[0].mxu0
          %v4733 = vadd.f32 0.0, %v4732
          %v4734 = vpop.f32.mrb[0].mxu0
          %4735 = vmatprep.mubr.bf16.mxu0 %v4547
          %4736 = vmatmul.mubr.bf16.gmra.mrb[0].mxu0 %v4546
          %v4737 = vpop.f32.mrb[0].mxu0
          %v4738 = vadd.f32 0.0, %v4737
          %v4739 = vpop.f32.mrb[0].mxu0
          %v4740 = vpop.f32.mrb[0].mxu0
          %v4741 = vadd.f32 0.0, %v4740
          %v4742 = vpop.f32.mrb[0].mxu0
          %4743 = vmatprep.mubr.bf16.mxu0 %v4549
          %4744 = vmatmul.mubr.bf16.gmra.mrb[0].mxu0 %v4548
          %v4745 = vpop.f32.mrb[0].mxu0
          %v4746 = vadd.f32 0.0, %v4745
          %v4747 = vpop.f32.mrb[0].mxu0
          %v4748 = vpop.f32.mrb[0].mxu0
          %v4749 = vadd.f32 0.0, %v4748
          %v4750 = vpop.f32.mrb[0].mxu0
          %4751 = vmatprep.mubr.bf16.mxu0 %v4551
          %4752 = vmatmul.mubr.bf16.gmra.mrb[0].mxu0 %v4550
          %v4753 = vpop.f32.mrb[0].mxu0
          %v4754 = vadd.f32 0.0, %v4753
          %v4755 = vpop.f32.mrb[0].mxu0
          %v4756 = vpop.f32.mrb[0].mxu0
          %v4757 = vadd.f32 0.0, %v4756
          %v4758 = vpop.f32.mrb[0].mxu0
          %4759 = vmatprep.mubr.bf16.mxu0 %v4553
          %4760 = vmatmul.mubr.bf16.gmra.mrb[0].mxu0 %v4552
          %v4761 = vpop.f32.mrb[0].mxu0
          %v4762 = vadd.f32 0.0, %v4761
          %v4763 = vpop.f32.mrb[0].mxu0
          %v4764 = vpop.f32.mrb[0].mxu0
          %v4765 = vadd.f32 0.0, %v4764
          %v4766 = vpop.f32.mrb[0].mxu0
          %4767 = vmatprep.mubr.bf16.mxu0 %v4555
          %4768 = vmatmul.mubr.bf16.gmra.mrb[0].mxu0 %v4554
          %v4769 = vpop.f32.mrb[0].mxu0
          %v4770 = vadd.f32 0.0, %v4769
          %v4771 = vpop.f32.mrb[0].mxu0
          %v4772 = vpop.f32.mrb[0].mxu0
          %v4773 = vadd.f32 0.0, %v4772
          %v4774 = vpop.f32.mrb[0].mxu0
          %4775 = vmatprep.mubr.bf16.mxu0 %v4557
          %4776 = vmatmul.mubr.bf16.gmra.mrb[0].mxu0 %v4556
          %v4777 = vpop.f32.mrb[0].mxu0
          %v4778 = vadd.f32 0.0, %v4777
          %v4779 = vpop.f32.mrb[0].mxu0
          %v4780 = vpop.f32.mrb[0].mxu0
          %v4781 = vadd.f32 0.0, %v4780
          %v4782 = vpop.f32.mrb[0].mxu0
          %4783 = vdwg.mxu0
          %v4784 = vadd.f32 %v4494, %v4722
          %v4785 = vadd.f32 %v4495, %v4725
          %v4786 = vadd.f32 %v4496, %v4730
          %v4787 = vadd.f32 %v4497, %v4733
          %v4788 = vadd.f32 %v4498, %v4738
          %v4789 = vadd.f32 %v4499, %v4741
          %v4790 = vadd.f32 %v4500, %v4746
          %v4791 = vadd.f32 %v4501, %v4749
          %v4792 = vadd.f32 %v4502, %v4754
          %v4793 = vadd.f32 %v4503, %v4757
          %v4794 = vadd.f32 %v4504, %v4762
          %v4795 = vadd.f32 %v4505, %v4765
          %v4796 = vadd.f32 %v4506, %v4770
          %v4797 = vadd.f32 %v4507, %v4773
          %v4798 = vadd.f32 %v4508, %v4778
          %v4799 = vadd.f32 %v4509, %v4781
          %v4800 = vld [vmem:[#allocation2 + $0x21] sm:$0xff]
          %v4801 = vld [vmem:[#allocation2 + $0x29] sm:$0xff]
          %v4802 = vld [vmem:[#allocation2 + $0x31] sm:$0xff]
          %v4803 = vld [vmem:[#allocation2 + $0x39] sm:$0xff]
          %v4804 = vld [vmem:[#allocation2 + $0x41] sm:$0xff]
          %v4805 = vld [vmem:[#allocation2 + $0x49] sm:$0xff]
          %v4806 = vld [vmem:[#allocation2 + $0x51] sm:$0xff]
          %v4807 = vld [vmem:[#allocation2 + $0x59] sm:$0xff]
          %v4808 = vld [vmem:[#allocation2 + $0xa1] sm:$0xff]
          %v4809 = vld [vmem:[#allocation2 + $0xa9] sm:$0xff]
          %v4810 = vld [vmem:[#allocation2 + $0xb1] sm:$0xff]
          %v4811 = vld [vmem:[#allocation2 + $0xb9] sm:$0xff]
          %v4812 = vld [vmem:[#allocation2 + $0xc1] sm:$0xff]
          %v4813 = vld [vmem:[#allocation2 + $0xc9] sm:$0xff]
          %v4814 = vld [vmem:[#allocation2 + $0xd1] sm:$0xff]
          %v4815 = vld [vmem:[#allocation2 + $0xd9] sm:$0xff]
          %v4816 = vld [vmem:[#allocation2 + $0x22] sm:$0xff]
          %v4817 = vld [vmem:[#allocation2 + $0x2a] sm:$0xff]
          %v4818 = vld [vmem:[#allocation2 + $0x32] sm:$0xff]
          %v4819 = vld [vmem:[#allocation2 + $0x3a] sm:$0xff]
          %v4820 = vld [vmem:[#allocation2 + $0x42] sm:$0xff]
          %v4821 = vld [vmem:[#allocation2 + $0x4a] sm:$0xff]
          %v4822 = vld [vmem:[#allocation2 + $0x52] sm:$0xff]
          %v4823 = vld [vmem:[#allocation2 + $0x5a] sm:$0xff]
          %v4824 = vld [vmem:[#allocation2 + $0xa2] sm:$0xff]
          %v4825 = vld [vmem:[#allocation2 + $0xaa] sm:$0xff]
          %v4826 = vld [vmem:[#allocation2 + $0xb2] sm:$0xff]
          %v4827 = vld [vmem:[#allocation2 + $0xba] sm:$0xff]
          %v4828 = vld [vmem:[#allocation2 + $0xc2] sm:$0xff]
          %v4829 = vld [vmem:[#allocation2 + $0xca] sm:$0xff]
          %v4830 = vld [vmem:[#allocation2 + $0xd2] sm:$0xff]
          %v4831 = vld [vmem:[#allocation2 + $0xda] sm:$0xff]
          %v4832 = vpack.c.bf16 %v4801, %v4800
          %v4833 = vpack.c.bf16 %v4817, %v4816
          %v4834 = vpack.c.bf16 %v4803, %v4802
          %v4835 = vpack.c.bf16 %v4819, %v4818
          %v4836 = vpack.c.bf16 %v4805, %v4804
          %v4837 = vpack.c.bf16 %v4821, %v4820
          %v4838 = vpack.c.bf16 %v4807, %v4806
          %v4839 = vpack.c.bf16 %v4823, %v4822
          %v4840 = vpack.c.bf16 %v4809, %v4808
          %v4841 = vpack.c.bf16 %v4825, %v4824
          %v4842 = vpack.c.bf16 %v4811, %v4810
          %v4843 = vpack.c.bf16 %v4827, %v4826
          %v4844 = vpack.c.bf16 %v4813, %v4812
          %v4845 = vpack.c.bf16 %v4829, %v4828
          %v4846 = vpack.c.bf16 %v4815, %v4814
          %v4847 = vpack.c.bf16 %v4831, %v4830
          %s4848 = scalar_lea.vmem [#allocation11], 1664
          %v4849 = vld [vmem:[%s4848] sm:$0xf]
          %v4850 = vld [vmem:[%s4848 + $0x4] sm:$0xf]
          %v4851 = vld [vmem:[%s4848 + $0x8] sm:$0xf]
          %v4852 = vld [vmem:[%s4848 + $0xc] sm:$0xf]
          %v4853 = vld [vmem:[%s4848 + $0x10] sm:$0xf]
          %v4854 = vld [vmem:[%s4848 + $0x14] sm:$0xf]
          %v4855 = vld [vmem:[%s4848 + $0x18] sm:$0xf]
          %v4856 = vld [vmem:[%s4848 + $0x1c] sm:$0xf]
          %v4857 = vld [vmem:[%s4848 + $0x20] sm:$0xf]
          %v4858 = vld [vmem:[%s4848 + $0x24] sm:$0xf]
          %v4859 = vld [vmem:[%s4848 + $0x28] sm:$0xf]
          %v4860 = vld [vmem:[%s4848 + $0x2c] sm:$0xf]
          %v4861 = vld [vmem:[%s4848 + $0x30] sm:$0xf]
          %v4862 = vld [vmem:[%s4848 + $0x34] sm:$0xf]
          %v4863 = vld [vmem:[%s4848 + $0x38] sm:$0xf]
          %v4864 = vld [vmem:[%s4848 + $0x3c] sm:$0xf]
          %v4865 = vld [vmem:[%s4848 + $0x40] sm:$0xf]
          %v4866 = vld [vmem:[%s4848 + $0x44] sm:$0xf]
          %v4867 = vld [vmem:[%s4848 + $0x48] sm:$0xf]
          %v4868 = vld [vmem:[%s4848 + $0x4c] sm:$0xf]
          %v4869 = vld [vmem:[%s4848 + $0x50] sm:$0xf]
          %v4870 = vld [vmem:[%s4848 + $0x54] sm:$0xf]
          %v4871 = vld [vmem:[%s4848 + $0x58] sm:$0xf]
          %v4872 = vld [vmem:[%s4848 + $0x5c] sm:$0xf]
          %v4873 = vld [vmem:[%s4848 + $0x60] sm:$0xf]
          %v4874 = vld [vmem:[%s4848 + $0x64] sm:$0xf]
          %v4875 = vld [vmem:[%s4848 + $0x68] sm:$0xf]
          %v4876 = vld [vmem:[%s4848 + $0x6c] sm:$0xf]
          %v4877 = vld [vmem:[%s4848 + $0x70] sm:$0xf]
          %v4878 = vld [vmem:[%s4848 + $0x74] sm:$0xf]
          %v4879 = vld [vmem:[%s4848 + $0x78] sm:$0xf]
          %v4880 = vld [vmem:[%s4848 + $0x7c] sm:$0xf]
          %v4913 = vunpack.c.l.b16 %v4849
          %v4914 = vunpack.c.l.b16 %v4850
          %v4915 = vunpack.c.l.b16 %v4851
          %v4916 = vunpack.c.l.b16 %v4852
          %v4917 = vunpack.c.l.b16 %v4853
          %v4918 = vunpack.c.l.b16 %v4854
          %v4919 = vunpack.c.l.b16 %v4855
          %v4920 = vunpack.c.l.b16 %v4856
          %v4921 = vunpack.c.l.b16 %v4857
          %v4922 = vunpack.c.l.b16 %v4858
          %v4923 = vunpack.c.l.b16 %v4859
          %v4924 = vunpack.c.l.b16 %v4860
          %v4925 = vunpack.c.l.b16 %v4861
          %v4926 = vunpack.c.l.b16 %v4862
          %v4927 = vunpack.c.l.b16 %v4863
          %v4928 = vunpack.c.l.b16 %v4864
          %v4929 = vunpack.c.l.b16 %v4865
          %v4930 = vunpack.c.l.b16 %v4866
          %v4931 = vunpack.c.l.b16 %v4867
          %v4932 = vunpack.c.l.b16 %v4868
          %v4933 = vunpack.c.l.b16 %v4869
          %v4934 = vunpack.c.l.b16 %v4870
          %v4935 = vunpack.c.l.b16 %v4871
          %v4936 = vunpack.c.l.b16 %v4872
          %v4937 = vunpack.c.l.b16 %v4873
          %v4938 = vunpack.c.l.b16 %v4874
          %v4939 = vunpack.c.l.b16 %v4875
          %v4940 = vunpack.c.l.b16 %v4876
          %v4941 = vunpack.c.l.b16 %v4877
          %v4942 = vunpack.c.l.b16 %v4878
          %v4943 = vunpack.c.l.b16 %v4879
          %v4944 = vunpack.c.l.b16 %v4880
          %v4945 = vpack.c.b16 %v4914, %v4913
          %v4946 = vpack.c.b16 %v4916, %v4915
          %v4947 = vpack.c.b16 %v4918, %v4917
          %v4948 = vpack.c.b16 %v4920, %v4919
          %v4949 = vpack.c.b16 %v4922, %v4921
          %v4950 = vpack.c.b16 %v4924, %v4923
          %v4951 = vpack.c.b16 %v4926, %v4925
          %v4952 = vpack.c.b16 %v4928, %v4927
          %v4953 = vpack.c.b16 %v4930, %v4929
          %v4954 = vpack.c.b16 %v4932, %v4931
          %v4955 = vpack.c.b16 %v4934, %v4933
          %v4956 = vpack.c.b16 %v4936, %v4935
          %v4957 = vpack.c.b16 %v4938, %v4937
          %v4958 = vpack.c.b16 %v4940, %v4939
          %v4959 = vpack.c.b16 %v4942, %v4941
          %v4960 = vpack.c.b16 %v4944, %v4943
          %4977 = vmatprep.subr.bf16.mxu0 0
          %4978 = vmatpush1.bf16.msra.mxu0 %v4945
          %4979 = vmatprep.subr.bf16.mxu0 0
          %4980 = vmatpush1.bf16.msra.mxu0 %v4946
          %4981 = vmatprep.subr.bf16.mxu0 0
          %4982 = vmatpush1.bf16.msra.mxu0 %v4947
          %4983 = vmatprep.subr.bf16.mxu0 0
          %4984 = vmatpush1.bf16.msra.mxu0 %v4948
          %4985 = vmatprep.subr.bf16.mxu0 0
          %4986 = vmatpush1.bf16.msra.mxu0 %v4949
          %4987 = vmatprep.subr.bf16.mxu0 0
          %4988 = vmatpush1.bf16.msra.mxu0 %v4950
          %4989 = vmatprep.subr.bf16.mxu0 0
          %4990 = vmatpush1.bf16.msra.mxu0 %v4951
          %4991 = vmatprep.subr.bf16.mxu0 0
          %4992 = vmatpush1.bf16.msra.mxu0 %v4952
          %4993 = vmatprep.subr.bf16.mxu0 0
          %4994 = vmatpush1.bf16.msra.mxu0 %v4953
          %4995 = vmatprep.subr.bf16.mxu0 0
          %4996 = vmatpush1.bf16.msra.mxu0 %v4954
          %4997 = vmatprep.subr.bf16.mxu0 0
          %4998 = vmatpush1.bf16.msra.mxu0 %v4955
          %4999 = vmatprep.subr.bf16.mxu0 0
          %5000 = vmatpush1.bf16.msra.mxu0 %v4956
          %5001 = vmatprep.subr.bf16.mxu0 0
          %5002 = vmatpush1.bf16.msra.mxu0 %v4957
          %5003 = vmatprep.subr.bf16.mxu0 0
          %5004 = vmatpush1.bf16.msra.mxu0 %v4958
          %5005 = vmatprep.subr.bf16.mxu0 0
          %5006 = vmatpush1.bf16.msra.mxu0 %v4959
          %5007 = vmatprep.subr.bf16.mxu0 0
          %5008 = vmatpush1.bf16.msra.mxu0 %v4960
          %5009 = vmatprep.mubr.bf16.mxu0 %v4833
          %5010 = vmatmul.mubr.bf16.gmra.mrb[0].mxu0 %v4832
          %v5011 = vpop.f32.mrb[0].mxu0
          %v5012 = vadd.f32 0.0, %v5011
          %v5013 = vpop.f32.mrb[0].mxu0
          %v5014 = vpop.f32.mrb[0].mxu0
          %v5015 = vadd.f32 0.0, %v5014
          %v5016 = vpop.f32.mrb[0].mxu0
          %5017 = vmatprep.mubr.bf16.mxu0 %v4835
          %5018 = vmatmul.mubr.bf16.gmra.mrb[0].mxu0 %v4834
          %v5019 = vpop.f32.mrb[0].mxu0
          %v5020 = vadd.f32 0.0, %v5019
          %v5021 = vpop.f32.mrb[0].mxu0
          %v5022 = vpop.f32.mrb[0].mxu0
          %v5023 = vadd.f32 0.0, %v5022
          %v5024 = vpop.f32.mrb[0].mxu0
          %5025 = vmatprep.mubr.bf16.mxu0 %v4837
          %5026 = vmatmul.mubr.bf16.gmra.mrb[0].mxu0 %v4836
          %v5027 = vpop.f32.mrb[0].mxu0
          %v5028 = vadd.f32 0.0, %v5027
          %v5029 = vpop.f32.mrb[0].mxu0
          %v5030 = vpop.f32.mrb[0].mxu0
          %v5031 = vadd.f32 0.0, %v5030
          %v5032 = vpop.f32.mrb[0].mxu0
          %5033 = vmatprep.mubr.bf16.mxu0 %v4839
          %5034 = vmatmul.mubr.bf16.gmra.mrb[0].mxu0 %v4838
          %v5035 = vpop.f32.mrb[0].mxu0
          %v5036 = vadd.f32 0.0, %v5035
          %v5037 = vpop.f32.mrb[0].mxu0
          %v5038 = vpop.f32.mrb[0].mxu0
          %v5039 = vadd.f32 0.0, %v5038
          %v5040 = vpop.f32.mrb[0].mxu0
          %5041 = vmatprep.mubr.bf16.mxu0 %v4841
          %5042 = vmatmul.mubr.bf16.gmra.mrb[0].mxu0 %v4840
          %v5043 = vpop.f32.mrb[0].mxu0
          %v5044 = vadd.f32 0.0, %v5043
          %v5045 = vpop.f32.mrb[0].mxu0
          %v5046 = vpop.f32.mrb[0].mxu0
          %v5047 = vadd.f32 0.0, %v5046
          %v5048 = vpop.f32.mrb[0].mxu0
          %5049 = vmatprep.mubr.bf16.mxu0 %v4843
          %5050 = vmatmul.mubr.bf16.gmra.mrb[0].mxu0 %v4842
          %v5051 = vpop.f32.mrb[0].mxu0
          %v5052 = vadd.f32 0.0, %v5051
          %v5053 = vpop.f32.mrb[0].mxu0
          %v5054 = vpop.f32.mrb[0].mxu0
          %v5055 = vadd.f32 0.0, %v5054
          %v5056 = vpop.f32.mrb[0].mxu0
          %5057 = vmatprep.mubr.bf16.mxu0 %v4845
          %5058 = vmatmul.mubr.bf16.gmra.mrb[0].mxu0 %v4844
          %v5059 = vpop.f32.mrb[0].mxu0
          %v5060 = vadd.f32 0.0, %v5059
          %v5061 = vpop.f32.mrb[0].mxu0
          %v5062 = vpop.f32.mrb[0].mxu0
          %v5063 = vadd.f32 0.0, %v5062
          %v5064 = vpop.f32.mrb[0].mxu0
          %5065 = vmatprep.mubr.bf16.mxu0 %v4847
          %5066 = vmatmul.mubr.bf16.gmra.mrb[0].mxu0 %v4846
          %v5067 = vpop.f32.mrb[0].mxu0
          %v5068 = vadd.f32 0.0, %v5067
          %v5069 = vpop.f32.mrb[0].mxu0
          %v5070 = vpop.f32.mrb[0].mxu0
          %v5071 = vadd.f32 0.0, %v5070
          %v5072 = vpop.f32.mrb[0].mxu0
          %5073 = vdwg.mxu0
          %v5074 = vadd.f32 %v4784, %v5012
          %v5075 = vadd.f32 %v4785, %v5015
          %v5076 = vadd.f32 %v4786, %v5020
          %v5077 = vadd.f32 %v4787, %v5023
          %v5078 = vadd.f32 %v4788, %v5028
          %v5079 = vadd.f32 %v4789, %v5031
          %v5080 = vadd.f32 %v4790, %v5036
          %v5081 = vadd.f32 %v4791, %v5039
          %v5082 = vadd.f32 %v4792, %v5044
          %v5083 = vadd.f32 %v4793, %v5047
          %v5084 = vadd.f32 %v4794, %v5052
          %v5085 = vadd.f32 %v4795, %v5055
          %v5086 = vadd.f32 %v4796, %v5060
          %v5087 = vadd.f32 %v4797, %v5063
          %v5088 = vadd.f32 %v4798, %v5068
          %v5089 = vadd.f32 %v4799, %v5071
          %v5090 = vld [vmem:[#allocation2 + $0x23] sm:$0xff]
          %v5091 = vld [vmem:[#allocation2 + $0x2b] sm:$0xff]
          %v5092 = vld [vmem:[#allocation2 + $0x33] sm:$0xff]
          %v5093 = vld [vmem:[#allocation2 + $0x3b] sm:$0xff]
          %v5094 = vld [vmem:[#allocation2 + $0x43] sm:$0xff]
          %v5095 = vld [vmem:[#allocation2 + $0x4b] sm:$0xff]
          %v5096 = vld [vmem:[#allocation2 + $0x53] sm:$0xff]
          %v5097 = vld [vmem:[#allocation2 + $0x5b] sm:$0xff]
          %v5098 = vld [vmem:[#allocation2 + $0xa3] sm:$0xff]
          %v5099 = vld [vmem:[#allocation2 + $0xab] sm:$0xff]
          %v5100 = vld [vmem:[#allocation2 + $0xb3] sm:$0xff]
          %v5101 = vld [vmem:[#allocation2 + $0xbb] sm:$0xff]
          %v5102 = vld [vmem:[#allocation2 + $0xc3] sm:$0xff]
          %v5103 = vld [vmem:[#allocation2 + $0xcb] sm:$0xff]
          %v5104 = vld [vmem:[#allocation2 + $0xd3] sm:$0xff]
          %v5105 = vld [vmem:[#allocation2 + $0xdb] sm:$0xff]
          %v5106 = vld [vmem:[#allocation2 + $0x24] sm:$0xff]
          %v5107 = vld [vmem:[#allocation2 + $0x2c] sm:$0xff]
          %v5108 = vld [vmem:[#allocation2 + $0x34] sm:$0xff]
          %v5109 = vld [vmem:[#allocation2 + $0x3c] sm:$0xff]
          %v5110 = vld [vmem:[#allocation2 + $0x44] sm:$0xff]
          %v5111 = vld [vmem:[#allocation2 + $0x4c] sm:$0xff]
          %v5112 = vld [vmem:[#allocation2 + $0x54] sm:$0xff]
          %v5113 = vld [vmem:[#allocation2 + $0x5c] sm:$0xff]
          %v5114 = vld [vmem:[#allocation2 + $0xa4] sm:$0xff]
          %v5115 = vld [vmem:[#allocation2 + $0xac] sm:$0xff]
          %v5116 = vld [vmem:[#allocation2 + $0xb4] sm:$0xff]
          %v5117 = vld [vmem:[#allocation2 + $0xbc] sm:$0xff]
          %v5118 = vld [vmem:[#allocation2 + $0xc4] sm:$0xff]
          %v5119 = vld [vmem:[#allocation2 + $0xcc] sm:$0xff]
          %v5120 = vld [vmem:[#allocation2 + $0xd4] sm:$0xff]
          %v5121 = vld [vmem:[#allocation2 + $0xdc] sm:$0xff]
          %v5122 = vpack.c.bf16 %v5091, %v5090
          %v5123 = vpack.c.bf16 %v5107, %v5106
          %v5124 = vpack.c.bf16 %v5093, %v5092
          %v5125 = vpack.c.bf16 %v5109, %v5108
          %v5126 = vpack.c.bf16 %v5095, %v5094
          %v5127 = vpack.c.bf16 %v5111, %v5110
          %v5128 = vpack.c.bf16 %v5097, %v5096
          %v5129 = vpack.c.bf16 %v5113, %v5112
          %v5130 = vpack.c.bf16 %v5099, %v5098
          %v5131 = vpack.c.bf16 %v5115, %v5114
          %v5132 = vpack.c.bf16 %v5101, %v5100
          %v5133 = vpack.c.bf16 %v5117, %v5116
          %v5134 = vpack.c.bf16 %v5103, %v5102
          %v5135 = vpack.c.bf16 %v5119, %v5118
          %v5136 = vpack.c.bf16 %v5105, %v5104
          %v5137 = vpack.c.bf16 %v5121, %v5120
          %s5138 = scalar_lea.vmem [#allocation11], 1792
          %v5139 = vld [vmem:[%s5138] sm:$0xf]
          %v5140 = vld [vmem:[%s5138 + $0x4] sm:$0xf]
          %v5141 = vld [vmem:[%s5138 + $0x8] sm:$0xf]
          %v5142 = vld [vmem:[%s5138 + $0xc] sm:$0xf]
          %v5143 = vld [vmem:[%s5138 + $0x10] sm:$0xf]
          %v5144 = vld [vmem:[%s5138 + $0x14] sm:$0xf]
          %v5145 = vld [vmem:[%s5138 + $0x18] sm:$0xf]
          %v5146 = vld [vmem:[%s5138 + $0x1c] sm:$0xf]
          %v5147 = vld [vmem:[%s5138 + $0x20] sm:$0xf]
          %v5148 = vld [vmem:[%s5138 + $0x24] sm:$0xf]
          %v5149 = vld [vmem:[%s5138 + $0x28] sm:$0xf]
          %v5150 = vld [vmem:[%s5138 + $0x2c] sm:$0xf]
          %v5151 = vld [vmem:[%s5138 + $0x30] sm:$0xf]
          %v5152 = vld [vmem:[%s5138 + $0x34] sm:$0xf]
          %v5153 = vld [vmem:[%s5138 + $0x38] sm:$0xf]
          %v5154 = vld [vmem:[%s5138 + $0x3c] sm:$0xf]
          %v5155 = vld [vmem:[%s5138 + $0x40] sm:$0xf]
          %v5156 = vld [vmem:[%s5138 + $0x44] sm:$0xf]
          %v5157 = vld [vmem:[%s5138 + $0x48] sm:$0xf]
          %v5158 = vld [vmem:[%s5138 + $0x4c] sm:$0xf]
          %v5159 = vld [vmem:[%s5138 + $0x50] sm:$0xf]
          %v5160 = vld [vmem:[%s5138 + $0x54] sm:$0xf]
          %v5161 = vld [vmem:[%s5138 + $0x58] sm:$0xf]
          %v5162 = vld [vmem:[%s5138 + $0x5c] sm:$0xf]
          %v5163 = vld [vmem:[%s5138 + $0x60] sm:$0xf]
          %v5164 = vld [vmem:[%s5138 + $0x64] sm:$0xf]
          %v5165 = vld [vmem:[%s5138 + $0x68] sm:$0xf]
          %v5166 = vld [vmem:[%s5138 + $0x6c] sm:$0xf]
          %v5167 = vld [vmem:[%s5138 + $0x70] sm:$0xf]
          %v5168 = vld [vmem:[%s5138 + $0x74] sm:$0xf]
          %v5169 = vld [vmem:[%s5138 + $0x78] sm:$0xf]
          %v5170 = vld [vmem:[%s5138 + $0x7c] sm:$0xf]
          %v5203 = vunpack.c.l.b16 %v5139
          %v5204 = vunpack.c.l.b16 %v5140
          %v5205 = vunpack.c.l.b16 %v5141
          %v5206 = vunpack.c.l.b16 %v5142
          %v5207 = vunpack.c.l.b16 %v5143
          %v5208 = vunpack.c.l.b16 %v5144
          %v5209 = vunpack.c.l.b16 %v5145
          %v5210 = vunpack.c.l.b16 %v5146
          %v5211 = vunpack.c.l.b16 %v5147
          %v5212 = vunpack.c.l.b16 %v5148
          %v5213 = vunpack.c.l.b16 %v5149
          %v5214 = vunpack.c.l.b16 %v5150
          %v5215 = vunpack.c.l.b16 %v5151
          %v5216 = vunpack.c.l.b16 %v5152
          %v5217 = vunpack.c.l.b16 %v5153
          %v5218 = vunpack.c.l.b16 %v5154
          %v5219 = vunpack.c.l.b16 %v5155
          %v5220 = vunpack.c.l.b16 %v5156
          %v5221 = vunpack.c.l.b16 %v5157
          %v5222 = vunpack.c.l.b16 %v5158
          %v5223 = vunpack.c.l.b16 %v5159
          %v5224 = vunpack.c.l.b16 %v5160
          %v5225 = vunpack.c.l.b16 %v5161
          %v5226 = vunpack.c.l.b16 %v5162
          %v5227 = vunpack.c.l.b16 %v5163
          %v5228 = vunpack.c.l.b16 %v5164
          %v5229 = vunpack.c.l.b16 %v5165
          %v5230 = vunpack.c.l.b16 %v5166
          %v5231 = vunpack.c.l.b16 %v5167
          %v5232 = vunpack.c.l.b16 %v5168
          %v5233 = vunpack.c.l.b16 %v5169
          %v5234 = vunpack.c.l.b16 %v5170
          %v5235 = vpack.c.b16 %v5204, %v5203
          %v5236 = vpack.c.b16 %v5206, %v5205
          %v5237 = vpack.c.b16 %v5208, %v5207
          %v5238 = vpack.c.b16 %v5210, %v5209
          %v5239 = vpack.c.b16 %v5212, %v5211
          %v5240 = vpack.c.b16 %v5214, %v5213
          %v5241 = vpack.c.b16 %v5216, %v5215
          %v5242 = vpack.c.b16 %v5218, %v5217
          %v5243 = vpack.c.b16 %v5220, %v5219
          %v5244 = vpack.c.b16 %v5222, %v5221
          %v5245 = vpack.c.b16 %v5224, %v5223
          %v5246 = vpack.c.b16 %v5226, %v5225
          %v5247 = vpack.c.b16 %v5228, %v5227
          %v5248 = vpack.c.b16 %v5230, %v5229
          %v5249 = vpack.c.b16 %v5232, %v5231
          %v5250 = vpack.c.b16 %v5234, %v5233
          %5267 = vmatprep.subr.bf16.mxu0 0
          %5268 = vmatpush1.bf16.msra.mxu0 %v5235
          %5269 = vmatprep.subr.bf16.mxu0 0
          %5270 = vmatpush1.bf16.msra.mxu0 %v5236
          %5271 = vmatprep.subr.bf16.mxu0 0
          %5272 = vmatpush1.bf16.msra.mxu0 %v5237
          %5273 = vmatprep.subr.bf16.mxu0 0
          %5274 = vmatpush1.bf16.msra.mxu0 %v5238
          %5275 = vmatprep.subr.bf16.mxu0 0
          %5276 = vmatpush1.bf16.msra.mxu0 %v5239
          %5277 = vmatprep.subr.bf16.mxu0 0
          %5278 = vmatpush1.bf16.msra.mxu0 %v5240
          %5279 = vmatprep.subr.bf16.mxu0 0
          %5280 = vmatpush1.bf16.msra.mxu0 %v5241
          %5281 = vmatprep.subr.bf16.mxu0 0
          %5282 = vmatpush1.bf16.msra.mxu0 %v5242
          %5283 = vmatprep.subr.bf16.mxu0 0
          %5284 = vmatpush1.bf16.msra.mxu0 %v5243
          %5285 = vmatprep.subr.bf16.mxu0 0
          %5286 = vmatpush1.bf16.msra.mxu0 %v5244
          %5287 = vmatprep.subr.bf16.mxu0 0
          %5288 = vmatpush1.bf16.msra.mxu0 %v5245
          %5289 = vmatprep.subr.bf16.mxu0 0
          %5290 = vmatpush1.bf16.msra.mxu0 %v5246
          %5291 = vmatprep.subr.bf16.mxu0 0
          %5292 = vmatpush1.bf16.msra.mxu0 %v5247
          %5293 = vmatprep.subr.bf16.mxu0 0
          %5294 = vmatpush1.bf16.msra.mxu0 %v5248
          %5295 = vmatprep.subr.bf16.mxu0 0
          %5296 = vmatpush1.bf16.msra.mxu0 %v5249
          %5297 = vmatprep.subr.bf16.mxu0 0
          %5298 = vmatpush1.bf16.msra.mxu0 %v5250
          %5299 = vmatprep.mubr.bf16.mxu0 %v5123
          %5300 = vmatmul.mubr.bf16.gmra.mrb[0].mxu0 %v5122
          %v5301 = vpop.f32.mrb[0].mxu0
          %v5302 = vadd.f32 0.0, %v5301
          %v5303 = vpop.f32.mrb[0].mxu0
          %v5304 = vpop.f32.mrb[0].mxu0
          %v5305 = vadd.f32 0.0, %v5304
          %v5306 = vpop.f32.mrb[0].mxu0
          %5307 = vmatprep.mubr.bf16.mxu0 %v5125
          %5308 = vmatmul.mubr.bf16.gmra.mrb[0].mxu0 %v5124
          %v5309 = vpop.f32.mrb[0].mxu0
          %v5310 = vadd.f32 0.0, %v5309
          %v5311 = vpop.f32.mrb[0].mxu0
          %v5312 = vpop.f32.mrb[0].mxu0
          %v5313 = vadd.f32 0.0, %v5312
          %v5314 = vpop.f32.mrb[0].mxu0
          %5315 = vmatprep.mubr.bf16.mxu0 %v5127
          %5316 = vmatmul.mubr.bf16.gmra.mrb[0].mxu0 %v5126
          %v5317 = vpop.f32.mrb[0].mxu0
          %v5318 = vadd.f32 0.0, %v5317
          %v5319 = vpop.f32.mrb[0].mxu0
          %v5320 = vpop.f32.mrb[0].mxu0
          %v5321 = vadd.f32 0.0, %v5320
          %v5322 = vpop.f32.mrb[0].mxu0
          %5323 = vmatprep.mubr.bf16.mxu0 %v5129
          %5324 = vmatmul.mubr.bf16.gmra.mrb[0].mxu0 %v5128
          %v5325 = vpop.f32.mrb[0].mxu0
          %v5326 = vadd.f32 0.0, %v5325
          %v5327 = vpop.f32.mrb[0].mxu0
          %v5328 = vpop.f32.mrb[0].mxu0
          %v5329 = vadd.f32 0.0, %v5328
          %v5330 = vpop.f32.mrb[0].mxu0
          %5331 = vmatprep.mubr.bf16.mxu0 %v5131
          %5332 = vmatmul.mubr.bf16.gmra.mrb[0].mxu0 %v5130
          %v5333 = vpop.f32.mrb[0].mxu0
          %v5334 = vadd.f32 0.0, %v5333
          %v5335 = vpop.f32.mrb[0].mxu0
          %v5336 = vpop.f32.mrb[0].mxu0
          %v5337 = vadd.f32 0.0, %v5336
          %v5338 = vpop.f32.mrb[0].mxu0
          %5339 = vmatprep.mubr.bf16.mxu0 %v5133
          %5340 = vmatmul.mubr.bf16.gmra.mrb[0].mxu0 %v5132
          %v5341 = vpop.f32.mrb[0].mxu0
          %v5342 = vadd.f32 0.0, %v5341
          %v5343 = vpop.f32.mrb[0].mxu0
          %v5344 = vpop.f32.mrb[0].mxu0
          %v5345 = vadd.f32 0.0, %v5344
          %v5346 = vpop.f32.mrb[0].mxu0
          %5347 = vmatprep.mubr.bf16.mxu0 %v5135
          %5348 = vmatmul.mubr.bf16.gmra.mrb[0].mxu0 %v5134
          %v5349 = vpop.f32.mrb[0].mxu0
          %v5350 = vadd.f32 0.0, %v5349
          %v5351 = vpop.f32.mrb[0].mxu0
          %v5352 = vpop.f32.mrb[0].mxu0
          %v5353 = vadd.f32 0.0, %v5352
          %v5354 = vpop.f32.mrb[0].mxu0
          %5355 = vmatprep.mubr.bf16.mxu0 %v5137
          %5356 = vmatmul.mubr.bf16.gmra.mrb[0].mxu0 %v5136
          %v5357 = vpop.f32.mrb[0].mxu0
          %v5358 = vadd.f32 0.0, %v5357
          %v5359 = vpop.f32.mrb[0].mxu0
          %v5360 = vpop.f32.mrb[0].mxu0
          %v5361 = vadd.f32 0.0, %v5360
          %v5362 = vpop.f32.mrb[0].mxu0
          %5363 = vdwg.mxu0
          %v5364 = vadd.f32 %v5074, %v5302
          %v5365 = vadd.f32 %v5075, %v5305
          %v5366 = vadd.f32 %v5076, %v5310
          %v5367 = vadd.f32 %v5077, %v5313
          %v5368 = vadd.f32 %v5078, %v5318
          %v5369 = vadd.f32 %v5079, %v5321
          %v5370 = vadd.f32 %v5080, %v5326
          %v5371 = vadd.f32 %v5081, %v5329
          %v5372 = vadd.f32 %v5082, %v5334
          %v5373 = vadd.f32 %v5083, %v5337
          %v5374 = vadd.f32 %v5084, %v5342
          %v5375 = vadd.f32 %v5085, %v5345
          %v5376 = vadd.f32 %v5086, %v5350
          %v5377 = vadd.f32 %v5087, %v5353
          %v5378 = vadd.f32 %v5088, %v5358
          %v5379 = vadd.f32 %v5089, %v5361
          %v5380 = vld [vmem:[#allocation2 + $0x25] sm:$0xff]
          %v5381 = vld [vmem:[#allocation2 + $0x2d] sm:$0xff]
          %v5382 = vld [vmem:[#allocation2 + $0x35] sm:$0xff]
          %v5383 = vld [vmem:[#allocation2 + $0x3d] sm:$0xff]
          %v5384 = vld [vmem:[#allocation2 + $0x45] sm:$0xff]
          %v5385 = vld [vmem:[#allocation2 + $0x4d] sm:$0xff]
          %v5386 = vld [vmem:[#allocation2 + $0x55] sm:$0xff]
          %v5387 = vld [vmem:[#allocation2 + $0x5d] sm:$0xff]
          %v5388 = vld [vmem:[#allocation2 + $0xa5] sm:$0xff]
          %v5389 = vld [vmem:[#allocation2 + $0xad] sm:$0xff]
          %v5390 = vld [vmem:[#allocation2 + $0xb5] sm:$0xff]
          %v5391 = vld [vmem:[#allocation2 + $0xbd] sm:$0xff]
          %v5392 = vld [vmem:[#allocation2 + $0xc5] sm:$0xff]
          %v5393 = vld [vmem:[#allocation2 + $0xcd] sm:$0xff]
          %v5394 = vld [vmem:[#allocation2 + $0xd5] sm:$0xff]
          %v5395 = vld [vmem:[#allocation2 + $0xdd] sm:$0xff]
          %v5396 = vld [vmem:[#allocation2 + $0x26] sm:$0xff]
          %v5397 = vld [vmem:[#allocation2 + $0x2e] sm:$0xff]
          %v5398 = vld [vmem:[#allocation2 + $0x36] sm:$0xff]
          %v5399 = vld [vmem:[#allocation2 + $0x3e] sm:$0xff]
          %v5400 = vld [vmem:[#allocation2 + $0x46] sm:$0xff]
          %v5401 = vld [vmem:[#allocation2 + $0x4e] sm:$0xff]
          %v5402 = vld [vmem:[#allocation2 + $0x56] sm:$0xff]
          %v5403 = vld [vmem:[#allocation2 + $0x5e] sm:$0xff]
          %v5404 = vld [vmem:[#allocation2 + $0xa6] sm:$0xff]
          %v5405 = vld [vmem:[#allocation2 + $0xae] sm:$0xff]
          %v5406 = vld [vmem:[#allocation2 + $0xb6] sm:$0xff]
          %v5407 = vld [vmem:[#allocation2 + $0xbe] sm:$0xff]
          %v5408 = vld [vmem:[#allocation2 + $0xc6] sm:$0xff]
          %v5409 = vld [vmem:[#allocation2 + $0xce] sm:$0xff]
          %v5410 = vld [vmem:[#allocation2 + $0xd6] sm:$0xff]
          %v5411 = vld [vmem:[#allocation2 + $0xde] sm:$0xff]
          %v5412 = vpack.c.bf16 %v5381, %v5380
          %v5413 = vpack.c.bf16 %v5397, %v5396
          %v5414 = vpack.c.bf16 %v5383, %v5382
          %v5415 = vpack.c.bf16 %v5399, %v5398
          %v5416 = vpack.c.bf16 %v5385, %v5384
          %v5417 = vpack.c.bf16 %v5401, %v5400
          %v5418 = vpack.c.bf16 %v5387, %v5386
          %v5419 = vpack.c.bf16 %v5403, %v5402
          %v5420 = vpack.c.bf16 %v5389, %v5388
          %v5421 = vpack.c.bf16 %v5405, %v5404
          %v5422 = vpack.c.bf16 %v5391, %v5390
          %v5423 = vpack.c.bf16 %v5407, %v5406
          %v5424 = vpack.c.bf16 %v5393, %v5392
          %v5425 = vpack.c.bf16 %v5409, %v5408
          %v5426 = vpack.c.bf16 %v5395, %v5394
          %v5427 = vpack.c.bf16 %v5411, %v5410
          %s5428 = scalar_lea.vmem [#allocation11], 1920
          %v5429 = vld [vmem:[%s5428] sm:$0xf]
          %v5430 = vld [vmem:[%s5428 + $0x4] sm:$0xf]
          %v5431 = vld [vmem:[%s5428 + $0x8] sm:$0xf]
          %v5432 = vld [vmem:[%s5428 + $0xc] sm:$0xf]
          %v5433 = vld [vmem:[%s5428 + $0x10] sm:$0xf]
          %v5434 = vld [vmem:[%s5428 + $0x14] sm:$0xf]
          %v5435 = vld [vmem:[%s5428 + $0x18] sm:$0xf]
          %v5436 = vld [vmem:[%s5428 + $0x1c] sm:$0xf]
          %v5437 = vld [vmem:[%s5428 + $0x20] sm:$0xf]
          %v5438 = vld [vmem:[%s5428 + $0x24] sm:$0xf]
          %v5439 = vld [vmem:[%s5428 + $0x28] sm:$0xf]
          %v5440 = vld [vmem:[%s5428 + $0x2c] sm:$0xf]
          %v5441 = vld [vmem:[%s5428 + $0x30] sm:$0xf]
          %v5442 = vld [vmem:[%s5428 + $0x34] sm:$0xf]
          %v5443 = vld [vmem:[%s5428 + $0x38] sm:$0xf]
          %v5444 = vld [vmem:[%s5428 + $0x3c] sm:$0xf]
          %v5445 = vld [vmem:[%s5428 + $0x40] sm:$0xf]
          %v5446 = vld [vmem:[%s5428 + $0x44] sm:$0xf]
          %v5447 = vld [vmem:[%s5428 + $0x48] sm:$0xf]
          %v5448 = vld [vmem:[%s5428 + $0x4c] sm:$0xf]
          %v5449 = vld [vmem:[%s5428 + $0x50] sm:$0xf]
          %v5450 = vld [vmem:[%s5428 + $0x54] sm:$0xf]
          %v5451 = vld [vmem:[%s5428 + $0x58] sm:$0xf]
          %v5452 = vld [vmem:[%s5428 + $0x5c] sm:$0xf]
          %v5453 = vld [vmem:[%s5428 + $0x60] sm:$0xf]
          %v5454 = vld [vmem:[%s5428 + $0x64] sm:$0xf]
          %v5455 = vld [vmem:[%s5428 + $0x68] sm:$0xf]
          %v5456 = vld [vmem:[%s5428 + $0x6c] sm:$0xf]
          %v5457 = vld [vmem:[%s5428 + $0x70] sm:$0xf]
          %v5458 = vld [vmem:[%s5428 + $0x74] sm:$0xf]
          %v5459 = vld [vmem:[%s5428 + $0x78] sm:$0xf]
          %v5460 = vld [vmem:[%s5428 + $0x7c] sm:$0xf]
          %v5493 = vunpack.c.l.b16 %v5429
          %v5494 = vunpack.c.l.b16 %v5430
          %v5495 = vunpack.c.l.b16 %v5431
          %v5496 = vunpack.c.l.b16 %v5432
          %v5497 = vunpack.c.l.b16 %v5433
          %v5498 = vunpack.c.l.b16 %v5434
          %v5499 = vunpack.c.l.b16 %v5435
          %v5500 = vunpack.c.l.b16 %v5436
          %v5501 = vunpack.c.l.b16 %v5437
          %v5502 = vunpack.c.l.b16 %v5438
          %v5503 = vunpack.c.l.b16 %v5439
          %v5504 = vunpack.c.l.b16 %v5440
          %v5505 = vunpack.c.l.b16 %v5441
          %v5506 = vunpack.c.l.b16 %v5442
          %v5507 = vunpack.c.l.b16 %v5443
          %v5508 = vunpack.c.l.b16 %v5444
          %v5509 = vunpack.c.l.b16 %v5445
          %v5510 = vunpack.c.l.b16 %v5446
          %v5511 = vunpack.c.l.b16 %v5447
          %v5512 = vunpack.c.l.b16 %v5448
          %v5513 = vunpack.c.l.b16 %v5449
          %v5514 = vunpack.c.l.b16 %v5450
          %v5515 = vunpack.c.l.b16 %v5451
          %v5516 = vunpack.c.l.b16 %v5452
          %v5517 = vunpack.c.l.b16 %v5453
          %v5518 = vunpack.c.l.b16 %v5454
          %v5519 = vunpack.c.l.b16 %v5455
          %v5520 = vunpack.c.l.b16 %v5456
          %v5521 = vunpack.c.l.b16 %v5457
          %v5522 = vunpack.c.l.b16 %v5458
          %v5523 = vunpack.c.l.b16 %v5459
          %v5524 = vunpack.c.l.b16 %v5460
          %v5525 = vpack.c.b16 %v5494, %v5493
          %v5526 = vpack.c.b16 %v5496, %v5495
          %v5527 = vpack.c.b16 %v5498, %v5497
          %v5528 = vpack.c.b16 %v5500, %v5499
          %v5529 = vpack.c.b16 %v5502, %v5501
          %v5530 = vpack.c.b16 %v5504, %v5503
          %v5531 = vpack.c.b16 %v5506, %v5505
          %v5532 = vpack.c.b16 %v5508, %v5507
          %v5533 = vpack.c.b16 %v5510, %v5509
          %v5534 = vpack.c.b16 %v5512, %v5511
          %v5535 = vpack.c.b16 %v5514, %v5513
          %v5536 = vpack.c.b16 %v5516, %v5515
          %v5537 = vpack.c.b16 %v5518, %v5517
          %v5538 = vpack.c.b16 %v5520, %v5519
          %v5539 = vpack.c.b16 %v5522, %v5521
          %v5540 = vpack.c.b16 %v5524, %v5523
          %5557 = vmatprep.subr.bf16.mxu0 0
          %5558 = vmatpush1.bf16.msra.mxu0 %v5525
          %5559 = vmatprep.subr.bf16.mxu0 0
          %5560 = vmatpush1.bf16.msra.mxu0 %v5526
          %5561 = vmatprep.subr.bf16.mxu0 0
          %5562 = vmatpush1.bf16.msra.mxu0 %v5527
          %5563 = vmatprep.subr.bf16.mxu0 0
          %5564 = vmatpush1.bf16.msra.mxu0 %v5528
          %5565 = vmatprep.subr.bf16.mxu0 0
          %5566 = vmatpush1.bf16.msra.mxu0 %v5529
          %5567 = vmatprep.subr.bf16.mxu0 0
          %5568 = vmatpush1.bf16.msra.mxu0 %v5530
          %5569 = vmatprep.subr.bf16.mxu0 0
          %5570 = vmatpush1.bf16.msra.mxu0 %v5531
          %5571 = vmatprep.subr.bf16.mxu0 0
          %5572 = vmatpush1.bf16.msra.mxu0 %v5532
          %5573 = vmatprep.subr.bf16.mxu0 0
          %5574 = vmatpush1.bf16.msra.mxu0 %v5533
          %5575 = vmatprep.subr.bf16.mxu0 0
          %5576 = vmatpush1.bf16.msra.mxu0 %v5534
          %5577 = vmatprep.subr.bf16.mxu0 0
          %5578 = vmatpush1.bf16.msra.mxu0 %v5535
          %5579 = vmatprep.subr.bf16.mxu0 0
          %5580 = vmatpush1.bf16.msra.mxu0 %v5536
          %5581 = vmatprep.subr.bf16.mxu0 0
          %5582 = vmatpush1.bf16.msra.mxu0 %v5537
          %5583 = vmatprep.subr.bf16.mxu0 0
          %5584 = vmatpush1.bf16.msra.mxu0 %v5538
          %5585 = vmatprep.subr.bf16.mxu0 0
          %5586 = vmatpush1.bf16.msra.mxu0 %v5539
          %5587 = vmatprep.subr.bf16.mxu0 0
          %5588 = vmatpush1.bf16.msra.mxu0 %v5540
          %5589 = vmatprep.mubr.bf16.mxu0 %v5413
          %5590 = vmatmul.mubr.bf16.gmra.mrb[0].mxu0 %v5412
          %v5591 = vpop.f32.mrb[0].mxu0
          %v5592 = vadd.f32 0.0, %v5591
          %v5593 = vpop.f32.mrb[0].mxu0
          %v5594 = vpop.f32.mrb[0].mxu0
          %v5595 = vadd.f32 0.0, %v5594
          %v5596 = vpop.f32.mrb[0].mxu0
          %5597 = vmatprep.mubr.bf16.mxu0 %v5415
          %5598 = vmatmul.mubr.bf16.gmra.mrb[0].mxu0 %v5414
          %v5599 = vpop.f32.mrb[0].mxu0
          %v5600 = vadd.f32 0.0, %v5599
          %v5601 = vpop.f32.mrb[0].mxu0
          %v5602 = vpop.f32.mrb[0].mxu0
          %v5603 = vadd.f32 0.0, %v5602
          %v5604 = vpop.f32.mrb[0].mxu0
          %5605 = vmatprep.mubr.bf16.mxu0 %v5417
          %5606 = vmatmul.mubr.bf16.gmra.mrb[0].mxu0 %v5416
          %v5607 = vpop.f32.mrb[0].mxu0
          %v5608 = vadd.f32 0.0, %v5607
          %v5609 = vpop.f32.mrb[0].mxu0
          %v5610 = vpop.f32.mrb[0].mxu0
          %v5611 = vadd.f32 0.0, %v5610
          %v5612 = vpop.f32.mrb[0].mxu0
          %5613 = vmatprep.mubr.bf16.mxu0 %v5419
          %5614 = vmatmul.mubr.bf16.gmra.mrb[0].mxu0 %v5418
          %v5615 = vpop.f32.mrb[0].mxu0
          %v5616 = vadd.f32 0.0, %v5615
          %v5617 = vpop.f32.mrb[0].mxu0
          %v5618 = vpop.f32.mrb[0].mxu0
          %v5619 = vadd.f32 0.0, %v5618
          %v5620 = vpop.f32.mrb[0].mxu0
          %5621 = vmatprep.mubr.bf16.mxu0 %v5421
          %5622 = vmatmul.mubr.bf16.gmra.mrb[0].mxu0 %v5420
          %v5623 = vpop.f32.mrb[0].mxu0
          %v5624 = vadd.f32 0.0, %v5623
          %v5625 = vpop.f32.mrb[0].mxu0
          %v5626 = vpop.f32.mrb[0].mxu0
          %v5627 = vadd.f32 0.0, %v5626
          %v5628 = vpop.f32.mrb[0].mxu0
          %5629 = vmatprep.mubr.bf16.mxu0 %v5423
          %5630 = vmatmul.mubr.bf16.gmra.mrb[0].mxu0 %v5422
          %v5631 = vpop.f32.mrb[0].mxu0
          %v5632 = vadd.f32 0.0, %v5631
          %v5633 = vpop.f32.mrb[0].mxu0
          %v5634 = vpop.f32.mrb[0].mxu0
          %v5635 = vadd.f32 0.0, %v5634
          %v5636 = vpop.f32.mrb[0].mxu0
          %5637 = vmatprep.mubr.bf16.mxu0 %v5425
          %5638 = vmatmul.mubr.bf16.gmra.mrb[0].mxu0 %v5424
          %v5639 = vpop.f32.mrb[0].mxu0
          %v5640 = vadd.f32 0.0, %v5639
          %v5641 = vpop.f32.mrb[0].mxu0
          %v5642 = vpop.f32.mrb[0].mxu0
          %v5643 = vadd.f32 0.0, %v5642
          %v5644 = vpop.f32.mrb[0].mxu0
          %5645 = vmatprep.mubr.bf16.mxu0 %v5427
          %5646 = vmatmul.mubr.bf16.gmra.mrb[0].mxu0 %v5426
          %v5647 = vpop.f32.mrb[0].mxu0
          %v5648 = vadd.f32 0.0, %v5647
          %v5649 = vpop.f32.mrb[0].mxu0
          %v5650 = vpop.f32.mrb[0].mxu0
          %v5651 = vadd.f32 0.0, %v5650
          %v5652 = vpop.f32.mrb[0].mxu0
          %5653 = vdwg.mxu0
          %v5654 = vadd.f32 %v5364, %v5592
          %v5655 = vadd.f32 %v5365, %v5595
          %v5656 = vadd.f32 %v5366, %v5600
          %v5657 = vadd.f32 %v5367, %v5603
          %v5658 = vadd.f32 %v5368, %v5608
          %v5659 = vadd.f32 %v5369, %v5611
          %v5660 = vadd.f32 %v5370, %v5616
          %v5661 = vadd.f32 %v5371, %v5619
          %v5662 = vadd.f32 %v5372, %v5624
          %v5663 = vadd.f32 %v5373, %v5627
          %v5664 = vadd.f32 %v5374, %v5632
          %v5665 = vadd.f32 %v5375, %v5635
          %v5666 = vadd.f32 %v5376, %v5640
          %v5667 = vadd.f32 %v5377, %v5643
          %v5668 = vadd.f32 %v5378, %v5648
          %v5669 = vadd.f32 %v5379, %v5651
          %v5670 = vld [vmem:[#allocation2 + $0x27] sm:$0xff]
          %v5671 = vld [vmem:[#allocation2 + $0x2f] sm:$0xff]
          %v5672 = vld [vmem:[#allocation2 + $0x37] sm:$0xff]
          %v5673 = vld [vmem:[#allocation2 + $0x3f] sm:$0xff]
          %v5674 = vld [vmem:[#allocation2 + $0x47] sm:$0xff]
          %v5675 = vld [vmem:[#allocation2 + $0x4f] sm:$0xff]
          %v5676 = vld [vmem:[#allocation2 + $0x57] sm:$0xff]
          %v5677 = vld [vmem:[#allocation2 + $0x5f] sm:$0xff]
          %v5678 = vld [vmem:[#allocation2 + $0xa7] sm:$0xff]
          %v5679 = vld [vmem:[#allocation2 + $0xaf] sm:$0xff]
          %v5680 = vld [vmem:[#allocation2 + $0xb7] sm:$0xff]
          %v5681 = vld [vmem:[#allocation2 + $0xbf] sm:$0xff]
          %v5682 = vld [vmem:[#allocation2 + $0xc7] sm:$0xff]
          %v5683 = vld [vmem:[#allocation2 + $0xcf] sm:$0xff]
          %v5684 = vld [vmem:[#allocation2 + $0xd7] sm:$0xff]
          %v5685 = vld [vmem:[#allocation2 + $0xdf] sm:$0xff]
          %v5686 = vld [vmem:[#allocation2 + $0x28] sm:$0xff]
          %v5687 = vld [vmem:[#allocation2 + $0x30] sm:$0xff]
          %v5688 = vld [vmem:[#allocation2 + $0x38] sm:$0xff]
          %v5689 = vld [vmem:[#allocation2 + $0x40] sm:$0xff]
          %v5690 = vld [vmem:[#allocation2 + $0x48] sm:$0xff]
          %v5691 = vld [vmem:[#allocation2 + $0x50] sm:$0xff]
          %v5692 = vld [vmem:[#allocation2 + $0x58] sm:$0xff]
          %v5693 = vld [vmem:[#allocation2 + $0x60] sm:$0xff]
          %v5694 = vld [vmem:[#allocation2 + $0xa8] sm:$0xff]
          %v5695 = vld [vmem:[#allocation2 + $0xb0] sm:$0xff]
          %v5696 = vld [vmem:[#allocation2 + $0xb8] sm:$0xff]
          %v5697 = vld [vmem:[#allocation2 + $0xc0] sm:$0xff]
          %v5698 = vld [vmem:[#allocation2 + $0xc8] sm:$0xff]
          %v5699 = vld [vmem:[#allocation2 + $0xd0] sm:$0xff]
          %v5700 = vld [vmem:[#allocation2 + $0xd8] sm:$0xff]
          %v5701 = vld [vmem:[#allocation2 + $0xe0] sm:$0xff]
          %v5702 = vpack.c.bf16 %v5671, %v5670
          %v5703 = vpack.c.bf16 %v5687, %v5686
          %v5704 = vpack.c.bf16 %v5673, %v5672
          %v5705 = vpack.c.bf16 %v5689, %v5688
          %v5706 = vpack.c.bf16 %v5675, %v5674
          %v5707 = vpack.c.bf16 %v5691, %v5690
          %v5708 = vpack.c.bf16 %v5677, %v5676
          %v5709 = vpack.c.bf16 %v5693, %v5692
          %v5710 = vpack.c.bf16 %v5679, %v5678
          %v5711 = vpack.c.bf16 %v5695, %v5694
          %v5712 = vpack.c.bf16 %v5681, %v5680
          %v5713 = vpack.c.bf16 %v5697, %v5696
          %v5714 = vpack.c.bf16 %v5683, %v5682
          %v5715 = vpack.c.bf16 %v5699, %v5698
          %v5716 = vpack.c.bf16 %v5685, %v5684
          %v5717 = vpack.c.bf16 %v5701, %v5700
          %s5718 = scalar_lea.vmem [#allocation11], 2048
          %v5719 = vld [vmem:[%s5718] sm:$0xf]
          %v5720 = vld [vmem:[%s5718 + $0x4] sm:$0xf]
          %v5721 = vld [vmem:[%s5718 + $0x8] sm:$0xf]
          %v5722 = vld [vmem:[%s5718 + $0xc] sm:$0xf]
          %v5723 = vld [vmem:[%s5718 + $0x10] sm:$0xf]
          %v5724 = vld [vmem:[%s5718 + $0x14] sm:$0xf]
          %v5725 = vld [vmem:[%s5718 + $0x18] sm:$0xf]
          %v5726 = vld [vmem:[%s5718 + $0x1c] sm:$0xf]
          %v5727 = vld [vmem:[%s5718 + $0x20] sm:$0xf]
          %v5728 = vld [vmem:[%s5718 + $0x24] sm:$0xf]
          %v5729 = vld [vmem:[%s5718 + $0x28] sm:$0xf]
          %v5730 = vld [vmem:[%s5718 + $0x2c] sm:$0xf]
          %v5731 = vld [vmem:[%s5718 + $0x30] sm:$0xf]
          %v5732 = vld [vmem:[%s5718 + $0x34] sm:$0xf]
          %v5733 = vld [vmem:[%s5718 + $0x38] sm:$0xf]
          %v5734 = vld [vmem:[%s5718 + $0x3c] sm:$0xf]
          %v5735 = vld [vmem:[%s5718 + $0x40] sm:$0xf]
          %v5736 = vld [vmem:[%s5718 + $0x44] sm:$0xf]
          %v5737 = vld [vmem:[%s5718 + $0x48] sm:$0xf]
          %v5738 = vld [vmem:[%s5718 + $0x4c] sm:$0xf]
          %v5739 = vld [vmem:[%s5718 + $0x50] sm:$0xf]
          %v5740 = vld [vmem:[%s5718 + $0x54] sm:$0xf]
          %v5741 = vld [vmem:[%s5718 + $0x58] sm:$0xf]
          %v5742 = vld [vmem:[%s5718 + $0x5c] sm:$0xf]
          %v5743 = vld [vmem:[%s5718 + $0x60] sm:$0xf]
          %v5744 = vld [vmem:[%s5718 + $0x64] sm:$0xf]
          %v5745 = vld [vmem:[%s5718 + $0x68] sm:$0xf]
          %v5746 = vld [vmem:[%s5718 + $0x6c] sm:$0xf]
          %v5747 = vld [vmem:[%s5718 + $0x70] sm:$0xf]
          %v5748 = vld [vmem:[%s5718 + $0x74] sm:$0xf]
          %v5749 = vld [vmem:[%s5718 + $0x78] sm:$0xf]
          %v5750 = vld [vmem:[%s5718 + $0x7c] sm:$0xf]
          %v5783 = vunpack.c.l.b16 %v5719
          %v5784 = vunpack.c.l.b16 %v5720
          %v5785 = vunpack.c.l.b16 %v5721
          %v5786 = vunpack.c.l.b16 %v5722
          %v5787 = vunpack.c.l.b16 %v5723
          %v5788 = vunpack.c.l.b16 %v5724
          %v5789 = vunpack.c.l.b16 %v5725
          %v5790 = vunpack.c.l.b16 %v5726
          %v5791 = vunpack.c.l.b16 %v5727
          %v5792 = vunpack.c.l.b16 %v5728
          %v5793 = vunpack.c.l.b16 %v5729
          %v5794 = vunpack.c.l.b16 %v5730
          %v5795 = vunpack.c.l.b16 %v5731
          %v5796 = vunpack.c.l.b16 %v5732
          %v5797 = vunpack.c.l.b16 %v5733
          %v5798 = vunpack.c.l.b16 %v5734
          %v5799 = vunpack.c.l.b16 %v5735
          %v5800 = vunpack.c.l.b16 %v5736
          %v5801 = vunpack.c.l.b16 %v5737
          %v5802 = vunpack.c.l.b16 %v5738
          %v5803 = vunpack.c.l.b16 %v5739
          %v5804 = vunpack.c.l.b16 %v5740
          %v5805 = vunpack.c.l.b16 %v5741
          %v5806 = vunpack.c.l.b16 %v5742
          %v5807 = vunpack.c.l.b16 %v5743
          %v5808 = vunpack.c.l.b16 %v5744
          %v5809 = vunpack.c.l.b16 %v5745
          %v5810 = vunpack.c.l.b16 %v5746
          %v5811 = vunpack.c.l.b16 %v5747
          %v5812 = vunpack.c.l.b16 %v5748
          %v5813 = vunpack.c.l.b16 %v5749
          %v5814 = vunpack.c.l.b16 %v5750
          %v5815 = vpack.c.b16 %v5784, %v5783
          %v5816 = vpack.c.b16 %v5786, %v5785
          %v5817 = vpack.c.b16 %v5788, %v5787
          %v5818 = vpack.c.b16 %v5790, %v5789
          %v5819 = vpack.c.b16 %v5792, %v5791
          %v5820 = vpack.c.b16 %v5794, %v5793
          %v5821 = vpack.c.b16 %v5796, %v5795
          %v5822 = vpack.c.b16 %v5798, %v5797
          %v5823 = vpack.c.b16 %v5800, %v5799
          %v5824 = vpack.c.b16 %v5802, %v5801
          %v5825 = vpack.c.b16 %v5804, %v5803
          %v5826 = vpack.c.b16 %v5806, %v5805
          %v5827 = vpack.c.b16 %v5808, %v5807
          %v5828 = vpack.c.b16 %v5810, %v5809
          %v5829 = vpack.c.b16 %v5812, %v5811
          %v5830 = vpack.c.b16 %v5814, %v5813
          %5847 = vmatprep.subr.bf16.mxu0 0
          %5848 = vmatpush1.bf16.msra.mxu0 %v5815
          %5849 = vmatprep.subr.bf16.mxu0 0
          %5850 = vmatpush1.bf16.msra.mxu0 %v5816
          %5851 = vmatprep.subr.bf16.mxu0 0
          %5852 = vmatpush1.bf16.msra.mxu0 %v5817
          %5853 = vmatprep.subr.bf16.mxu0 0
          %5854 = vmatpush1.bf16.msra.mxu0 %v5818
          %5855 = vmatprep.subr.bf16.mxu0 0
          %5856 = vmatpush1.bf16.msra.mxu0 %v5819
          %5857 = vmatprep.subr.bf16.mxu0 0
          %5858 = vmatpush1.bf16.msra.mxu0 %v5820
          %5859 = vmatprep.subr.bf16.mxu0 0
          %5860 = vmatpush1.bf16.msra.mxu0 %v5821
          %5861 = vmatprep.subr.bf16.mxu0 0
          %5862 = vmatpush1.bf16.msra.mxu0 %v5822
          %5863 = vmatprep.subr.bf16.mxu0 0
          %5864 = vmatpush1.bf16.msra.mxu0 %v5823
          %5865 = vmatprep.subr.bf16.mxu0 0
          %5866 = vmatpush1.bf16.msra.mxu0 %v5824
          %5867 = vmatprep.subr.bf16.mxu0 0
          %5868 = vmatpush1.bf16.msra.mxu0 %v5825
          %5869 = vmatprep.subr.bf16.mxu0 0
          %5870 = vmatpush1.bf16.msra.mxu0 %v5826
          %5871 = vmatprep.subr.bf16.mxu0 0
          %5872 = vmatpush1.bf16.msra.mxu0 %v5827
          %5873 = vmatprep.subr.bf16.mxu0 0
          %5874 = vmatpush1.bf16.msra.mxu0 %v5828
          %5875 = vmatprep.subr.bf16.mxu0 0
          %5876 = vmatpush1.bf16.msra.mxu0 %v5829
          %5877 = vmatprep.subr.bf16.mxu0 0
          %5878 = vmatpush1.bf16.msra.mxu0 %v5830
          %5879 = vmatprep.mubr.bf16.mxu0 %v5703
          %5880 = vmatmul.mubr.bf16.gmra.mrb[0].mxu0 %v5702
          %v5881 = vpop.f32.mrb[0].mxu0
          %v5882 = vadd.f32 0.0, %v5881
          %v5883 = vpop.f32.mrb[0].mxu0
          %v5884 = vpop.f32.mrb[0].mxu0
          %v5885 = vadd.f32 0.0, %v5884
          %v5886 = vpop.f32.mrb[0].mxu0
          %5887 = vmatprep.mubr.bf16.mxu0 %v5705
          %5888 = vmatmul.mubr.bf16.gmra.mrb[0].mxu0 %v5704
          %v5889 = vpop.f32.mrb[0].mxu0
          %v5890 = vadd.f32 0.0, %v5889
          %v5891 = vpop.f32.mrb[0].mxu0
          %v5892 = vpop.f32.mrb[0].mxu0
          %v5893 = vadd.f32 0.0, %v5892
          %v5894 = vpop.f32.mrb[0].mxu0
          %5895 = vmatprep.mubr.bf16.mxu0 %v5707
          %5896 = vmatmul.mubr.bf16.gmra.mrb[0].mxu0 %v5706
          %v5897 = vpop.f32.mrb[0].mxu0
          %v5898 = vadd.f32 0.0, %v5897
          %v5899 = vpop.f32.mrb[0].mxu0
          %v5900 = vpop.f32.mrb[0].mxu0
          %v5901 = vadd.f32 0.0, %v5900
          %v5902 = vpop.f32.mrb[0].mxu0
          %5903 = vmatprep.mubr.bf16.mxu0 %v5709
          %5904 = vmatmul.mubr.bf16.gmra.mrb[0].mxu0 %v5708
          %v5905 = vpop.f32.mrb[0].mxu0
          %v5906 = vadd.f32 0.0, %v5905
          %v5907 = vpop.f32.mrb[0].mxu0
          %v5908 = vpop.f32.mrb[0].mxu0
          %v5909 = vadd.f32 0.0, %v5908
          %v5910 = vpop.f32.mrb[0].mxu0
          %5911 = vmatprep.mubr.bf16.mxu0 %v5711
          %5912 = vmatmul.mubr.bf16.gmra.mrb[0].mxu0 %v5710
          %v5913 = vpop.f32.mrb[0].mxu0
          %v5914 = vadd.f32 0.0, %v5913
          %v5915 = vpop.f32.mrb[0].mxu0
          %v5916 = vpop.f32.mrb[0].mxu0
          %v5917 = vadd.f32 0.0, %v5916
          %v5918 = vpop.f32.mrb[0].mxu0
          %5919 = vmatprep.mubr.bf16.mxu0 %v5713
          %5920 = vmatmul.mubr.bf16.gmra.mrb[0].mxu0 %v5712
          %v5921 = vpop.f32.mrb[0].mxu0
          %v5922 = vadd.f32 0.0, %v5921
          %v5923 = vpop.f32.mrb[0].mxu0
          %v5924 = vpop.f32.mrb[0].mxu0
          %v5925 = vadd.f32 0.0, %v5924
          %v5926 = vpop.f32.mrb[0].mxu0
          %5927 = vmatprep.mubr.bf16.mxu0 %v5715
          %5928 = vmatmul.mubr.bf16.gmra.mrb[0].mxu0 %v5714
          %v5929 = vpop.f32.mrb[0].mxu0
          %v5930 = vadd.f32 0.0, %v5929
          %v5931 = vpop.f32.mrb[0].mxu0
          %v5932 = vpop.f32.mrb[0].mxu0
          %v5933 = vadd.f32 0.0, %v5932
          %v5934 = vpop.f32.mrb[0].mxu0
          %5935 = vmatprep.mubr.bf16.mxu0 %v5717
          %5936 = vmatmul.mubr.bf16.gmra.mrb[0].mxu0 %v5716
          %v5937 = vpop.f32.mrb[0].mxu0
          %v5938 = vadd.f32 0.0, %v5937
          %v5939 = vpop.f32.mrb[0].mxu0
          %v5940 = vpop.f32.mrb[0].mxu0
          %v5941 = vadd.f32 0.0, %v5940
          %v5942 = vpop.f32.mrb[0].mxu0
          %5943 = vdwg.mxu0
          %v5944 = vadd.f32 %v5654, %v5882
          %v5945 = vadd.f32 %v5655, %v5885
          %v5946 = vadd.f32 %v5656, %v5890
          %v5947 = vadd.f32 %v5657, %v5893
          %v5948 = vadd.f32 %v5658, %v5898
          %v5949 = vadd.f32 %v5659, %v5901
          %v5950 = vadd.f32 %v5660, %v5906
          %v5951 = vadd.f32 %v5661, %v5909
          %v5952 = vadd.f32 %v5662, %v5914
          %v5953 = vadd.f32 %v5663, %v5917
          %v5954 = vadd.f32 %v5664, %v5922
          %v5955 = vadd.f32 %v5665, %v5925
          %v5956 = vadd.f32 %v5666, %v5930
          %v5957 = vadd.f32 %v5667, %v5933
          %v5958 = vadd.f32 %v5668, %v5938
          %v5959 = vadd.f32 %v5669, %v5941
          %v5960 = vld [vmem:[#allocation2 + $0x29] sm:$0xff]
          %v5961 = vld [vmem:[#allocation2 + $0x31] sm:$0xff]
          %v5962 = vld [vmem:[#allocation2 + $0x39] sm:$0xff]
          %v5963 = vld [vmem:[#allocation2 + $0x41] sm:$0xff]
          %v5964 = vld [vmem:[#allocation2 + $0x49] sm:$0xff]
          %v5965 = vld [vmem:[#allocation2 + $0x51] sm:$0xff]
          %v5966 = vld [vmem:[#allocation2 + $0x59] sm:$0xff]
          %v5967 = vld [vmem:[#allocation2 + $0x61] sm:$0xff]
          %v5968 = vld [vmem:[#allocation2 + $0xa9] sm:$0xff]
          %v5969 = vld [vmem:[#allocation2 + $0xb1] sm:$0xff]
          %v5970 = vld [vmem:[#allocation2 + $0xb9] sm:$0xff]
          %v5971 = vld [vmem:[#allocation2 + $0xc1] sm:$0xff]
          %v5972 = vld [vmem:[#allocation2 + $0xc9] sm:$0xff]
          %v5973 = vld [vmem:[#allocation2 + $0xd1] sm:$0xff]
          %v5974 = vld [vmem:[#allocation2 + $0xd9] sm:$0xff]
          %v5975 = vld [vmem:[#allocation2 + $0xe1] sm:$0xff]
          %v5976 = vld [vmem:[#allocation2 + $0x2a] sm:$0xff]
          %v5977 = vld [vmem:[#allocation2 + $0x32] sm:$0xff]
          %v5978 = vld [vmem:[#allocation2 + $0x3a] sm:$0xff]
          %v5979 = vld [vmem:[#allocation2 + $0x42] sm:$0xff]
          %v5980 = vld [vmem:[#allocation2 + $0x4a] sm:$0xff]
          %v5981 = vld [vmem:[#allocation2 + $0x52] sm:$0xff]
          %v5982 = vld [vmem:[#allocation2 + $0x5a] sm:$0xff]
          %v5983 = vld [vmem:[#allocation2 + $0x62] sm:$0xff]
          %v5984 = vld [vmem:[#allocation2 + $0xaa] sm:$0xff]
          %v5985 = vld [vmem:[#allocation2 + $0xb2] sm:$0xff]
          %v5986 = vld [vmem:[#allocation2 + $0xba] sm:$0xff]
          %v5987 = vld [vmem:[#allocation2 + $0xc2] sm:$0xff]
          %v5988 = vld [vmem:[#allocation2 + $0xca] sm:$0xff]
          %v5989 = vld [vmem:[#allocation2 + $0xd2] sm:$0xff]
          %v5990 = vld [vmem:[#allocation2 + $0xda] sm:$0xff]
          %v5991 = vld [vmem:[#allocation2 + $0xe2] sm:$0xff]
          %v5992 = vpack.c.bf16 %v5961, %v5960
          %v5993 = vpack.c.bf16 %v5977, %v5976
          %v5994 = vpack.c.bf16 %v5963, %v5962
          %v5995 = vpack.c.bf16 %v5979, %v5978
          %v5996 = vpack.c.bf16 %v5965, %v5964
          %v5997 = vpack.c.bf16 %v5981, %v5980
          %v5998 = vpack.c.bf16 %v5967, %v5966
          %v5999 = vpack.c.bf16 %v5983, %v5982
          %v6000 = vpack.c.bf16 %v5969, %v5968
          %v6001 = vpack.c.bf16 %v5985, %v5984
          %v6002 = vpack.c.bf16 %v5971, %v5970
          %v6003 = vpack.c.bf16 %v5987, %v5986
          %v6004 = vpack.c.bf16 %v5973, %v5972
          %v6005 = vpack.c.bf16 %v5989, %v5988
          %v6006 = vpack.c.bf16 %v5975, %v5974
          %v6007 = vpack.c.bf16 %v5991, %v5990
          %s6008 = scalar_lea.vmem [#allocation11], 2176
          %v6009 = vld [vmem:[%s6008] sm:$0xf]
          %v6010 = vld [vmem:[%s6008 + $0x4] sm:$0xf]
          %v6011 = vld [vmem:[%s6008 + $0x8] sm:$0xf]
          %v6012 = vld [vmem:[%s6008 + $0xc] sm:$0xf]
          %v6013 = vld [vmem:[%s6008 + $0x10] sm:$0xf]
          %v6014 = vld [vmem:[%s6008 + $0x14] sm:$0xf]
          %v6015 = vld [vmem:[%s6008 + $0x18] sm:$0xf]
          %v6016 = vld [vmem:[%s6008 + $0x1c] sm:$0xf]
          %v6017 = vld [vmem:[%s6008 + $0x20] sm:$0xf]
          %v6018 = vld [vmem:[%s6008 + $0x24] sm:$0xf]
          %v6019 = vld [vmem:[%s6008 + $0x28] sm:$0xf]
          %v6020 = vld [vmem:[%s6008 + $0x2c] sm:$0xf]
          %v6021 = vld [vmem:[%s6008 + $0x30] sm:$0xf]
          %v6022 = vld [vmem:[%s6008 + $0x34] sm:$0xf]
          %v6023 = vld [vmem:[%s6008 + $0x38] sm:$0xf]
          %v6024 = vld [vmem:[%s6008 + $0x3c] sm:$0xf]
          %v6025 = vld [vmem:[%s6008 + $0x40] sm:$0xf]
          %v6026 = vld [vmem:[%s6008 + $0x44] sm:$0xf]
          %v6027 = vld [vmem:[%s6008 + $0x48] sm:$0xf]
          %v6028 = vld [vmem:[%s6008 + $0x4c] sm:$0xf]
          %v6029 = vld [vmem:[%s6008 + $0x50] sm:$0xf]
          %v6030 = vld [vmem:[%s6008 + $0x54] sm:$0xf]
          %v6031 = vld [vmem:[%s6008 + $0x58] sm:$0xf]
          %v6032 = vld [vmem:[%s6008 + $0x5c] sm:$0xf]
          %v6033 = vld [vmem:[%s6008 + $0x60] sm:$0xf]
          %v6034 = vld [vmem:[%s6008 + $0x64] sm:$0xf]
          %v6035 = vld [vmem:[%s6008 + $0x68] sm:$0xf]
          %v6036 = vld [vmem:[%s6008 + $0x6c] sm:$0xf]
          %v6037 = vld [vmem:[%s6008 + $0x70] sm:$0xf]
          %v6038 = vld [vmem:[%s6008 + $0x74] sm:$0xf]
          %v6039 = vld [vmem:[%s6008 + $0x78] sm:$0xf]
          %v6040 = vld [vmem:[%s6008 + $0x7c] sm:$0xf]
          %v6073 = vunpack.c.l.b16 %v6009
          %v6074 = vunpack.c.l.b16 %v6010
          %v6075 = vunpack.c.l.b16 %v6011
          %v6076 = vunpack.c.l.b16 %v6012
          %v6077 = vunpack.c.l.b16 %v6013
          %v6078 = vunpack.c.l.b16 %v6014
          %v6079 = vunpack.c.l.b16 %v6015
          %v6080 = vunpack.c.l.b16 %v6016
          %v6081 = vunpack.c.l.b16 %v6017
          %v6082 = vunpack.c.l.b16 %v6018
          %v6083 = vunpack.c.l.b16 %v6019
          %v6084 = vunpack.c.l.b16 %v6020
          %v6085 = vunpack.c.l.b16 %v6021
          %v6086 = vunpack.c.l.b16 %v6022
          %v6087 = vunpack.c.l.b16 %v6023
          %v6088 = vunpack.c.l.b16 %v6024
          %v6089 = vunpack.c.l.b16 %v6025
          %v6090 = vunpack.c.l.b16 %v6026
          %v6091 = vunpack.c.l.b16 %v6027
          %v6092 = vunpack.c.l.b16 %v6028
          %v6093 = vunpack.c.l.b16 %v6029
          %v6094 = vunpack.c.l.b16 %v6030
          %v6095 = vunpack.c.l.b16 %v6031
          %v6096 = vunpack.c.l.b16 %v6032
          %v6097 = vunpack.c.l.b16 %v6033
          %v6098 = vunpack.c.l.b16 %v6034
          %v6099 = vunpack.c.l.b16 %v6035
          %v6100 = vunpack.c.l.b16 %v6036
          %v6101 = vunpack.c.l.b16 %v6037
          %v6102 = vunpack.c.l.b16 %v6038
          %v6103 = vunpack.c.l.b16 %v6039
          %v6104 = vunpack.c.l.b16 %v6040
          %v6105 = vpack.c.b16 %v6074, %v6073
          %v6106 = vpack.c.b16 %v6076, %v6075
          %v6107 = vpack.c.b16 %v6078, %v6077
          %v6108 = vpack.c.b16 %v6080, %v6079
          %v6109 = vpack.c.b16 %v6082, %v6081
          %v6110 = vpack.c.b16 %v6084, %v6083
          %v6111 = vpack.c.b16 %v6086, %v6085
          %v6112 = vpack.c.b16 %v6088, %v6087
          %v6113 = vpack.c.b16 %v6090, %v6089
          %v6114 = vpack.c.b16 %v6092, %v6091
          %v6115 = vpack.c.b16 %v6094, %v6093
          %v6116 = vpack.c.b16 %v6096, %v6095
          %v6117 = vpack.c.b16 %v6098, %v6097
          %v6118 = vpack.c.b16 %v6100, %v6099
          %v6119 = vpack.c.b16 %v6102, %v6101
          %v6120 = vpack.c.b16 %v6104, %v6103
          %6137 = vmatprep.subr.bf16.mxu0 0
          %6138 = vmatpush1.bf16.msra.mxu0 %v6105
          %6139 = vmatprep.subr.bf16.mxu0 0
          %6140 = vmatpush1.bf16.msra.mxu0 %v6106
          %6141 = vmatprep.subr.bf16.mxu0 0
          %6142 = vmatpush1.bf16.msra.mxu0 %v6107
          %6143 = vmatprep.subr.bf16.mxu0 0
          %6144 = vmatpush1.bf16.msra.mxu0 %v6108
          %6145 = vmatprep.subr.bf16.mxu0 0
          %6146 = vmatpush1.bf16.msra.mxu0 %v6109
          %6147 = vmatprep.subr.bf16.mxu0 0
          %6148 = vmatpush1.bf16.msra.mxu0 %v6110
          %6149 = vmatprep.subr.bf16.mxu0 0
          %6150 = vmatpush1.bf16.msra.mxu0 %v6111
          %6151 = vmatprep.subr.bf16.mxu0 0
          %6152 = vmatpush1.bf16.msra.mxu0 %v6112
          %6153 = vmatprep.subr.bf16.mxu0 0
          %6154 = vmatpush1.bf16.msra.mxu0 %v6113
          %6155 = vmatprep.subr.bf16.mxu0 0
          %6156 = vmatpush1.bf16.msra.mxu0 %v6114
          %6157 = vmatprep.subr.bf16.mxu0 0
          %6158 = vmatpush1.bf16.msra.mxu0 %v6115
          %6159 = vmatprep.subr.bf16.mxu0 0
          %6160 = vmatpush1.bf16.msra.mxu0 %v6116
          %6161 = vmatprep.subr.bf16.mxu0 0
          %6162 = vmatpush1.bf16.msra.mxu0 %v6117
          %6163 = vmatprep.subr.bf16.mxu0 0
          %6164 = vmatpush1.bf16.msra.mxu0 %v6118
          %6165 = vmatprep.subr.bf16.mxu0 0
          %6166 = vmatpush1.bf16.msra.mxu0 %v6119
          %6167 = vmatprep.subr.bf16.mxu0 0
          %6168 = vmatpush1.bf16.msra.mxu0 %v6120
          %6169 = vmatprep.mubr.bf16.mxu0 %v5993
          %6170 = vmatmul.mubr.bf16.gmra.mrb[0].mxu0 %v5992
          %v6171 = vpop.f32.mrb[0].mxu0
          %v6172 = vadd.f32 0.0, %v6171
          %v6173 = vpop.f32.mrb[0].mxu0
          %v6174 = vpop.f32.mrb[0].mxu0
          %v6175 = vadd.f32 0.0, %v6174
          %v6176 = vpop.f32.mrb[0].mxu0
          %6177 = vmatprep.mubr.bf16.mxu0 %v5995
          %6178 = vmatmul.mubr.bf16.gmra.mrb[0].mxu0 %v5994
          %v6179 = vpop.f32.mrb[0].mxu0
          %v6180 = vadd.f32 0.0, %v6179
          %v6181 = vpop.f32.mrb[0].mxu0
          %v6182 = vpop.f32.mrb[0].mxu0
          %v6183 = vadd.f32 0.0, %v6182
          %v6184 = vpop.f32.mrb[0].mxu0
          %6185 = vmatprep.mubr.bf16.mxu0 %v5997
          %6186 = vmatmul.mubr.bf16.gmra.mrb[0].mxu0 %v5996
          %v6187 = vpop.f32.mrb[0].mxu0
          %v6188 = vadd.f32 0.0, %v6187
          %v6189 = vpop.f32.mrb[0].mxu0
          %v6190 = vpop.f32.mrb[0].mxu0
          %v6191 = vadd.f32 0.0, %v6190
          %v6192 = vpop.f32.mrb[0].mxu0
          %6193 = vmatprep.mubr.bf16.mxu0 %v5999
          %6194 = vmatmul.mubr.bf16.gmra.mrb[0].mxu0 %v5998
          %v6195 = vpop.f32.mrb[0].mxu0
          %v6196 = vadd.f32 0.0, %v6195
          %v6197 = vpop.f32.mrb[0].mxu0
          %v6198 = vpop.f32.mrb[0].mxu0
          %v6199 = vadd.f32 0.0, %v6198
          %v6200 = vpop.f32.mrb[0].mxu0
          %6201 = vmatprep.mubr.bf16.mxu0 %v6001
          %6202 = vmatmul.mubr.bf16.gmra.mrb[0].mxu0 %v6000
          %v6203 = vpop.f32.mrb[0].mxu0
          %v6204 = vadd.f32 0.0, %v6203
          %v6205 = vpop.f32.mrb[0].mxu0
          %v6206 = vpop.f32.mrb[0].mxu0
          %v6207 = vadd.f32 0.0, %v6206
          %v6208 = vpop.f32.mrb[0].mxu0
          %6209 = vmatprep.mubr.bf16.mxu0 %v6003
          %6210 = vmatmul.mubr.bf16.gmra.mrb[0].mxu0 %v6002
          %v6211 = vpop.f32.mrb[0].mxu0
          %v6212 = vadd.f32 0.0, %v6211
          %v6213 = vpop.f32.mrb[0].mxu0
          %v6214 = vpop.f32.mrb[0].mxu0
          %v6215 = vadd.f32 0.0, %v6214
          %v6216 = vpop.f32.mrb[0].mxu0
          %6217 = vmatprep.mubr.bf16.mxu0 %v6005
          %6218 = vmatmul.mubr.bf16.gmra.mrb[0].mxu0 %v6004
          %v6219 = vpop.f32.mrb[0].mxu0
          %v6220 = vadd.f32 0.0, %v6219
          %v6221 = vpop.f32.mrb[0].mxu0
          %v6222 = vpop.f32.mrb[0].mxu0
          %v6223 = vadd.f32 0.0, %v6222
          %v6224 = vpop.f32.mrb[0].mxu0
          %6225 = vmatprep.mubr.bf16.mxu0 %v6007
          %6226 = vmatmul.mubr.bf16.gmra.mrb[0].mxu0 %v6006
          %v6227 = vpop.f32.mrb[0].mxu0
          %v6228 = vadd.f32 0.0, %v6227
          %v6229 = vpop.f32.mrb[0].mxu0
          %v6230 = vpop.f32.mrb[0].mxu0
          %v6231 = vadd.f32 0.0, %v6230
          %v6232 = vpop.f32.mrb[0].mxu0
          %6233 = vdwg.mxu0
          %v6234 = vadd.f32 %v5944, %v6172
          %v6235 = vadd.f32 %v5945, %v6175
          %v6236 = vadd.f32 %v5946, %v6180
          %v6237 = vadd.f32 %v5947, %v6183
          %v6238 = vadd.f32 %v5948, %v6188
          %v6239 = vadd.f32 %v5949, %v6191
          %v6240 = vadd.f32 %v5950, %v6196
          %v6241 = vadd.f32 %v5951, %v6199
          %v6242 = vadd.f32 %v5952, %v6204
          %v6243 = vadd.f32 %v5953, %v6207
          %v6244 = vadd.f32 %v5954, %v6212
          %v6245 = vadd.f32 %v5955, %v6215
          %v6246 = vadd.f32 %v5956, %v6220
          %v6247 = vadd.f32 %v5957, %v6223
          %v6248 = vadd.f32 %v5958, %v6228
          %v6249 = vadd.f32 %v5959, %v6231
          %v6250 = vld [vmem:[#allocation2 + $0x2b] sm:$0xff]
          %v6251 = vld [vmem:[#allocation2 + $0x33] sm:$0xff]
          %v6252 = vld [vmem:[#allocation2 + $0x3b] sm:$0xff]
          %v6253 = vld [vmem:[#allocation2 + $0x43] sm:$0xff]
          %v6254 = vld [vmem:[#allocation2 + $0x4b] sm:$0xff]
          %v6255 = vld [vmem:[#allocation2 + $0x53] sm:$0xff]
          %v6256 = vld [vmem:[#allocation2 + $0x5b] sm:$0xff]
          %v6257 = vld [vmem:[#allocation2 + $0x63] sm:$0xff]
          %v6258 = vld [vmem:[#allocation2 + $0xab] sm:$0xff]
          %v6259 = vld [vmem:[#allocation2 + $0xb3] sm:$0xff]
          %v6260 = vld [vmem:[#allocation2 + $0xbb] sm:$0xff]
          %v6261 = vld [vmem:[#allocation2 + $0xc3] sm:$0xff]
          %v6262 = vld [vmem:[#allocation2 + $0xcb] sm:$0xff]
          %v6263 = vld [vmem:[#allocation2 + $0xd3] sm:$0xff]
          %v6264 = vld [vmem:[#allocation2 + $0xdb] sm:$0xff]
          %v6265 = vld [vmem:[#allocation2 + $0xe3] sm:$0xff]
          %v6266 = vld [vmem:[#allocation2 + $0x2c] sm:$0xff]
          %v6267 = vld [vmem:[#allocation2 + $0x34] sm:$0xff]
          %v6268 = vld [vmem:[#allocation2 + $0x3c] sm:$0xff]
          %v6269 = vld [vmem:[#allocation2 + $0x44] sm:$0xff]
          %v6270 = vld [vmem:[#allocation2 + $0x4c] sm:$0xff]
          %v6271 = vld [vmem:[#allocation2 + $0x54] sm:$0xff]
          %v6272 = vld [vmem:[#allocation2 + $0x5c] sm:$0xff]
          %v6273 = vld [vmem:[#allocation2 + $0x64] sm:$0xff]
          %v6274 = vld [vmem:[#allocation2 + $0xac] sm:$0xff]
          %v6275 = vld [vmem:[#allocation2 + $0xb4] sm:$0xff]
          %v6276 = vld [vmem:[#allocation2 + $0xbc] sm:$0xff]
          %v6277 = vld [vmem:[#allocation2 + $0xc4] sm:$0xff]
          %v6278 = vld [vmem:[#allocation2 + $0xcc] sm:$0xff]
          %v6279 = vld [vmem:[#allocation2 + $0xd4] sm:$0xff]
          %v6280 = vld [vmem:[#allocation2 + $0xdc] sm:$0xff]
          %v6281 = vld [vmem:[#allocation2 + $0xe4] sm:$0xff]
          %v6282 = vpack.c.bf16 %v6251, %v6250
          %v6283 = vpack.c.bf16 %v6267, %v6266
          %v6284 = vpack.c.bf16 %v6253, %v6252
          %v6285 = vpack.c.bf16 %v6269, %v6268
          %v6286 = vpack.c.bf16 %v6255, %v6254
          %v6287 = vpack.c.bf16 %v6271, %v6270
          %v6288 = vpack.c.bf16 %v6257, %v6256
          %v6289 = vpack.c.bf16 %v6273, %v6272
          %v6290 = vpack.c.bf16 %v6259, %v6258
          %v6291 = vpack.c.bf16 %v6275, %v6274
          %v6292 = vpack.c.bf16 %v6261, %v6260
          %v6293 = vpack.c.bf16 %v6277, %v6276
          %v6294 = vpack.c.bf16 %v6263, %v6262
          %v6295 = vpack.c.bf16 %v6279, %v6278
          %v6296 = vpack.c.bf16 %v6265, %v6264
          %v6297 = vpack.c.bf16 %v6281, %v6280
          %s6298 = scalar_lea.vmem [#allocation11], 2304
          %v6299 = vld [vmem:[%s6298] sm:$0xf]
          %v6300 = vld [vmem:[%s6298 + $0x4] sm:$0xf]
          %v6301 = vld [vmem:[%s6298 + $0x8] sm:$0xf]
          %v6302 = vld [vmem:[%s6298 + $0xc] sm:$0xf]
          %v6303 = vld [vmem:[%s6298 + $0x10] sm:$0xf]
          %v6304 = vld [vmem:[%s6298 + $0x14] sm:$0xf]
          %v6305 = vld [vmem:[%s6298 + $0x18] sm:$0xf]
          %v6306 = vld [vmem:[%s6298 + $0x1c] sm:$0xf]
          %v6307 = vld [vmem:[%s6298 + $0x20] sm:$0xf]
          %v6308 = vld [vmem:[%s6298 + $0x24] sm:$0xf]
          %v6309 = vld [vmem:[%s6298 + $0x28] sm:$0xf]
          %v6310 = vld [vmem:[%s6298 + $0x2c] sm:$0xf]
          %v6311 = vld [vmem:[%s6298 + $0x30] sm:$0xf]
          %v6312 = vld [vmem:[%s6298 + $0x34] sm:$0xf]
          %v6313 = vld [vmem:[%s6298 + $0x38] sm:$0xf]
          %v6314 = vld [vmem:[%s6298 + $0x3c] sm:$0xf]
          %v6315 = vld [vmem:[%s6298 + $0x40] sm:$0xf]
          %v6316 = vld [vmem:[%s6298 + $0x44] sm:$0xf]
          %v6317 = vld [vmem:[%s6298 + $0x48] sm:$0xf]
          %v6318 = vld [vmem:[%s6298 + $0x4c] sm:$0xf]
          %v6319 = vld [vmem:[%s6298 + $0x50] sm:$0xf]
          %v6320 = vld [vmem:[%s6298 + $0x54] sm:$0xf]
          %v6321 = vld [vmem:[%s6298 + $0x58] sm:$0xf]
          %v6322 = vld [vmem:[%s6298 + $0x5c] sm:$0xf]
          %v6323 = vld [vmem:[%s6298 + $0x60] sm:$0xf]
          %v6324 = vld [vmem:[%s6298 + $0x64] sm:$0xf]
          %v6325 = vld [vmem:[%s6298 + $0x68] sm:$0xf]
          %v6326 = vld [vmem:[%s6298 + $0x6c] sm:$0xf]
          %v6327 = vld [vmem:[%s6298 + $0x70] sm:$0xf]
          %v6328 = vld [vmem:[%s6298 + $0x74] sm:$0xf]
          %v6329 = vld [vmem:[%s6298 + $0x78] sm:$0xf]
          %v6330 = vld [vmem:[%s6298 + $0x7c] sm:$0xf]
          %v6363 = vunpack.c.l.b16 %v6299
          %v6364 = vunpack.c.l.b16 %v6300
          %v6365 = vunpack.c.l.b16 %v6301
          %v6366 = vunpack.c.l.b16 %v6302
          %v6367 = vunpack.c.l.b16 %v6303
          %v6368 = vunpack.c.l.b16 %v6304
          %v6369 = vunpack.c.l.b16 %v6305
          %v6370 = vunpack.c.l.b16 %v6306
          %v6371 = vunpack.c.l.b16 %v6307
          %v6372 = vunpack.c.l.b16 %v6308
          %v6373 = vunpack.c.l.b16 %v6309
          %v6374 = vunpack.c.l.b16 %v6310
          %v6375 = vunpack.c.l.b16 %v6311
          %v6376 = vunpack.c.l.b16 %v6312
          %v6377 = vunpack.c.l.b16 %v6313
          %v6378 = vunpack.c.l.b16 %v6314
          %v6379 = vunpack.c.l.b16 %v6315
          %v6380 = vunpack.c.l.b16 %v6316
          %v6381 = vunpack.c.l.b16 %v6317
          %v6382 = vunpack.c.l.b16 %v6318
          %v6383 = vunpack.c.l.b16 %v6319
          %v6384 = vunpack.c.l.b16 %v6320
          %v6385 = vunpack.c.l.b16 %v6321
          %v6386 = vunpack.c.l.b16 %v6322
          %v6387 = vunpack.c.l.b16 %v6323
          %v6388 = vunpack.c.l.b16 %v6324
          %v6389 = vunpack.c.l.b16 %v6325
          %v6390 = vunpack.c.l.b16 %v6326
          %v6391 = vunpack.c.l.b16 %v6327
          %v6392 = vunpack.c.l.b16 %v6328
          %v6393 = vunpack.c.l.b16 %v6329
          %v6394 = vunpack.c.l.b16 %v6330
          %v6395 = vpack.c.b16 %v6364, %v6363
          %v6396 = vpack.c.b16 %v6366, %v6365
          %v6397 = vpack.c.b16 %v6368, %v6367
          %v6398 = vpack.c.b16 %v6370, %v6369
          %v6399 = vpack.c.b16 %v6372, %v6371
          %v6400 = vpack.c.b16 %v6374, %v6373
          %v6401 = vpack.c.b16 %v6376, %v6375
          %v6402 = vpack.c.b16 %v6378, %v6377
          %v6403 = vpack.c.b16 %v6380, %v6379
          %v6404 = vpack.c.b16 %v6382, %v6381
          %v6405 = vpack.c.b16 %v6384, %v6383
          %v6406 = vpack.c.b16 %v6386, %v6385
          %v6407 = vpack.c.b16 %v6388, %v6387
          %v6408 = vpack.c.b16 %v6390, %v6389
          %v6409 = vpack.c.b16 %v6392, %v6391
          %v6410 = vpack.c.b16 %v6394, %v6393
          %6427 = vmatprep.subr.bf16.mxu0 0
          %6428 = vmatpush1.bf16.msra.mxu0 %v6395
          %6429 = vmatprep.subr.bf16.mxu0 0
          %6430 = vmatpush1.bf16.msra.mxu0 %v6396
          %6431 = vmatprep.subr.bf16.mxu0 0
          %6432 = vmatpush1.bf16.msra.mxu0 %v6397
          %6433 = vmatprep.subr.bf16.mxu0 0
          %6434 = vmatpush1.bf16.msra.mxu0 %v6398
          %6435 = vmatprep.subr.bf16.mxu0 0
          %6436 = vmatpush1.bf16.msra.mxu0 %v6399
          %6437 = vmatprep.subr.bf16.mxu0 0
          %6438 = vmatpush1.bf16.msra.mxu0 %v6400
          %6439 = vmatprep.subr.bf16.mxu0 0
          %6440 = vmatpush1.bf16.msra.mxu0 %v6401
          %6441 = vmatprep.subr.bf16.mxu0 0
          %6442 = vmatpush1.bf16.msra.mxu0 %v6402
          %6443 = vmatprep.subr.bf16.mxu0 0
          %6444 = vmatpush1.bf16.msra.mxu0 %v6403
          %6445 = vmatprep.subr.bf16.mxu0 0
          %6446 = vmatpush1.bf16.msra.mxu0 %v6404
          %6447 = vmatprep.subr.bf16.mxu0 0
          %6448 = vmatpush1.bf16.msra.mxu0 %v6405
          %6449 = vmatprep.subr.bf16.mxu0 0
          %6450 = vmatpush1.bf16.msra.mxu0 %v6406
          %6451 = vmatprep.subr.bf16.mxu0 0
          %6452 = vmatpush1.bf16.msra.mxu0 %v6407
          %6453 = vmatprep.subr.bf16.mxu0 0
          %6454 = vmatpush1.bf16.msra.mxu0 %v6408
          %6455 = vmatprep.subr.bf16.mxu0 0
          %6456 = vmatpush1.bf16.msra.mxu0 %v6409
          %6457 = vmatprep.subr.bf16.mxu0 0
          %6458 = vmatpush1.bf16.msra.mxu0 %v6410
          %6459 = vmatprep.mubr.bf16.mxu0 %v6283
          %6460 = vmatmul.mubr.bf16.gmra.mrb[0].mxu0 %v6282
          %v6461 = vpop.f32.mrb[0].mxu0
          %v6462 = vadd.f32 0.0, %v6461
          %v6463 = vpop.f32.mrb[0].mxu0
          %v6464 = vpop.f32.mrb[0].mxu0
          %v6465 = vadd.f32 0.0, %v6464
          %v6466 = vpop.f32.mrb[0].mxu0
          %6467 = vmatprep.mubr.bf16.mxu0 %v6285
          %6468 = vmatmul.mubr.bf16.gmra.mrb[0].mxu0 %v6284
          %v6469 = vpop.f32.mrb[0].mxu0
          %v6470 = vadd.f32 0.0, %v6469
          %v6471 = vpop.f32.mrb[0].mxu0
          %v6472 = vpop.f32.mrb[0].mxu0
          %v6473 = vadd.f32 0.0, %v6472
          %v6474 = vpop.f32.mrb[0].mxu0
          %6475 = vmatprep.mubr.bf16.mxu0 %v6287
          %6476 = vmatmul.mubr.bf16.gmra.mrb[0].mxu0 %v6286
          %v6477 = vpop.f32.mrb[0].mxu0
          %v6478 = vadd.f32 0.0, %v6477
          %v6479 = vpop.f32.mrb[0].mxu0
          %v6480 = vpop.f32.mrb[0].mxu0
          %v6481 = vadd.f32 0.0, %v6480
          %v6482 = vpop.f32.mrb[0].mxu0
          %6483 = vmatprep.mubr.bf16.mxu0 %v6289
          %6484 = vmatmul.mubr.bf16.gmra.mrb[0].mxu0 %v6288
          %v6485 = vpop.f32.mrb[0].mxu0
          %v6486 = vadd.f32 0.0, %v6485
          %v6487 = vpop.f32.mrb[0].mxu0
          %v6488 = vpop.f32.mrb[0].mxu0
          %v6489 = vadd.f32 0.0, %v6488
          %v6490 = vpop.f32.mrb[0].mxu0
          %6491 = vmatprep.mubr.bf16.mxu0 %v6291
          %6492 = vmatmul.mubr.bf16.gmra.mrb[0].mxu0 %v6290
          %v6493 = vpop.f32.mrb[0].mxu0
          %v6494 = vadd.f32 0.0, %v6493
          %v6495 = vpop.f32.mrb[0].mxu0
          %v6496 = vpop.f32.mrb[0].mxu0
          %v6497 = vadd.f32 0.0, %v6496
          %v6498 = vpop.f32.mrb[0].mxu0
          %6499 = vmatprep.mubr.bf16.mxu0 %v6293
          %6500 = vmatmul.mubr.bf16.gmra.mrb[0].mxu0 %v6292
          %v6501 = vpop.f32.mrb[0].mxu0
          %v6502 = vadd.f32 0.0, %v6501
          %v6503 = vpop.f32.mrb[0].mxu0
          %v6504 = vpop.f32.mrb[0].mxu0
          %v6505 = vadd.f32 0.0, %v6504
          %v6506 = vpop.f32.mrb[0].mxu0
          %6507 = vmatprep.mubr.bf16.mxu0 %v6295
          %6508 = vmatmul.mubr.bf16.gmra.mrb[0].mxu0 %v6294
          %v6509 = vpop.f32.mrb[0].mxu0
          %v6510 = vadd.f32 0.0, %v6509
          %v6511 = vpop.f32.mrb[0].mxu0
          %v6512 = vpop.f32.mrb[0].mxu0
          %v6513 = vadd.f32 0.0, %v6512
          %v6514 = vpop.f32.mrb[0].mxu0
          %6515 = vmatprep.mubr.bf16.mxu0 %v6297
          %6516 = vmatmul.mubr.bf16.gmra.mrb[0].mxu0 %v6296
          %v6517 = vpop.f32.mrb[0].mxu0
          %v6518 = vadd.f32 0.0, %v6517
          %v6519 = vpop.f32.mrb[0].mxu0
          %v6520 = vpop.f32.mrb[0].mxu0
          %v6521 = vadd.f32 0.0, %v6520
          %v6522 = vpop.f32.mrb[0].mxu0
          %6523 = vdwg.mxu0
          %v6524 = vadd.f32 %v6234, %v6462
          %v6525 = vadd.f32 %v6235, %v6465
          %v6526 = vadd.f32 %v6236, %v6470
          %v6527 = vadd.f32 %v6237, %v6473
          %v6528 = vadd.f32 %v6238, %v6478
          %v6529 = vadd.f32 %v6239, %v6481
          %v6530 = vadd.f32 %v6240, %v6486
          %v6531 = vadd.f32 %v6241, %v6489
          %v6532 = vadd.f32 %v6242, %v6494
          %v6533 = vadd.f32 %v6243, %v6497
          %v6534 = vadd.f32 %v6244, %v6502
          %v6535 = vadd.f32 %v6245, %v6505
          %v6536 = vadd.f32 %v6246, %v6510
          %v6537 = vadd.f32 %v6247, %v6513
          %v6538 = vadd.f32 %v6248, %v6518
          %v6539 = vadd.f32 %v6249, %v6521
          %v6540 = vld [vmem:[#allocation2 + $0x2d] sm:$0xff]
          %v6541 = vld [vmem:[#allocation2 + $0x35] sm:$0xff]
          %v6542 = vld [vmem:[#allocation2 + $0x3d] sm:$0xff]
          %v6543 = vld [vmem:[#allocation2 + $0x45] sm:$0xff]
          %v6544 = vld [vmem:[#allocation2 + $0x4d] sm:$0xff]
          %v6545 = vld [vmem:[#allocation2 + $0x55] sm:$0xff]
          %v6546 = vld [vmem:[#allocation2 + $0x5d] sm:$0xff]
          %v6547 = vld [vmem:[#allocation2 + $0x65] sm:$0xff]
          %v6548 = vld [vmem:[#allocation2 + $0xad] sm:$0xff]
          %v6549 = vld [vmem:[#allocation2 + $0xb5] sm:$0xff]
          %v6550 = vld [vmem:[#allocation2 + $0xbd] sm:$0xff]
          %v6551 = vld [vmem:[#allocation2 + $0xc5] sm:$0xff]
          %v6552 = vld [vmem:[#allocation2 + $0xcd] sm:$0xff]
          %v6553 = vld [vmem:[#allocation2 + $0xd5] sm:$0xff]
          %v6554 = vld [vmem:[#allocation2 + $0xdd] sm:$0xff]
          %v6555 = vld [vmem:[#allocation2 + $0xe5] sm:$0xff]
          %v6556 = vld [vmem:[#allocation2 + $0x2e] sm:$0xff]
          %v6557 = vld [vmem:[#allocation2 + $0x36] sm:$0xff]
          %v6558 = vld [vmem:[#allocation2 + $0x3e] sm:$0xff]
          %v6559 = vld [vmem:[#allocation2 + $0x46] sm:$0xff]
          %v6560 = vld [vmem:[#allocation2 + $0x4e] sm:$0xff]
          %v6561 = vld [vmem:[#allocation2 + $0x56] sm:$0xff]
          %v6562 = vld [vmem:[#allocation2 + $0x5e] sm:$0xff]
          %v6563 = vld [vmem:[#allocation2 + $0x66] sm:$0xff]
          %v6564 = vld [vmem:[#allocation2 + $0xae] sm:$0xff]
          %v6565 = vld [vmem:[#allocation2 + $0xb6] sm:$0xff]
          %v6566 = vld [vmem:[#allocation2 + $0xbe] sm:$0xff]
          %v6567 = vld [vmem:[#allocation2 + $0xc6] sm:$0xff]
          %v6568 = vld [vmem:[#allocation2 + $0xce] sm:$0xff]
          %v6569 = vld [vmem:[#allocation2 + $0xd6] sm:$0xff]
          %v6570 = vld [vmem:[#allocation2 + $0xde] sm:$0xff]
          %v6571 = vld [vmem:[#allocation2 + $0xe6] sm:$0xff]
          %v6572 = vpack.c.bf16 %v6541, %v6540
          %v6573 = vpack.c.bf16 %v6557, %v6556
          %v6574 = vpack.c.bf16 %v6543, %v6542
          %v6575 = vpack.c.bf16 %v6559, %v6558
          %v6576 = vpack.c.bf16 %v6545, %v6544
          %v6577 = vpack.c.bf16 %v6561, %v6560
          %v6578 = vpack.c.bf16 %v6547, %v6546
          %v6579 = vpack.c.bf16 %v6563, %v6562
          %v6580 = vpack.c.bf16 %v6549, %v6548
          %v6581 = vpack.c.bf16 %v6565, %v6564
          %v6582 = vpack.c.bf16 %v6551, %v6550
          %v6583 = vpack.c.bf16 %v6567, %v6566
          %v6584 = vpack.c.bf16 %v6553, %v6552
          %v6585 = vpack.c.bf16 %v6569, %v6568
          %v6586 = vpack.c.bf16 %v6555, %v6554
          %v6587 = vpack.c.bf16 %v6571, %v6570
          %s6588 = scalar_lea.vmem [#allocation11], 2432
          %v6589 = vld [vmem:[%s6588] sm:$0xf]
          %v6590 = vld [vmem:[%s6588 + $0x4] sm:$0xf]
          %v6591 = vld [vmem:[%s6588 + $0x8] sm:$0xf]
          %v6592 = vld [vmem:[%s6588 + $0xc] sm:$0xf]
          %v6593 = vld [vmem:[%s6588 + $0x10] sm:$0xf]
          %v6594 = vld [vmem:[%s6588 + $0x14] sm:$0xf]
          %v6595 = vld [vmem:[%s6588 + $0x18] sm:$0xf]
          %v6596 = vld [vmem:[%s6588 + $0x1c] sm:$0xf]
          %v6597 = vld [vmem:[%s6588 + $0x20] sm:$0xf]
          %v6598 = vld [vmem:[%s6588 + $0x24] sm:$0xf]
          %v6599 = vld [vmem:[%s6588 + $0x28] sm:$0xf]
          %v6600 = vld [vmem:[%s6588 + $0x2c] sm:$0xf]
          %v6601 = vld [vmem:[%s6588 + $0x30] sm:$0xf]
          %v6602 = vld [vmem:[%s6588 + $0x34] sm:$0xf]
          %v6603 = vld [vmem:[%s6588 + $0x38] sm:$0xf]
          %v6604 = vld [vmem:[%s6588 + $0x3c] sm:$0xf]
          %v6605 = vld [vmem:[%s6588 + $0x40] sm:$0xf]
          %v6606 = vld [vmem:[%s6588 + $0x44] sm:$0xf]
          %v6607 = vld [vmem:[%s6588 + $0x48] sm:$0xf]
          %v6608 = vld [vmem:[%s6588 + $0x4c] sm:$0xf]
          %v6609 = vld [vmem:[%s6588 + $0x50] sm:$0xf]
          %v6610 = vld [vmem:[%s6588 + $0x54] sm:$0xf]
          %v6611 = vld [vmem:[%s6588 + $0x58] sm:$0xf]
          %v6612 = vld [vmem:[%s6588 + $0x5c] sm:$0xf]
          %v6613 = vld [vmem:[%s6588 + $0x60] sm:$0xf]
          %v6614 = vld [vmem:[%s6588 + $0x64] sm:$0xf]
          %v6615 = vld [vmem:[%s6588 + $0x68] sm:$0xf]
          %v6616 = vld [vmem:[%s6588 + $0x6c] sm:$0xf]
          %v6617 = vld [vmem:[%s6588 + $0x70] sm:$0xf]
          %v6618 = vld [vmem:[%s6588 + $0x74] sm:$0xf]
          %v6619 = vld [vmem:[%s6588 + $0x78] sm:$0xf]
          %v6620 = vld [vmem:[%s6588 + $0x7c] sm:$0xf]
          %v6653 = vunpack.c.l.b16 %v6589
          %v6654 = vunpack.c.l.b16 %v6590
          %v6655 = vunpack.c.l.b16 %v6591
          %v6656 = vunpack.c.l.b16 %v6592
          %v6657 = vunpack.c.l.b16 %v6593
          %v6658 = vunpack.c.l.b16 %v6594
          %v6659 = vunpack.c.l.b16 %v6595
          %v6660 = vunpack.c.l.b16 %v6596
          %v6661 = vunpack.c.l.b16 %v6597
          %v6662 = vunpack.c.l.b16 %v6598
          %v6663 = vunpack.c.l.b16 %v6599
          %v6664 = vunpack.c.l.b16 %v6600
          %v6665 = vunpack.c.l.b16 %v6601
          %v6666 = vunpack.c.l.b16 %v6602
          %v6667 = vunpack.c.l.b16 %v6603
          %v6668 = vunpack.c.l.b16 %v6604
          %v6669 = vunpack.c.l.b16 %v6605
          %v6670 = vunpack.c.l.b16 %v6606
          %v6671 = vunpack.c.l.b16 %v6607
          %v6672 = vunpack.c.l.b16 %v6608
          %v6673 = vunpack.c.l.b16 %v6609
          %v6674 = vunpack.c.l.b16 %v6610
          %v6675 = vunpack.c.l.b16 %v6611
          %v6676 = vunpack.c.l.b16 %v6612
          %v6677 = vunpack.c.l.b16 %v6613
          %v6678 = vunpack.c.l.b16 %v6614
          %v6679 = vunpack.c.l.b16 %v6615
          %v6680 = vunpack.c.l.b16 %v6616
          %v6681 = vunpack.c.l.b16 %v6617
          %v6682 = vunpack.c.l.b16 %v6618
          %v6683 = vunpack.c.l.b16 %v6619
          %v6684 = vunpack.c.l.b16 %v6620
          %v6685 = vpack.c.b16 %v6654, %v6653
          %v6686 = vpack.c.b16 %v6656, %v6655
          %v6687 = vpack.c.b16 %v6658, %v6657
          %v6688 = vpack.c.b16 %v6660, %v6659
          %v6689 = vpack.c.b16 %v6662, %v6661
          %v6690 = vpack.c.b16 %v6664, %v6663
          %v6691 = vpack.c.b16 %v6666, %v6665
          %v6692 = vpack.c.b16 %v6668, %v6667
          %v6693 = vpack.c.b16 %v6670, %v6669
          %v6694 = vpack.c.b16 %v6672, %v6671
          %v6695 = vpack.c.b16 %v6674, %v6673
          %v6696 = vpack.c.b16 %v6676, %v6675
          %v6697 = vpack.c.b16 %v6678, %v6677
          %v6698 = vpack.c.b16 %v6680, %v6679
          %v6699 = vpack.c.b16 %v6682, %v6681
          %v6700 = vpack.c.b16 %v6684, %v6683
          %6717 = vmatprep.subr.bf16.mxu0 0
          %6718 = vmatpush1.bf16.msra.mxu0 %v6685
          %6719 = vmatprep.subr.bf16.mxu0 0
          %6720 = vmatpush1.bf16.msra.mxu0 %v6686
          %6721 = vmatprep.subr.bf16.mxu0 0
          %6722 = vmatpush1.bf16.msra.mxu0 %v6687
          %6723 = vmatprep.subr.bf16.mxu0 0
          %6724 = vmatpush1.bf16.msra.mxu0 %v6688
          %6725 = vmatprep.subr.bf16.mxu0 0
          %6726 = vmatpush1.bf16.msra.mxu0 %v6689
          %6727 = vmatprep.subr.bf16.mxu0 0
          %6728 = vmatpush1.bf16.msra.mxu0 %v6690
          %6729 = vmatprep.subr.bf16.mxu0 0
          %6730 = vmatpush1.bf16.msra.mxu0 %v6691
          %6731 = vmatprep.subr.bf16.mxu0 0
          %6732 = vmatpush1.bf16.msra.mxu0 %v6692
          %6733 = vmatprep.subr.bf16.mxu0 0
          %6734 = vmatpush1.bf16.msra.mxu0 %v6693
          %6735 = vmatprep.subr.bf16.mxu0 0
          %6736 = vmatpush1.bf16.msra.mxu0 %v6694
          %6737 = vmatprep.subr.bf16.mxu0 0
          %6738 = vmatpush1.bf16.msra.mxu0 %v6695
          %6739 = vmatprep.subr.bf16.mxu0 0
          %6740 = vmatpush1.bf16.msra.mxu0 %v6696
          %6741 = vmatprep.subr.bf16.mxu0 0
          %6742 = vmatpush1.bf16.msra.mxu0 %v6697
          %6743 = vmatprep.subr.bf16.mxu0 0
          %6744 = vmatpush1.bf16.msra.mxu0 %v6698
          %6745 = vmatprep.subr.bf16.mxu0 0
          %6746 = vmatpush1.bf16.msra.mxu0 %v6699
          %6747 = vmatprep.subr.bf16.mxu0 0
          %6748 = vmatpush1.bf16.msra.mxu0 %v6700
          %6749 = vmatprep.mubr.bf16.mxu0 %v6573
          %6750 = vmatmul.mubr.bf16.gmra.mrb[0].mxu0 %v6572
          %v6751 = vpop.f32.mrb[0].mxu0
          %v6752 = vadd.f32 0.0, %v6751
          %v6753 = vpop.f32.mrb[0].mxu0
          %v6754 = vpop.f32.mrb[0].mxu0
          %v6755 = vadd.f32 0.0, %v6754
          %v6756 = vpop.f32.mrb[0].mxu0
          %6757 = vmatprep.mubr.bf16.mxu0 %v6575
          %6758 = vmatmul.mubr.bf16.gmra.mrb[0].mxu0 %v6574
          %v6759 = vpop.f32.mrb[0].mxu0
          %v6760 = vadd.f32 0.0, %v6759
          %v6761 = vpop.f32.mrb[0].mxu0
          %v6762 = vpop.f32.mrb[0].mxu0
          %v6763 = vadd.f32 0.0, %v6762
          %v6764 = vpop.f32.mrb[0].mxu0
          %6765 = vmatprep.mubr.bf16.mxu0 %v6577
          %6766 = vmatmul.mubr.bf16.gmra.mrb[0].mxu0 %v6576
          %v6767 = vpop.f32.mrb[0].mxu0
          %v6768 = vadd.f32 0.0, %v6767
          %v6769 = vpop.f32.mrb[0].mxu0
          %v6770 = vpop.f32.mrb[0].mxu0
          %v6771 = vadd.f32 0.0, %v6770
          %v6772 = vpop.f32.mrb[0].mxu0
          %6773 = vmatprep.mubr.bf16.mxu0 %v6579
          %6774 = vmatmul.mubr.bf16.gmra.mrb[0].mxu0 %v6578
          %v6775 = vpop.f32.mrb[0].mxu0
          %v6776 = vadd.f32 0.0, %v6775
          %v6777 = vpop.f32.mrb[0].mxu0
          %v6778 = vpop.f32.mrb[0].mxu0
          %v6779 = vadd.f32 0.0, %v6778
          %v6780 = vpop.f32.mrb[0].mxu0
          %6781 = vmatprep.mubr.bf16.mxu0 %v6581
          %6782 = vmatmul.mubr.bf16.gmra.mrb[0].mxu0 %v6580
          %v6783 = vpop.f32.mrb[0].mxu0
          %v6784 = vadd.f32 0.0, %v6783
          %v6785 = vpop.f32.mrb[0].mxu0
          %v6786 = vpop.f32.mrb[0].mxu0
          %v6787 = vadd.f32 0.0, %v6786
          %v6788 = vpop.f32.mrb[0].mxu0
          %6789 = vmatprep.mubr.bf16.mxu0 %v6583
          %6790 = vmatmul.mubr.bf16.gmra.mrb[0].mxu0 %v6582
          %v6791 = vpop.f32.mrb[0].mxu0
          %v6792 = vadd.f32 0.0, %v6791
          %v6793 = vpop.f32.mrb[0].mxu0
          %v6794 = vpop.f32.mrb[0].mxu0
          %v6795 = vadd.f32 0.0, %v6794
          %v6796 = vpop.f32.mrb[0].mxu0
          %6797 = vmatprep.mubr.bf16.mxu0 %v6585
          %6798 = vmatmul.mubr.bf16.gmra.mrb[0].mxu0 %v6584
          %v6799 = vpop.f32.mrb[0].mxu0
          %v6800 = vadd.f32 0.0, %v6799
          %v6801 = vpop.f32.mrb[0].mxu0
          %v6802 = vpop.f32.mrb[0].mxu0
          %v6803 = vadd.f32 0.0, %v6802
          %v6804 = vpop.f32.mrb[0].mxu0
          %6805 = vmatprep.mubr.bf16.mxu0 %v6587
          %6806 = vmatmul.mubr.bf16.gmra.mrb[0].mxu0 %v6586
          %v6807 = vpop.f32.mrb[0].mxu0
          %v6808 = vadd.f32 0.0, %v6807
          %v6809 = vpop.f32.mrb[0].mxu0
          %v6810 = vpop.f32.mrb[0].mxu0
          %v6811 = vadd.f32 0.0, %v6810
          %v6812 = vpop.f32.mrb[0].mxu0
          %6813 = vdwg.mxu0
          %v6814 = vadd.f32 %v6524, %v6752
          %v6815 = vadd.f32 %v6525, %v6755
          %v6816 = vadd.f32 %v6526, %v6760
          %v6817 = vadd.f32 %v6527, %v6763
          %v6818 = vadd.f32 %v6528, %v6768
          %v6819 = vadd.f32 %v6529, %v6771
          %v6820 = vadd.f32 %v6530, %v6776
          %v6821 = vadd.f32 %v6531, %v6779
          %v6822 = vadd.f32 %v6532, %v6784
          %v6823 = vadd.f32 %v6533, %v6787
          %v6824 = vadd.f32 %v6534, %v6792
          %v6825 = vadd.f32 %v6535, %v6795
          %v6826 = vadd.f32 %v6536, %v6800
          %v6827 = vadd.f32 %v6537, %v6803
          %v6828 = vadd.f32 %v6538, %v6808
          %v6829 = vadd.f32 %v6539, %v6811
          %v6830 = vld [vmem:[#allocation2 + $0x2f] sm:$0xff]
          %v6831 = vld [vmem:[#allocation2 + $0x37] sm:$0xff]
          %v6832 = vld [vmem:[#allocation2 + $0x3f] sm:$0xff]
          %v6833 = vld [vmem:[#allocation2 + $0x47] sm:$0xff]
          %v6834 = vld [vmem:[#allocation2 + $0x4f] sm:$0xff]
          %v6835 = vld [vmem:[#allocation2 + $0x57] sm:$0xff]
          %v6836 = vld [vmem:[#allocation2 + $0x5f] sm:$0xff]
          %v6837 = vld [vmem:[#allocation2 + $0x67] sm:$0xff]
          %v6838 = vld [vmem:[#allocation2 + $0xaf] sm:$0xff]
          %v6839 = vld [vmem:[#allocation2 + $0xb7] sm:$0xff]
          %v6840 = vld [vmem:[#allocation2 + $0xbf] sm:$0xff]
          %v6841 = vld [vmem:[#allocation2 + $0xc7] sm:$0xff]
          %v6842 = vld [vmem:[#allocation2 + $0xcf] sm:$0xff]
          %v6843 = vld [vmem:[#allocation2 + $0xd7] sm:$0xff]
          %v6844 = vld [vmem:[#allocation2 + $0xdf] sm:$0xff]
          %v6845 = vld [vmem:[#allocation2 + $0xe7] sm:$0xff]
          %v6846 = vld [vmem:[#allocation2 + $0x30] sm:$0xff]
          %v6847 = vld [vmem:[#allocation2 + $0x38] sm:$0xff]
          %v6848 = vld [vmem:[#allocation2 + $0x40] sm:$0xff]
          %v6849 = vld [vmem:[#allocation2 + $0x48] sm:$0xff]
          %v6850 = vld [vmem:[#allocation2 + $0x50] sm:$0xff]
          %v6851 = vld [vmem:[#allocation2 + $0x58] sm:$0xff]
          %v6852 = vld [vmem:[#allocation2 + $0x60] sm:$0xff]
          %v6853 = vld [vmem:[#allocation2 + $0x68] sm:$0xff]
          %v6854 = vld [vmem:[#allocation2 + $0xb0] sm:$0xff]
          %v6855 = vld [vmem:[#allocation2 + $0xb8] sm:$0xff]
          %v6856 = vld [vmem:[#allocation2 + $0xc0] sm:$0xff]
          %v6857 = vld [vmem:[#allocation2 + $0xc8] sm:$0xff]
          %v6858 = vld [vmem:[#allocation2 + $0xd0] sm:$0xff]
          %v6859 = vld [vmem:[#allocation2 + $0xd8] sm:$0xff]
          %v6860 = vld [vmem:[#allocation2 + $0xe0] sm:$0xff]
          %v6861 = vld [vmem:[#allocation2 + $0xe8] sm:$0xff]
          %v6862 = vpack.c.bf16 %v6831, %v6830
          %v6863 = vpack.c.bf16 %v6847, %v6846
          %v6864 = vpack.c.bf16 %v6833, %v6832
          %v6865 = vpack.c.bf16 %v6849, %v6848
          %v6866 = vpack.c.bf16 %v6835, %v6834
          %v6867 = vpack.c.bf16 %v6851, %v6850
          %v6868 = vpack.c.bf16 %v6837, %v6836
          %v6869 = vpack.c.bf16 %v6853, %v6852
          %v6870 = vpack.c.bf16 %v6839, %v6838
          %v6871 = vpack.c.bf16 %v6855, %v6854
          %v6872 = vpack.c.bf16 %v6841, %v6840
          %v6873 = vpack.c.bf16 %v6857, %v6856
          %v6874 = vpack.c.bf16 %v6843, %v6842
          %v6875 = vpack.c.bf16 %v6859, %v6858
          %v6876 = vpack.c.bf16 %v6845, %v6844
          %v6877 = vpack.c.bf16 %v6861, %v6860
          %s6878 = scalar_lea.vmem [#allocation11], 2560
          %v6879 = vld [vmem:[%s6878] sm:$0xf]
          %v6880 = vld [vmem:[%s6878 + $0x4] sm:$0xf]
          %v6881 = vld [vmem:[%s6878 + $0x8] sm:$0xf]
          %v6882 = vld [vmem:[%s6878 + $0xc] sm:$0xf]
          %v6883 = vld [vmem:[%s6878 + $0x10] sm:$0xf]
          %v6884 = vld [vmem:[%s6878 + $0x14] sm:$0xf]
          %v6885 = vld [vmem:[%s6878 + $0x18] sm:$0xf]
          %v6886 = vld [vmem:[%s6878 + $0x1c] sm:$0xf]
          %v6887 = vld [vmem:[%s6878 + $0x20] sm:$0xf]
          %v6888 = vld [vmem:[%s6878 + $0x24] sm:$0xf]
          %v6889 = vld [vmem:[%s6878 + $0x28] sm:$0xf]
          %v6890 = vld [vmem:[%s6878 + $0x2c] sm:$0xf]
          %v6891 = vld [vmem:[%s6878 + $0x30] sm:$0xf]
          %v6892 = vld [vmem:[%s6878 + $0x34] sm:$0xf]
          %v6893 = vld [vmem:[%s6878 + $0x38] sm:$0xf]
          %v6894 = vld [vmem:[%s6878 + $0x3c] sm:$0xf]
          %v6895 = vld [vmem:[%s6878 + $0x40] sm:$0xf]
          %v6896 = vld [vmem:[%s6878 + $0x44] sm:$0xf]
          %v6897 = vld [vmem:[%s6878 + $0x48] sm:$0xf]
          %v6898 = vld [vmem:[%s6878 + $0x4c] sm:$0xf]
          %v6899 = vld [vmem:[%s6878 + $0x50] sm:$0xf]
          %v6900 = vld [vmem:[%s6878 + $0x54] sm:$0xf]
          %v6901 = vld [vmem:[%s6878 + $0x58] sm:$0xf]
          %v6902 = vld [vmem:[%s6878 + $0x5c] sm:$0xf]
          %v6903 = vld [vmem:[%s6878 + $0x60] sm:$0xf]
          %v6904 = vld [vmem:[%s6878 + $0x64] sm:$0xf]
          %v6905 = vld [vmem:[%s6878 + $0x68] sm:$0xf]
          %v6906 = vld [vmem:[%s6878 + $0x6c] sm:$0xf]
          %v6907 = vld [vmem:[%s6878 + $0x70] sm:$0xf]
          %v6908 = vld [vmem:[%s6878 + $0x74] sm:$0xf]
          %v6909 = vld [vmem:[%s6878 + $0x78] sm:$0xf]
          %v6910 = vld [vmem:[%s6878 + $0x7c] sm:$0xf]
          %v6943 = vunpack.c.l.b16 %v6879
          %v6944 = vunpack.c.l.b16 %v6880
          %v6945 = vunpack.c.l.b16 %v6881
          %v6946 = vunpack.c.l.b16 %v6882
          %v6947 = vunpack.c.l.b16 %v6883
          %v6948 = vunpack.c.l.b16 %v6884
          %v6949 = vunpack.c.l.b16 %v6885
          %v6950 = vunpack.c.l.b16 %v6886
          %v6951 = vunpack.c.l.b16 %v6887
          %v6952 = vunpack.c.l.b16 %v6888
          %v6953 = vunpack.c.l.b16 %v6889
          %v6954 = vunpack.c.l.b16 %v6890
          %v6955 = vunpack.c.l.b16 %v6891
          %v6956 = vunpack.c.l.b16 %v6892
          %v6957 = vunpack.c.l.b16 %v6893
          %v6958 = vunpack.c.l.b16 %v6894
          %v6959 = vunpack.c.l.b16 %v6895
          %v6960 = vunpack.c.l.b16 %v6896
          %v6961 = vunpack.c.l.b16 %v6897
          %v6962 = vunpack.c.l.b16 %v6898
          %v6963 = vunpack.c.l.b16 %v6899
          %v6964 = vunpack.c.l.b16 %v6900
          %v6965 = vunpack.c.l.b16 %v6901
          %v6966 = vunpack.c.l.b16 %v6902
          %v6967 = vunpack.c.l.b16 %v6903
          %v6968 = vunpack.c.l.b16 %v6904
          %v6969 = vunpack.c.l.b16 %v6905
          %v6970 = vunpack.c.l.b16 %v6906
          %v6971 = vunpack.c.l.b16 %v6907
          %v6972 = vunpack.c.l.b16 %v6908
          %v6973 = vunpack.c.l.b16 %v6909
          %v6974 = vunpack.c.l.b16 %v6910
          %v6975 = vpack.c.b16 %v6944, %v6943
          %v6976 = vpack.c.b16 %v6946, %v6945
          %v6977 = vpack.c.b16 %v6948, %v6947
          %v6978 = vpack.c.b16 %v6950, %v6949
          %v6979 = vpack.c.b16 %v6952, %v6951
          %v6980 = vpack.c.b16 %v6954, %v6953
          %v6981 = vpack.c.b16 %v6956, %v6955
          %v6982 = vpack.c.b16 %v6958, %v6957
          %v6983 = vpack.c.b16 %v6960, %v6959
          %v6984 = vpack.c.b16 %v6962, %v6961
          %v6985 = vpack.c.b16 %v6964, %v6963
          %v6986 = vpack.c.b16 %v6966, %v6965
          %v6987 = vpack.c.b16 %v6968, %v6967
          %v6988 = vpack.c.b16 %v6970, %v6969
          %v6989 = vpack.c.b16 %v6972, %v6971
          %v6990 = vpack.c.b16 %v6974, %v6973
          %7007 = vmatprep.subr.bf16.mxu0 0
          %7008 = vmatpush1.bf16.msra.mxu0 %v6975
          %7009 = vmatprep.subr.bf16.mxu0 0
          %7010 = vmatpush1.bf16.msra.mxu0 %v6976
          %7011 = vmatprep.subr.bf16.mxu0 0
          %7012 = vmatpush1.bf16.msra.mxu0 %v6977
          %7013 = vmatprep.subr.bf16.mxu0 0
          %7014 = vmatpush1.bf16.msra.mxu0 %v6978
          %7015 = vmatprep.subr.bf16.mxu0 0
          %7016 = vmatpush1.bf16.msra.mxu0 %v6979
          %7017 = vmatprep.subr.bf16.mxu0 0
          %7018 = vmatpush1.bf16.msra.mxu0 %v6980
          %7019 = vmatprep.subr.bf16.mxu0 0
          %7020 = vmatpush1.bf16.msra.mxu0 %v6981
          %7021 = vmatprep.subr.bf16.mxu0 0
          %7022 = vmatpush1.bf16.msra.mxu0 %v6982
          %7023 = vmatprep.subr.bf16.mxu0 0
          %7024 = vmatpush1.bf16.msra.mxu0 %v6983
          %7025 = vmatprep.subr.bf16.mxu0 0
          %7026 = vmatpush1.bf16.msra.mxu0 %v6984
          %7027 = vmatprep.subr.bf16.mxu0 0
          %7028 = vmatpush1.bf16.msra.mxu0 %v6985
          %7029 = vmatprep.subr.bf16.mxu0 0
          %7030 = vmatpush1.bf16.msra.mxu0 %v6986
          %7031 = vmatprep.subr.bf16.mxu0 0
          %7032 = vmatpush1.bf16.msra.mxu0 %v6987
          %7033 = vmatprep.subr.bf16.mxu0 0
          %7034 = vmatpush1.bf16.msra.mxu0 %v6988
          %7035 = vmatprep.subr.bf16.mxu0 0
          %7036 = vmatpush1.bf16.msra.mxu0 %v6989
          %7037 = vmatprep.subr.bf16.mxu0 0
          %7038 = vmatpush1.bf16.msra.mxu0 %v6990
          %7039 = vmatprep.mubr.bf16.mxu0 %v6863
          %7040 = vmatmul.mubr.bf16.gmra.mrb[0].mxu0 %v6862
          %v7041 = vpop.f32.mrb[0].mxu0
          %v7042 = vadd.f32 0.0, %v7041
          %v7043 = vpop.f32.mrb[0].mxu0
          %v7044 = vpop.f32.mrb[0].mxu0
          %v7045 = vadd.f32 0.0, %v7044
          %v7046 = vpop.f32.mrb[0].mxu0
          %7047 = vmatprep.mubr.bf16.mxu0 %v6865
          %7048 = vmatmul.mubr.bf16.gmra.mrb[0].mxu0 %v6864
          %v7049 = vpop.f32.mrb[0].mxu0
          %v7050 = vadd.f32 0.0, %v7049
          %v7051 = vpop.f32.mrb[0].mxu0
          %v7052 = vpop.f32.mrb[0].mxu0
          %v7053 = vadd.f32 0.0, %v7052
          %v7054 = vpop.f32.mrb[0].mxu0
          %7055 = vmatprep.mubr.bf16.mxu0 %v6867
          %7056 = vmatmul.mubr.bf16.gmra.mrb[0].mxu0 %v6866
          %v7057 = vpop.f32.mrb[0].mxu0
          %v7058 = vadd.f32 0.0, %v7057
          %v7059 = vpop.f32.mrb[0].mxu0
          %v7060 = vpop.f32.mrb[0].mxu0
          %v7061 = vadd.f32 0.0, %v7060
          %v7062 = vpop.f32.mrb[0].mxu0
          %7063 = vmatprep.mubr.bf16.mxu0 %v6869
          %7064 = vmatmul.mubr.bf16.gmra.mrb[0].mxu0 %v6868
          %v7065 = vpop.f32.mrb[0].mxu0
          %v7066 = vadd.f32 0.0, %v7065
          %v7067 = vpop.f32.mrb[0].mxu0
          %v7068 = vpop.f32.mrb[0].mxu0
          %v7069 = vadd.f32 0.0, %v7068
          %v7070 = vpop.f32.mrb[0].mxu0
          %7071 = vmatprep.mubr.bf16.mxu0 %v6871
          %7072 = vmatmul.mubr.bf16.gmra.mrb[0].mxu0 %v6870
          %v7073 = vpop.f32.mrb[0].mxu0
          %v7074 = vadd.f32 0.0, %v7073
          %v7075 = vpop.f32.mrb[0].mxu0
          %v7076 = vpop.f32.mrb[0].mxu0
          %v7077 = vadd.f32 0.0, %v7076
          %v7078 = vpop.f32.mrb[0].mxu0
          %7079 = vmatprep.mubr.bf16.mxu0 %v6873
          %7080 = vmatmul.mubr.bf16.gmra.mrb[0].mxu0 %v6872
          %v7081 = vpop.f32.mrb[0].mxu0
          %v7082 = vadd.f32 0.0, %v7081
          %v7083 = vpop.f32.mrb[0].mxu0
          %v7084 = vpop.f32.mrb[0].mxu0
          %v7085 = vadd.f32 0.0, %v7084
          %v7086 = vpop.f32.mrb[0].mxu0
          %7087 = vmatprep.mubr.bf16.mxu0 %v6875
          %7088 = vmatmul.mubr.bf16.gmra.mrb[0].mxu0 %v6874
          %v7089 = vpop.f32.mrb[0].mxu0
          %v7090 = vadd.f32 0.0, %v7089
          %v7091 = vpop.f32.mrb[0].mxu0
          %v7092 = vpop.f32.mrb[0].mxu0
          %v7093 = vadd.f32 0.0, %v7092
          %v7094 = vpop.f32.mrb[0].mxu0
          %7095 = vmatprep.mubr.bf16.mxu0 %v6877
          %7096 = vmatmul.mubr.bf16.gmra.mrb[0].mxu0 %v6876
          %v7097 = vpop.f32.mrb[0].mxu0
          %v7098 = vadd.f32 0.0, %v7097
          %v7099 = vpop.f32.mrb[0].mxu0
          %v7100 = vpop.f32.mrb[0].mxu0
          %v7101 = vadd.f32 0.0, %v7100
          %v7102 = vpop.f32.mrb[0].mxu0
          %7103 = vdwg.mxu0
          %v7104 = vadd.f32 %v6814, %v7042
          %v7105 = vadd.f32 %v6815, %v7045
          %v7106 = vadd.f32 %v6816, %v7050
          %v7107 = vadd.f32 %v6817, %v7053
          %v7108 = vadd.f32 %v6818, %v7058
          %v7109 = vadd.f32 %v6819, %v7061
          %v7110 = vadd.f32 %v6820, %v7066
          %v7111 = vadd.f32 %v6821, %v7069
          %v7112 = vadd.f32 %v6822, %v7074
          %v7113 = vadd.f32 %v6823, %v7077
          %v7114 = vadd.f32 %v6824, %v7082
          %v7115 = vadd.f32 %v6825, %v7085
          %v7116 = vadd.f32 %v6826, %v7090
          %v7117 = vadd.f32 %v6827, %v7093
          %v7118 = vadd.f32 %v6828, %v7098
          %v7119 = vadd.f32 %v6829, %v7101
          %v7120 = vld [vmem:[#allocation2 + $0x31] sm:$0xff]
          %v7121 = vld [vmem:[#allocation2 + $0x39] sm:$0xff]
          %v7122 = vld [vmem:[#allocation2 + $0x41] sm:$0xff]
          %v7123 = vld [vmem:[#allocation2 + $0x49] sm:$0xff]
          %v7124 = vld [vmem:[#allocation2 + $0x51] sm:$0xff]
          %v7125 = vld [vmem:[#allocation2 + $0x59] sm:$0xff]
          %v7126 = vld [vmem:[#allocation2 + $0x61] sm:$0xff]
          %v7127 = vld [vmem:[#allocation2 + $0x69] sm:$0xff]
          %v7128 = vld [vmem:[#allocation2 + $0xb1] sm:$0xff]
          %v7129 = vld [vmem:[#allocation2 + $0xb9] sm:$0xff]
          %v7130 = vld [vmem:[#allocation2 + $0xc1] sm:$0xff]
          %v7131 = vld [vmem:[#allocation2 + $0xc9] sm:$0xff]
          %v7132 = vld [vmem:[#allocation2 + $0xd1] sm:$0xff]
          %v7133 = vld [vmem:[#allocation2 + $0xd9] sm:$0xff]
          %v7134 = vld [vmem:[#allocation2 + $0xe1] sm:$0xff]
          %v7135 = vld [vmem:[#allocation2 + $0xe9] sm:$0xff]
          %v7136 = vld [vmem:[#allocation2 + $0x32] sm:$0xff]
          %v7137 = vld [vmem:[#allocation2 + $0x3a] sm:$0xff]
          %v7138 = vld [vmem:[#allocation2 + $0x42] sm:$0xff]
          %v7139 = vld [vmem:[#allocation2 + $0x4a] sm:$0xff]
          %v7140 = vld [vmem:[#allocation2 + $0x52] sm:$0xff]
          %v7141 = vld [vmem:[#allocation2 + $0x5a] sm:$0xff]
          %v7142 = vld [vmem:[#allocation2 + $0x62] sm:$0xff]
          %v7143 = vld [vmem:[#allocation2 + $0x6a] sm:$0xff]
          %v7144 = vld [vmem:[#allocation2 + $0xb2] sm:$0xff]
          %v7145 = vld [vmem:[#allocation2 + $0xba] sm:$0xff]
          %v7146 = vld [vmem:[#allocation2 + $0xc2] sm:$0xff]
          %v7147 = vld [vmem:[#allocation2 + $0xca] sm:$0xff]
          %v7148 = vld [vmem:[#allocation2 + $0xd2] sm:$0xff]
          %v7149 = vld [vmem:[#allocation2 + $0xda] sm:$0xff]
          %v7150 = vld [vmem:[#allocation2 + $0xe2] sm:$0xff]
          %v7151 = vld [vmem:[#allocation2 + $0xea] sm:$0xff]
          %v7152 = vpack.c.bf16 %v7121, %v7120
          %v7153 = vpack.c.bf16 %v7137, %v7136
          %v7154 = vpack.c.bf16 %v7123, %v7122
          %v7155 = vpack.c.bf16 %v7139, %v7138
          %v7156 = vpack.c.bf16 %v7125, %v7124
          %v7157 = vpack.c.bf16 %v7141, %v7140
          %v7158 = vpack.c.bf16 %v7127, %v7126
          %v7159 = vpack.c.bf16 %v7143, %v7142
          %v7160 = vpack.c.bf16 %v7129, %v7128
          %v7161 = vpack.c.bf16 %v7145, %v7144
          %v7162 = vpack.c.bf16 %v7131, %v7130
          %v7163 = vpack.c.bf16 %v7147, %v7146
          %v7164 = vpack.c.bf16 %v7133, %v7132
          %v7165 = vpack.c.bf16 %v7149, %v7148
          %v7166 = vpack.c.bf16 %v7135, %v7134
          %v7167 = vpack.c.bf16 %v7151, %v7150
          %s7168 = scalar_lea.vmem [#allocation11], 2688
          %v7169 = vld [vmem:[%s7168] sm:$0xf]
          %v7170 = vld [vmem:[%s7168 + $0x4] sm:$0xf]
          %v7171 = vld [vmem:[%s7168 + $0x8] sm:$0xf]
          %v7172 = vld [vmem:[%s7168 + $0xc] sm:$0xf]
          %v7173 = vld [vmem:[%s7168 + $0x10] sm:$0xf]
          %v7174 = vld [vmem:[%s7168 + $0x14] sm:$0xf]
          %v7175 = vld [vmem:[%s7168 + $0x18] sm:$0xf]
          %v7176 = vld [vmem:[%s7168 + $0x1c] sm:$0xf]
          %v7177 = vld [vmem:[%s7168 + $0x20] sm:$0xf]
          %v7178 = vld [vmem:[%s7168 + $0x24] sm:$0xf]
          %v7179 = vld [vmem:[%s7168 + $0x28] sm:$0xf]
          %v7180 = vld [vmem:[%s7168 + $0x2c] sm:$0xf]
          %v7181 = vld [vmem:[%s7168 + $0x30] sm:$0xf]
          %v7182 = vld [vmem:[%s7168 + $0x34] sm:$0xf]
          %v7183 = vld [vmem:[%s7168 + $0x38] sm:$0xf]
          %v7184 = vld [vmem:[%s7168 + $0x3c] sm:$0xf]
          %v7185 = vld [vmem:[%s7168 + $0x40] sm:$0xf]
          %v7186 = vld [vmem:[%s7168 + $0x44] sm:$0xf]
          %v7187 = vld [vmem:[%s7168 + $0x48] sm:$0xf]
          %v7188 = vld [vmem:[%s7168 + $0x4c] sm:$0xf]
          %v7189 = vld [vmem:[%s7168 + $0x50] sm:$0xf]
          %v7190 = vld [vmem:[%s7168 + $0x54] sm:$0xf]
          %v7191 = vld [vmem:[%s7168 + $0x58] sm:$0xf]
          %v7192 = vld [vmem:[%s7168 + $0x5c] sm:$0xf]
          %v7193 = vld [vmem:[%s7168 + $0x60] sm:$0xf]
          %v7194 = vld [vmem:[%s7168 + $0x64] sm:$0xf]
          %v7195 = vld [vmem:[%s7168 + $0x68] sm:$0xf]
          %v7196 = vld [vmem:[%s7168 + $0x6c] sm:$0xf]
          %v7197 = vld [vmem:[%s7168 + $0x70] sm:$0xf]
          %v7198 = vld [vmem:[%s7168 + $0x74] sm:$0xf]
          %v7199 = vld [vmem:[%s7168 + $0x78] sm:$0xf]
          %v7200 = vld [vmem:[%s7168 + $0x7c] sm:$0xf]
          %v7233 = vunpack.c.l.b16 %v7169
          %v7234 = vunpack.c.l.b16 %v7170
          %v7235 = vunpack.c.l.b16 %v7171
          %v7236 = vunpack.c.l.b16 %v7172
          %v7237 = vunpack.c.l.b16 %v7173
          %v7238 = vunpack.c.l.b16 %v7174
          %v7239 = vunpack.c.l.b16 %v7175
          %v7240 = vunpack.c.l.b16 %v7176
          %v7241 = vunpack.c.l.b16 %v7177
          %v7242 = vunpack.c.l.b16 %v7178
          %v7243 = vunpack.c.l.b16 %v7179
          %v7244 = vunpack.c.l.b16 %v7180
          %v7245 = vunpack.c.l.b16 %v7181
          %v7246 = vunpack.c.l.b16 %v7182
          %v7247 = vunpack.c.l.b16 %v7183
          %v7248 = vunpack.c.l.b16 %v7184
          %v7249 = vunpack.c.l.b16 %v7185
          %v7250 = vunpack.c.l.b16 %v7186
          %v7251 = vunpack.c.l.b16 %v7187
          %v7252 = vunpack.c.l.b16 %v7188
          %v7253 = vunpack.c.l.b16 %v7189
          %v7254 = vunpack.c.l.b16 %v7190
          %v7255 = vunpack.c.l.b16 %v7191
          %v7256 = vunpack.c.l.b16 %v7192
          %v7257 = vunpack.c.l.b16 %v7193
          %v7258 = vunpack.c.l.b16 %v7194
          %v7259 = vunpack.c.l.b16 %v7195
          %v7260 = vunpack.c.l.b16 %v7196
          %v7261 = vunpack.c.l.b16 %v7197
          %v7262 = vunpack.c.l.b16 %v7198
          %v7263 = vunpack.c.l.b16 %v7199
          %v7264 = vunpack.c.l.b16 %v7200
          %v7265 = vpack.c.b16 %v7234, %v7233
          %v7266 = vpack.c.b16 %v7236, %v7235
          %v7267 = vpack.c.b16 %v7238, %v7237
          %v7268 = vpack.c.b16 %v7240, %v7239
          %v7269 = vpack.c.b16 %v7242, %v7241
          %v7270 = vpack.c.b16 %v7244, %v7243
          %v7271 = vpack.c.b16 %v7246, %v7245
          %v7272 = vpack.c.b16 %v7248, %v7247
          %v7273 = vpack.c.b16 %v7250, %v7249
          %v7274 = vpack.c.b16 %v7252, %v7251
          %v7275 = vpack.c.b16 %v7254, %v7253
          %v7276 = vpack.c.b16 %v7256, %v7255
          %v7277 = vpack.c.b16 %v7258, %v7257
          %v7278 = vpack.c.b16 %v7260, %v7259
          %v7279 = vpack.c.b16 %v7262, %v7261
          %v7280 = vpack.c.b16 %v7264, %v7263
          %7297 = vmatprep.subr.bf16.mxu0 0
          %7298 = vmatpush1.bf16.msra.mxu0 %v7265
          %7299 = vmatprep.subr.bf16.mxu0 0
          %7300 = vmatpush1.bf16.msra.mxu0 %v7266
          %7301 = vmatprep.subr.bf16.mxu0 0
          %7302 = vmatpush1.bf16.msra.mxu0 %v7267
          %7303 = vmatprep.subr.bf16.mxu0 0
          %7304 = vmatpush1.bf16.msra.mxu0 %v7268
          %7305 = vmatprep.subr.bf16.mxu0 0
          %7306 = vmatpush1.bf16.msra.mxu0 %v7269
          %7307 = vmatprep.subr.bf16.mxu0 0
          %7308 = vmatpush1.bf16.msra.mxu0 %v7270
          %7309 = vmatprep.subr.bf16.mxu0 0
          %7310 = vmatpush1.bf16.msra.mxu0 %v7271
          %7311 = vmatprep.subr.bf16.mxu0 0
          %7312 = vmatpush1.bf16.msra.mxu0 %v7272
          %7313 = vmatprep.subr.bf16.mxu0 0
          %7314 = vmatpush1.bf16.msra.mxu0 %v7273
          %7315 = vmatprep.subr.bf16.mxu0 0
          %7316 = vmatpush1.bf16.msra.mxu0 %v7274
          %7317 = vmatprep.subr.bf16.mxu0 0
          %7318 = vmatpush1.bf16.msra.mxu0 %v7275
          %7319 = vmatprep.subr.bf16.mxu0 0
          %7320 = vmatpush1.bf16.msra.mxu0 %v7276
          %7321 = vmatprep.subr.bf16.mxu0 0
          %7322 = vmatpush1.bf16.msra.mxu0 %v7277
          %7323 = vmatprep.subr.bf16.mxu0 0
          %7324 = vmatpush1.bf16.msra.mxu0 %v7278
          %7325 = vmatprep.subr.bf16.mxu0 0
          %7326 = vmatpush1.bf16.msra.mxu0 %v7279
          %7327 = vmatprep.subr.bf16.mxu0 0
          %7328 = vmatpush1.bf16.msra.mxu0 %v7280
          %7329 = vmatprep.mubr.bf16.mxu0 %v7153
          %7330 = vmatmul.mubr.bf16.gmra.mrb[0].mxu0 %v7152
          %v7331 = vpop.f32.mrb[0].mxu0
          %v7332 = vadd.f32 0.0, %v7331
          %v7333 = vpop.f32.mrb[0].mxu0
          %v7334 = vpop.f32.mrb[0].mxu0
          %v7335 = vadd.f32 0.0, %v7334
          %v7336 = vpop.f32.mrb[0].mxu0
          %7337 = vmatprep.mubr.bf16.mxu0 %v7155
          %7338 = vmatmul.mubr.bf16.gmra.mrb[0].mxu0 %v7154
          %v7339 = vpop.f32.mrb[0].mxu0
          %v7340 = vadd.f32 0.0, %v7339
          %v7341 = vpop.f32.mrb[0].mxu0
          %v7342 = vpop.f32.mrb[0].mxu0
          %v7343 = vadd.f32 0.0, %v7342
          %v7344 = vpop.f32.mrb[0].mxu0
          %7345 = vmatprep.mubr.bf16.mxu0 %v7157
          %7346 = vmatmul.mubr.bf16.gmra.mrb[0].mxu0 %v7156
          %v7347 = vpop.f32.mrb[0].mxu0
          %v7348 = vadd.f32 0.0, %v7347
          %v7349 = vpop.f32.mrb[0].mxu0
          %v7350 = vpop.f32.mrb[0].mxu0
          %v7351 = vadd.f32 0.0, %v7350
          %v7352 = vpop.f32.mrb[0].mxu0
          %7353 = vmatprep.mubr.bf16.mxu0 %v7159
          %7354 = vmatmul.mubr.bf16.gmra.mrb[0].mxu0 %v7158
          %v7355 = vpop.f32.mrb[0].mxu0
          %v7356 = vadd.f32 0.0, %v7355
          %v7357 = vpop.f32.mrb[0].mxu0
          %v7358 = vpop.f32.mrb[0].mxu0
          %v7359 = vadd.f32 0.0, %v7358
          %v7360 = vpop.f32.mrb[0].mxu0
          %7361 = vmatprep.mubr.bf16.mxu0 %v7161
          %7362 = vmatmul.mubr.bf16.gmra.mrb[0].mxu0 %v7160
          %v7363 = vpop.f32.mrb[0].mxu0
          %v7364 = vadd.f32 0.0, %v7363
          %v7365 = vpop.f32.mrb[0].mxu0
          %v7366 = vpop.f32.mrb[0].mxu0
          %v7367 = vadd.f32 0.0, %v7366
          %v7368 = vpop.f32.mrb[0].mxu0
          %7369 = vmatprep.mubr.bf16.mxu0 %v7163
          %7370 = vmatmul.mubr.bf16.gmra.mrb[0].mxu0 %v7162
          %v7371 = vpop.f32.mrb[0].mxu0
          %v7372 = vadd.f32 0.0, %v7371
          %v7373 = vpop.f32.mrb[0].mxu0
          %v7374 = vpop.f32.mrb[0].mxu0
          %v7375 = vadd.f32 0.0, %v7374
          %v7376 = vpop.f32.mrb[0].mxu0
          %7377 = vmatprep.mubr.bf16.mxu0 %v7165
          %7378 = vmatmul.mubr.bf16.gmra.mrb[0].mxu0 %v7164
          %v7379 = vpop.f32.mrb[0].mxu0
          %v7380 = vadd.f32 0.0, %v7379
          %v7381 = vpop.f32.mrb[0].mxu0
          %v7382 = vpop.f32.mrb[0].mxu0
          %v7383 = vadd.f32 0.0, %v7382
          %v7384 = vpop.f32.mrb[0].mxu0
          %7385 = vmatprep.mubr.bf16.mxu0 %v7167
          %7386 = vmatmul.mubr.bf16.gmra.mrb[0].mxu0 %v7166
          %v7387 = vpop.f32.mrb[0].mxu0
          %v7388 = vadd.f32 0.0, %v7387
          %v7389 = vpop.f32.mrb[0].mxu0
          %v7390 = vpop.f32.mrb[0].mxu0
          %v7391 = vadd.f32 0.0, %v7390
          %v7392 = vpop.f32.mrb[0].mxu0
          %7393 = vdwg.mxu0
          %v7394 = vadd.f32 %v7104, %v7332
          %v7395 = vadd.f32 %v7105, %v7335
          %v7396 = vadd.f32 %v7106, %v7340
          %v7397 = vadd.f32 %v7107, %v7343
          %v7398 = vadd.f32 %v7108, %v7348
          %v7399 = vadd.f32 %v7109, %v7351
          %v7400 = vadd.f32 %v7110, %v7356
          %v7401 = vadd.f32 %v7111, %v7359
          %v7402 = vadd.f32 %v7112, %v7364
          %v7403 = vadd.f32 %v7113, %v7367
          %v7404 = vadd.f32 %v7114, %v7372
          %v7405 = vadd.f32 %v7115, %v7375
          %v7406 = vadd.f32 %v7116, %v7380
          %v7407 = vadd.f32 %v7117, %v7383
          %v7408 = vadd.f32 %v7118, %v7388
          %v7409 = vadd.f32 %v7119, %v7391
          %v7410 = vld [vmem:[#allocation2 + $0x33] sm:$0xff]
          %v7411 = vld [vmem:[#allocation2 + $0x3b] sm:$0xff]
          %v7412 = vld [vmem:[#allocation2 + $0x43] sm:$0xff]
          %v7413 = vld [vmem:[#allocation2 + $0x4b] sm:$0xff]
          %v7414 = vld [vmem:[#allocation2 + $0x53] sm:$0xff]
          %v7415 = vld [vmem:[#allocation2 + $0x5b] sm:$0xff]
          %v7416 = vld [vmem:[#allocation2 + $0x63] sm:$0xff]
          %v7417 = vld [vmem:[#allocation2 + $0x6b] sm:$0xff]
          %v7418 = vld [vmem:[#allocation2 + $0xb3] sm:$0xff]
          %v7419 = vld [vmem:[#allocation2 + $0xbb] sm:$0xff]
          %v7420 = vld [vmem:[#allocation2 + $0xc3] sm:$0xff]
          %v7421 = vld [vmem:[#allocation2 + $0xcb] sm:$0xff]
          %v7422 = vld [vmem:[#allocation2 + $0xd3] sm:$0xff]
          %v7423 = vld [vmem:[#allocation2 + $0xdb] sm:$0xff]
          %v7424 = vld [vmem:[#allocation2 + $0xe3] sm:$0xff]
          %v7425 = vld [vmem:[#allocation2 + $0xeb] sm:$0xff]
          %v7426 = vld [vmem:[#allocation2 + $0x34] sm:$0xff]
          %v7427 = vld [vmem:[#allocation2 + $0x3c] sm:$0xff]
          %v7428 = vld [vmem:[#allocation2 + $0x44] sm:$0xff]
          %v7429 = vld [vmem:[#allocation2 + $0x4c] sm:$0xff]
          %v7430 = vld [vmem:[#allocation2 + $0x54] sm:$0xff]
          %v7431 = vld [vmem:[#allocation2 + $0x5c] sm:$0xff]
          %v7432 = vld [vmem:[#allocation2 + $0x64] sm:$0xff]
          %v7433 = vld [vmem:[#allocation2 + $0x6c] sm:$0xff]
          %v7434 = vld [vmem:[#allocation2 + $0xb4] sm:$0xff]
          %v7435 = vld [vmem:[#allocation2 + $0xbc] sm:$0xff]
          %v7436 = vld [vmem:[#allocation2 + $0xc4] sm:$0xff]
          %v7437 = vld [vmem:[#allocation2 + $0xcc] sm:$0xff]
          %v7438 = vld [vmem:[#allocation2 + $0xd4] sm:$0xff]
          %v7439 = vld [vmem:[#allocation2 + $0xdc] sm:$0xff]
          %v7440 = vld [vmem:[#allocation2 + $0xe4] sm:$0xff]
          %v7441 = vld [vmem:[#allocation2 + $0xec] sm:$0xff]
          %v7442 = vpack.c.bf16 %v7411, %v7410
          %v7443 = vpack.c.bf16 %v7427, %v7426
          %v7444 = vpack.c.bf16 %v7413, %v7412
          %v7445 = vpack.c.bf16 %v7429, %v7428
          %v7446 = vpack.c.bf16 %v7415, %v7414
          %v7447 = vpack.c.bf16 %v7431, %v7430
          %v7448 = vpack.c.bf16 %v7417, %v7416
          %v7449 = vpack.c.bf16 %v7433, %v7432
          %v7450 = vpack.c.bf16 %v7419, %v7418
          %v7451 = vpack.c.bf16 %v7435, %v7434
          %v7452 = vpack.c.bf16 %v7421, %v7420
          %v7453 = vpack.c.bf16 %v7437, %v7436
          %v7454 = vpack.c.bf16 %v7423, %v7422
          %v7455 = vpack.c.bf16 %v7439, %v7438
          %v7456 = vpack.c.bf16 %v7425, %v7424
          %v7457 = vpack.c.bf16 %v7441, %v7440
          %s7458 = scalar_lea.vmem [#allocation11], 2816
          %v7459 = vld [vmem:[%s7458] sm:$0xf]
          %v7460 = vld [vmem:[%s7458 + $0x4] sm:$0xf]
          %v7461 = vld [vmem:[%s7458 + $0x8] sm:$0xf]
          %v7462 = vld [vmem:[%s7458 + $0xc] sm:$0xf]
          %v7463 = vld [vmem:[%s7458 + $0x10] sm:$0xf]
          %v7464 = vld [vmem:[%s7458 + $0x14] sm:$0xf]
          %v7465 = vld [vmem:[%s7458 + $0x18] sm:$0xf]
          %v7466 = vld [vmem:[%s7458 + $0x1c] sm:$0xf]
          %v7467 = vld [vmem:[%s7458 + $0x20] sm:$0xf]
          %v7468 = vld [vmem:[%s7458 + $0x24] sm:$0xf]
          %v7469 = vld [vmem:[%s7458 + $0x28] sm:$0xf]
          %v7470 = vld [vmem:[%s7458 + $0x2c] sm:$0xf]
          %v7471 = vld [vmem:[%s7458 + $0x30] sm:$0xf]
          %v7472 = vld [vmem:[%s7458 + $0x34] sm:$0xf]
          %v7473 = vld [vmem:[%s7458 + $0x38] sm:$0xf]
          %v7474 = vld [vmem:[%s7458 + $0x3c] sm:$0xf]
          %v7475 = vld [vmem:[%s7458 + $0x40] sm:$0xf]
          %v7476 = vld [vmem:[%s7458 + $0x44] sm:$0xf]
          %v7477 = vld [vmem:[%s7458 + $0x48] sm:$0xf]
          %v7478 = vld [vmem:[%s7458 + $0x4c] sm:$0xf]
          %v7479 = vld [vmem:[%s7458 + $0x50] sm:$0xf]
          %v7480 = vld [vmem:[%s7458 + $0x54] sm:$0xf]
          %v7481 = vld [vmem:[%s7458 + $0x58] sm:$0xf]
          %v7482 = vld [vmem:[%s7458 + $0x5c] sm:$0xf]
          %v7483 = vld [vmem:[%s7458 + $0x60] sm:$0xf]
          %v7484 = vld [vmem:[%s7458 + $0x64] sm:$0xf]
          %v7485 = vld [vmem:[%s7458 + $0x68] sm:$0xf]
          %v7486 = vld [vmem:[%s7458 + $0x6c] sm:$0xf]
          %v7487 = vld [vmem:[%s7458 + $0x70] sm:$0xf]
          %v7488 = vld [vmem:[%s7458 + $0x74] sm:$0xf]
          %v7489 = vld [vmem:[%s7458 + $0x78] sm:$0xf]
          %v7490 = vld [vmem:[%s7458 + $0x7c] sm:$0xf]
          %v7523 = vunpack.c.l.b16 %v7459
          %v7524 = vunpack.c.l.b16 %v7460
          %v7525 = vunpack.c.l.b16 %v7461
          %v7526 = vunpack.c.l.b16 %v7462
          %v7527 = vunpack.c.l.b16 %v7463
          %v7528 = vunpack.c.l.b16 %v7464
          %v7529 = vunpack.c.l.b16 %v7465
          %v7530 = vunpack.c.l.b16 %v7466
          %v7531 = vunpack.c.l.b16 %v7467
          %v7532 = vunpack.c.l.b16 %v7468
          %v7533 = vunpack.c.l.b16 %v7469
          %v7534 = vunpack.c.l.b16 %v7470
          %v7535 = vunpack.c.l.b16 %v7471
          %v7536 = vunpack.c.l.b16 %v7472
          %v7537 = vunpack.c.l.b16 %v7473
          %v7538 = vunpack.c.l.b16 %v7474
          %v7539 = vunpack.c.l.b16 %v7475
          %v7540 = vunpack.c.l.b16 %v7476
          %v7541 = vunpack.c.l.b16 %v7477
          %v7542 = vunpack.c.l.b16 %v7478
          %v7543 = vunpack.c.l.b16 %v7479
          %v7544 = vunpack.c.l.b16 %v7480
          %v7545 = vunpack.c.l.b16 %v7481
          %v7546 = vunpack.c.l.b16 %v7482
          %v7547 = vunpack.c.l.b16 %v7483
          %v7548 = vunpack.c.l.b16 %v7484
          %v7549 = vunpack.c.l.b16 %v7485
          %v7550 = vunpack.c.l.b16 %v7486
          %v7551 = vunpack.c.l.b16 %v7487
          %v7552 = vunpack.c.l.b16 %v7488
          %v7553 = vunpack.c.l.b16 %v7489
          %v7554 = vunpack.c.l.b16 %v7490
          %v7555 = vpack.c.b16 %v7524, %v7523
          %v7556 = vpack.c.b16 %v7526, %v7525
          %v7557 = vpack.c.b16 %v7528, %v7527
          %v7558 = vpack.c.b16 %v7530, %v7529
          %v7559 = vpack.c.b16 %v7532, %v7531
          %v7560 = vpack.c.b16 %v7534, %v7533
          %v7561 = vpack.c.b16 %v7536, %v7535
          %v7562 = vpack.c.b16 %v7538, %v7537
          %v7563 = vpack.c.b16 %v7540, %v7539
          %v7564 = vpack.c.b16 %v7542, %v7541
          %v7565 = vpack.c.b16 %v7544, %v7543
          %v7566 = vpack.c.b16 %v7546, %v7545
          %v7567 = vpack.c.b16 %v7548, %v7547
          %v7568 = vpack.c.b16 %v7550, %v7549
          %v7569 = vpack.c.b16 %v7552, %v7551
          %v7570 = vpack.c.b16 %v7554, %v7553
          %7587 = vmatprep.subr.bf16.mxu0 0
          %7588 = vmatpush1.bf16.msra.mxu0 %v7555
          %7589 = vmatprep.subr.bf16.mxu0 0
          %7590 = vmatpush1.bf16.msra.mxu0 %v7556
          %7591 = vmatprep.subr.bf16.mxu0 0
          %7592 = vmatpush1.bf16.msra.mxu0 %v7557
          %7593 = vmatprep.subr.bf16.mxu0 0
          %7594 = vmatpush1.bf16.msra.mxu0 %v7558
          %7595 = vmatprep.subr.bf16.mxu0 0
          %7596 = vmatpush1.bf16.msra.mxu0 %v7559
          %7597 = vmatprep.subr.bf16.mxu0 0
          %7598 = vmatpush1.bf16.msra.mxu0 %v7560
          %7599 = vmatprep.subr.bf16.mxu0 0
          %7600 = vmatpush1.bf16.msra.mxu0 %v7561
          %7601 = vmatprep.subr.bf16.mxu0 0
          %7602 = vmatpush1.bf16.msra.mxu0 %v7562
          %7603 = vmatprep.subr.bf16.mxu0 0
          %7604 = vmatpush1.bf16.msra.mxu0 %v7563
          %7605 = vmatprep.subr.bf16.mxu0 0
          %7606 = vmatpush1.bf16.msra.mxu0 %v7564
          %7607 = vmatprep.subr.bf16.mxu0 0
          %7608 = vmatpush1.bf16.msra.mxu0 %v7565
          %7609 = vmatprep.subr.bf16.mxu0 0
          %7610 = vmatpush1.bf16.msra.mxu0 %v7566
          %7611 = vmatprep.subr.bf16.mxu0 0
          %7612 = vmatpush1.bf16.msra.mxu0 %v7567
          %7613 = vmatprep.subr.bf16.mxu0 0
          %7614 = vmatpush1.bf16.msra.mxu0 %v7568
          %7615 = vmatprep.subr.bf16.mxu0 0
          %7616 = vmatpush1.bf16.msra.mxu0 %v7569
          %7617 = vmatprep.subr.bf16.mxu0 0
          %7618 = vmatpush1.bf16.msra.mxu0 %v7570
          %7619 = vmatprep.mubr.bf16.mxu0 %v7443
          %7620 = vmatmul.mubr.bf16.gmra.mrb[0].mxu0 %v7442
          %v7621 = vpop.f32.mrb[0].mxu0
          %v7622 = vadd.f32 0.0, %v7621
          %v7623 = vpop.f32.mrb[0].mxu0
          %v7624 = vpop.f32.mrb[0].mxu0
          %v7625 = vadd.f32 0.0, %v7624
          %v7626 = vpop.f32.mrb[0].mxu0
          %7627 = vmatprep.mubr.bf16.mxu0 %v7445
          %7628 = vmatmul.mubr.bf16.gmra.mrb[0].mxu0 %v7444
          %v7629 = vpop.f32.mrb[0].mxu0
          %v7630 = vadd.f32 0.0, %v7629
          %v7631 = vpop.f32.mrb[0].mxu0
          %v7632 = vpop.f32.mrb[0].mxu0
          %v7633 = vadd.f32 0.0, %v7632
          %v7634 = vpop.f32.mrb[0].mxu0
          %7635 = vmatprep.mubr.bf16.mxu0 %v7447
          %7636 = vmatmul.mubr.bf16.gmra.mrb[0].mxu0 %v7446
          %v7637 = vpop.f32.mrb[0].mxu0
          %v7638 = vadd.f32 0.0, %v7637
          %v7639 = vpop.f32.mrb[0].mxu0
          %v7640 = vpop.f32.mrb[0].mxu0
          %v7641 = vadd.f32 0.0, %v7640
          %v7642 = vpop.f32.mrb[0].mxu0
          %7643 = vmatprep.mubr.bf16.mxu0 %v7449
          %7644 = vmatmul.mubr.bf16.gmra.mrb[0].mxu0 %v7448
          %v7645 = vpop.f32.mrb[0].mxu0
          %v7646 = vadd.f32 0.0, %v7645
          %v7647 = vpop.f32.mrb[0].mxu0
          %v7648 = vpop.f32.mrb[0].mxu0
          %v7649 = vadd.f32 0.0, %v7648
          %v7650 = vpop.f32.mrb[0].mxu0
          %7651 = vmatprep.mubr.bf16.mxu0 %v7451
          %7652 = vmatmul.mubr.bf16.gmra.mrb[0].mxu0 %v7450
          %v7653 = vpop.f32.mrb[0].mxu0
          %v7654 = vadd.f32 0.0, %v7653
          %v7655 = vpop.f32.mrb[0].mxu0
          %v7656 = vpop.f32.mrb[0].mxu0
          %v7657 = vadd.f32 0.0, %v7656
          %v7658 = vpop.f32.mrb[0].mxu0
          %7659 = vmatprep.mubr.bf16.mxu0 %v7453
          %7660 = vmatmul.mubr.bf16.gmra.mrb[0].mxu0 %v7452
          %v7661 = vpop.f32.mrb[0].mxu0
          %v7662 = vadd.f32 0.0, %v7661
          %v7663 = vpop.f32.mrb[0].mxu0
          %v7664 = vpop.f32.mrb[0].mxu0
          %v7665 = vadd.f32 0.0, %v7664
          %v7666 = vpop.f32.mrb[0].mxu0
          %7667 = vmatprep.mubr.bf16.mxu0 %v7455
          %7668 = vmatmul.mubr.bf16.gmra.mrb[0].mxu0 %v7454
          %v7669 = vpop.f32.mrb[0].mxu0
          %v7670 = vadd.f32 0.0, %v7669
          %v7671 = vpop.f32.mrb[0].mxu0
          %v7672 = vpop.f32.mrb[0].mxu0
          %v7673 = vadd.f32 0.0, %v7672
          %v7674 = vpop.f32.mrb[0].mxu0
          %7675 = vmatprep.mubr.bf16.mxu0 %v7457
          %7676 = vmatmul.mubr.bf16.gmra.mrb[0].mxu0 %v7456
          %v7677 = vpop.f32.mrb[0].mxu0
          %v7678 = vadd.f32 0.0, %v7677
          %v7679 = vpop.f32.mrb[0].mxu0
          %v7680 = vpop.f32.mrb[0].mxu0
          %v7681 = vadd.f32 0.0, %v7680
          %v7682 = vpop.f32.mrb[0].mxu0
          %7683 = vdwg.mxu0
          %v7684 = vadd.f32 %v7394, %v7622
          %v7685 = vadd.f32 %v7395, %v7625
          %v7686 = vadd.f32 %v7396, %v7630
          %v7687 = vadd.f32 %v7397, %v7633
          %v7688 = vadd.f32 %v7398, %v7638
          %v7689 = vadd.f32 %v7399, %v7641
          %v7690 = vadd.f32 %v7400, %v7646
          %v7691 = vadd.f32 %v7401, %v7649
          %v7692 = vadd.f32 %v7402, %v7654
          %v7693 = vadd.f32 %v7403, %v7657
          %v7694 = vadd.f32 %v7404, %v7662
          %v7695 = vadd.f32 %v7405, %v7665
          %v7696 = vadd.f32 %v7406, %v7670
          %v7697 = vadd.f32 %v7407, %v7673
          %v7698 = vadd.f32 %v7408, %v7678
          %v7699 = vadd.f32 %v7409, %v7681
          %v7700 = vld [vmem:[#allocation2 + $0x35] sm:$0xff]
          %v7701 = vld [vmem:[#allocation2 + $0x3d] sm:$0xff]
          %v7702 = vld [vmem:[#allocation2 + $0x45] sm:$0xff]
          %v7703 = vld [vmem:[#allocation2 + $0x4d] sm:$0xff]
          %v7704 = vld [vmem:[#allocation2 + $0x55] sm:$0xff]
          %v7705 = vld [vmem:[#allocation2 + $0x5d] sm:$0xff]
          %v7706 = vld [vmem:[#allocation2 + $0x65] sm:$0xff]
          %v7707 = vld [vmem:[#allocation2 + $0x6d] sm:$0xff]
          %v7708 = vld [vmem:[#allocation2 + $0xb5] sm:$0xff]
          %v7709 = vld [vmem:[#allocation2 + $0xbd] sm:$0xff]
          %v7710 = vld [vmem:[#allocation2 + $0xc5] sm:$0xff]
          %v7711 = vld [vmem:[#allocation2 + $0xcd] sm:$0xff]
          %v7712 = vld [vmem:[#allocation2 + $0xd5] sm:$0xff]
          %v7713 = vld [vmem:[#allocation2 + $0xdd] sm:$0xff]
          %v7714 = vld [vmem:[#allocation2 + $0xe5] sm:$0xff]
          %v7715 = vld [vmem:[#allocation2 + $0xed] sm:$0xff]
          %v7716 = vld [vmem:[#allocation2 + $0x36] sm:$0xff]
          %v7717 = vld [vmem:[#allocation2 + $0x3e] sm:$0xff]
          %v7718 = vld [vmem:[#allocation2 + $0x46] sm:$0xff]
          %v7719 = vld [vmem:[#allocation2 + $0x4e] sm:$0xff]
          %v7720 = vld [vmem:[#allocation2 + $0x56] sm:$0xff]
          %v7721 = vld [vmem:[#allocation2 + $0x5e] sm:$0xff]
          %v7722 = vld [vmem:[#allocation2 + $0x66] sm:$0xff]
          %v7723 = vld [vmem:[#allocation2 + $0x6e] sm:$0xff]
          %v7724 = vld [vmem:[#allocation2 + $0xb6] sm:$0xff]
          %v7725 = vld [vmem:[#allocation2 + $0xbe] sm:$0xff]
          %v7726 = vld [vmem:[#allocation2 + $0xc6] sm:$0xff]
          %v7727 = vld [vmem:[#allocation2 + $0xce] sm:$0xff]
          %v7728 = vld [vmem:[#allocation2 + $0xd6] sm:$0xff]
          %v7729 = vld [vmem:[#allocation2 + $0xde] sm:$0xff]
          %v7730 = vld [vmem:[#allocation2 + $0xe6] sm:$0xff]
          %v7731 = vld [vmem:[#allocation2 + $0xee] sm:$0xff]
          %v7732 = vpack.c.bf16 %v7701, %v7700
          %v7733 = vpack.c.bf16 %v7717, %v7716
          %v7734 = vpack.c.bf16 %v7703, %v7702
          %v7735 = vpack.c.bf16 %v7719, %v7718
          %v7736 = vpack.c.bf16 %v7705, %v7704
          %v7737 = vpack.c.bf16 %v7721, %v7720
          %v7738 = vpack.c.bf16 %v7707, %v7706
          %v7739 = vpack.c.bf16 %v7723, %v7722
          %v7740 = vpack.c.bf16 %v7709, %v7708
          %v7741 = vpack.c.bf16 %v7725, %v7724
          %v7742 = vpack.c.bf16 %v7711, %v7710
          %v7743 = vpack.c.bf16 %v7727, %v7726
          %v7744 = vpack.c.bf16 %v7713, %v7712
          %v7745 = vpack.c.bf16 %v7729, %v7728
          %v7746 = vpack.c.bf16 %v7715, %v7714
          %v7747 = vpack.c.bf16 %v7731, %v7730
          %s7748 = scalar_lea.vmem [#allocation11], 2944
          %v7749 = vld [vmem:[%s7748] sm:$0xf]
          %v7750 = vld [vmem:[%s7748 + $0x4] sm:$0xf]
          %v7751 = vld [vmem:[%s7748 + $0x8] sm:$0xf]
          %v7752 = vld [vmem:[%s7748 + $0xc] sm:$0xf]
          %v7753 = vld [vmem:[%s7748 + $0x10] sm:$0xf]
          %v7754 = vld [vmem:[%s7748 + $0x14] sm:$0xf]
          %v7755 = vld [vmem:[%s7748 + $0x18] sm:$0xf]
          %v7756 = vld [vmem:[%s7748 + $0x1c] sm:$0xf]
          %v7757 = vld [vmem:[%s7748 + $0x20] sm:$0xf]
          %v7758 = vld [vmem:[%s7748 + $0x24] sm:$0xf]
          %v7759 = vld [vmem:[%s7748 + $0x28] sm:$0xf]
          %v7760 = vld [vmem:[%s7748 + $0x2c] sm:$0xf]
          %v7761 = vld [vmem:[%s7748 + $0x30] sm:$0xf]
          %v7762 = vld [vmem:[%s7748 + $0x34] sm:$0xf]
          %v7763 = vld [vmem:[%s7748 + $0x38] sm:$0xf]
          %v7764 = vld [vmem:[%s7748 + $0x3c] sm:$0xf]
          %v7765 = vld [vmem:[%s7748 + $0x40] sm:$0xf]
          %v7766 = vld [vmem:[%s7748 + $0x44] sm:$0xf]
          %v7767 = vld [vmem:[%s7748 + $0x48] sm:$0xf]
          %v7768 = vld [vmem:[%s7748 + $0x4c] sm:$0xf]
          %v7769 = vld [vmem:[%s7748 + $0x50] sm:$0xf]
          %v7770 = vld [vmem:[%s7748 + $0x54] sm:$0xf]
          %v7771 = vld [vmem:[%s7748 + $0x58] sm:$0xf]
          %v7772 = vld [vmem:[%s7748 + $0x5c] sm:$0xf]
          %v7773 = vld [vmem:[%s7748 + $0x60] sm:$0xf]
          %v7774 = vld [vmem:[%s7748 + $0x64] sm:$0xf]
          %v7775 = vld [vmem:[%s7748 + $0x68] sm:$0xf]
          %v7776 = vld [vmem:[%s7748 + $0x6c] sm:$0xf]
          %v7777 = vld [vmem:[%s7748 + $0x70] sm:$0xf]
          %v7778 = vld [vmem:[%s7748 + $0x74] sm:$0xf]
          %v7779 = vld [vmem:[%s7748 + $0x78] sm:$0xf]
          %v7780 = vld [vmem:[%s7748 + $0x7c] sm:$0xf]
          %v7813 = vunpack.c.l.b16 %v7749
          %v7814 = vunpack.c.l.b16 %v7750
          %v7815 = vunpack.c.l.b16 %v7751
          %v7816 = vunpack.c.l.b16 %v7752
          %v7817 = vunpack.c.l.b16 %v7753
          %v7818 = vunpack.c.l.b16 %v7754
          %v7819 = vunpack.c.l.b16 %v7755
          %v7820 = vunpack.c.l.b16 %v7756
          %v7821 = vunpack.c.l.b16 %v7757
          %v7822 = vunpack.c.l.b16 %v7758
          %v7823 = vunpack.c.l.b16 %v7759
          %v7824 = vunpack.c.l.b16 %v7760
          %v7825 = vunpack.c.l.b16 %v7761
          %v7826 = vunpack.c.l.b16 %v7762
          %v7827 = vunpack.c.l.b16 %v7763
          %v7828 = vunpack.c.l.b16 %v7764
          %v7829 = vunpack.c.l.b16 %v7765
          %v7830 = vunpack.c.l.b16 %v7766
          %v7831 = vunpack.c.l.b16 %v7767
          %v7832 = vunpack.c.l.b16 %v7768
          %v7833 = vunpack.c.l.b16 %v7769
          %v7834 = vunpack.c.l.b16 %v7770
          %v7835 = vunpack.c.l.b16 %v7771
          %v7836 = vunpack.c.l.b16 %v7772
          %v7837 = vunpack.c.l.b16 %v7773
          %v7838 = vunpack.c.l.b16 %v7774
          %v7839 = vunpack.c.l.b16 %v7775
          %v7840 = vunpack.c.l.b16 %v7776
          %v7841 = vunpack.c.l.b16 %v7777
          %v7842 = vunpack.c.l.b16 %v7778
          %v7843 = vunpack.c.l.b16 %v7779
          %v7844 = vunpack.c.l.b16 %v7780
          %v7845 = vpack.c.b16 %v7814, %v7813
          %v7846 = vpack.c.b16 %v7816, %v7815
          %v7847 = vpack.c.b16 %v7818, %v7817
          %v7848 = vpack.c.b16 %v7820, %v7819
          %v7849 = vpack.c.b16 %v7822, %v7821
          %v7850 = vpack.c.b16 %v7824, %v7823
          %v7851 = vpack.c.b16 %v7826, %v7825
          %v7852 = vpack.c.b16 %v7828, %v7827
          %v7853 = vpack.c.b16 %v7830, %v7829
          %v7854 = vpack.c.b16 %v7832, %v7831
          %v7855 = vpack.c.b16 %v7834, %v7833
          %v7856 = vpack.c.b16 %v7836, %v7835
          %v7857 = vpack.c.b16 %v7838, %v7837
          %v7858 = vpack.c.b16 %v7840, %v7839
          %v7859 = vpack.c.b16 %v7842, %v7841
          %v7860 = vpack.c.b16 %v7844, %v7843
          %7877 = vmatprep.subr.bf16.mxu0 0
          %7878 = vmatpush1.bf16.msra.mxu0 %v7845
          %7879 = vmatprep.subr.bf16.mxu0 0
          %7880 = vmatpush1.bf16.msra.mxu0 %v7846
          %7881 = vmatprep.subr.bf16.mxu0 0
          %7882 = vmatpush1.bf16.msra.mxu0 %v7847
          %7883 = vmatprep.subr.bf16.mxu0 0
          %7884 = vmatpush1.bf16.msra.mxu0 %v7848
          %7885 = vmatprep.subr.bf16.mxu0 0
          %7886 = vmatpush1.bf16.msra.mxu0 %v7849
          %7887 = vmatprep.subr.bf16.mxu0 0
          %7888 = vmatpush1.bf16.msra.mxu0 %v7850
          %7889 = vmatprep.subr.bf16.mxu0 0
          %7890 = vmatpush1.bf16.msra.mxu0 %v7851
          %7891 = vmatprep.subr.bf16.mxu0 0
          %7892 = vmatpush1.bf16.msra.mxu0 %v7852
          %7893 = vmatprep.subr.bf16.mxu0 0
          %7894 = vmatpush1.bf16.msra.mxu0 %v7853
          %7895 = vmatprep.subr.bf16.mxu0 0
          %7896 = vmatpush1.bf16.msra.mxu0 %v7854
          %7897 = vmatprep.subr.bf16.mxu0 0
          %7898 = vmatpush1.bf16.msra.mxu0 %v7855
          %7899 = vmatprep.subr.bf16.mxu0 0
          %7900 = vmatpush1.bf16.msra.mxu0 %v7856
          %7901 = vmatprep.subr.bf16.mxu0 0
          %7902 = vmatpush1.bf16.msra.mxu0 %v7857
          %7903 = vmatprep.subr.bf16.mxu0 0
          %7904 = vmatpush1.bf16.msra.mxu0 %v7858
          %7905 = vmatprep.subr.bf16.mxu0 0
          %7906 = vmatpush1.bf16.msra.mxu0 %v7859
          %7907 = vmatprep.subr.bf16.mxu0 0
          %7908 = vmatpush1.bf16.msra.mxu0 %v7860
          %7909 = vmatprep.mubr.bf16.mxu0 %v7733
          %7910 = vmatmul.mubr.bf16.gmra.mrb[0].mxu0 %v7732
          %v7911 = vpop.f32.mrb[0].mxu0
          %v7912 = vadd.f32 0.0, %v7911
          %v7913 = vpop.f32.mrb[0].mxu0
          %v7914 = vpop.f32.mrb[0].mxu0
          %v7915 = vadd.f32 0.0, %v7914
          %v7916 = vpop.f32.mrb[0].mxu0
          %7917 = vmatprep.mubr.bf16.mxu0 %v7735
          %7918 = vmatmul.mubr.bf16.gmra.mrb[0].mxu0 %v7734
          %v7919 = vpop.f32.mrb[0].mxu0
          %v7920 = vadd.f32 0.0, %v7919
          %v7921 = vpop.f32.mrb[0].mxu0
          %v7922 = vpop.f32.mrb[0].mxu0
          %v7923 = vadd.f32 0.0, %v7922
          %v7924 = vpop.f32.mrb[0].mxu0
          %7925 = vmatprep.mubr.bf16.mxu0 %v7737
          %7926 = vmatmul.mubr.bf16.gmra.mrb[0].mxu0 %v7736
          %v7927 = vpop.f32.mrb[0].mxu0
          %v7928 = vadd.f32 0.0, %v7927
          %v7929 = vpop.f32.mrb[0].mxu0
          %v7930 = vpop.f32.mrb[0].mxu0
          %v7931 = vadd.f32 0.0, %v7930
          %v7932 = vpop.f32.mrb[0].mxu0
          %7933 = vmatprep.mubr.bf16.mxu0 %v7739
          %7934 = vmatmul.mubr.bf16.gmra.mrb[0].mxu0 %v7738
          %v7935 = vpop.f32.mrb[0].mxu0
          %v7936 = vadd.f32 0.0, %v7935
          %v7937 = vpop.f32.mrb[0].mxu0
          %v7938 = vpop.f32.mrb[0].mxu0
          %v7939 = vadd.f32 0.0, %v7938
          %v7940 = vpop.f32.mrb[0].mxu0
          %7941 = vmatprep.mubr.bf16.mxu0 %v7741
          %7942 = vmatmul.mubr.bf16.gmra.mrb[0].mxu0 %v7740
          %v7943 = vpop.f32.mrb[0].mxu0
          %v7944 = vadd.f32 0.0, %v7943
          %v7945 = vpop.f32.mrb[0].mxu0
          %v7946 = vpop.f32.mrb[0].mxu0
          %v7947 = vadd.f32 0.0, %v7946
          %v7948 = vpop.f32.mrb[0].mxu0
          %7949 = vmatprep.mubr.bf16.mxu0 %v7743
          %7950 = vmatmul.mubr.bf16.gmra.mrb[0].mxu0 %v7742
          %v7951 = vpop.f32.mrb[0].mxu0
          %v7952 = vadd.f32 0.0, %v7951
          %v7953 = vpop.f32.mrb[0].mxu0
          %v7954 = vpop.f32.mrb[0].mxu0
          %v7955 = vadd.f32 0.0, %v7954
          %v7956 = vpop.f32.mrb[0].mxu0
          %7957 = vmatprep.mubr.bf16.mxu0 %v7745
          %7958 = vmatmul.mubr.bf16.gmra.mrb[0].mxu0 %v7744
          %v7959 = vpop.f32.mrb[0].mxu0
          %v7960 = vadd.f32 0.0, %v7959
          %v7961 = vpop.f32.mrb[0].mxu0
          %v7962 = vpop.f32.mrb[0].mxu0
          %v7963 = vadd.f32 0.0, %v7962
          %v7964 = vpop.f32.mrb[0].mxu0
          %7965 = vmatprep.mubr.bf16.mxu0 %v7747
          %7966 = vmatmul.mubr.bf16.gmra.mrb[0].mxu0 %v7746
          %v7967 = vpop.f32.mrb[0].mxu0
          %v7968 = vadd.f32 0.0, %v7967
          %v7969 = vpop.f32.mrb[0].mxu0
          %v7970 = vpop.f32.mrb[0].mxu0
          %v7971 = vadd.f32 0.0, %v7970
          %v7972 = vpop.f32.mrb[0].mxu0
          %7973 = vdwg.mxu0
          %v7974 = vadd.f32 %v7684, %v7912
          %v7975 = vadd.f32 %v7685, %v7915
          %v7976 = vadd.f32 %v7686, %v7920
          %v7977 = vadd.f32 %v7687, %v7923
          %v7978 = vadd.f32 %v7688, %v7928
          %v7979 = vadd.f32 %v7689, %v7931
          %v7980 = vadd.f32 %v7690, %v7936
          %v7981 = vadd.f32 %v7691, %v7939
          %v7982 = vadd.f32 %v7692, %v7944
          %v7983 = vadd.f32 %v7693, %v7947
          %v7984 = vadd.f32 %v7694, %v7952
          %v7985 = vadd.f32 %v7695, %v7955
          %v7986 = vadd.f32 %v7696, %v7960
          %v7987 = vadd.f32 %v7697, %v7963
          %v7988 = vadd.f32 %v7698, %v7968
          %v7989 = vadd.f32 %v7699, %v7971
          %v7990 = vld [vmem:[#allocation2 + $0x37] sm:$0xff]
          %v7991 = vld [vmem:[#allocation2 + $0x3f] sm:$0xff]
          %v7992 = vld [vmem:[#allocation2 + $0x47] sm:$0xff]
          %v7993 = vld [vmem:[#allocation2 + $0x4f] sm:$0xff]
          %v7994 = vld [vmem:[#allocation2 + $0x57] sm:$0xff]
          %v7995 = vld [vmem:[#allocation2 + $0x5f] sm:$0xff]
          %v7996 = vld [vmem:[#allocation2 + $0x67] sm:$0xff]
          %v7997 = vld [vmem:[#allocation2 + $0x6f] sm:$0xff]
          %v7998 = vld [vmem:[#allocation2 + $0xb7] sm:$0xff]
          %v7999 = vld [vmem:[#allocation2 + $0xbf] sm:$0xff]
          %v8000 = vld [vmem:[#allocation2 + $0xc7] sm:$0xff]
          %v8001 = vld [vmem:[#allocation2 + $0xcf] sm:$0xff]
          %v8002 = vld [vmem:[#allocation2 + $0xd7] sm:$0xff]
          %v8003 = vld [vmem:[#allocation2 + $0xdf] sm:$0xff]
          %v8004 = vld [vmem:[#allocation2 + $0xe7] sm:$0xff]
          %v8005 = vld [vmem:[#allocation2 + $0xef] sm:$0xff]
          %v8006 = vld [vmem:[#allocation2 + $0x38] sm:$0xff]
          %v8007 = vld [vmem:[#allocation2 + $0x40] sm:$0xff]
          %v8008 = vld [vmem:[#allocation2 + $0x48] sm:$0xff]
          %v8009 = vld [vmem:[#allocation2 + $0x50] sm:$0xff]
          %v8010 = vld [vmem:[#allocation2 + $0x58] sm:$0xff]
          %v8011 = vld [vmem:[#allocation2 + $0x60] sm:$0xff]
          %v8012 = vld [vmem:[#allocation2 + $0x68] sm:$0xff]
          %v8013 = vld [vmem:[#allocation2 + $0x70] sm:$0xff]
          %v8014 = vld [vmem:[#allocation2 + $0xb8] sm:$0xff]
          %v8015 = vld [vmem:[#allocation2 + $0xc0] sm:$0xff]
          %v8016 = vld [vmem:[#allocation2 + $0xc8] sm:$0xff]
          %v8017 = vld [vmem:[#allocation2 + $0xd0] sm:$0xff]
          %v8018 = vld [vmem:[#allocation2 + $0xd8] sm:$0xff]
          %v8019 = vld [vmem:[#allocation2 + $0xe0] sm:$0xff]
          %v8020 = vld [vmem:[#allocation2 + $0xe8] sm:$0xff]
          %v8021 = vld [vmem:[#allocation2 + $0xf0] sm:$0xff]
          %v8022 = vpack.c.bf16 %v7991, %v7990
          %v8023 = vpack.c.bf16 %v8007, %v8006
          %v8024 = vpack.c.bf16 %v7993, %v7992
          %v8025 = vpack.c.bf16 %v8009, %v8008
          %v8026 = vpack.c.bf16 %v7995, %v7994
          %v8027 = vpack.c.bf16 %v8011, %v8010
          %v8028 = vpack.c.bf16 %v7997, %v7996
          %v8029 = vpack.c.bf16 %v8013, %v8012
          %v8030 = vpack.c.bf16 %v7999, %v7998
          %v8031 = vpack.c.bf16 %v8015, %v8014
          %v8032 = vpack.c.bf16 %v8001, %v8000
          %v8033 = vpack.c.bf16 %v8017, %v8016
          %v8034 = vpack.c.bf16 %v8003, %v8002
          %v8035 = vpack.c.bf16 %v8019, %v8018
          %v8036 = vpack.c.bf16 %v8005, %v8004
          %v8037 = vpack.c.bf16 %v8021, %v8020
          %s8038 = scalar_lea.vmem [#allocation11], 3072
          %v8039 = vld [vmem:[%s8038] sm:$0xf]
          %v8040 = vld [vmem:[%s8038 + $0x4] sm:$0xf]
          %v8041 = vld [vmem:[%s8038 + $0x8] sm:$0xf]
          %v8042 = vld [vmem:[%s8038 + $0xc] sm:$0xf]
          %v8043 = vld [vmem:[%s8038 + $0x10] sm:$0xf]
          %v8044 = vld [vmem:[%s8038 + $0x14] sm:$0xf]
          %v8045 = vld [vmem:[%s8038 + $0x18] sm:$0xf]
          %v8046 = vld [vmem:[%s8038 + $0x1c] sm:$0xf]
          %v8047 = vld [vmem:[%s8038 + $0x20] sm:$0xf]
          %v8048 = vld [vmem:[%s8038 + $0x24] sm:$0xf]
          %v8049 = vld [vmem:[%s8038 + $0x28] sm:$0xf]
          %v8050 = vld [vmem:[%s8038 + $0x2c] sm:$0xf]
          %v8051 = vld [vmem:[%s8038 + $0x30] sm:$0xf]
          %v8052 = vld [vmem:[%s8038 + $0x34] sm:$0xf]
          %v8053 = vld [vmem:[%s8038 + $0x38] sm:$0xf]
          %v8054 = vld [vmem:[%s8038 + $0x3c] sm:$0xf]
          %v8055 = vld [vmem:[%s8038 + $0x40] sm:$0xf]
          %v8056 = vld [vmem:[%s8038 + $0x44] sm:$0xf]
          %v8057 = vld [vmem:[%s8038 + $0x48] sm:$0xf]
          %v8058 = vld [vmem:[%s8038 + $0x4c] sm:$0xf]
          %v8059 = vld [vmem:[%s8038 + $0x50] sm:$0xf]
          %v8060 = vld [vmem:[%s8038 + $0x54] sm:$0xf]
          %v8061 = vld [vmem:[%s8038 + $0x58] sm:$0xf]
          %v8062 = vld [vmem:[%s8038 + $0x5c] sm:$0xf]
          %v8063 = vld [vmem:[%s8038 + $0x60] sm:$0xf]
          %v8064 = vld [vmem:[%s8038 + $0x64] sm:$0xf]
          %v8065 = vld [vmem:[%s8038 + $0x68] sm:$0xf]
          %v8066 = vld [vmem:[%s8038 + $0x6c] sm:$0xf]
          %v8067 = vld [vmem:[%s8038 + $0x70] sm:$0xf]
          %v8068 = vld [vmem:[%s8038 + $0x74] sm:$0xf]
          %v8069 = vld [vmem:[%s8038 + $0x78] sm:$0xf]
          %v8070 = vld [vmem:[%s8038 + $0x7c] sm:$0xf]
          %v8103 = vunpack.c.l.b16 %v8039
          %v8104 = vunpack.c.l.b16 %v8040
          %v8105 = vunpack.c.l.b16 %v8041
          %v8106 = vunpack.c.l.b16 %v8042
          %v8107 = vunpack.c.l.b16 %v8043
          %v8108 = vunpack.c.l.b16 %v8044
          %v8109 = vunpack.c.l.b16 %v8045
          %v8110 = vunpack.c.l.b16 %v8046
          %v8111 = vunpack.c.l.b16 %v8047
          %v8112 = vunpack.c.l.b16 %v8048
          %v8113 = vunpack.c.l.b16 %v8049
          %v8114 = vunpack.c.l.b16 %v8050
          %v8115 = vunpack.c.l.b16 %v8051
          %v8116 = vunpack.c.l.b16 %v8052
          %v8117 = vunpack.c.l.b16 %v8053
          %v8118 = vunpack.c.l.b16 %v8054
          %v8119 = vunpack.c.l.b16 %v8055
          %v8120 = vunpack.c.l.b16 %v8056
          %v8121 = vunpack.c.l.b16 %v8057
          %v8122 = vunpack.c.l.b16 %v8058
          %v8123 = vunpack.c.l.b16 %v8059
          %v8124 = vunpack.c.l.b16 %v8060
          %v8125 = vunpack.c.l.b16 %v8061
          %v8126 = vunpack.c.l.b16 %v8062
          %v8127 = vunpack.c.l.b16 %v8063
          %v8128 = vunpack.c.l.b16 %v8064
          %v8129 = vunpack.c.l.b16 %v8065
          %v8130 = vunpack.c.l.b16 %v8066
          %v8131 = vunpack.c.l.b16 %v8067
          %v8132 = vunpack.c.l.b16 %v8068
          %v8133 = vunpack.c.l.b16 %v8069
          %v8134 = vunpack.c.l.b16 %v8070
          %v8135 = vpack.c.b16 %v8104, %v8103
          %v8136 = vpack.c.b16 %v8106, %v8105
          %v8137 = vpack.c.b16 %v8108, %v8107
          %v8138 = vpack.c.b16 %v8110, %v8109
          %v8139 = vpack.c.b16 %v8112, %v8111
          %v8140 = vpack.c.b16 %v8114, %v8113
          %v8141 = vpack.c.b16 %v8116, %v8115
          %v8142 = vpack.c.b16 %v8118, %v8117
          %v8143 = vpack.c.b16 %v8120, %v8119
          %v8144 = vpack.c.b16 %v8122, %v8121
          %v8145 = vpack.c.b16 %v8124, %v8123
          %v8146 = vpack.c.b16 %v8126, %v8125
          %v8147 = vpack.c.b16 %v8128, %v8127
          %v8148 = vpack.c.b16 %v8130, %v8129
          %v8149 = vpack.c.b16 %v8132, %v8131
          %v8150 = vpack.c.b16 %v8134, %v8133
          %8167 = vmatprep.subr.bf16.mxu0 0
          %8168 = vmatpush1.bf16.msra.mxu0 %v8135
          %8169 = vmatprep.subr.bf16.mxu0 0
          %8170 = vmatpush1.bf16.msra.mxu0 %v8136
          %8171 = vmatprep.subr.bf16.mxu0 0
          %8172 = vmatpush1.bf16.msra.mxu0 %v8137
          %8173 = vmatprep.subr.bf16.mxu0 0
          %8174 = vmatpush1.bf16.msra.mxu0 %v8138
          %8175 = vmatprep.subr.bf16.mxu0 0
          %8176 = vmatpush1.bf16.msra.mxu0 %v8139
          %8177 = vmatprep.subr.bf16.mxu0 0
          %8178 = vmatpush1.bf16.msra.mxu0 %v8140
          %8179 = vmatprep.subr.bf16.mxu0 0
          %8180 = vmatpush1.bf16.msra.mxu0 %v8141
          %8181 = vmatprep.subr.bf16.mxu0 0
          %8182 = vmatpush1.bf16.msra.mxu0 %v8142
          %8183 = vmatprep.subr.bf16.mxu0 0
          %8184 = vmatpush1.bf16.msra.mxu0 %v8143
          %8185 = vmatprep.subr.bf16.mxu0 0
          %8186 = vmatpush1.bf16.msra.mxu0 %v8144
          %8187 = vmatprep.subr.bf16.mxu0 0
          %8188 = vmatpush1.bf16.msra.mxu0 %v8145
          %8189 = vmatprep.subr.bf16.mxu0 0
          %8190 = vmatpush1.bf16.msra.mxu0 %v8146
          %8191 = vmatprep.subr.bf16.mxu0 0
          %8192 = vmatpush1.bf16.msra.mxu0 %v8147
          %8193 = vmatprep.subr.bf16.mxu0 0
          %8194 = vmatpush1.bf16.msra.mxu0 %v8148
          %8195 = vmatprep.subr.bf16.mxu0 0
          %8196 = vmatpush1.bf16.msra.mxu0 %v8149
          %8197 = vmatprep.subr.bf16.mxu0 0
          %8198 = vmatpush1.bf16.msra.mxu0 %v8150
          %8199 = vmatprep.mubr.bf16.mxu0 %v8023
          %8200 = vmatmul.mubr.bf16.gmra.mrb[0].mxu0 %v8022
          %v8201 = vpop.f32.mrb[0].mxu0
          %v8202 = vadd.f32 0.0, %v8201
          %v8203 = vpop.f32.mrb[0].mxu0
          %v8204 = vpop.f32.mrb[0].mxu0
          %v8205 = vadd.f32 0.0, %v8204
          %v8206 = vpop.f32.mrb[0].mxu0
          %8207 = vmatprep.mubr.bf16.mxu0 %v8025
          %8208 = vmatmul.mubr.bf16.gmra.mrb[0].mxu0 %v8024
          %v8209 = vpop.f32.mrb[0].mxu0
          %v8210 = vadd.f32 0.0, %v8209
          %v8211 = vpop.f32.mrb[0].mxu0
          %v8212 = vpop.f32.mrb[0].mxu0
          %v8213 = vadd.f32 0.0, %v8212
          %v8214 = vpop.f32.mrb[0].mxu0
          %8215 = vmatprep.mubr.bf16.mxu0 %v8027
          %8216 = vmatmul.mubr.bf16.gmra.mrb[0].mxu0 %v8026
          %v8217 = vpop.f32.mrb[0].mxu0
          %v8218 = vadd.f32 0.0, %v8217
          %v8219 = vpop.f32.mrb[0].mxu0
          %v8220 = vpop.f32.mrb[0].mxu0
          %v8221 = vadd.f32 0.0, %v8220
          %v8222 = vpop.f32.mrb[0].mxu0
          %8223 = vmatprep.mubr.bf16.mxu0 %v8029
          %8224 = vmatmul.mubr.bf16.gmra.mrb[0].mxu0 %v8028
          %v8225 = vpop.f32.mrb[0].mxu0
          %v8226 = vadd.f32 0.0, %v8225
          %v8227 = vpop.f32.mrb[0].mxu0
          %v8228 = vpop.f32.mrb[0].mxu0
          %v8229 = vadd.f32 0.0, %v8228
          %v8230 = vpop.f32.mrb[0].mxu0
          %8231 = vmatprep.mubr.bf16.mxu0 %v8031
          %8232 = vmatmul.mubr.bf16.gmra.mrb[0].mxu0 %v8030
          %v8233 = vpop.f32.mrb[0].mxu0
          %v8234 = vadd.f32 0.0, %v8233
          %v8235 = vpop.f32.mrb[0].mxu0
          %v8236 = vpop.f32.mrb[0].mxu0
          %v8237 = vadd.f32 0.0, %v8236
          %v8238 = vpop.f32.mrb[0].mxu0
          %8239 = vmatprep.mubr.bf16.mxu0 %v8033
          %8240 = vmatmul.mubr.bf16.gmra.mrb[0].mxu0 %v8032
          %v8241 = vpop.f32.mrb[0].mxu0
          %v8242 = vadd.f32 0.0, %v8241
          %v8243 = vpop.f32.mrb[0].mxu0
          %v8244 = vpop.f32.mrb[0].mxu0
          %v8245 = vadd.f32 0.0, %v8244
          %v8246 = vpop.f32.mrb[0].mxu0
          %8247 = vmatprep.mubr.bf16.mxu0 %v8035
          %8248 = vmatmul.mubr.bf16.gmra.mrb[0].mxu0 %v8034
          %v8249 = vpop.f32.mrb[0].mxu0
          %v8250 = vadd.f32 0.0, %v8249
          %v8251 = vpop.f32.mrb[0].mxu0
          %v8252 = vpop.f32.mrb[0].mxu0
          %v8253 = vadd.f32 0.0, %v8252
          %v8254 = vpop.f32.mrb[0].mxu0
          %8255 = vmatprep.mubr.bf16.mxu0 %v8037
          %8256 = vmatmul.mubr.bf16.gmra.mrb[0].mxu0 %v8036
          %v8257 = vpop.f32.mrb[0].mxu0
          %v8258 = vadd.f32 0.0, %v8257
          %v8259 = vpop.f32.mrb[0].mxu0
          %v8260 = vpop.f32.mrb[0].mxu0
          %v8261 = vadd.f32 0.0, %v8260
          %v8262 = vpop.f32.mrb[0].mxu0
          %8263 = vdwg.mxu0
          %v8264 = vadd.f32 %v7974, %v8202
          %v8265 = vadd.f32 %v7975, %v8205
          %v8266 = vadd.f32 %v7976, %v8210
          %v8267 = vadd.f32 %v7977, %v8213
          %v8268 = vadd.f32 %v7978, %v8218
          %v8269 = vadd.f32 %v7979, %v8221
          %v8270 = vadd.f32 %v7980, %v8226
          %v8271 = vadd.f32 %v7981, %v8229
          %v8272 = vadd.f32 %v7982, %v8234
          %v8273 = vadd.f32 %v7983, %v8237
          %v8274 = vadd.f32 %v7984, %v8242
          %v8275 = vadd.f32 %v7985, %v8245
          %v8276 = vadd.f32 %v7986, %v8250
          %v8277 = vadd.f32 %v7987, %v8253
          %v8278 = vadd.f32 %v7988, %v8258
          %v8279 = vadd.f32 %v7989, %v8261
          %v8280 = vld [vmem:[#allocation2 + $0x39] sm:$0xff]
          %v8281 = vld [vmem:[#allocation2 + $0x41] sm:$0xff]
          %v8282 = vld [vmem:[#allocation2 + $0x49] sm:$0xff]
          %v8283 = vld [vmem:[#allocation2 + $0x51] sm:$0xff]
          %v8284 = vld [vmem:[#allocation2 + $0x59] sm:$0xff]
          %v8285 = vld [vmem:[#allocation2 + $0x61] sm:$0xff]
          %v8286 = vld [vmem:[#allocation2 + $0x69] sm:$0xff]
          %v8287 = vld [vmem:[#allocation2 + $0x71] sm:$0xff]
          %v8288 = vld [vmem:[#allocation2 + $0xb9] sm:$0xff]
          %v8289 = vld [vmem:[#allocation2 + $0xc1] sm:$0xff]
          %v8290 = vld [vmem:[#allocation2 + $0xc9] sm:$0xff]
          %v8291 = vld [vmem:[#allocation2 + $0xd1] sm:$0xff]
          %v8292 = vld [vmem:[#allocation2 + $0xd9] sm:$0xff]
          %v8293 = vld [vmem:[#allocation2 + $0xe1] sm:$0xff]
          %v8294 = vld [vmem:[#allocation2 + $0xe9] sm:$0xff]
          %v8295 = vld [vmem:[#allocation2 + $0xf1] sm:$0xff]
          %v8296 = vld [vmem:[#allocation2 + $0x3a] sm:$0xff]
          %v8297 = vld [vmem:[#allocation2 + $0x42] sm:$0xff]
          %v8298 = vld [vmem:[#allocation2 + $0x4a] sm:$0xff]
          %v8299 = vld [vmem:[#allocation2 + $0x52] sm:$0xff]
          %v8300 = vld [vmem:[#allocation2 + $0x5a] sm:$0xff]
          %v8301 = vld [vmem:[#allocation2 + $0x62] sm:$0xff]
          %v8302 = vld [vmem:[#allocation2 + $0x6a] sm:$0xff]
          %v8303 = vld [vmem:[#allocation2 + $0x72] sm:$0xff]
          %v8304 = vld [vmem:[#allocation2 + $0xba] sm:$0xff]
          %v8305 = vld [vmem:[#allocation2 + $0xc2] sm:$0xff]
          %v8306 = vld [vmem:[#allocation2 + $0xca] sm:$0xff]
          %v8307 = vld [vmem:[#allocation2 + $0xd2] sm:$0xff]
          %v8308 = vld [vmem:[#allocation2 + $0xda] sm:$0xff]
          %v8309 = vld [vmem:[#allocation2 + $0xe2] sm:$0xff]
          %v8310 = vld [vmem:[#allocation2 + $0xea] sm:$0xff]
          %v8311 = vld [vmem:[#allocation2 + $0xf2] sm:$0xff]
          %v8312 = vpack.c.bf16 %v8281, %v8280
          %v8313 = vpack.c.bf16 %v8297, %v8296
          %v8314 = vpack.c.bf16 %v8283, %v8282
          %v8315 = vpack.c.bf16 %v8299, %v8298
          %v8316 = vpack.c.bf16 %v8285, %v8284
          %v8317 = vpack.c.bf16 %v8301, %v8300
          %v8318 = vpack.c.bf16 %v8287, %v8286
          %v8319 = vpack.c.bf16 %v8303, %v8302
          %v8320 = vpack.c.bf16 %v8289, %v8288
          %v8321 = vpack.c.bf16 %v8305, %v8304
          %v8322 = vpack.c.bf16 %v8291, %v8290
          %v8323 = vpack.c.bf16 %v8307, %v8306
          %v8324 = vpack.c.bf16 %v8293, %v8292
          %v8325 = vpack.c.bf16 %v8309, %v8308
          %v8326 = vpack.c.bf16 %v8295, %v8294
          %v8327 = vpack.c.bf16 %v8311, %v8310
          %s8328 = scalar_lea.vmem [#allocation11], 3200
          %v8329 = vld [vmem:[%s8328] sm:$0xf]
          %v8330 = vld [vmem:[%s8328 + $0x4] sm:$0xf]
          %v8331 = vld [vmem:[%s8328 + $0x8] sm:$0xf]
          %v8332 = vld [vmem:[%s8328 + $0xc] sm:$0xf]
          %v8333 = vld [vmem:[%s8328 + $0x10] sm:$0xf]
          %v8334 = vld [vmem:[%s8328 + $0x14] sm:$0xf]
          %v8335 = vld [vmem:[%s8328 + $0x18] sm:$0xf]
          %v8336 = vld [vmem:[%s8328 + $0x1c] sm:$0xf]
          %v8337 = vld [vmem:[%s8328 + $0x20] sm:$0xf]
          %v8338 = vld [vmem:[%s8328 + $0x24] sm:$0xf]
          %v8339 = vld [vmem:[%s8328 + $0x28] sm:$0xf]
          %v8340 = vld [vmem:[%s8328 + $0x2c] sm:$0xf]
          %v8341 = vld [vmem:[%s8328 + $0x30] sm:$0xf]
          %v8342 = vld [vmem:[%s8328 + $0x34] sm:$0xf]
          %v8343 = vld [vmem:[%s8328 + $0x38] sm:$0xf]
          %v8344 = vld [vmem:[%s8328 + $0x3c] sm:$0xf]
          %v8345 = vld [vmem:[%s8328 + $0x40] sm:$0xf]
          %v8346 = vld [vmem:[%s8328 + $0x44] sm:$0xf]
          %v8347 = vld [vmem:[%s8328 + $0x48] sm:$0xf]
          %v8348 = vld [vmem:[%s8328 + $0x4c] sm:$0xf]
          %v8349 = vld [vmem:[%s8328 + $0x50] sm:$0xf]
          %v8350 = vld [vmem:[%s8328 + $0x54] sm:$0xf]
          %v8351 = vld [vmem:[%s8328 + $0x58] sm:$0xf]
          %v8352 = vld [vmem:[%s8328 + $0x5c] sm:$0xf]
          %v8353 = vld [vmem:[%s8328 + $0x60] sm:$0xf]
          %v8354 = vld [vmem:[%s8328 + $0x64] sm:$0xf]
          %v8355 = vld [vmem:[%s8328 + $0x68] sm:$0xf]
          %v8356 = vld [vmem:[%s8328 + $0x6c] sm:$0xf]
          %v8357 = vld [vmem:[%s8328 + $0x70] sm:$0xf]
          %v8358 = vld [vmem:[%s8328 + $0x74] sm:$0xf]
          %v8359 = vld [vmem:[%s8328 + $0x78] sm:$0xf]
          %v8360 = vld [vmem:[%s8328 + $0x7c] sm:$0xf]
          %v8393 = vunpack.c.l.b16 %v8329
          %v8394 = vunpack.c.l.b16 %v8330
          %v8395 = vunpack.c.l.b16 %v8331
          %v8396 = vunpack.c.l.b16 %v8332
          %v8397 = vunpack.c.l.b16 %v8333
          %v8398 = vunpack.c.l.b16 %v8334
          %v8399 = vunpack.c.l.b16 %v8335
          %v8400 = vunpack.c.l.b16 %v8336
          %v8401 = vunpack.c.l.b16 %v8337
          %v8402 = vunpack.c.l.b16 %v8338
          %v8403 = vunpack.c.l.b16 %v8339
          %v8404 = vunpack.c.l.b16 %v8340
          %v8405 = vunpack.c.l.b16 %v8341
          %v8406 = vunpack.c.l.b16 %v8342
          %v8407 = vunpack.c.l.b16 %v8343
          %v8408 = vunpack.c.l.b16 %v8344
          %v8409 = vunpack.c.l.b16 %v8345
          %v8410 = vunpack.c.l.b16 %v8346
          %v8411 = vunpack.c.l.b16 %v8347
          %v8412 = vunpack.c.l.b16 %v8348
          %v8413 = vunpack.c.l.b16 %v8349
          %v8414 = vunpack.c.l.b16 %v8350
          %v8415 = vunpack.c.l.b16 %v8351
          %v8416 = vunpack.c.l.b16 %v8352
          %v8417 = vunpack.c.l.b16 %v8353
          %v8418 = vunpack.c.l.b16 %v8354
          %v8419 = vunpack.c.l.b16 %v8355
          %v8420 = vunpack.c.l.b16 %v8356
          %v8421 = vunpack.c.l.b16 %v8357
          %v8422 = vunpack.c.l.b16 %v8358
          %v8423 = vunpack.c.l.b16 %v8359
          %v8424 = vunpack.c.l.b16 %v8360
          %v8425 = vpack.c.b16 %v8394, %v8393
          %v8426 = vpack.c.b16 %v8396, %v8395
          %v8427 = vpack.c.b16 %v8398, %v8397
          %v8428 = vpack.c.b16 %v8400, %v8399
          %v8429 = vpack.c.b16 %v8402, %v8401
          %v8430 = vpack.c.b16 %v8404, %v8403
          %v8431 = vpack.c.b16 %v8406, %v8405
          %v8432 = vpack.c.b16 %v8408, %v8407
          %v8433 = vpack.c.b16 %v8410, %v8409
          %v8434 = vpack.c.b16 %v8412, %v8411
          %v8435 = vpack.c.b16 %v8414, %v8413
          %v8436 = vpack.c.b16 %v8416, %v8415
          %v8437 = vpack.c.b16 %v8418, %v8417
          %v8438 = vpack.c.b16 %v8420, %v8419
          %v8439 = vpack.c.b16 %v8422, %v8421
          %v8440 = vpack.c.b16 %v8424, %v8423
          %8457 = vmatprep.subr.bf16.mxu0 0
          %8458 = vmatpush1.bf16.msra.mxu0 %v8425
          %8459 = vmatprep.subr.bf16.mxu0 0
          %8460 = vmatpush1.bf16.msra.mxu0 %v8426
          %8461 = vmatprep.subr.bf16.mxu0 0
          %8462 = vmatpush1.bf16.msra.mxu0 %v8427
          %8463 = vmatprep.subr.bf16.mxu0 0
          %8464 = vmatpush1.bf16.msra.mxu0 %v8428
          %8465 = vmatprep.subr.bf16.mxu0 0
          %8466 = vmatpush1.bf16.msra.mxu0 %v8429
          %8467 = vmatprep.subr.bf16.mxu0 0
          %8468 = vmatpush1.bf16.msra.mxu0 %v8430
          %8469 = vmatprep.subr.bf16.mxu0 0
          %8470 = vmatpush1.bf16.msra.mxu0 %v8431
          %8471 = vmatprep.subr.bf16.mxu0 0
          %8472 = vmatpush1.bf16.msra.mxu0 %v8432
          %8473 = vmatprep.subr.bf16.mxu0 0
          %8474 = vmatpush1.bf16.msra.mxu0 %v8433
          %8475 = vmatprep.subr.bf16.mxu0 0
          %8476 = vmatpush1.bf16.msra.mxu0 %v8434
          %8477 = vmatprep.subr.bf16.mxu0 0
          %8478 = vmatpush1.bf16.msra.mxu0 %v8435
          %8479 = vmatprep.subr.bf16.mxu0 0
          %8480 = vmatpush1.bf16.msra.mxu0 %v8436
          %8481 = vmatprep.subr.bf16.mxu0 0
          %8482 = vmatpush1.bf16.msra.mxu0 %v8437
          %8483 = vmatprep.subr.bf16.mxu0 0
          %8484 = vmatpush1.bf16.msra.mxu0 %v8438
          %8485 = vmatprep.subr.bf16.mxu0 0
          %8486 = vmatpush1.bf16.msra.mxu0 %v8439
          %8487 = vmatprep.subr.bf16.mxu0 0
          %8488 = vmatpush1.bf16.msra.mxu0 %v8440
          %8489 = vmatprep.mubr.bf16.mxu0 %v8313
          %8490 = vmatmul.mubr.bf16.gmra.mrb[0].mxu0 %v8312
          %v8491 = vpop.f32.mrb[0].mxu0
          %v8492 = vadd.f32 0.0, %v8491
          %v8493 = vpop.f32.mrb[0].mxu0
          %v8494 = vpop.f32.mrb[0].mxu0
          %v8495 = vadd.f32 0.0, %v8494
          %v8496 = vpop.f32.mrb[0].mxu0
          %8497 = vmatprep.mubr.bf16.mxu0 %v8315
          %8498 = vmatmul.mubr.bf16.gmra.mrb[0].mxu0 %v8314
          %v8499 = vpop.f32.mrb[0].mxu0
          %v8500 = vadd.f32 0.0, %v8499
          %v8501 = vpop.f32.mrb[0].mxu0
          %v8502 = vpop.f32.mrb[0].mxu0
          %v8503 = vadd.f32 0.0, %v8502
          %v8504 = vpop.f32.mrb[0].mxu0
          %8505 = vmatprep.mubr.bf16.mxu0 %v8317
          %8506 = vmatmul.mubr.bf16.gmra.mrb[0].mxu0 %v8316
          %v8507 = vpop.f32.mrb[0].mxu0
          %v8508 = vadd.f32 0.0, %v8507
          %v8509 = vpop.f32.mrb[0].mxu0
          %v8510 = vpop.f32.mrb[0].mxu0
          %v8511 = vadd.f32 0.0, %v8510
          %v8512 = vpop.f32.mrb[0].mxu0
          %8513 = vmatprep.mubr.bf16.mxu0 %v8319
          %8514 = vmatmul.mubr.bf16.gmra.mrb[0].mxu0 %v8318
          %v8515 = vpop.f32.mrb[0].mxu0
          %v8516 = vadd.f32 0.0, %v8515
          %v8517 = vpop.f32.mrb[0].mxu0
          %v8518 = vpop.f32.mrb[0].mxu0
          %v8519 = vadd.f32 0.0, %v8518
          %v8520 = vpop.f32.mrb[0].mxu0
          %8521 = vmatprep.mubr.bf16.mxu0 %v8321
          %8522 = vmatmul.mubr.bf16.gmra.mrb[0].mxu0 %v8320
          %v8523 = vpop.f32.mrb[0].mxu0
          %v8524 = vadd.f32 0.0, %v8523
          %v8525 = vpop.f32.mrb[0].mxu0
          %v8526 = vpop.f32.mrb[0].mxu0
          %v8527 = vadd.f32 0.0, %v8526
          %v8528 = vpop.f32.mrb[0].mxu0
          %8529 = vmatprep.mubr.bf16.mxu0 %v8323
          %8530 = vmatmul.mubr.bf16.gmra.mrb[0].mxu0 %v8322
          %v8531 = vpop.f32.mrb[0].mxu0
          %v8532 = vadd.f32 0.0, %v8531
          %v8533 = vpop.f32.mrb[0].mxu0
          %v8534 = vpop.f32.mrb[0].mxu0
          %v8535 = vadd.f32 0.0, %v8534
          %v8536 = vpop.f32.mrb[0].mxu0
          %8537 = vmatprep.mubr.bf16.mxu0 %v8325
          %8538 = vmatmul.mubr.bf16.gmra.mrb[0].mxu0 %v8324
          %v8539 = vpop.f32.mrb[0].mxu0
          %v8540 = vadd.f32 0.0, %v8539
          %v8541 = vpop.f32.mrb[0].mxu0
          %v8542 = vpop.f32.mrb[0].mxu0
          %v8543 = vadd.f32 0.0, %v8542
          %v8544 = vpop.f32.mrb[0].mxu0
          %8545 = vmatprep.mubr.bf16.mxu0 %v8327
          %8546 = vmatmul.mubr.bf16.gmra.mrb[0].mxu0 %v8326
          %v8547 = vpop.f32.mrb[0].mxu0
          %v8548 = vadd.f32 0.0, %v8547
          %v8549 = vpop.f32.mrb[0].mxu0
          %v8550 = vpop.f32.mrb[0].mxu0
          %v8551 = vadd.f32 0.0, %v8550
          %v8552 = vpop.f32.mrb[0].mxu0
          %8553 = vdwg.mxu0
          %v8554 = vadd.f32 %v8264, %v8492
          %v8555 = vadd.f32 %v8265, %v8495
          %v8556 = vadd.f32 %v8266, %v8500
          %v8557 = vadd.f32 %v8267, %v8503
          %v8558 = vadd.f32 %v8268, %v8508
          %v8559 = vadd.f32 %v8269, %v8511
          %v8560 = vadd.f32 %v8270, %v8516
          %v8561 = vadd.f32 %v8271, %v8519
          %v8562 = vadd.f32 %v8272, %v8524
          %v8563 = vadd.f32 %v8273, %v8527
          %v8564 = vadd.f32 %v8274, %v8532
          %v8565 = vadd.f32 %v8275, %v8535
          %v8566 = vadd.f32 %v8276, %v8540
          %v8567 = vadd.f32 %v8277, %v8543
          %v8568 = vadd.f32 %v8278, %v8548
          %v8569 = vadd.f32 %v8279, %v8551
          %v8570 = vld [vmem:[#allocation12] sm:$0x1]
          %v8572 = vlaneseq
          %v8573 = vshrl.u32 %v8572, 7
          %v8574 = vsub.s32 0, %v8573
          %v8575 = vrot.slane %v8570, %v8574
          %v8577 = vadd.f32 %v8554, %v8575
          %v8578 = vadd.f32 %v8555, %v8575
          %v8579 = vadd.f32 %v8556, %v8575
          %v8580 = vadd.f32 %v8557, %v8575
          %v8581 = vadd.f32 %v8558, %v8575
          %v8582 = vadd.f32 %v8559, %v8575
          %v8583 = vadd.f32 %v8560, %v8575
          %v8584 = vadd.f32 %v8561, %v8575
          %v8585 = vadd.f32 %v8562, %v8575
          %v8586 = vadd.f32 %v8563, %v8575
          %v8587 = vadd.f32 %v8564, %v8575
          %v8588 = vadd.f32 %v8565, %v8575
          %v8589 = vadd.f32 %v8566, %v8575
          %v8590 = vadd.f32 %v8567, %v8575
          %v8591 = vadd.f32 %v8568, %v8575
          %v8592 = vadd.f32 %v8569, %v8575
          %v8593 = vmax.f32 %v8577, 0.0
          %v8594 = vmax.f32 %v8578, 0.0
          %v8595 = vmax.f32 %v8579, 0.0
          %v8596 = vmax.f32 %v8580, 0.0
          %v8597 = vmax.f32 %v8581, 0.0
          %v8598 = vmax.f32 %v8582, 0.0
          %v8599 = vmax.f32 %v8583, 0.0
          %v8600 = vmax.f32 %v8584, 0.0
          %v8601 = vmax.f32 %v8585, 0.0
          %v8602 = vmax.f32 %v8586, 0.0
          %v8603 = vmax.f32 %v8587, 0.0
          %v8604 = vmax.f32 %v8588, 0.0
          %v8605 = vmax.f32 %v8589, 0.0
          %v8606 = vmax.f32 %v8590, 0.0
          %v8607 = vmax.f32 %v8591, 0.0
          %v8608 = vmax.f32 %v8592, 0.0
          %v8609 = vsel %vm549, %v8593, -1e+13
          %v8610 = vsel %vm549, %v8594, -1e+13
          %v8611 = vsel %vm549, %v8595, -1e+13
          %v8612 = vsel %vm549, %v8596, -1e+13
          %v8613 = vsel %vm549, %v8597, -1e+13
          %v8614 = vsel %vm549, %v8598, -1e+13
          %v8615 = vsel %vm549, %v8599, -1e+13
          %v8616 = vsel %vm549, %v8600, -1e+13
          %v8617 = vsel %vm549, %v8601, -1e+13
          %v8618 = vsel %vm549, %v8602, -1e+13
          %v8619 = vsel %vm549, %v8603, -1e+13
          %v8620 = vsel %vm549, %v8604, -1e+13
          %v8621 = vsel %vm549, %v8605, -1e+13
          %v8622 = vsel %vm549, %v8606, -1e+13
          %v8623 = vsel %vm549, %v8607, -1e+13
          %v8624 = vsel %vm549, %v8608, -1e+13
          %8625 = vmax.xlane.f32.xlu0 %v8609
          %v8626 = vpop.xlane.xlu0 %8625
          %8627 = vmax.xlane.f32.xlu0 %v8610
          %v8628 = vpop.xlane.xlu0 %8627
          %8629 = vmax.xlane.f32.xlu0 %v8611
          %v8630 = vpop.xlane.xlu0 %8629
          %8631 = vmax.xlane.f32.xlu0 %v8612
          %v8632 = vpop.xlane.xlu0 %8631
          %8633 = vmax.xlane.f32.xlu0 %v8613
          %v8634 = vpop.xlane.xlu0 %8633
          %8635 = vmax.xlane.f32.xlu0 %v8614
          %v8636 = vpop.xlane.xlu0 %8635
          %8637 = vmax.xlane.f32.xlu0 %v8615
          %v8638 = vpop.xlane.xlu0 %8637
          %8639 = vmax.xlane.f32.xlu0 %v8616
          %v8640 = vpop.xlane.xlu0 %8639
          %8641 = vmax.xlane.f32.xlu0 %v8617
          %v8642 = vpop.xlane.xlu0 %8641
          %8643 = vmax.xlane.f32.xlu0 %v8618
          %v8644 = vpop.xlane.xlu0 %8643
          %8645 = vmax.xlane.f32.xlu0 %v8619
          %v8646 = vpop.xlane.xlu0 %8645
          %8647 = vmax.xlane.f32.xlu0 %v8620
          %v8648 = vpop.xlane.xlu0 %8647
          %8649 = vmax.xlane.f32.xlu0 %v8621
          %v8650 = vpop.xlane.xlu0 %8649
          %8651 = vmax.xlane.f32.xlu0 %v8622
          %v8652 = vpop.xlane.xlu0 %8651
          %8653 = vmax.xlane.f32.xlu0 %v8623
          %v8654 = vpop.xlane.xlu0 %8653
          %8655 = vmax.xlane.f32.xlu0 %v8624
          %v8656 = vpop.xlane.xlu0 %8655
          %s8657 = smul.u32 %s551, 2
          %s8658 = scalar_lea.vmem %s453, %s8657 [#allocation6]
          %v8659 = vld [vmem:[%s8658] sm:$0x3]
          %vm8660 = vcmp.gt.f32.partialorder %v8659, 0.5
          %v8677 = vlaneseq
          %v8678 = vshrl.u32 %v8677, 7
          %v8679 = vsub.s32 %v548, %v8678
          %v8680 = vrot.slane %v8626, %v8679
          %v8681 = vadd.s32 %v548, 4294967288
          %v8682 = vlaneseq
          %v8683 = vshrl.u32 %v8682, 7
          %v8684 = vsub.s32 %v8681, %v8683
          %v8685 = vrot.slane %v8628, %v8684
          %vm8686 = vcmask 130112
          %v8687 = vsel %vm8686, %v8685, %v8680
          %v8688 = vadd.s32 %v548, 4294967280
          %v8689 = vlaneseq
          %v8690 = vshrl.u32 %v8689, 7
          %v8691 = vsub.s32 %v8688, %v8690
          %v8692 = vrot.slane %v8630, %v8691
          %vm8693 = vcmask 195712
          %v8694 = vsel %vm8693, %v8692, %v8687
          %v8695 = vadd.s32 %v548, 4294967272
          %v8696 = vlaneseq
          %v8697 = vshrl.u32 %v8696, 7
          %v8698 = vsub.s32 %v8695, %v8697
          %v8699 = vrot.slane %v8632, %v8698
          %vm8700 = vcmask 261312
          %v8701 = vsel %vm8700, %v8699, %v8694
          %v8702 = vadd.s32 %v548, 4294967264
          %v8703 = vlaneseq
          %v8704 = vshrl.u32 %v8703, 7
          %v8705 = vsub.s32 %v8702, %v8704
          %v8706 = vrot.slane %v8634, %v8705
          %vm8707 = vcmask 326912
          %v8708 = vsel %vm8707, %v8706, %v8701
          %v8709 = vadd.s32 %v548, 4294967256
          %v8710 = vlaneseq
          %v8711 = vshrl.u32 %v8710, 7
          %v8712 = vsub.s32 %v8709, %v8711
          %v8713 = vrot.slane %v8636, %v8712
          %vm8714 = vcmask 392512
          %v8715 = vsel %vm8714, %v8713, %v8708
          %v8716 = vadd.s32 %v548, 4294967248
          %v8717 = vlaneseq
          %v8718 = vshrl.u32 %v8717, 7
          %v8719 = vsub.s32 %v8716, %v8718
          %v8720 = vrot.slane %v8638, %v8719
          %vm8721 = vcmask 458112
          %v8722 = vsel %vm8721, %v8720, %v8715
          %v8723 = vadd.s32 %v548, 4294967240
          %v8724 = vlaneseq
          %v8725 = vshrl.u32 %v8724, 7
          %v8726 = vsub.s32 %v8723, %v8725
          %v8727 = vrot.slane %v8640, %v8726
          %vm8728 = vcmask 523712
          %v8729 = vsel %vm8728, %v8727, %v8722
          %v8730 = vlaneseq
          %v8731 = vshrl.u32 %v8730, 7
          %v8732 = vsub.s32 %v548, %v8731
          %v8733 = vrot.slane %v8642, %v8732
          %v8734 = vlaneseq
          %v8735 = vshrl.u32 %v8734, 7
          %v8736 = vsub.s32 %v8681, %v8735
          %v8737 = vrot.slane %v8644, %v8736
          %v8738 = vsel %vm8686, %v8737, %v8733
          %v8739 = vlaneseq
          %v8740 = vshrl.u32 %v8739, 7
          %v8741 = vsub.s32 %v8688, %v8740
          %v8742 = vrot.slane %v8646, %v8741
          %v8743 = vsel %vm8693, %v8742, %v8738
          %v8744 = vlaneseq
          %v8745 = vshrl.u32 %v8744, 7
          %v8746 = vsub.s32 %v8695, %v8745
          %v8747 = vrot.slane %v8648, %v8746
          %v8748 = vsel %vm8700, %v8747, %v8743
          %v8749 = vlaneseq
          %v8750 = vshrl.u32 %v8749, 7
          %v8751 = vsub.s32 %v8702, %v8750
          %v8752 = vrot.slane %v8650, %v8751
          %v8753 = vsel %vm8707, %v8752, %v8748
          %v8754 = vlaneseq
          %v8755 = vshrl.u32 %v8754, 7
          %v8756 = vsub.s32 %v8709, %v8755
          %v8757 = vrot.slane %v8652, %v8756
          %v8758 = vsel %vm8714, %v8757, %v8753
          %v8759 = vlaneseq
          %v8760 = vshrl.u32 %v8759, 7
          %v8761 = vsub.s32 %v8716, %v8760
          %v8762 = vrot.slane %v8654, %v8761
          %v8763 = vsel %vm8721, %v8762, %v8758
          %v8764 = vlaneseq
          %v8765 = vshrl.u32 %v8764, 7
          %v8766 = vsub.s32 %v8723, %v8765
          %v8767 = vrot.slane %v8656, %v8766
          %v8768 = vsel %vm8728, %v8767, %v8763
          %vm8769 = vcmask 1041409
          %v8770 = vsel %vm8769, %v8768, %v8729
          %v8772 = vsel %vm8660, %v8770, -1e+13
          %vm8773 = vcmask 517120
          %v8774 = vsel %vm8773, %v8772, -inf
          %8775 = vmax.xlane.f32.xlu0 %v8774
          %v8776 = vpop.xlane.xlu0 %8775
          %v8777 = vsub.f32 %v8772, %v8776
          %v8778 = vmul.f32 %v8777, 1.442695
          %v8779 = vpow.pop %v8778
          %v8780 = vsel %vm8773, %v8779, 0.0
          %8781 = vadd.xlane.f32.xlu0 %v8780
          %v8782 = vpop.xlane.xlu0 %8781
          %v8783 = vrcp.pop %v8782
          %v8784 = vmul.f32 %v8779, %v8783
          %v8785 = vlaneseq
          %v8786 = vshrl.u32 %v8785, 7
          %v8787 = vsub.s32 0, %v8786
          %v8788 = vrot.slane %v8784, %v8787
          %8790 = vbcast.lane.b32.xlu0 %v8788, 256
          %v8791 = vpop.permute.xlu0 %8790
          %s8793 = sor.u32 256, 8
          %8794 = vbcast.lane.b32.xlu0 %v8788, %s8793
          %v8795 = vpop.permute.xlu0 %8794
          %s8797 = sor.u32 256, 16
          %8798 = vbcast.lane.b32.xlu0 %v8788, %s8797
          %v8799 = vpop.permute.xlu0 %8798
          %s8801 = sor.u32 256, 24
          %8802 = vbcast.lane.b32.xlu0 %v8788, %s8801
          %v8803 = vpop.permute.xlu0 %8802
          %s8805 = sor.u32 256, 32
          %8806 = vbcast.lane.b32.xlu0 %v8788, %s8805
          %v8807 = vpop.permute.xlu0 %8806
          %s8809 = sor.u32 256, 40
          %8810 = vbcast.lane.b32.xlu0 %v8788, %s8809
          %v8811 = vpop.permute.xlu0 %8810
          %s8813 = sor.u32 256, 48
          %8814 = vbcast.lane.b32.xlu0 %v8788, %s8813
          %v8815 = vpop.permute.xlu0 %8814
          %s8817 = sor.u32 256, 56
          %8818 = vbcast.lane.b32.xlu0 %v8788, %s8817
          %v8819 = vpop.permute.xlu0 %8818
          %v8820 = vlaneseq
          %v8821 = vshrl.u32 %v8820, 7
          %v8822 = vsub.s32 1, %v8821
          %v8823 = vrot.slane %v8784, %v8822
          %8825 = vbcast.lane.b32.xlu0 %v8823, 256
          %v8826 = vpop.permute.xlu0 %8825
          %s8828 = sor.u32 256, 8
          %8829 = vbcast.lane.b32.xlu0 %v8823, %s8828
          %v8830 = vpop.permute.xlu0 %8829
          %s8832 = sor.u32 256, 16
          %8833 = vbcast.lane.b32.xlu0 %v8823, %s8832
          %v8834 = vpop.permute.xlu0 %8833
          %s8836 = sor.u32 256, 24
          %8837 = vbcast.lane.b32.xlu0 %v8823, %s8836
          %v8838 = vpop.permute.xlu0 %8837
          %s8840 = sor.u32 256, 32
          %8841 = vbcast.lane.b32.xlu0 %v8823, %s8840
          %v8842 = vpop.permute.xlu0 %8841
          %s8844 = sor.u32 256, 40
          %8845 = vbcast.lane.b32.xlu0 %v8823, %s8844
          %v8846 = vpop.permute.xlu0 %8845
          %s8848 = sor.u32 256, 48
          %8849 = vbcast.lane.b32.xlu0 %v8823, %s8848
          %v8850 = vpop.permute.xlu0 %8849
          %s8852 = sor.u32 256, 56
          %8853 = vbcast.lane.b32.xlu0 %v8823, %s8852
          %v8854 = vpop.permute.xlu0 %8853
          %v8855 = vmul.f32 %v784, %v8791
          %v8856 = vmul.f32 %v785, %v8795
          %v8857 = vmul.f32 %v786, %v8799
          %v8858 = vmul.f32 %v787, %v8803
          %v8859 = vmul.f32 %v788, %v8807
          %v8860 = vmul.f32 %v789, %v8811
          %v8861 = vmul.f32 %v790, %v8815
          %v8862 = vmul.f32 %v791, %v8819
          %v8863 = vmul.f32 %v792, %v8826
          %v8864 = vmul.f32 %v793, %v8830
          %v8865 = vmul.f32 %v794, %v8834
          %v8866 = vmul.f32 %v795, %v8838
          %v8867 = vmul.f32 %v796, %v8842
          %v8868 = vmul.f32 %v797, %v8846
          %v8869 = vmul.f32 %v798, %v8850
          %v8870 = vmul.f32 %v799, %v8854
          %v8871 = vadd.f32 %v8855, %v8856
          %v8872 = vadd.f32 %v8871, %v8857
          %v8873 = vadd.f32 %v8872, %v8858
          %v8874 = vadd.f32 %v8873, %v8859
          %v8875 = vadd.f32 %v8874, %v8860
          %v8876 = vadd.f32 %v8875, %v8861
          %v8877 = vadd.f32 %v8876, %v8862
          %v8878 = vrot.slane %v8877, 4
          %v8879 = vadd.f32 %v8877, %v8878
          %v8880 = vrot.slane %v8879, 2
          %v8881 = vadd.f32 %v8879, %v8880
          %v8882 = vrot.slane %v8881, 1
          %v8883 = vadd.f32 %v8881, %v8882
          %v8884 = vadd.f32 %v8863, %v8864
          %v8885 = vadd.f32 %v8884, %v8865
          %v8886 = vadd.f32 %v8885, %v8866
          %v8887 = vadd.f32 %v8886, %v8867
          %v8888 = vadd.f32 %v8887, %v8868
          %v8889 = vadd.f32 %v8888, %v8869
          %v8890 = vadd.f32 %v8889, %v8870
          %v8891 = vrot.slane %v8890, 4
          %v8892 = vadd.f32 %v8890, %v8891
          %v8893 = vrot.slane %v8892, 2
          %v8894 = vadd.f32 %v8892, %v8893
          %v8895 = vrot.slane %v8894, 1
          %v8896 = vadd.f32 %v8894, %v8895
          %v8897 = vld [vmem:[#allocation14] sm:$0xff]
          %v8898 = vld [vmem:[#allocation14 + $0x8] sm:$0xff]
          %v8899 = vld [vmem:[#allocation14 + $0x10] sm:$0xff]
          %v8900 = vld [vmem:[#allocation14 + $0x18] sm:$0xff]
          %v8901 = vld [vmem:[#allocation14 + $0x20] sm:$0xff]
          %v8902 = vld [vmem:[#allocation14 + $0x28] sm:$0xff]
          %v8903 = vld [vmem:[#allocation14 + $0x30] sm:$0xff]
          %v8904 = vld [vmem:[#allocation14 + $0x38] sm:$0xff]
          %v8905 = vld [vmem:[#allocation14 + $0x40] sm:$0xff]
          %v8906 = vld [vmem:[#allocation14 + $0x48] sm:$0xff]
          %v8907 = vld [vmem:[#allocation14 + $0x50] sm:$0xff]
          %v8908 = vld [vmem:[#allocation14 + $0x58] sm:$0xff]
          %v8909 = vld [vmem:[#allocation14 + $0x60] sm:$0xff]
          %v8910 = vld [vmem:[#allocation14 + $0x68] sm:$0xff]
          %v8911 = vld [vmem:[#allocation14 + $0x70] sm:$0xff]
          %v8912 = vld [vmem:[#allocation14 + $0x78] sm:$0xff]
          %v8913 = vld [vmem:[#allocation15] sm:$0x1]
          %v8915 = vlaneseq
          %v8916 = vshrl.u32 %v8915, 7
          %v8917 = vsub.s32 0, %v8916
          %v8918 = vrot.slane %v8913, %v8917
          %v8922 = vsel %vm8769, %v8896, %v8883
          %8924 = vmatprep.subr.mxu0 0.0
          %8925 = vmatpush1.msra.mxu0 %v8897
          %8926 = vmatprep.subr.mxu0 0.0
          %8927 = vmatpush1.msra.mxu0 %v8898
          %8928 = vmatprep.subr.mxu0 0.0
          %8929 = vmatpush1.msra.mxu0 %v8899
          %8930 = vmatprep.subr.mxu0 0.0
          %8931 = vmatpush1.msra.mxu0 %v8900
          %8932 = vmatprep.subr.mxu0 0.0
          %8933 = vmatpush1.msra.mxu0 %v8901
          %8934 = vmatprep.subr.mxu0 0.0
          %8935 = vmatpush1.msra.mxu0 %v8902
          %8936 = vmatprep.subr.mxu0 0.0
          %8937 = vmatpush1.msra.mxu0 %v8903
          %8938 = vmatprep.subr.mxu0 0.0
          %8939 = vmatpush1.msra.mxu0 %v8904
          %8940 = vmatprep.subr.mxu0 0.0
          %8941 = vmatpush1.msra.mxu0 %v8905
          %8942 = vmatprep.subr.mxu0 0.0
          %8943 = vmatpush1.msra.mxu0 %v8906
          %8944 = vmatprep.subr.mxu0 0.0
          %8945 = vmatpush1.msra.mxu0 %v8907
          %8946 = vmatprep.subr.mxu0 0.0
          %8947 = vmatpush1.msra.mxu0 %v8908
          %8948 = vmatprep.subr.mxu0 0.0
          %8949 = vmatpush1.msra.mxu0 %v8909
          %8950 = vmatprep.subr.mxu0 0.0
          %8951 = vmatpush1.msra.mxu0 %v8910
          %8952 = vmatprep.subr.mxu0 0.0
          %8953 = vmatpush1.msra.mxu0 %v8911
          %8954 = vmatprep.subr.mxu0 0.0
          %8955 = vmatpush1.msra.mxu0 %v8912
          %8956 = vmatprep.subr.mxu0 0.0
          %8957 = vmatpush1.msra.mxu0 0.0
          %8958 = vmatprep.subr.mxu0 0.0
          %8959 = vmatpush1.msra.mxu0 0.0
          %8960 = vmatprep.subr.mxu0 0.0
          %8961 = vmatpush1.msra.mxu0 0.0
          %8962 = vmatprep.subr.mxu0 0.0
          %8963 = vmatpush1.msra.mxu0 0.0
          %8964 = vmatprep.subr.mxu0 0.0
          %8965 = vmatpush1.msra.mxu0 0.0
          %8966 = vmatprep.subr.mxu0 0.0
          %8967 = vmatpush1.msra.mxu0 0.0
          %8968 = vmatprep.subr.mxu0 0.0
          %8969 = vmatpush1.msra.mxu0 0.0
          %8970 = vmatprep.subr.mxu0 0.0
          %8971 = vmatpush1.msra.mxu0 0.0
          %8972 = vmatprep.subr.mxu0 0.0
          %8973 = vmatpush1.msra.mxu0 0.0
          %8974 = vmatprep.subr.mxu0 0.0
          %8975 = vmatpush1.msra.mxu0 0.0
          %8976 = vmatprep.subr.mxu0 0.0
          %8977 = vmatpush1.msra.mxu0 0.0
          %8978 = vmatprep.subr.mxu0 0.0
          %8979 = vmatpush1.msra.mxu0 0.0
          %8980 = vmatprep.subr.mxu0 0.0
          %8981 = vmatpush1.msra.mxu0 0.0
          %8982 = vmatprep.subr.mxu0 0.0
          %8983 = vmatpush1.msra.mxu0 0.0
          %8984 = vmatprep.subr.mxu0 0.0
          %8985 = vmatpush1.msra.mxu0 0.0
          %8986 = vmatprep.subr.mxu0 0.0
          %8987 = vmatpush1.msra.mxu0 0.0
          %8988 = vmatprep.mubr.f32.mxu0 0.0
          %8989 = vmatmul.mubr.f32.gmra.mrb[0].mxu0 %v8922
          %v8990 = vpop.f32.mrb[0].mxu0
          %v8991 = vadd.f32 %v8918, %v8990
          %v8992 = vpop.f32.mrb[0].mxu0
          %8993 = vdwg.mxu0
          %v8994 = vmax.f32 %v8991, 0.0
          %v8995 = vld [vmem:[#allocation17] sm:$0xff]
          %v8996 = vld [vmem:[#allocation17 + $0x8] sm:$0xff]
          %v8997 = vld [vmem:[#allocation17 + $0x10] sm:$0xff]
          %v8998 = vld [vmem:[#allocation17 + $0x18] sm:$0xff]
          %v8999 = vld [vmem:[#allocation17 + $0x20] sm:$0xff]
          %v9000 = vld [vmem:[#allocation17 + $0x28] sm:$0xff]
          %v9001 = vld [vmem:[#allocation17 + $0x30] sm:$0xff]
          %v9002 = vld [vmem:[#allocation17 + $0x38] sm:$0xff]
          %v9003 = vld [vmem:[#allocation17 + $0x40] sm:$0xff]
          %v9004 = vld [vmem:[#allocation17 + $0x48] sm:$0xff]
          %v9005 = vld [vmem:[#allocation17 + $0x50] sm:$0xff]
          %v9006 = vld [vmem:[#allocation17 + $0x58] sm:$0xff]
          %v9007 = vld [vmem:[#allocation17 + $0x60] sm:$0xff]
          %v9008 = vld [vmem:[#allocation17 + $0x68] sm:$0xff]
          %v9009 = vld [vmem:[#allocation17 + $0x70] sm:$0xff]
          %v9010 = vld [vmem:[#allocation17 + $0x78] sm:$0xff]
          %v9011 = vld [vmem:[#allocation18] sm:$0x1]
          %v9013 = vlaneseq
          %v9014 = vshrl.u32 %v9013, 7
          %v9015 = vsub.s32 0, %v9014
          %v9016 = vrot.slane %v9011, %v9015
          %9018 = vmatprep.subr.mxu0 0.0
          %9019 = vmatpush1.msra.mxu0 %v8995
          %9020 = vmatprep.subr.mxu0 0.0
          %9021 = vmatpush1.msra.mxu0 %v8996
          %9022 = vmatprep.subr.mxu0 0.0
          %9023 = vmatpush1.msra.mxu0 %v8997
          %9024 = vmatprep.subr.mxu0 0.0
          %9025 = vmatpush1.msra.mxu0 %v8998
          %9026 = vmatprep.subr.mxu0 0.0
          %9027 = vmatpush1.msra.mxu0 %v8999
          %9028 = vmatprep.subr.mxu0 0.0
          %9029 = vmatpush1.msra.mxu0 %v9000
          %9030 = vmatprep.subr.mxu0 0.0
          %9031 = vmatpush1.msra.mxu0 %v9001
          %9032 = vmatprep.subr.mxu0 0.0
          %9033 = vmatpush1.msra.mxu0 %v9002
          %9034 = vmatprep.subr.mxu0 0.0
          %9035 = vmatpush1.msra.mxu0 %v9003
          %9036 = vmatprep.subr.mxu0 0.0
          %9037 = vmatpush1.msra.mxu0 %v9004
          %9038 = vmatprep.subr.mxu0 0.0
          %9039 = vmatpush1.msra.mxu0 %v9005
          %9040 = vmatprep.subr.mxu0 0.0
          %9041 = vmatpush1.msra.mxu0 %v9006
          %9042 = vmatprep.subr.mxu0 0.0
          %9043 = vmatpush1.msra.mxu0 %v9007
          %9044 = vmatprep.subr.mxu0 0.0
          %9045 = vmatpush1.msra.mxu0 %v9008
          %9046 = vmatprep.subr.mxu0 0.0
          %9047 = vmatpush1.msra.mxu0 %v9009
          %9048 = vmatprep.subr.mxu0 0.0
          %9049 = vmatpush1.msra.mxu0 %v9010
          %9050 = vmatprep.subr.mxu0 0.0
          %9051 = vmatpush1.msra.mxu0 0.0
          %9052 = vmatprep.subr.mxu0 0.0
          %9053 = vmatpush1.msra.mxu0 0.0
          %9054 = vmatprep.subr.mxu0 0.0
          %9055 = vmatpush1.msra.mxu0 0.0
          %9056 = vmatprep.subr.mxu0 0.0
          %9057 = vmatpush1.msra.mxu0 0.0
          %9058 = vmatprep.subr.mxu0 0.0
          %9059 = vmatpush1.msra.mxu0 0.0
          %9060 = vmatprep.subr.mxu0 0.0
          %9061 = vmatpush1.msra.mxu0 0.0
          %9062 = vmatprep.subr.mxu0 0.0
          %9063 = vmatpush1.msra.mxu0 0.0
          %9064 = vmatprep.subr.mxu0 0.0
          %9065 = vmatpush1.msra.mxu0 0.0
          %9066 = vmatprep.subr.mxu0 0.0
          %9067 = vmatpush1.msra.mxu0 0.0
          %9068 = vmatprep.subr.mxu0 0.0
          %9069 = vmatpush1.msra.mxu0 0.0
          %9070 = vmatprep.subr.mxu0 0.0
          %9071 = vmatpush1.msra.mxu0 0.0
          %9072 = vmatprep.subr.mxu0 0.0
          %9073 = vmatpush1.msra.mxu0 0.0
          %9074 = vmatprep.subr.mxu0 0.0
          %9075 = vmatpush1.msra.mxu0 0.0
          %9076 = vmatprep.subr.mxu0 0.0
          %9077 = vmatpush1.msra.mxu0 0.0
          %9078 = vmatprep.subr.mxu0 0.0
          %9079 = vmatpush1.msra.mxu0 0.0
          %9080 = vmatprep.subr.mxu0 0.0
          %9081 = vmatpush1.msra.mxu0 0.0
          %9082 = vmatprep.mubr.f32.mxu0 0.0
          %9083 = vmatmul.mubr.f32.gmra.mrb[0].mxu0 %v8994
          %v9084 = vpop.f32.mrb[0].mxu0
          %v9085 = vadd.f32 %v9016, %v9084
          %v9086 = vpop.f32.mrb[0].mxu0
          %9087 = vdwg.mxu0
          %s9088 = scalar_lea.vmem %s526, %s8657 [#allocation20]
          %9089 = vst [vmem:[%s9088] sm:$0x3] %v9085
        $region105: #{tpu_custom_call.1} parent=59 // loop_footer
          %s555 = sadd.s32 1, %s551
        $region106: #{tpu_custom_call.1} parent=59 // loop_footer_branch
          %550 = sbr.rel target = $region102
        $region107: #{tpu_custom_call.1} parent=59 // loop_exit
          _
        %s9090 = sand.u32 %s262, 1
        %s9091 = scalar_lea.sflag [#allocation5], %s9090
        %s9092 = sand.u32 %s262, 1
        %s9093 = smul.addr %s9092, 8
        %s9094 = scalar_lea.vmem [#allocation20], %s9093
        // Predicated region
        $region108: #{tpu_custom_call.1} parent=59 // pred_check
          %p9095 = pneg %p272
        $region109: #{tpu_custom_call.1} parent=59 // pred_check_branch
          %9097 = sbr.rel (%p9095) target = $region111
        $region110: #{tpu_custom_call.1} parent=59 // pred_region
          %s9098 = smul.u32 4, %s34
          %s9100 = ssub.s32 128, 128
          %9101 = vsyncadd %s9091, %s9100
          %s9102 = smul.addr %s9098, 32
          %s9103 = scalar_lea.hbm %s10, %s9102
          %s9104 = sshll.u32 %s9094, 4
          %s9105 = int_to_ptr.vmem [resolvable:$true] %s9104
          %9110 = dma.vmem_to_hbm [thread:$0]  %s9105, 128, %s9103, %s9091, 32, 32, 2
        $region111: #{tpu_custom_call.1} parent=59 // pred_fallthru
          _
      $region60: #{tpu_custom_call.1} parent=5 // pred_fallthru
        _
      %p9111 = scmp.le.s32.totalorder 2, %s29
      // Predicated region
      $region112: #{tpu_custom_call.1} parent=5 // pred_check
        %p9112 = pneg %p9111
      $region113: #{tpu_custom_call.1} parent=5 // pred_check_branch
        %9114 = sbr.rel (%p9112) target = $region115
      $region114: #{tpu_custom_call.1} parent=5 // pred_region
        %s9115 = ssub.s32 %s29, 2
        // Predicated region
        $region116: #{tpu_custom_call.1} parent=114 // pred_check
          %p9116 = pneg %p278
        $region117: #{tpu_custom_call.1} parent=114 // pred_check_branch
          %9118 = sbr.rel (%p9116) target = $region119
        $region118: #{tpu_custom_call.1} parent=114 // pred_region
          %s9119 = sand.u32 %s263, 1
          %s9120 = scalar_lea.sflag [#allocation5], %s9119
          %s9121 = sand.u32 %s263, 1
          %s9122 = smul.addr %s9121, 8
          %s9123 = scalar_lea.vmem [#allocation20], %s9122
          %9124 = dma.done %s9120, 128
        $region119: #{tpu_custom_call.1} parent=114 // pred_fallthru
          _
      $region115: #{tpu_custom_call.1} parent=5 // pred_fallthru
        _
    $region6: #{tpu_custom_call.1} parent=1 // loop_footer
      %s33 = sadd.s32 1, %s29
    $region7: #{tpu_custom_call.1} parent=1 // loop_footer_branch
      %28 = sbr.rel target = $region3
    $region8: #{tpu_custom_call.1} parent=1 // loop_exit
      _
    %9125 = vsyncpa [#allocation4], 1
    %s9126 = scalar_lea.sflag [#allocation4], 1
    %9127 = vsyncpa %s9126, 1
    %9128 = vsyncpa [#allocation7], 1
    %s9129 = scalar_lea.sflag [#allocation7], 1
    %9130 = vsyncpa %s9129, 1
    %9131 = vsyncpa [#allocation10], 1
    %9132 = vsyncpa [#allocation13], 1
    %9133 = vsyncpa [#allocation16], 1
    %9134 = vsyncpa [#allocation19], 1
    %9135 = vsyncpa [#allocation5], 1
    %s9136 = scalar_lea.sflag [#allocation5], 1
    %9137 = vsyncpa %s9136, 1

</llo_original>
